<compile_context>
chip_gen: v6e
topology: v6e:2x2x1
jax: 0.10.0
libtpu: 0.0.40
codegen_flags: <defaults>
</compile_context>

<pallas_src>
import functools

import jax
import jax.numpy as jnp
from jax import lax
from jax.experimental import pallas as pl
from jax.experimental.pallas import tpu as pltpu


_TIME_CHUNK = 16  # timesteps per grid step (inner unrolled loop)


def _round_up(x, m):
    return ((x + m - 1) // m) * m


def _pick_tile(dim, target, base):
    """Largest multiple of `base` <= target that divides dim (dims are pre-padded)."""
    if dim <= base:
        return dim
    t = min(target, dim)
    t -= t % base
    while t > base and dim % t:
        t -= base
    return t if (t > 0 and dim % t == 0) else dim


# ----------------------- tiled matmul + bias (MXU) kernel --------------------------
def _matmul_bias_kernel(a_ref, b_ref, bias_ref, o_ref, acc_ref):
    @pl.when(pl.program_id(2) == 0)
    def _():
        acc_ref[...] = jnp.zeros_like(acc_ref)

    acc_ref[...] += jnp.dot(a_ref[...], b_ref[...],
                            preferred_element_type=jnp.float32)

    @pl.when(pl.program_id(2) == pl.num_programs(2) - 1)
    def _():
        o_ref[...] = (acc_ref[...] + bias_ref[...]).astype(o_ref.dtype)


def matmul_bias(a, b, bias, *, tm=256, tn=512, tk=512):
    """a: (M, K) bf16, b: (K, N) bf16, bias: (1, N) f32 -> (M, N) f32."""
    M, K = a.shape
    _, N = b.shape
    tm = _pick_tile(M, tm, 8)
    tn = _pick_tile(N, tn, 128)
    tk = _pick_tile(K, tk, 128)
    return pl.pallas_call(
        _matmul_bias_kernel,
        out_shape=jax.ShapeDtypeStruct((M, N), jnp.float32),
        grid=(M // tm, N // tn, K // tk),
        in_specs=[
            pl.BlockSpec((tm, tk), lambda i, j, k: (i, k)),
            pl.BlockSpec((tk, tn), lambda i, j, k: (k, j)),
            pl.BlockSpec((1, tn), lambda i, j, k: (0, j)),
        ],
        out_specs=pl.BlockSpec((tm, tn), lambda i, j, k: (i, j)),
        scratch_shapes=[pltpu.VMEM((tm, tn), jnp.float32)],
        compiler_params=pltpu.CompilerParams(
            dimension_semantics=("parallel", "parallel", "arbitrary")),
    )(a, b, bias)


# --------------------------- recurrent LSTM chunk kernel ----------------------------
def _lstm_chunk_kernel(len_ref, gin_ref, whh_ref, y_ref, hn_ref, cn_ref, h_sc, c_sc):
    """Grid = (batch_blocks, time_chunks).  Only the recurrent h @ W_hh runs here.

    len_ref: (BB, 1)          int32 sequence lengths
    gin_ref: (TS, BB, 4H)     precomputed x @ W_ih + bias for this chunk (f32)
    whh_ref: (H, 4H)          transposed hidden->hidden weights (bf16, gate order i,f,g,o)
    y_ref  : (TS, BB, H)      outputs (zero where padded)
    hn_ref : (BB, H)          final hidden state (state at last valid step)
    cn_ref : (BB, H)          final cell state
    h_sc/c_sc : (BB, H) f32   recurrent state carried across time chunks
    """
    chunk = pl.program_id(1)
    n_chunks = pl.num_programs(1)
    ts = gin_ref.shape[0]
    hsz = h_sc.shape[-1]

    @pl.when(chunk == 0)
    def _():
        h_sc[...] = jnp.zeros_like(h_sc)
        c_sc[...] = jnp.zeros_like(c_sc)

    lengths = len_ref[...]          # (BB, 1) int32
    t0 = chunk * ts

    def step(s, carry):
        h_prev, c_prev = carry
        gates = gin_ref[s] + jnp.dot(h_prev.astype(jnp.bfloat16), whh_ref[...],
                                     preferred_element_type=jnp.float32)
        i_g = jax.nn.sigmoid(gates[:, 0 * hsz:1 * hsz])
        f_g = jax.nn.sigmoid(gates[:, 1 * hsz:2 * hsz])
        g_g = jnp.tanh(gates[:, 2 * hsz:3 * hsz])
        o_g = jax.nn.sigmoid(gates[:, 3 * hsz:4 * hsz])

        c_new = f_g * c_prev + i_g * g_g
        h_new = o_g * jnp.tanh(c_new)

        valid = (t0 + s) < lengths                         # (BB, 1) bool
        h_next = jnp.where(valid, h_new, h_prev)
        c_next = jnp.where(valid, c_new, c_prev)
        y_ref[s] = jnp.where(valid, h_new, jnp.zeros_like(h_new))
        return h_next, c_next

    h_fin, c_fin = lax.fori_loop(0, ts, step, (h_sc[...], c_sc[...]), unroll=True)
    h_sc[...] = h_fin
    c_sc[...] = c_fin

    @pl.when(chunk == n_chunks - 1)
    def _():
        hn_ref[...] = h_fin
        cn_ref[...] = c_fin


def lstm_recurrent_pallas(gates_in, lengths_b1, w_hh_t, *, ts, bb):
    """gates_in: (T_pad, B_pad, 4H_pad) f32 -> (y (T,B,H), h_n (B,H), c_n (B,H))."""
    T_pad, B_pad, G = gates_in.shape
    H = w_hh_t.shape[0]
    return pl.pallas_call(
        _lstm_chunk_kernel,
        out_shape=(
            jax.ShapeDtypeStruct((T_pad, B_pad, H), jnp.float32),
            jax.ShapeDtypeStruct((B_pad, H), jnp.float32),
            jax.ShapeDtypeStruct((B_pad, H), jnp.float32),
        ),
        grid=(B_pad // bb, T_pad // ts),
        in_specs=[
            pl.BlockSpec((bb, 1), lambda b, c: (b, 0)),
            pl.BlockSpec((ts, bb, G), lambda b, c: (c, b, 0)),
            pl.BlockSpec((H, G), lambda b, c: (0, 0)),
        ],
        out_specs=(
            pl.BlockSpec((ts, bb, H), lambda b, c: (c, b, 0)),
            pl.BlockSpec((bb, H), lambda b, c: (b, 0)),
            pl.BlockSpec((bb, H), lambda b, c: (b, 0)),
        ),
        scratch_shapes=[pltpu.VMEM((bb, H), jnp.float32),
                        pltpu.VMEM((bb, H), jnp.float32)],
        compiler_params=pltpu.CompilerParams(
            dimension_semantics=("parallel", "arbitrary")),
    )(lengths_b1, gates_in, w_hh_t)


# --------------------------------- Full forward -------------------------------------
def rnn_forward(params, input_ids, lengths, *, t_max, vocab_size, hidden_size):
    """Replicates RNN.forward(input_ids, lengths, hiddens=None).

    input_ids: (B, T) int32, lengths: (B,) int32 (sorted descending).
    Returns (logits (B, t_max, V), (h_n (L, B, H), c_n (L, B, H))).
    """
    B, T = input_ids.shape
    emb_tbl = params["emb"]                         # (V, D_pad) f32
    H_pad = params["lstm"][0]["w_hh_t"].shape[0]
    V_pad = params["lin_w_t"].shape[1]

    ts = _TIME_CHUNK
    B_pad = _round_up(B, 8)
    T_pad = _round_up(max(T, 1), ts)
    bb = _pick_tile(B_pad, 256, 8)

    # Embedding gather, directly time-major (no separate transpose pass).
    ids_tm = jnp.transpose(input_ids, (1, 0))
    ids_tm = jnp.pad(ids_tm, ((0, T_pad - T), (0, B_pad - B)))
    x = jnp.take(emb_tbl, ids_tm, axis=0).astype(jnp.bfloat16)   # (T_pad, B_pad, D_pad)

    len_pad = jnp.pad(lengths.astype(jnp.int32), (0, B_pad - B))[:, None]  # (B_pad, 1)

    M = T_pad * B_pad
    h_list, c_list = [], []
    for layer in params["lstm"]:
        G = layer["w_ih_t"].shape[1]                # 4 * H_pad
        # Hoisted, non-recurrent input projection: one big MXU matmul.
        gin = matmul_bias(x.reshape(M, x.shape[-1]), layer["w_ih_t"], layer["bias"])
        gin = gin.reshape(T_pad, B_pad, G)
        y, h_n, c_n = lstm_recurrent_pallas(gin, len_pad, layer["w_hh_t"], ts=ts, bb=bb)
        h_list.append(h_n[:B, :hidden_size])
        c_list.append(c_n[:B, :hidden_size])
        x = y.astype(jnp.bfloat16)
        # eval-mode dropout == identity (see TODO at top)

    # Final Linear (tiled matmul), then back to batch-first and strip padding.
    logits = matmul_bias(x.reshape(M, H_pad), params["lin_w_t"], params["lin_b"])
    logits = logits.reshape(T_pad, B_pad, V_pad)
    logits = jnp.transpose(logits, (1, 0, 2))[:B, :t_max, :vocab_size]

    h_n = jnp.stack(h_list, axis=0)                 # (L, B, H)
    c_n = jnp.stack(c_list, axis=0)
    return logits, (h_n, c_n)


# --------------------------------- Param init ----------------------------------------
def _pad_gates(w, H, H_pad, d_in, d_pad):
    """(4H, d_in) PyTorch layout -> (d_pad, 4*H_pad), each gate block lane-aligned."""
    w4 = w.reshape(4, H, d_in)
    w4 = jnp.pad(w4, ((0, 0), (0, H_pad - H), (0, d_pad - d_in)))
    return jnp.transpose(w4.reshape(4 * H_pad, d_pad), (1, 0))


def _pad_gate_bias(b, H, H_pad):
    b4 = jnp.pad(b.reshape(4, H), ((0, 0), (0, H_pad - H)))
    return b4.reshape(1, 4 * H_pad)


def init_params(key, vocab_size, num_layers, hidden_size, pad_token_ids):
    V, H = vocab_size, hidden_size
    D_pad = _round_up(V, 128)
    H_pad = _round_up(H, 128)
    V_pad = _round_up(V, 128)
    k = 1.0 / (H ** 0.5)
    keys = jax.random.split(key, 4 * num_layers + 3)
    ki = iter(keys)

    emb = jax.random.normal(next(ki), (V, V), jnp.float32)
    emb = emb.at[pad_token_ids].set(0.0)                       # padding_idx row = 0
    emb = jnp.pad(emb, ((0, 0), (0, D_pad - V)))               # (V, D_pad)

    lstm = []
    d_in, d_pad = V, D_pad
    for _ in range(num_layers):
        w_ih = jax.random.uniform(next(ki), (4 * H, d_in), jnp.float32, -k, k)
        w_hh = jax.random.uniform(next(ki), (4 * H, H), jnp.float32, -k, k)
        b_ih = jax.random.uniform(next(ki), (4 * H,), jnp.float32, -k, k)
        b_hh = jax.random.uniform(next(ki), (4 * H,), jnp.float32, -k, k)
        lstm.append({
            "w_ih_t": _pad_gates(w_ih, H, H_pad, d_in, d_pad).astype(jnp.bfloat16),
            "w_hh_t": _pad_gates(w_hh, H, H_pad, H, H_pad).astype(jnp.bfloat16),
            "bias": _pad_gate_bias(b_ih + b_hh, H, H_pad),     # f32
        })
        d_in, d_pad = H, H_pad

    lin_w = jax.random.uniform(next(ki), (V, H), jnp.float32, -k, k)
    lin_b = jax.random.uniform(next(ki), (V,), jnp.float32, -k, k)
    lin_w_t = jnp.pad(lin_w, ((0, V_pad - V), (0, H_pad - H))).T.astype(jnp.bfloat16)
    lin_b = jnp.pad(lin_b, (0, V_pad - V))[None, :]            # (1, V_pad) f32

    return {"emb": emb, "lstm": lstm, "lin_w_t": lin_w_t, "lin_b": lin_b}


# ------------------------------------ Main --------------------------------------------
if __name__ == "__main__":
    vocab_size = 16
    num_layers = 2
    hidden_size = 32
    pad_token_ids = 0
    B, T = 2, 8

    key = jax.random.PRNGKey(0)
    k_param, k_ids = jax.random.split(key)

    params = init_params(k_param, vocab_size, num_layers, hidden_size, pad_token_ids)

    # lengths sorted descending (pack_padded_sequence enforce_sorted=True default)
    lengths = jnp.array([8, 5], dtype=jnp.int32)
    ids = jax.random.randint(k_ids, (B, T), 1, vocab_size, dtype=jnp.int32)
    pos = jnp.arange(T, dtype=jnp.int32)[None, :]
    input_ids = jnp.where(pos < lengths[:, None], ids, pad_token_ids)

    # Host-side once (mirrors PyTorch's lengths.to('cpu')); the jitted forward has no sync.
    t_max = int(lengths.max())

    fwd = jax.jit(functools.partial(rnn_forward, t_max=t_max,
                                    vocab_size=vocab_size, hidden_size=hidden_size))
    logits, (h_n, c_n) = fwd(params, input_ids, lengths)
    jax.block_until_ready((logits, h_n, c_n))

    assert logits.shape == (B, t_max, vocab_size)
    assert h_n.shape == (num_layers, B, hidden_size)
    assert c_n.shape == (num_layers, B, hidden_size)
    assert bool(jnp.all(jnp.isfinite(logits)))
    print("KERNEL_OK")
</pallas_src>

<mosaic_0001>
module attributes {stable_mosaic.version = 11 : i64} {
  func.func @_matmul_bias_kernel(%arg0: i32, %arg1: i32, %arg2: i32, %arg3: memref<128x128xbf16, #tpu.memory_space<vmem>>, %arg4: memref<128x128xbf16, #tpu.memory_space<vmem>>, %arg5: memref<1x128xf32, #tpu.memory_space<vmem>>, %arg6: memref<128x128xf32, #tpu.memory_space<vmem>>, %arg7: memref<128x128xf32, #tpu.memory_space<vmem>>) attributes {dimension_semantics = [#tpu.dimension_semantics<parallel>, #tpu.dimension_semantics<parallel>, #tpu.dimension_semantics<arbitrary>], iteration_bounds = array<i64: 1, 1, 1>, scalar_prefetch = 0 : i64, scratch_operands = 1 : i64, tpu.core_type = #tpu.core_type<tc>, window_params = [{transform_indices = @transform_0, window_bounds = array<i64: 128, 128>}, {transform_indices = @transform_1, window_bounds = array<i64: 128, 128>}, {transform_indices = @transform_2, window_bounds = array<i64: 1, 128>}, {transform_indices = @transform_3, window_bounds = array<i64: 128, 128>}]} {
    %c0_i32 = arith.constant 0 : i32
    %0 = arith.cmpi eq, %arg2, %c0_i32 : i32
    %1 = arith.extui %0 : i1 to i32
    %c0_i32_0 = arith.constant 0 : i32
    %2 = arith.cmpi ne, %1, %c0_i32_0 : i32
    scf.if %2 {
      %cst_10 = arith.constant 0.000000e+00 : f32
      %12 = vector.broadcast %cst_10 : f32 to vector<128x128xf32>
      %c0_11 = arith.constant 0 : index
      %c0_12 = arith.constant 0 : index
      %13 = vector.load %arg7[%c0_11, %c0_12] : memref<128x128xf32, #tpu.memory_space<vmem>>, vector<128x128xf32>
      tpu.vector_store %arg7[%c0_11, %c0_12], %12 {strides = array<i32>} : memref<128x128xf32, #tpu.memory_space<vmem>>, vector<128x128xf32>,
    } else {
    }
    %c0 = arith.constant 0 : index
    %c0_1 = arith.constant 0 : index
    %3 = vector.load %arg7[%c0, %c0_1] : memref<128x128xf32, #tpu.memory_space<vmem>>, vector<128x128xf32>
    %c0_2 = arith.constant 0 : index
    %c0_3 = arith.constant 0 : index
    %4 = vector.load %arg3[%c0_2, %c0_3] : memref<128x128xbf16, #tpu.memory_space<vmem>>, vector<128x128xbf16>
    %c0_4 = arith.constant 0 : index
    %c0_5 = arith.constant 0 : index
    %5 = vector.load %arg4[%c0_4, %c0_5] : memref<128x128xbf16, #tpu.memory_space<vmem>>, vector<128x128xbf16>
    %cst = arith.constant dense<0.000000e+00> : vector<128x128xf32>
    %6 = tpu.matmul %4, %5, %cst {dimension_numbers = #tpu.dot_dimension_numbers<[1], [0], [0], [1], [0, 0, 1, 1], [], []>} : vector<128x128xbf16>, vector<128x128xbf16>, vector<128x128xf32> -> vector<128x128xf32>
    %7 = arith.addf %3, %6 : vector<128x128xf32>
    %c0_6 = arith.constant 0 : index
    %c0_7 = arith.constant 0 : index
    %8 = vector.load %arg7[%c0_6, %c0_7] : memref<128x128xf32, #tpu.memory_space<vmem>>, vector<128x128xf32>
    tpu.vector_store %arg7[%c0_6, %c0_7], %7 {strides = array<i32>} : memref<128x128xf32, #tpu.memory_space<vmem>>, vector<128x128xf32>,
    %c0_i32_8 = arith.constant 0 : i32
    %9 = arith.cmpi eq, %arg2, %c0_i32_8 : i32
    %10 = arith.extui %9 : i1 to i32
    %c0_i32_9 = arith.constant 0 : i32
    %11 = arith.cmpi ne, %10, %c0_i32_9 : i32
    scf.if %11 {
      %c0_10 = arith.constant 0 : index
      %c0_11 = arith.constant 0 : index
      %12 = vector.load %arg7[%c0_10, %c0_11] : memref<128x128xf32, #tpu.memory_space<vmem>>, vector<128x128xf32>
      %c0_12 = arith.constant 0 : index
      %c0_13 = arith.constant 0 : index
      %13 = vector.load %arg5[%c0_12, %c0_13] : memref<1x128xf32, #tpu.memory_space<vmem>>, vector<1x128xf32>
      %14 = vector.broadcast %13 : vector<1x128xf32> to vector<128x128xf32>
      %15 = arith.addf %12, %14 : vector<128x128xf32>
      %c0_14 = arith.constant 0 : index
      %c0_15 = arith.constant 0 : index
      %16 = vector.load %arg6[%c0_14, %c0_15] : memref<128x128xf32, #tpu.memory_space<vmem>>, vector<128x128xf32>
      tpu.vector_store %arg6[%c0_14, %c0_15], %15 {strides = array<i32>} : memref<128x128xf32, #tpu.memory_space<vmem>>, vector<128x128xf32>,
    } else {
    }
    return
  }
  func.func @transform_0(%arg0: i32, %arg1: i32, %arg2: i32) -> (i32, i32) {
    %c0_i32 = arith.constant 0 : i32
    return %arg0, %arg2 : i32, i32
  }
  func.func @transform_1(%arg0: i32, %arg1: i32, %arg2: i32) -> (i32, i32) {
    %c0_i32 = arith.constant 0 : i32
    return %arg2, %arg1 : i32, i32
  }
  func.func @transform_2(%arg0: i32, %arg1: i32, %arg2: i32) -> (i32, i32) {
    %c0_i32 = arith.constant 0 : i32
    %c0_i32_0 = arith.constant 0 : i32
    return %c0_i32, %arg1 : i32, i32
  }
  func.func @transform_3(%arg0: i32, %arg1: i32, %arg2: i32) -> (i32, i32) {
    %c0_i32 = arith.constant 0 : i32
    return %arg0, %arg1 : i32, i32
  }
}

module attributes {stable_mosaic.version = 11 : i64} {
  func.func @_matmul_bias_kernel(%arg0: i32, %arg1: i32, %arg2: i32, %arg3: memref<128x128xbf16, #tpu.memory_space<vmem>>, %arg4: memref<128x512xbf16, #tpu.memory_space<vmem>>, %arg5: memref<1x512xf32, #tpu.memory_space<vmem>>, %arg6: memref<128x512xf32, #tpu.memory_space<vmem>>, %arg7: memref<128x512xf32, #tpu.memory_space<vmem>>) attributes {dimension_semantics = [#tpu.dimension_semantics<parallel>, #tpu.dimension_semantics<parallel>, #tpu.dimension_semantics<arbitrary>], iteration_bounds = array<i64: 1, 1, 1>, scalar_prefetch = 0 : i64, scratch_operands = 1 : i64, tpu.core_type = #tpu.core_type<tc>, window_params = [{transform_indices = @transform_0, window_bounds = array<i64: 128, 128>}, {transform_indices = @transform_1, window_bounds = array<i64: 128, 512>}, {transform_indices = @transform_2, window_bounds = array<i64: 1, 512>}, {transform_indices = @transform_3, window_bounds = array<i64: 128, 512>}]} {
    %c0_i32 = arith.constant 0 : i32
    %0 = arith.cmpi eq, %arg2, %c0_i32 : i32
    %1 = arith.extui %0 : i1 to i32
    %c0_i32_0 = arith.constant 0 : i32
    %2 = arith.cmpi ne, %1, %c0_i32_0 : i32
    scf.if %2 {
      %cst_10 = arith.constant 0.000000e+00 : f32
      %12 = vector.broadcast %cst_10 : f32 to vector<128x512xf32>
      %c0_11 = arith.constant 0 : index
      %c0_12 = arith.constant 0 : index
      %13 = vector.load %arg7[%c0_11, %c0_12] : memref<128x512xf32, #tpu.memory_space<vmem>>, vector<128x512xf32>
      tpu.vector_store %arg7[%c0_11, %c0_12], %12 {strides = array<i32>} : memref<128x512xf32, #tpu.memory_space<vmem>>, vector<128x512xf32>,
    } else {
    }
    %c0 = arith.constant 0 : index
    %c0_1 = arith.constant 0 : index
    %3 = vector.load %arg7[%c0, %c0_1] : memref<128x512xf32, #tpu.memory_space<vmem>>, vector<128x512xf32>
    %c0_2 = arith.constant 0 : index
    %c0_3 = arith.constant 0 : index
    %4 = vector.load %arg3[%c0_2, %c0_3] : memref<128x128xbf16, #tpu.memory_space<vmem>>, vector<128x128xbf16>
    %c0_4 = arith.constant 0 : index
    %c0_5 = arith.constant 0 : index
    %5 = vector.load %arg4[%c0_4, %c0_5] : memref<128x512xbf16, #tpu.memory_space<vmem>>, vector<128x512xbf16>
    %cst = arith.constant dense<0.000000e+00> : vector<128x512xf32>
    %6 = tpu.matmul %4, %5, %cst {dimension_numbers = #tpu.dot_dimension_numbers<[1], [0], [0], [1], [0, 0, 1, 1], [], []>} : vector<128x128xbf16>, vector<128x512xbf16>, vector<128x512xf32> -> vector<128x512xf32>
    %7 = arith.addf %3, %6 : vector<128x512xf32>
    %c0_6 = arith.constant 0 : index
    %c0_7 = arith.constant 0 : index
    %8 = vector.load %arg7[%c0_6, %c0_7] : memref<128x512xf32, #tpu.memory_space<vmem>>, vector<128x512xf32>
    tpu.vector_store %arg7[%c0_6, %c0_7], %7 {strides = array<i32>} : memref<128x512xf32, #tpu.memory_space<vmem>>, vector<128x512xf32>,
    %c0_i32_8 = arith.constant 0 : i32
    %9 = arith.cmpi eq, %arg2, %c0_i32_8 : i32
    %10 = arith.extui %9 : i1 to i32
    %c0_i32_9 = arith.constant 0 : i32
    %11 = arith.cmpi ne, %10, %c0_i32_9 : i32
    scf.if %11 {
      %c0_10 = arith.constant 0 : index
      %c0_11 = arith.constant 0 : index
      %12 = vector.load %arg7[%c0_10, %c0_11] : memref<128x512xf32, #tpu.memory_space<vmem>>, vector<128x512xf32>
      %c0_12 = arith.constant 0 : index
      %c0_13 = arith.constant 0 : index
      %13 = vector.load %arg5[%c0_12, %c0_13] : memref<1x512xf32, #tpu.memory_space<vmem>>, vector<1x512xf32>
      %14 = vector.broadcast %13 : vector<1x512xf32> to vector<128x512xf32>
      %15 = arith.addf %12, %14 : vector<128x512xf32>
      %c0_14 = arith.constant 0 : index
      %c0_15 = arith.constant 0 : index
      %16 = vector.load %arg6[%c0_14, %c0_15] : memref<128x512xf32, #tpu.memory_space<vmem>>, vector<128x512xf32>
      tpu.vector_store %arg6[%c0_14, %c0_15], %15 {strides = array<i32>} : memref<128x512xf32, #tpu.memory_space<vmem>>, vector<128x512xf32>,
    } else {
    }
    return
  }
  func.func @transform_0(%arg0: i32, %arg1: i32, %arg2: i32) -> (i32, i32) {
    %c0_i32 = arith.constant 0 : i32
    return %arg0, %arg2 : i32, i32
  }
  func.func @transform_1(%arg0: i32, %arg1: i32, %arg2: i32) -> (i32, i32) {
    %c0_i32 = arith.constant 0 : i32
    return %arg2, %arg1 : i32, i32
  }
  func.func @transform_2(%arg0: i32, %arg1: i32, %arg2: i32) -> (i32, i32) {
    %c0_i32 = arith.constant 0 : i32
    %c0_i32_0 = arith.constant 0 : i32
    return %c0_i32, %arg1 : i32, i32
  }
  func.func @transform_3(%arg0: i32, %arg1: i32, %arg2: i32) -> (i32, i32) {
    %c0_i32 = arith.constant 0 : i32
    return %arg0, %arg1 : i32, i32
  }
}

module attributes {stable_mosaic.version = 11 : i64} {
  func.func @_lstm_chunk_kernel(%arg0: i32, %arg1: i32, %arg2: memref<8x1xi32, #tpu.memory_space<vmem>>, %arg3: memref<16x8x512xf32, #tpu.memory_space<vmem>>, %arg4: memref<128x512xbf16, #tpu.memory_space<vmem>>, %arg5: memref<16x8x128xf32, #tpu.memory_space<vmem>>, %arg6: memref<8x128xf32, #tpu.memory_space<vmem>>, %arg7: memref<8x128xf32, #tpu.memory_space<vmem>>, %arg8: memref<8x128xf32, #tpu.memory_space<vmem>>, %arg9: memref<8x128xf32, #tpu.memory_space<vmem>>) attributes {dimension_semantics = [#tpu.dimension_semantics<parallel>, #tpu.dimension_semantics<arbitrary>], iteration_bounds = array<i64: 1, 1>, scalar_prefetch = 0 : i64, scratch_operands = 2 : i64, tpu.core_type = #tpu.core_type<tc>, window_params = [{transform_indices = @transform_0, window_bounds = array<i64: 8, 1>}, {transform_indices = @transform_1, window_bounds = array<i64: 16, 8, 512>}, {pipeline_mode = #tpu.pipeline_mode<synchronous>, transform_indices = @transform_2, window_bounds = array<i64: 128, 512>}, {transform_indices = @transform_3, window_bounds = array<i64: 16, 8, 128>}, {transform_indices = @transform_4, window_bounds = array<i64: 8, 128>}, {transform_indices = @transform_5, window_bounds = array<i64: 8, 128>}]} {
    %c0_i32 = arith.constant 0 : i32
    %0 = arith.cmpi eq, %arg1, %c0_i32 : i32
    %1 = arith.extui %0 : i1 to i32
    %c0_i32_0 = arith.constant 0 : i32
    %2 = arith.cmpi ne, %1, %c0_i32_0 : i32
    scf.if %2 {
      %cst_189 = arith.constant 0.000000e+00 : f32
      %796 = vector.broadcast %cst_189 : f32 to vector<8x128xf32>
      %c0_190 = arith.constant 0 : index
      %c0_191 = arith.constant 0 : index
      %797 = vector.load %arg8[%c0_190, %c0_191] : memref<8x128xf32, #tpu.memory_space<vmem>>, vector<8x128xf32>
      tpu.vector_store %arg8[%c0_190, %c0_191], %796 {strides = array<i32>} : memref<8x128xf32, #tpu.memory_space<vmem>>, vector<8x128xf32>,
      %cst_192 = arith.constant 0.000000e+00 : f32
      %798 = vector.broadcast %cst_192 : f32 to vector<8x128xf32>
      %c0_193 = arith.constant 0 : index
      %c0_194 = arith.constant 0 : index
      %799 = vector.load %arg9[%c0_193, %c0_194] : memref<8x128xf32, #tpu.memory_space<vmem>>, vector<8x128xf32>
      tpu.vector_store %arg9[%c0_193, %c0_194], %798 {strides = array<i32>} : memref<8x128xf32, #tpu.memory_space<vmem>>, vector<8x128xf32>,
    } else {
    }
    %c0 = arith.constant 0 : index
    %c0_1 = arith.constant 0 : index
    %3 = vector.load %arg2[%c0, %c0_1] : memref<8x1xi32, #tpu.memory_space<vmem>>, vector<8x1xi32>
    %c16_i32 = arith.constant 16 : i32
    %4 = arith.muli %arg1, %c16_i32 : i32
    %c0_2 = arith.constant 0 : index
    %c0_3 = arith.constant 0 : index
    %5 = vector.load %arg8[%c0_2, %c0_3] : memref<8x128xf32, #tpu.memory_space<vmem>>, vector<8x128xf32>
    %c0_4 = arith.constant 0 : index
    %c0_5 = arith.constant 0 : index
    %6 = vector.load %arg9[%c0_4, %c0_5] : memref<8x128xf32, #tpu.memory_space<vmem>>, vector<8x128xf32>
    %c0_i32_6 = arith.constant 0 : i32
    %7 = arith.index_cast %c0_i32_6 : i32 to index
    %c0_7 = arith.constant 0 : index
    %c0_8 = arith.constant 0 : index
    %8 = vector.load %arg3[%7, %c0_7, %c0_8] : memref<16x8x512xf32, #tpu.memory_space<vmem>>, vector<1x8x512xf32>
    %9 = vector.shape_cast %8 : vector<1x8x512xf32> to vector<8x512xf32>
    %10 = arith.truncf %5 : vector<8x128xf32> to vector<8x128xbf16>
    %c0_9 = arith.constant 0 : index
    %c0_10 = arith.constant 0 : index
    %11 = vector.load %arg4[%c0_9, %c0_10] : memref<128x512xbf16, #tpu.memory_space<vmem>>, vector<128x512xbf16>
    %cst = arith.constant dense<0.000000e+00> : vector<8x512xf32>
    %12 = tpu.matmul %10, %11, %cst {dimension_numbers = #tpu.dot_dimension_numbers<[1], [0], [0], [1], [0, 0, 1, 1], [], []>} : vector<8x128xbf16>, vector<128x512xbf16>, vector<8x512xf32> -> vector<8x512xf32>
    %13 = arith.addf %9, %12 : vector<8x512xf32>
    %14 = vector.extract_strided_slice %13 {offsets = [0, 0], sizes = [8, 128], strides = [1, 1]} : vector<8x512xf32> to vector<8x128xf32>
    %15 = arith.negf %14 : vector<8x128xf32>
    %16 = math.exp %15 : vector<8x128xf32>
    %cst_11 = arith.constant 1.000000e+00 : f32
    %17 = vector.broadcast %cst_11 : f32 to vector<8x128xf32>
    %18 = arith.addf %17, %16 : vector<8x128xf32>
    %19 = arith.divf %17, %18 : vector<8x128xf32>
    %20 = vector.extract_strided_slice %13 {offsets = [0, 128], sizes = [8, 128], strides = [1, 1]} : vector<8x512xf32> to vector<8x128xf32>
    %21 = arith.negf %20 : vector<8x128xf32>
    %22 = math.exp %21 : vector<8x128xf32>
    %cst_12 = arith.constant 1.000000e+00 : f32
    %23 = vector.broadcast %cst_12 : f32 to vector<8x128xf32>
    %24 = arith.addf %23, %22 : vector<8x128xf32>
    %25 = arith.divf %23, %24 : vector<8x128xf32>
    %26 = vector.extract_strided_slice %13 {offsets = [0, 256], sizes = [8, 128], strides = [1, 1]} : vector<8x512xf32> to vector<8x128xf32>
    %27 = math.tanh %26 : vector<8x128xf32>
    %28 = vector.extract_strided_slice %13 {offsets = [0, 384], sizes = [8, 128], strides = [1, 1]} : vector<8x512xf32> to vector<8x128xf32>
    %29 = arith.negf %28 : vector<8x128xf32>
    %30 = math.exp %29 : vector<8x128xf32>
    %cst_13 = arith.constant 1.000000e+00 : f32
    %31 = vector.broadcast %cst_13 : f32 to vector<8x128xf32>
    %32 = arith.addf %31, %30 : vector<8x128xf32>
    %33 = arith.divf %31, %32 : vector<8x128xf32>
    %34 = arith.mulf %25, %6 : vector<8x128xf32>
    %35 = arith.mulf %19, %27 : vector<8x128xf32>
    %36 = arith.addf %34, %35 : vector<8x128xf32>
    %37 = math.tanh %36 : vector<8x128xf32>
    %38 = arith.mulf %33, %37 : vector<8x128xf32>
    %39 = arith.addi %4, %c0_i32_6 : i32
    %40 = vector.broadcast %39 : i32 to vector<8x1xi32>
    %41 = arith.cmpi slt, %40, %3 : vector<8x1xi32>
    %42 = vector.shape_cast %41 : vector<8x1xi1> to vector<8x1xi1>
    %43 = vector.broadcast %42 : vector<8x1xi1> to vector<8x128xi1>
    %44 = arith.select %43, %38, %5 : vector<8x128xi1>, vector<8x128xf32>
    %45 = vector.shape_cast %41 : vector<8x1xi1> to vector<8x1xi1>
    %46 = vector.broadcast %45 : vector<8x1xi1> to vector<8x128xi1>
    %47 = arith.select %46, %36, %6 : vector<8x128xi1>, vector<8x128xf32>
    %cst_14 = arith.constant 0.000000e+00 : f32
    %48 = vector.broadcast %cst_14 : f32 to vector<8x128xf32>
    %49 = vector.shape_cast %41 : vector<8x1xi1> to vector<8x1xi1>
    %50 = vector.broadcast %49 : vector<8x1xi1> to vector<8x128xi1>
    %51 = arith.select %50, %38, %48 : vector<8x128xi1>, vector<8x128xf32>
    %52 = arith.index_cast %c0_i32_6 : i32 to index
    %c0_15 = arith.constant 0 : index
    %c0_16 = arith.constant 0 : index
    %53 = vector.load %arg5[%52, %c0_15, %c0_16] : memref<16x8x128xf32, #tpu.memory_space<vmem>>, vector<1x8x128xf32>
    %54 = vector.shape_cast %53 : vector<1x8x128xf32> to vector<8x128xf32>
    %55 = vector.shape_cast %51 : vector<8x128xf32> to vector<1x8x128xf32>
    tpu.vector_store %arg5[%52, %c0_15, %c0_16], %55 {strides = array<i32>} : memref<16x8x128xf32, #tpu.memory_space<vmem>>, vector<1x8x128xf32>,
    %c1_i32 = arith.constant 1 : i32
    %56 = arith.index_cast %c1_i32 : i32 to index
    %c0_17 = arith.constant 0 : index
    %c0_18 = arith.constant 0 : index
    %57 = vector.load %arg3[%56, %c0_17, %c0_18] : memref<16x8x512xf32, #tpu.memory_space<vmem>>, vector<1x8x512xf32>
    %58 = vector.shape_cast %57 : vector<1x8x512xf32> to vector<8x512xf32>
    %59 = arith.truncf %44 : vector<8x128xf32> to vector<8x128xbf16>
    %c0_19 = arith.constant 0 : index
    %c0_20 = arith.constant 0 : index
    %60 = vector.load %arg4[%c0_19, %c0_20] : memref<128x512xbf16, #tpu.memory_space<vmem>>, vector<128x512xbf16>
    %cst_21 = arith.constant dense<0.000000e+00> : vector<8x512xf32>
    %61 = tpu.matmul %59, %60, %cst_21 {dimension_numbers = #tpu.dot_dimension_numbers<[1], [0], [0], [1], [0, 0, 1, 1], [], []>} : vector<8x128xbf16>, vector<128x512xbf16>, vector<8x512xf32> -> vector<8x512xf32>
    %62 = arith.addf %58, %61 : vector<8x512xf32>
    %63 = vector.extract_strided_slice %62 {offsets = [0, 0], sizes = [8, 128], strides = [1, 1]} : vector<8x512xf32> to vector<8x128xf32>
    %64 = arith.negf %63 : vector<8x128xf32>
    %65 = math.exp %64 : vector<8x128xf32>
    %cst_22 = arith.constant 1.000000e+00 : f32
    %66 = vector.broadcast %cst_22 : f32 to vector<8x128xf32>
    %67 = arith.addf %66, %65 : vector<8x128xf32>
    %68 = arith.divf %66, %67 : vector<8x128xf32>
    %69 = vector.extract_strided_slice %62 {offsets = [0, 128], sizes = [8, 128], strides = [1, 1]} : vector<8x512xf32> to vector<8x128xf32>
    %70 = arith.negf %69 : vector<8x128xf32>
    %71 = math.exp %70 : vector<8x128xf32>
    %cst_23 = arith.constant 1.000000e+00 : f32
    %72 = vector.broadcast %cst_23 : f32 to vector<8x128xf32>
    %73 = arith.addf %72, %71 : vector<8x128xf32>
    %74 = arith.divf %72, %73 : vector<8x128xf32>
    %75 = vector.extract_strided_slice %62 {offsets = [0, 256], sizes = [8, 128], strides = [1, 1]} : vector<8x512xf32> to vector<8x128xf32>
    %76 = math.tanh %75 : vector<8x128xf32>
    %77 = vector.extract_strided_slice %62 {offsets = [0, 384], sizes = [8, 128], strides = [1, 1]} : vector<8x512xf32> to vector<8x128xf32>
    %78 = arith.negf %77 : vector<8x128xf32>
    %79 = math.exp %78 : vector<8x128xf32>
    %cst_24 = arith.constant 1.000000e+00 : f32
    %80 = vector.broadcast %cst_24 : f32 to vector<8x128xf32>
    %81 = arith.addf %80, %79 : vector<8x128xf32>
    %82 = arith.divf %80, %81 : vector<8x128xf32>
    %83 = arith.mulf %74, %47 : vector<8x128xf32>
    %84 = arith.mulf %68, %76 : vector<8x128xf32>
    %85 = arith.addf %83, %84 : vector<8x128xf32>
    %86 = math.tanh %85 : vector<8x128xf32>
    %87 = arith.mulf %82, %86 : vector<8x128xf32>
    %88 = arith.addi %4, %c1_i32 : i32
    %89 = vector.broadcast %88 : i32 to vector<8x1xi32>
    %90 = arith.cmpi slt, %89, %3 : vector<8x1xi32>
    %91 = vector.shape_cast %90 : vector<8x1xi1> to vector<8x1xi1>
    %92 = vector.broadcast %91 : vector<8x1xi1> to vector<8x128xi1>
    %93 = arith.select %92, %87, %44 : vector<8x128xi1>, vector<8x128xf32>
    %94 = vector.shape_cast %90 : vector<8x1xi1> to vector<8x1xi1>
    %95 = vector.broadcast %94 : vector<8x1xi1> to vector<8x128xi1>
    %96 = arith.select %95, %85, %47 : vector<8x128xi1>, vector<8x128xf32>
    %cst_25 = arith.constant 0.000000e+00 : f32
    %97 = vector.broadcast %cst_25 : f32 to vector<8x128xf32>
    %98 = vector.shape_cast %90 : vector<8x1xi1> to vector<8x1xi1>
    %99 = vector.broadcast %98 : vector<8x1xi1> to vector<8x128xi1>
    %100 = arith.select %99, %87, %97 : vector<8x128xi1>, vector<8x128xf32>
    %101 = arith.index_cast %c1_i32 : i32 to index
    %c0_26 = arith.constant 0 : index
    %c0_27 = arith.constant 0 : index
    %102 = vector.load %arg5[%101, %c0_26, %c0_27] : memref<16x8x128xf32, #tpu.memory_space<vmem>>, vector<1x8x128xf32>
    %103 = vector.shape_cast %102 : vector<1x8x128xf32> to vector<8x128xf32>
    %104 = vector.shape_cast %100 : vector<8x128xf32> to vector<1x8x128xf32>
    tpu.vector_store %arg5[%101, %c0_26, %c0_27], %104 {strides = array<i32>} : memref<16x8x128xf32, #tpu.memory_space<vmem>>, vector<1x8x128xf32>,
    %c2_i32 = arith.constant 2 : i32
    %105 = arith.index_cast %c2_i32 : i32 to index
    %c0_28 = arith.constant 0 : index
    %c0_29 = arith.constant 0 : index
    %106 = vector.load %arg3[%105, %c0_28, %c0_29] : memref<16x8x512xf32, #tpu.memory_space<vmem>>, vector<1x8x512xf32>
    %107 = vector.shape_cast %106 : vector<1x8x512xf32> to vector<8x512xf32>
    %108 = arith.truncf %93 : vector<8x128xf32> to vector<8x128xbf16>
    %c0_30 = arith.constant 0 : index
    %c0_31 = arith.constant 0 : index
    %109 = vector.load %arg4[%c0_30, %c0_31] : memref<128x512xbf16, #tpu.memory_space<vmem>>, vector<128x512xbf16>
    %cst_32 = arith.constant dense<0.000000e+00> : vector<8x512xf32>
    %110 = tpu.matmul %108, %109, %cst_32 {dimension_numbers = #tpu.dot_dimension_numbers<[1], [0], [0], [1], [0, 0, 1, 1], [], []>} : vector<8x128xbf16>, vector<128x512xbf16>, vector<8x512xf32> -> vector<8x512xf32>
    %111 = arith.addf %107, %110 : vector<8x512xf32>
    %112 = vector.extract_strided_slice %111 {offsets = [0, 0], sizes = [8, 128], strides = [1, 1]} : vector<8x512xf32> to vector<8x128xf32>
    %113 = arith.negf %112 : vector<8x128xf32>
    %114 = math.exp %113 : vector<8x128xf32>
    %cst_33 = arith.constant 1.000000e+00 : f32
    %115 = vector.broadcast %cst_33 : f32 to vector<8x128xf32>
    %116 = arith.addf %115, %114 : vector<8x128xf32>
    %117 = arith.divf %115, %116 : vector<8x128xf32>
    %118 = vector.extract_strided_slice %111 {offsets = [0, 128], sizes = [8, 128], strides = [1, 1]} : vector<8x512xf32> to vector<8x128xf32>
    %119 = arith.negf %118 : vector<8x128xf32>
    %120 = math.exp %119 : vector<8x128xf32>
    %cst_34 = arith.constant 1.000000e+00 : f32
    %121 = vector.broadcast %cst_34 : f32 to vector<8x128xf32>
    %122 = arith.addf %121, %120 : vector<8x128xf32>
    %123 = arith.divf %121, %122 : vector<8x128xf32>
    %124 = vector.extract_strided_slice %111 {offsets = [0, 256], sizes = [8, 128], strides = [1, 1]} : vector<8x512xf32> to vector<8x128xf32>
    %125 = math.tanh %124 : vector<8x128xf32>
    %126 = vector.extract_strided_slice %111 {offsets = [0, 384], sizes = [8, 128], strides = [1, 1]} : vector<8x512xf32> to vector<8x128xf32>
    %127 = arith.negf %126 : vector<8x128xf32>
    %128 = math.exp %127 : vector<8x128xf32>
    %cst_35 = arith.constant 1.000000e+00 : f32
    %129 = vector.broadcast %cst_35 : f32 to vector<8x128xf32>
    %130 = arith.addf %129, %128 : vector<8x128xf32>
    %131 = arith.divf %129, %130 : vector<8x128xf32>
    %132 = arith.mulf %123, %96 : vector<8x128xf32>
    %133 = arith.mulf %117, %125 : vector<8x128xf32>
    %134 = arith.addf %132, %133 : vector<8x128xf32>
    %135 = math.tanh %134 : vector<8x128xf32>
    %136 = arith.mulf %131, %135 : vector<8x128xf32>
    %137 = arith.addi %4, %c2_i32 : i32
    %138 = vector.broadcast %137 : i32 to vector<8x1xi32>
    %139 = arith.cmpi slt, %138, %3 : vector<8x1xi32>
    %140 = vector.shape_cast %139 : vector<8x1xi1> to vector<8x1xi1>
    %141 = vector.broadcast %140 : vector<8x1xi1> to vector<8x128xi1>
    %142 = arith.select %141, %136, %93 : vector<8x128xi1>, vector<8x128xf32>
    %143 = vector.shape_cast %139 : vector<8x1xi1> to vector<8x1xi1>
    %144 = vector.broadcast %143 : vector<8x1xi1> to vector<8x128xi1>
    %145 = arith.select %144, %134, %96 : vector<8x128xi1>, vector<8x128xf32>
    %cst_36 = arith.constant 0.000000e+00 : f32
    %146 = vector.broadcast %cst_36 : f32 to vector<8x128xf32>
    %147 = vector.shape_cast %139 : vector<8x1xi1> to vector<8x1xi1>
    %148 = vector.broadcast %147 : vector<8x1xi1> to vector<8x128xi1>
    %149 = arith.select %148, %136, %146 : vector<8x128xi1>, vector<8x128xf32>
    %150 = arith.index_cast %c2_i32 : i32 to index
    %c0_37 = arith.constant 0 : index
    %c0_38 = arith.constant 0 : index
    %151 = vector.load %arg5[%150, %c0_37, %c0_38] : memref<16x8x128xf32, #tpu.memory_space<vmem>>, vector<1x8x128xf32>
    %152 = vector.shape_cast %151 : vector<1x8x128xf32> to vector<8x128xf32>
    %153 = vector.shape_cast %149 : vector<8x128xf32> to vector<1x8x128xf32>
    tpu.vector_store %arg5[%150, %c0_37, %c0_38], %153 {strides = array<i32>} : memref<16x8x128xf32, #tpu.memory_space<vmem>>, vector<1x8x128xf32>,
    %c3_i32 = arith.constant 3 : i32
    %154 = arith.index_cast %c3_i32 : i32 to index
    %c0_39 = arith.constant 0 : index
    %c0_40 = arith.constant 0 : index
    %155 = vector.load %arg3[%154, %c0_39, %c0_40] : memref<16x8x512xf32, #tpu.memory_space<vmem>>, vector<1x8x512xf32>
    %156 = vector.shape_cast %155 : vector<1x8x512xf32> to vector<8x512xf32>
    %157 = arith.truncf %142 : vector<8x128xf32> to vector<8x128xbf16>
    %c0_41 = arith.constant 0 : index
    %c0_42 = arith.constant 0 : index
    %158 = vector.load %arg4[%c0_41, %c0_42] : memref<128x512xbf16, #tpu.memory_space<vmem>>, vector<128x512xbf16>
    %cst_43 = arith.constant dense<0.000000e+00> : vector<8x512xf32>
    %159 = tpu.matmul %157, %158, %cst_43 {dimension_numbers = #tpu.dot_dimension_numbers<[1], [0], [0], [1], [0, 0, 1, 1], [], []>} : vector<8x128xbf16>, vector<128x512xbf16>, vector<8x512xf32> -> vector<8x512xf32>
    %160 = arith.addf %156, %159 : vector<8x512xf32>
    %161 = vector.extract_strided_slice %160 {offsets = [0, 0], sizes = [8, 128], strides = [1, 1]} : vector<8x512xf32> to vector<8x128xf32>
    %162 = arith.negf %161 : vector<8x128xf32>
    %163 = math.exp %162 : vector<8x128xf32>
    %cst_44 = arith.constant 1.000000e+00 : f32
    %164 = vector.broadcast %cst_44 : f32 to vector<8x128xf32>
    %165 = arith.addf %164, %163 : vector<8x128xf32>
    %166 = arith.divf %164, %165 : vector<8x128xf32>
    %167 = vector.extract_strided_slice %160 {offsets = [0, 128], sizes = [8, 128], strides = [1, 1]} : vector<8x512xf32> to vector<8x128xf32>
    %168 = arith.negf %167 : vector<8x128xf32>
    %169 = math.exp %168 : vector<8x128xf32>
    %cst_45 = arith.constant 1.000000e+00 : f32
    %170 = vector.broadcast %cst_45 : f32 to vector<8x128xf32>
    %171 = arith.addf %170, %169 : vector<8x128xf32>
    %172 = arith.divf %170, %171 : vector<8x128xf32>
    %173 = vector.extract_strided_slice %160 {offsets = [0, 256], sizes = [8, 128], strides = [1, 1]} : vector<8x512xf32> to vector<8x128xf32>
    %174 = math.tanh %173 : vector<8x128xf32>
    %175 = vector.extract_strided_slice %160 {offsets = [0, 384], sizes = [8, 128], strides = [1, 1]} : vector<8x512xf32> to vector<8x128xf32>
    %176 = arith.negf %175 : vector<8x128xf32>
    %177 = math.exp %176 : vector<8x128xf32>
    %cst_46 = arith.constant 1.000000e+00 : f32
    %178 = vector.broadcast %cst_46 : f32 to vector<8x128xf32>
    %179 = arith.addf %178, %177 : vector<8x128xf32>
    %180 = arith.divf %178, %179 : vector<8x128xf32>
    %181 = arith.mulf %172, %145 : vector<8x128xf32>
    %182 = arith.mulf %166, %174 : vector<8x128xf32>
    %183 = arith.addf %181, %182 : vector<8x128xf32>
    %184 = math.tanh %183 : vector<8x128xf32>
    %185 = arith.mulf %180, %184 : vector<8x128xf32>
    %186 = arith.addi %4, %c3_i32 : i32
    %187 = vector.broadcast %186 : i32 to vector<8x1xi32>
    %188 = arith.cmpi slt, %187, %3 : vector<8x1xi32>
    %189 = vector.shape_cast %188 : vector<8x1xi1> to vector<8x1xi1>
    %190 = vector.broadcast %189 : vector<8x1xi1> to vector<8x128xi1>
    %191 = arith.select %190, %185, %142 : vector<8x128xi1>, vector<8x128xf32>
    %192 = vector.shape_cast %188 : vector<8x1xi1> to vector<8x1xi1>
    %193 = vector.broadcast %192 : vector<8x1xi1> to vector<8x128xi1>
    %194 = arith.select %193, %183, %145 : vector<8x128xi1>, vector<8x128xf32>
    %cst_47 = arith.constant 0.000000e+00 : f32
    %195 = vector.broadcast %cst_47 : f32 to vector<8x128xf32>
    %196 = vector.shape_cast %188 : vector<8x1xi1> to vector<8x1xi1>
    %197 = vector.broadcast %196 : vector<8x1xi1> to vector<8x128xi1>
    %198 = arith.select %197, %185, %195 : vector<8x128xi1>, vector<8x128xf32>
    %199 = arith.index_cast %c3_i32 : i32 to index
    %c0_48 = arith.constant 0 : index
    %c0_49 = arith.constant 0 : index
    %200 = vector.load %arg5[%199, %c0_48, %c0_49] : memref<16x8x128xf32, #tpu.memory_space<vmem>>, vector<1x8x128xf32>
    %201 = vector.shape_cast %200 : vector<1x8x128xf32> to vector<8x128xf32>
    %202 = vector.shape_cast %198 : vector<8x128xf32> to vector<1x8x128xf32>
    tpu.vector_store %arg5[%199, %c0_48, %c0_49], %202 {strides = array<i32>} : memref<16x8x128xf32, #tpu.memory_space<vmem>>, vector<1x8x128xf32>,
    %c4_i32 = arith.constant 4 : i32
    %203 = arith.index_cast %c4_i32 : i32 to index
    %c0_50 = arith.constant 0 : index
    %c0_51 = arith.constant 0 : index
    %204 = vector.load %arg3[%203, %c0_50, %c0_51] : memref<16x8x512xf32, #tpu.memory_space<vmem>>, vector<1x8x512xf32>
    %205 = vector.shape_cast %204 : vector<1x8x512xf32> to vector<8x512xf32>
    %206 = arith.truncf %191 : vector<8x128xf32> to vector<8x128xbf16>
    %c0_52 = arith.constant 0 : index
    %c0_53 = arith.constant 0 : index
    %207 = vector.load %arg4[%c0_52, %c0_53] : memref<128x512xbf16, #tpu.memory_space<vmem>>, vector<128x512xbf16>
    %cst_54 = arith.constant dense<0.000000e+00> : vector<8x512xf32>
    %208 = tpu.matmul %206, %207, %cst_54 {dimension_numbers = #tpu.dot_dimension_numbers<[1], [0], [0], [1], [0, 0, 1, 1], [], []>} : vector<8x128xbf16>, vector<128x512xbf16>, vector<8x512xf32> -> vector<8x512xf32>
    %209 = arith.addf %205, %208 : vector<8x512xf32>
    %210 = vector.extract_strided_slice %209 {offsets = [0, 0], sizes = [8, 128], strides = [1, 1]} : vector<8x512xf32> to vector<8x128xf32>
    %211 = arith.negf %210 : vector<8x128xf32>
    %212 = math.exp %211 : vector<8x128xf32>
    %cst_55 = arith.constant 1.000000e+00 : f32
    %213 = vector.broadcast %cst_55 : f32 to vector<8x128xf32>
    %214 = arith.addf %213, %212 : vector<8x128xf32>
    %215 = arith.divf %213, %214 : vector<8x128xf32>
    %216 = vector.extract_strided_slice %209 {offsets = [0, 128], sizes = [8, 128], strides = [1, 1]} : vector<8x512xf32> to vector<8x128xf32>
    %217 = arith.negf %216 : vector<8x128xf32>
    %218 = math.exp %217 : vector<8x128xf32>
    %cst_56 = arith.constant 1.000000e+00 : f32
    %219 = vector.broadcast %cst_56 : f32 to vector<8x128xf32>
    %220 = arith.addf %219, %218 : vector<8x128xf32>
    %221 = arith.divf %219, %220 : vector<8x128xf32>
    %222 = vector.extract_strided_slice %209 {offsets = [0, 256], sizes = [8, 128], strides = [1, 1]} : vector<8x512xf32> to vector<8x128xf32>
    %223 = math.tanh %222 : vector<8x128xf32>
    %224 = vector.extract_strided_slice %209 {offsets = [0, 384], sizes = [8, 128], strides = [1, 1]} : vector<8x512xf32> to vector<8x128xf32>
    %225 = arith.negf %224 : vector<8x128xf32>
    %226 = math.exp %225 : vector<8x128xf32>
    %cst_57 = arith.constant 1.000000e+00 : f32
    %227 = vector.broadcast %cst_57 : f32 to vector<8x128xf32>
    %228 = arith.addf %227, %226 : vector<8x128xf32>
    %229 = arith.divf %227, %228 : vector<8x128xf32>
    %230 = arith.mulf %221, %194 : vector<8x128xf32>
    %231 = arith.mulf %215, %223 : vector<8x128xf32>
    %232 = arith.addf %230, %231 : vector<8x128xf32>
    %233 = math.tanh %232 : vector<8x128xf32>
    %234 = arith.mulf %229, %233 : vector<8x128xf32>
    %235 = arith.addi %4, %c4_i32 : i32
    %236 = vector.broadcast %235 : i32 to vector<8x1xi32>
    %237 = arith.cmpi slt, %236, %3 : vector<8x1xi32>
    %238 = vector.shape_cast %237 : vector<8x1xi1> to vector<8x1xi1>
    %239 = vector.broadcast %238 : vector<8x1xi1> to vector<8x128xi1>
    %240 = arith.select %239, %234, %191 : vector<8x128xi1>, vector<8x128xf32>
    %241 = vector.shape_cast %237 : vector<8x1xi1> to vector<8x1xi1>
    %242 = vector.broadcast %241 : vector<8x1xi1> to vector<8x128xi1>
    %243 = arith.select %242, %232, %194 : vector<8x128xi1>, vector<8x128xf32>
    %cst_58 = arith.constant 0.000000e+00 : f32
    %244 = vector.broadcast %cst_58 : f32 to vector<8x128xf32>
    %245 = vector.shape_cast %237 : vector<8x1xi1> to vector<8x1xi1>
    %246 = vector.broadcast %245 : vector<8x1xi1> to vector<8x128xi1>
    %247 = arith.select %246, %234, %244 : vector<8x128xi1>, vector<8x128xf32>
    %248 = arith.index_cast %c4_i32 : i32 to index
    %c0_59 = arith.constant 0 : index
    %c0_60 = arith.constant 0 : index
    %249 = vector.load %arg5[%248, %c0_59, %c0_60] : memref<16x8x128xf32, #tpu.memory_space<vmem>>, vector<1x8x128xf32>
    %250 = vector.shape_cast %249 : vector<1x8x128xf32> to vector<8x128xf32>
    %251 = vector.shape_cast %247 : vector<8x128xf32> to vector<1x8x128xf32>
    tpu.vector_store %arg5[%248, %c0_59, %c0_60], %251 {strides = array<i32>} : memref<16x8x128xf32, #tpu.memory_space<vmem>>, vector<1x8x128xf32>,
    %c5_i32 = arith.constant 5 : i32
    %252 = arith.index_cast %c5_i32 : i32 to index
    %c0_61 = arith.constant 0 : index
    %c0_62 = arith.constant 0 : index
    %253 = vector.load %arg3[%252, %c0_61, %c0_62] : memref<16x8x512xf32, #tpu.memory_space<vmem>>, vector<1x8x512xf32>
    %254 = vector.shape_cast %253 : vector<1x8x512xf32> to vector<8x512xf32>
    %255 = arith.truncf %240 : vector<8x128xf32> to vector<8x128xbf16>
    %c0_63 = arith.constant 0 : index
    %c0_64 = arith.constant 0 : index
    %256 = vector.load %arg4[%c0_63, %c0_64] : memref<128x512xbf16, #tpu.memory_space<vmem>>, vector<128x512xbf16>
    %cst_65 = arith.constant dense<0.000000e+00> : vector<8x512xf32>
    %257 = tpu.matmul %255, %256, %cst_65 {dimension_numbers = #tpu.dot_dimension_numbers<[1], [0], [0], [1], [0, 0, 1, 1], [], []>} : vector<8x128xbf16>, vector<128x512xbf16>, vector<8x512xf32> -> vector<8x512xf32>
    %258 = arith.addf %254, %257 : vector<8x512xf32>
    %259 = vector.extract_strided_slice %258 {offsets = [0, 0], sizes = [8, 128], strides = [1, 1]} : vector<8x512xf32> to vector<8x128xf32>
    %260 = arith.negf %259 : vector<8x128xf32>
    %261 = math.exp %260 : vector<8x128xf32>
    %cst_66 = arith.constant 1.000000e+00 : f32
    %262 = vector.broadcast %cst_66 : f32 to vector<8x128xf32>
    %263 = arith.addf %262, %261 : vector<8x128xf32>
    %264 = arith.divf %262, %263 : vector<8x128xf32>
    %265 = vector.extract_strided_slice %258 {offsets = [0, 128], sizes = [8, 128], strides = [1, 1]} : vector<8x512xf32> to vector<8x128xf32>
    %266 = arith.negf %265 : vector<8x128xf32>
    %267 = math.exp %266 : vector<8x128xf32>
    %cst_67 = arith.constant 1.000000e+00 : f32
    %268 = vector.broadcast %cst_67 : f32 to vector<8x128xf32>
    %269 = arith.addf %268, %267 : vector<8x128xf32>
    %270 = arith.divf %268, %269 : vector<8x128xf32>
    %271 = vector.extract_strided_slice %258 {offsets = [0, 256], sizes = [8, 128], strides = [1, 1]} : vector<8x512xf32> to vector<8x128xf32>
    %272 = math.tanh %271 : vector<8x128xf32>
    %273 = vector.extract_strided_slice %258 {offsets = [0, 384], sizes = [8, 128], strides = [1, 1]} : vector<8x512xf32> to vector<8x128xf32>
    %274 = arith.negf %273 : vector<8x128xf32>
    %275 = math.exp %274 : vector<8x128xf32>
    %cst_68 = arith.constant 1.000000e+00 : f32
    %276 = vector.broadcast %cst_68 : f32 to vector<8x128xf32>
    %277 = arith.addf %276, %275 : vector<8x128xf32>
    %278 = arith.divf %276, %277 : vector<8x128xf32>
    %279 = arith.mulf %270, %243 : vector<8x128xf32>
    %280 = arith.mulf %264, %272 : vector<8x128xf32>
    %281 = arith.addf %279, %280 : vector<8x128xf32>
    %282 = math.tanh %281 : vector<8x128xf32>
    %283 = arith.mulf %278, %282 : vector<8x128xf32>
    %284 = arith.addi %4, %c5_i32 : i32
    %285 = vector.broadcast %284 : i32 to vector<8x1xi32>
    %286 = arith.cmpi slt, %285, %3 : vector<8x1xi32>
    %287 = vector.shape_cast %286 : vector<8x1xi1> to vector<8x1xi1>
    %288 = vector.broadcast %287 : vector<8x1xi1> to vector<8x128xi1>
    %289 = arith.select %288, %283, %240 : vector<8x128xi1>, vector<8x128xf32>
    %290 = vector.shape_cast %286 : vector<8x1xi1> to vector<8x1xi1>
    %291 = vector.broadcast %290 : vector<8x1xi1> to vector<8x128xi1>
    %292 = arith.select %291, %281, %243 : vector<8x128xi1>, vector<8x128xf32>
    %cst_69 = arith.constant 0.000000e+00 : f32
    %293 = vector.broadcast %cst_69 : f32 to vector<8x128xf32>
    %294 = vector.shape_cast %286 : vector<8x1xi1> to vector<8x1xi1>
    %295 = vector.broadcast %294 : vector<8x1xi1> to vector<8x128xi1>
    %296 = arith.select %295, %283, %293 : vector<8x128xi1>, vector<8x128xf32>
    %297 = arith.index_cast %c5_i32 : i32 to index
    %c0_70 = arith.constant 0 : index
    %c0_71 = arith.constant 0 : index
    %298 = vector.load %arg5[%297, %c0_70, %c0_71] : memref<16x8x128xf32, #tpu.memory_space<vmem>>, vector<1x8x128xf32>
    %299 = vector.shape_cast %298 : vector<1x8x128xf32> to vector<8x128xf32>
    %300 = vector.shape_cast %296 : vector<8x128xf32> to vector<1x8x128xf32>
    tpu.vector_store %arg5[%297, %c0_70, %c0_71], %300 {strides = array<i32>} : memref<16x8x128xf32, #tpu.memory_space<vmem>>, vector<1x8x128xf32>,
    %c6_i32 = arith.constant 6 : i32
    %301 = arith.index_cast %c6_i32 : i32 to index
    %c0_72 = arith.constant 0 : index
    %c0_73 = arith.constant 0 : index
    %302 = vector.load %arg3[%301, %c0_72, %c0_73] : memref<16x8x512xf32, #tpu.memory_space<vmem>>, vector<1x8x512xf32>
    %303 = vector.shape_cast %302 : vector<1x8x512xf32> to vector<8x512xf32>
    %304 = arith.truncf %289 : vector<8x128xf32> to vector<8x128xbf16>
    %c0_74 = arith.constant 0 : index
    %c0_75 = arith.constant 0 : index
    %305 = vector.load %arg4[%c0_74, %c0_75] : memref<128x512xbf16, #tpu.memory_space<vmem>>, vector<128x512xbf16>
    %cst_76 = arith.constant dense<0.000000e+00> : vector<8x512xf32>
    %306 = tpu.matmul %304, %305, %cst_76 {dimension_numbers = #tpu.dot_dimension_numbers<[1], [0], [0], [1], [0, 0, 1, 1], [], []>} : vector<8x128xbf16>, vector<128x512xbf16>, vector<8x512xf32> -> vector<8x512xf32>
    %307 = arith.addf %303, %306 : vector<8x512xf32>
    %308 = vector.extract_strided_slice %307 {offsets = [0, 0], sizes = [8, 128], strides = [1, 1]} : vector<8x512xf32> to vector<8x128xf32>
    %309 = arith.negf %308 : vector<8x128xf32>
    %310 = math.exp %309 : vector<8x128xf32>
    %cst_77 = arith.constant 1.000000e+00 : f32
    %311 = vector.broadcast %cst_77 : f32 to vector<8x128xf32>
    %312 = arith.addf %311, %310 : vector<8x128xf32>
    %313 = arith.divf %311, %312 : vector<8x128xf32>
    %314 = vector.extract_strided_slice %307 {offsets = [0, 128], sizes = [8, 128], strides = [1, 1]} : vector<8x512xf32> to vector<8x128xf32>
    %315 = arith.negf %314 : vector<8x128xf32>
    %316 = math.exp %315 : vector<8x128xf32>
    %cst_78 = arith.constant 1.000000e+00 : f32
    %317 = vector.broadcast %cst_78 : f32 to vector<8x128xf32>
    %318 = arith.addf %317, %316 : vector<8x128xf32>
    %319 = arith.divf %317, %318 : vector<8x128xf32>
    %320 = vector.extract_strided_slice %307 {offsets = [0, 256], sizes = [8, 128], strides = [1, 1]} : vector<8x512xf32> to vector<8x128xf32>
    %321 = math.tanh %320 : vector<8x128xf32>
    %322 = vector.extract_strided_slice %307 {offsets = [0, 384], sizes = [8, 128], strides = [1, 1]} : vector<8x512xf32> to vector<8x128xf32>
    %323 = arith.negf %322 : vector<8x128xf32>
    %324 = math.exp %323 : vector<8x128xf32>
    %cst_79 = arith.constant 1.000000e+00 : f32
    %325 = vector.broadcast %cst_79 : f32 to vector<8x128xf32>
    %326 = arith.addf %325, %324 : vector<8x128xf32>
    %327 = arith.divf %325, %326 : vector<8x128xf32>
    %328 = arith.mulf %319, %292 : vector<8x128xf32>
    %329 = arith.mulf %313, %321 : vector<8x128xf32>
    %330 = arith.addf %328, %329 : vector<8x128xf32>
    %331 = math.tanh %330 : vector<8x128xf32>
    %332 = arith.mulf %327, %331 : vector<8x128xf32>
    %333 = arith.addi %4, %c6_i32 : i32
    %334 = vector.broadcast %333 : i32 to vector<8x1xi32>
    %335 = arith.cmpi slt, %334, %3 : vector<8x1xi32>
    %336 = vector.shape_cast %335 : vector<8x1xi1> to vector<8x1xi1>
    %337 = vector.broadcast %336 : vector<8x1xi1> to vector<8x128xi1>
    %338 = arith.select %337, %332, %289 : vector<8x128xi1>, vector<8x128xf32>
    %339 = vector.shape_cast %335 : vector<8x1xi1> to vector<8x1xi1>
    %340 = vector.broadcast %339 : vector<8x1xi1> to vector<8x128xi1>
    %341 = arith.select %340, %330, %292 : vector<8x128xi1>, vector<8x128xf32>
    %cst_80 = arith.constant 0.000000e+00 : f32
    %342 = vector.broadcast %cst_80 : f32 to vector<8x128xf32>
    %343 = vector.shape_cast %335 : vector<8x1xi1> to vector<8x1xi1>
    %344 = vector.broadcast %343 : vector<8x1xi1> to vector<8x128xi1>
    %345 = arith.select %344, %332, %342 : vector<8x128xi1>, vector<8x128xf32>
    %346 = arith.index_cast %c6_i32 : i32 to index
    %c0_81 = arith.constant 0 : index
    %c0_82 = arith.constant 0 : index
    %347 = vector.load %arg5[%346, %c0_81, %c0_82] : memref<16x8x128xf32, #tpu.memory_space<vmem>>, vector<1x8x128xf32>
    %348 = vector.shape_cast %347 : vector<1x8x128xf32> to vector<8x128xf32>
    %349 = vector.shape_cast %345 : vector<8x128xf32> to vector<1x8x128xf32>
    tpu.vector_store %arg5[%346, %c0_81, %c0_82], %349 {strides = array<i32>} : memref<16x8x128xf32, #tpu.memory_space<vmem>>, vector<1x8x128xf32>,
    %c7_i32 = arith.constant 7 : i32
    %350 = arith.index_cast %c7_i32 : i32 to index
    %c0_83 = arith.constant 0 : index
    %c0_84 = arith.constant 0 : index
    %351 = vector.load %arg3[%350, %c0_83, %c0_84] : memref<16x8x512xf32, #tpu.memory_space<vmem>>, vector<1x8x512xf32>
    %352 = vector.shape_cast %351 : vector<1x8x512xf32> to vector<8x512xf32>
    %353 = arith.truncf %338 : vector<8x128xf32> to vector<8x128xbf16>
    %c0_85 = arith.constant 0 : index
    %c0_86 = arith.constant 0 : index
    %354 = vector.load %arg4[%c0_85, %c0_86] : memref<128x512xbf16, #tpu.memory_space<vmem>>, vector<128x512xbf16>
    %cst_87 = arith.constant dense<0.000000e+00> : vector<8x512xf32>
    %355 = tpu.matmul %353, %354, %cst_87 {dimension_numbers = #tpu.dot_dimension_numbers<[1], [0], [0], [1], [0, 0, 1, 1], [], []>} : vector<8x128xbf16>, vector<128x512xbf16>, vector<8x512xf32> -> vector<8x512xf32>
    %356 = arith.addf %352, %355 : vector<8x512xf32>
    %357 = vector.extract_strided_slice %356 {offsets = [0, 0], sizes = [8, 128], strides = [1, 1]} : vector<8x512xf32> to vector<8x128xf32>
    %358 = arith.negf %357 : vector<8x128xf32>
    %359 = math.exp %358 : vector<8x128xf32>
    %cst_88 = arith.constant 1.000000e+00 : f32
    %360 = vector.broadcast %cst_88 : f32 to vector<8x128xf32>
    %361 = arith.addf %360, %359 : vector<8x128xf32>
    %362 = arith.divf %360, %361 : vector<8x128xf32>
    %363 = vector.extract_strided_slice %356 {offsets = [0, 128], sizes = [8, 128], strides = [1, 1]} : vector<8x512xf32> to vector<8x128xf32>
    %364 = arith.negf %363 : vector<8x128xf32>
    %365 = math.exp %364 : vector<8x128xf32>
    %cst_89 = arith.constant 1.000000e+00 : f32
    %366 = vector.broadcast %cst_89 : f32 to vector<8x128xf32>
    %367 = arith.addf %366, %365 : vector<8x128xf32>
    %368 = arith.divf %366, %367 : vector<8x128xf32>
    %369 = vector.extract_strided_slice %356 {offsets = [0, 256], sizes = [8, 128], strides = [1, 1]} : vector<8x512xf32> to vector<8x128xf32>
    %370 = math.tanh %369 : vector<8x128xf32>
    %371 = vector.extract_strided_slice %356 {offsets = [0, 384], sizes = [8, 128], strides = [1, 1]} : vector<8x512xf32> to vector<8x128xf32>
    %372 = arith.negf %371 : vector<8x128xf32>
    %373 = math.exp %372 : vector<8x128xf32>
    %cst_90 = arith.constant 1.000000e+00 : f32
    %374 = vector.broadcast %cst_90 : f32 to vector<8x128xf32>
    %375 = arith.addf %374, %373 : vector<8x128xf32>
    %376 = arith.divf %374, %375 : vector<8x128xf32>
    %377 = arith.mulf %368, %341 : vector<8x128xf32>
    %378 = arith.mulf %362, %370 : vector<8x128xf32>
    %379 = arith.addf %377, %378 : vector<8x128xf32>
    %380 = math.tanh %379 : vector<8x128xf32>
    %381 = arith.mulf %376, %380 : vector<8x128xf32>
    %382 = arith.addi %4, %c7_i32 : i32
    %383 = vector.broadcast %382 : i32 to vector<8x1xi32>
    %384 = arith.cmpi slt, %383, %3 : vector<8x1xi32>
    %385 = vector.shape_cast %384 : vector<8x1xi1> to vector<8x1xi1>
    %386 = vector.broadcast %385 : vector<8x1xi1> to vector<8x128xi1>
    %387 = arith.select %386, %381, %338 : vector<8x128xi1>, vector<8x128xf32>
    %388 = vector.shape_cast %384 : vector<8x1xi1> to vector<8x1xi1>
    %389 = vector.broadcast %388 : vector<8x1xi1> to vector<8x128xi1>
    %390 = arith.select %389, %379, %341 : vector<8x128xi1>, vector<8x128xf32>
    %cst_91 = arith.constant 0.000000e+00 : f32
    %391 = vector.broadcast %cst_91 : f32 to vector<8x128xf32>
    %392 = vector.shape_cast %384 : vector<8x1xi1> to vector<8x1xi1>
    %393 = vector.broadcast %392 : vector<8x1xi1> to vector<8x128xi1>
    %394 = arith.select %393, %381, %391 : vector<8x128xi1>, vector<8x128xf32>
    %395 = arith.index_cast %c7_i32 : i32 to index
    %c0_92 = arith.constant 0 : index
    %c0_93 = arith.constant 0 : index
    %396 = vector.load %arg5[%395, %c0_92, %c0_93] : memref<16x8x128xf32, #tpu.memory_space<vmem>>, vector<1x8x128xf32>
    %397 = vector.shape_cast %396 : vector<1x8x128xf32> to vector<8x128xf32>
    %398 = vector.shape_cast %394 : vector<8x128xf32> to vector<1x8x128xf32>
    tpu.vector_store %arg5[%395, %c0_92, %c0_93], %398 {strides = array<i32>} : memref<16x8x128xf32, #tpu.memory_space<vmem>>, vector<1x8x128xf32>,
    %c8_i32 = arith.constant 8 : i32
    %399 = arith.index_cast %c8_i32 : i32 to index
    %c0_94 = arith.constant 0 : index
    %c0_95 = arith.constant 0 : index
    %400 = vector.load %arg3[%399, %c0_94, %c0_95] : memref<16x8x512xf32, #tpu.memory_space<vmem>>, vector<1x8x512xf32>
    %401 = vector.shape_cast %400 : vector<1x8x512xf32> to vector<8x512xf32>
    %402 = arith.truncf %387 : vector<8x128xf32> to vector<8x128xbf16>
    %c0_96 = arith.constant 0 : index
    %c0_97 = arith.constant 0 : index
    %403 = vector.load %arg4[%c0_96, %c0_97] : memref<128x512xbf16, #tpu.memory_space<vmem>>, vector<128x512xbf16>
    %cst_98 = arith.constant dense<0.000000e+00> : vector<8x512xf32>
    %404 = tpu.matmul %402, %403, %cst_98 {dimension_numbers = #tpu.dot_dimension_numbers<[1], [0], [0], [1], [0, 0, 1, 1], [], []>} : vector<8x128xbf16>, vector<128x512xbf16>, vector<8x512xf32> -> vector<8x512xf32>
    %405 = arith.addf %401, %404 : vector<8x512xf32>
    %406 = vector.extract_strided_slice %405 {offsets = [0, 0], sizes = [8, 128], strides = [1, 1]} : vector<8x512xf32> to vector<8x128xf32>
    %407 = arith.negf %406 : vector<8x128xf32>
    %408 = math.exp %407 : vector<8x128xf32>
    %cst_99 = arith.constant 1.000000e+00 : f32
    %409 = vector.broadcast %cst_99 : f32 to vector<8x128xf32>
    %410 = arith.addf %409, %408 : vector<8x128xf32>
    %411 = arith.divf %409, %410 : vector<8x128xf32>
    %412 = vector.extract_strided_slice %405 {offsets = [0, 128], sizes = [8, 128], strides = [1, 1]} : vector<8x512xf32> to vector<8x128xf32>
    %413 = arith.negf %412 : vector<8x128xf32>
    %414 = math.exp %413 : vector<8x128xf32>
    %cst_100 = arith.constant 1.000000e+00 : f32
    %415 = vector.broadcast %cst_100 : f32 to vector<8x128xf32>
    %416 = arith.addf %415, %414 : vector<8x128xf32>
    %417 = arith.divf %415, %416 : vector<8x128xf32>
    %418 = vector.extract_strided_slice %405 {offsets = [0, 256], sizes = [8, 128], strides = [1, 1]} : vector<8x512xf32> to vector<8x128xf32>
    %419 = math.tanh %418 : vector<8x128xf32>
    %420 = vector.extract_strided_slice %405 {offsets = [0, 384], sizes = [8, 128], strides = [1, 1]} : vector<8x512xf32> to vector<8x128xf32>
    %421 = arith.negf %420 : vector<8x128xf32>
    %422 = math.exp %421 : vector<8x128xf32>
    %cst_101 = arith.constant 1.000000e+00 : f32
    %423 = vector.broadcast %cst_101 : f32 to vector<8x128xf32>
    %424 = arith.addf %423, %422 : vector<8x128xf32>
    %425 = arith.divf %423, %424 : vector<8x128xf32>
    %426 = arith.mulf %417, %390 : vector<8x128xf32>
    %427 = arith.mulf %411, %419 : vector<8x128xf32>
    %428 = arith.addf %426, %427 : vector<8x128xf32>
    %429 = math.tanh %428 : vector<8x128xf32>
    %430 = arith.mulf %425, %429 : vector<8x128xf32>
    %431 = arith.addi %4, %c8_i32 : i32
    %432 = vector.broadcast %431 : i32 to vector<8x1xi32>
    %433 = arith.cmpi slt, %432, %3 : vector<8x1xi32>
    %434 = vector.shape_cast %433 : vector<8x1xi1> to vector<8x1xi1>
    %435 = vector.broadcast %434 : vector<8x1xi1> to vector<8x128xi1>
    %436 = arith.select %435, %430, %387 : vector<8x128xi1>, vector<8x128xf32>
    %437 = vector.shape_cast %433 : vector<8x1xi1> to vector<8x1xi1>
    %438 = vector.broadcast %437 : vector<8x1xi1> to vector<8x128xi1>
    %439 = arith.select %438, %428, %390 : vector<8x128xi1>, vector<8x128xf32>
    %cst_102 = arith.constant 0.000000e+00 : f32
    %440 = vector.broadcast %cst_102 : f32 to vector<8x128xf32>
    %441 = vector.shape_cast %433 : vector<8x1xi1> to vector<8x1xi1>
    %442 = vector.broadcast %441 : vector<8x1xi1> to vector<8x128xi1>
    %443 = arith.select %442, %430, %440 : vector<8x128xi1>, vector<8x128xf32>
    %444 = arith.index_cast %c8_i32 : i32 to index
    %c0_103 = arith.constant 0 : index
    %c0_104 = arith.constant 0 : index
    %445 = vector.load %arg5[%444, %c0_103, %c0_104] : memref<16x8x128xf32, #tpu.memory_space<vmem>>, vector<1x8x128xf32>
    %446 = vector.shape_cast %445 : vector<1x8x128xf32> to vector<8x128xf32>
    %447 = vector.shape_cast %443 : vector<8x128xf32> to vector<1x8x128xf32>
    tpu.vector_store %arg5[%444, %c0_103, %c0_104], %447 {strides = array<i32>} : memref<16x8x128xf32, #tpu.memory_space<vmem>>, vector<1x8x128xf32>,
    %c9_i32 = arith.constant 9 : i32
    %448 = arith.index_cast %c9_i32 : i32 to index
    %c0_105 = arith.constant 0 : index
    %c0_106 = arith.constant 0 : index
    %449 = vector.load %arg3[%448, %c0_105, %c0_106] : memref<16x8x512xf32, #tpu.memory_space<vmem>>, vector<1x8x512xf32>
    %450 = vector.shape_cast %449 : vector<1x8x512xf32> to vector<8x512xf32>
    %451 = arith.truncf %436 : vector<8x128xf32> to vector<8x128xbf16>
    %c0_107 = arith.constant 0 : index
    %c0_108 = arith.constant 0 : index
    %452 = vector.load %arg4[%c0_107, %c0_108] : memref<128x512xbf16, #tpu.memory_space<vmem>>, vector<128x512xbf16>
    %cst_109 = arith.constant dense<0.000000e+00> : vector<8x512xf32>
    %453 = tpu.matmul %451, %452, %cst_109 {dimension_numbers = #tpu.dot_dimension_numbers<[1], [0], [0], [1], [0, 0, 1, 1], [], []>} : vector<8x128xbf16>, vector<128x512xbf16>, vector<8x512xf32> -> vector<8x512xf32>
    %454 = arith.addf %450, %453 : vector<8x512xf32>
    %455 = vector.extract_strided_slice %454 {offsets = [0, 0], sizes = [8, 128], strides = [1, 1]} : vector<8x512xf32> to vector<8x128xf32>
    %456 = arith.negf %455 : vector<8x128xf32>
    %457 = math.exp %456 : vector<8x128xf32>
    %cst_110 = arith.constant 1.000000e+00 : f32
    %458 = vector.broadcast %cst_110 : f32 to vector<8x128xf32>
    %459 = arith.addf %458, %457 : vector<8x128xf32>
    %460 = arith.divf %458, %459 : vector<8x128xf32>
    %461 = vector.extract_strided_slice %454 {offsets = [0, 128], sizes = [8, 128], strides = [1, 1]} : vector<8x512xf32> to vector<8x128xf32>
    %462 = arith.negf %461 : vector<8x128xf32>
    %463 = math.exp %462 : vector<8x128xf32>
    %cst_111 = arith.constant 1.000000e+00 : f32
    %464 = vector.broadcast %cst_111 : f32 to vector<8x128xf32>
    %465 = arith.addf %464, %463 : vector<8x128xf32>
    %466 = arith.divf %464, %465 : vector<8x128xf32>
    %467 = vector.extract_strided_slice %454 {offsets = [0, 256], sizes = [8, 128], strides = [1, 1]} : vector<8x512xf32> to vector<8x128xf32>
    %468 = math.tanh %467 : vector<8x128xf32>
    %469 = vector.extract_strided_slice %454 {offsets = [0, 384], sizes = [8, 128], strides = [1, 1]} : vector<8x512xf32> to vector<8x128xf32>
    %470 = arith.negf %469 : vector<8x128xf32>
    %471 = math.exp %470 : vector<8x128xf32>
    %cst_112 = arith.constant 1.000000e+00 : f32
    %472 = vector.broadcast %cst_112 : f32 to vector<8x128xf32>
    %473 = arith.addf %472, %471 : vector<8x128xf32>
    %474 = arith.divf %472, %473 : vector<8x128xf32>
    %475 = arith.mulf %466, %439 : vector<8x128xf32>
    %476 = arith.mulf %460, %468 : vector<8x128xf32>
    %477 = arith.addf %475, %476 : vector<8x128xf32>
    %478 = math.tanh %477 : vector<8x128xf32>
    %479 = arith.mulf %474, %478 : vector<8x128xf32>
    %480 = arith.addi %4, %c9_i32 : i32
    %481 = vector.broadcast %480 : i32 to vector<8x1xi32>
    %482 = arith.cmpi slt, %481, %3 : vector<8x1xi32>
    %483 = vector.shape_cast %482 : vector<8x1xi1> to vector<8x1xi1>
    %484 = vector.broadcast %483 : vector<8x1xi1> to vector<8x128xi1>
    %485 = arith.select %484, %479, %436 : vector<8x128xi1>, vector<8x128xf32>
    %486 = vector.shape_cast %482 : vector<8x1xi1> to vector<8x1xi1>
    %487 = vector.broadcast %486 : vector<8x1xi1> to vector<8x128xi1>
    %488 = arith.select %487, %477, %439 : vector<8x128xi1>, vector<8x128xf32>
    %cst_113 = arith.constant 0.000000e+00 : f32
    %489 = vector.broadcast %cst_113 : f32 to vector<8x128xf32>
    %490 = vector.shape_cast %482 : vector<8x1xi1> to vector<8x1xi1>
    %491 = vector.broadcast %490 : vector<8x1xi1> to vector<8x128xi1>
    %492 = arith.select %491, %479, %489 : vector<8x128xi1>, vector<8x128xf32>
    %493 = arith.index_cast %c9_i32 : i32 to index
    %c0_114 = arith.constant 0 : index
    %c0_115 = arith.constant 0 : index
    %494 = vector.load %arg5[%493, %c0_114, %c0_115] : memref<16x8x128xf32, #tpu.memory_space<vmem>>, vector<1x8x128xf32>
    %495 = vector.shape_cast %494 : vector<1x8x128xf32> to vector<8x128xf32>
    %496 = vector.shape_cast %492 : vector<8x128xf32> to vector<1x8x128xf32>
    tpu.vector_store %arg5[%493, %c0_114, %c0_115], %496 {strides = array<i32>} : memref<16x8x128xf32, #tpu.memory_space<vmem>>, vector<1x8x128xf32>,
    %c10_i32 = arith.constant 10 : i32
    %497 = arith.index_cast %c10_i32 : i32 to index
    %c0_116 = arith.constant 0 : index
    %c0_117 = arith.constant 0 : index
    %498 = vector.load %arg3[%497, %c0_116, %c0_117] : memref<16x8x512xf32, #tpu.memory_space<vmem>>, vector<1x8x512xf32>
    %499 = vector.shape_cast %498 : vector<1x8x512xf32> to vector<8x512xf32>
    %500 = arith.truncf %485 : vector<8x128xf32> to vector<8x128xbf16>
    %c0_118 = arith.constant 0 : index
    %c0_119 = arith.constant 0 : index
    %501 = vector.load %arg4[%c0_118, %c0_119] : memref<128x512xbf16, #tpu.memory_space<vmem>>, vector<128x512xbf16>
    %cst_120 = arith.constant dense<0.000000e+00> : vector<8x512xf32>
    %502 = tpu.matmul %500, %501, %cst_120 {dimension_numbers = #tpu.dot_dimension_numbers<[1], [0], [0], [1], [0, 0, 1, 1], [], []>} : vector<8x128xbf16>, vector<128x512xbf16>, vector<8x512xf32> -> vector<8x512xf32>
    %503 = arith.addf %499, %502 : vector<8x512xf32>
    %504 = vector.extract_strided_slice %503 {offsets = [0, 0], sizes = [8, 128], strides = [1, 1]} : vector<8x512xf32> to vector<8x128xf32>
    %505 = arith.negf %504 : vector<8x128xf32>
    %506 = math.exp %505 : vector<8x128xf32>
    %cst_121 = arith.constant 1.000000e+00 : f32
    %507 = vector.broadcast %cst_121 : f32 to vector<8x128xf32>
    %508 = arith.addf %507, %506 : vector<8x128xf32>
    %509 = arith.divf %507, %508 : vector<8x128xf32>
    %510 = vector.extract_strided_slice %503 {offsets = [0, 128], sizes = [8, 128], strides = [1, 1]} : vector<8x512xf32> to vector<8x128xf32>
    %511 = arith.negf %510 : vector<8x128xf32>
    %512 = math.exp %511 : vector<8x128xf32>
    %cst_122 = arith.constant 1.000000e+00 : f32
    %513 = vector.broadcast %cst_122 : f32 to vector<8x128xf32>
    %514 = arith.addf %513, %512 : vector<8x128xf32>
    %515 = arith.divf %513, %514 : vector<8x128xf32>
    %516 = vector.extract_strided_slice %503 {offsets = [0, 256], sizes = [8, 128], strides = [1, 1]} : vector<8x512xf32> to vector<8x128xf32>
    %517 = math.tanh %516 : vector<8x128xf32>
    %518 = vector.extract_strided_slice %503 {offsets = [0, 384], sizes = [8, 128], strides = [1, 1]} : vector<8x512xf32> to vector<8x128xf32>
    %519 = arith.negf %518 : vector<8x128xf32>
    %520 = math.exp %519 : vector<8x128xf32>
    %cst_123 = arith.constant 1.000000e+00 : f32
    %521 = vector.broadcast %cst_123 : f32 to vector<8x128xf32>
    %522 = arith.addf %521, %520 : vector<8x128xf32>
    %523 = arith.divf %521, %522 : vector<8x128xf32>
    %524 = arith.mulf %515, %488 : vector<8x128xf32>
    %525 = arith.mulf %509, %517 : vector<8x128xf32>
    %526 = arith.addf %524, %525 : vector<8x128xf32>
    %527 = math.tanh %526 : vector<8x128xf32>
    %528 = arith.mulf %523, %527 : vector<8x128xf32>
    %529 = arith.addi %4, %c10_i32 : i32
    %530 = vector.broadcast %529 : i32 to vector<8x1xi32>
    %531 = arith.cmpi slt, %530, %3 : vector<8x1xi32>
    %532 = vector.shape_cast %531 : vector<8x1xi1> to vector<8x1xi1>
    %533 = vector.broadcast %532 : vector<8x1xi1> to vector<8x128xi1>
    %534 = arith.select %533, %528, %485 : vector<8x128xi1>, vector<8x128xf32>
    %535 = vector.shape_cast %531 : vector<8x1xi1> to vector<8x1xi1>
    %536 = vector.broadcast %535 : vector<8x1xi1> to vector<8x128xi1>
    %537 = arith.select %536, %526, %488 : vector<8x128xi1>, vector<8x128xf32>
    %cst_124 = arith.constant 0.000000e+00 : f32
    %538 = vector.broadcast %cst_124 : f32 to vector<8x128xf32>
    %539 = vector.shape_cast %531 : vector<8x1xi1> to vector<8x1xi1>
    %540 = vector.broadcast %539 : vector<8x1xi1> to vector<8x128xi1>
    %541 = arith.select %540, %528, %538 : vector<8x128xi1>, vector<8x128xf32>
    %542 = arith.index_cast %c10_i32 : i32 to index
    %c0_125 = arith.constant 0 : index
    %c0_126 = arith.constant 0 : index
    %543 = vector.load %arg5[%542, %c0_125, %c0_126] : memref<16x8x128xf32, #tpu.memory_space<vmem>>, vector<1x8x128xf32>
    %544 = vector.shape_cast %543 : vector<1x8x128xf32> to vector<8x128xf32>
    %545 = vector.shape_cast %541 : vector<8x128xf32> to vector<1x8x128xf32>
    tpu.vector_store %arg5[%542, %c0_125, %c0_126], %545 {strides = array<i32>} : memref<16x8x128xf32, #tpu.memory_space<vmem>>, vector<1x8x128xf32>,
    %c11_i32 = arith.constant 11 : i32
    %546 = arith.index_cast %c11_i32 : i32 to index
    %c0_127 = arith.constant 0 : index
    %c0_128 = arith.constant 0 : index
    %547 = vector.load %arg3[%546, %c0_127, %c0_128] : memref<16x8x512xf32, #tpu.memory_space<vmem>>, vector<1x8x512xf32>
    %548 = vector.shape_cast %547 : vector<1x8x512xf32> to vector<8x512xf32>
    %549 = arith.truncf %534 : vector<8x128xf32> to vector<8x128xbf16>
    %c0_129 = arith.constant 0 : index
    %c0_130 = arith.constant 0 : index
    %550 = vector.load %arg4[%c0_129, %c0_130] : memref<128x512xbf16, #tpu.memory_space<vmem>>, vector<128x512xbf16>
    %cst_131 = arith.constant dense<0.000000e+00> : vector<8x512xf32>
    %551 = tpu.matmul %549, %550, %cst_131 {dimension_numbers = #tpu.dot_dimension_numbers<[1], [0], [0], [1], [0, 0, 1, 1], [], []>} : vector<8x128xbf16>, vector<128x512xbf16>, vector<8x512xf32> -> vector<8x512xf32>
    %552 = arith.addf %548, %551 : vector<8x512xf32>
    %553 = vector.extract_strided_slice %552 {offsets = [0, 0], sizes = [8, 128], strides = [1, 1]} : vector<8x512xf32> to vector<8x128xf32>
    %554 = arith.negf %553 : vector<8x128xf32>
    %555 = math.exp %554 : vector<8x128xf32>
    %cst_132 = arith.constant 1.000000e+00 : f32
    %556 = vector.broadcast %cst_132 : f32 to vector<8x128xf32>
    %557 = arith.addf %556, %555 : vector<8x128xf32>
    %558 = arith.divf %556, %557 : vector<8x128xf32>
    %559 = vector.extract_strided_slice %552 {offsets = [0, 128], sizes = [8, 128], strides = [1, 1]} : vector<8x512xf32> to vector<8x128xf32>
    %560 = arith.negf %559 : vector<8x128xf32>
    %561 = math.exp %560 : vector<8x128xf32>
    %cst_133 = arith.constant 1.000000e+00 : f32
    %562 = vector.broadcast %cst_133 : f32 to vector<8x128xf32>
    %563 = arith.addf %562, %561 : vector<8x128xf32>
    %564 = arith.divf %562, %563 : vector<8x128xf32>
    %565 = vector.extract_strided_slice %552 {offsets = [0, 256], sizes = [8, 128], strides = [1, 1]} : vector<8x512xf32> to vector<8x128xf32>
    %566 = math.tanh %565 : vector<8x128xf32>
    %567 = vector.extract_strided_slice %552 {offsets = [0, 384], sizes = [8, 128], strides = [1, 1]} : vector<8x512xf32> to vector<8x128xf32>
    %568 = arith.negf %567 : vector<8x128xf32>
    %569 = math.exp %568 : vector<8x128xf32>
    %cst_134 = arith.constant 1.000000e+00 : f32
    %570 = vector.broadcast %cst_134 : f32 to vector<8x128xf32>
    %571 = arith.addf %570, %569 : vector<8x128xf32>
    %572 = arith.divf %570, %571 : vector<8x128xf32>
    %573 = arith.mulf %564, %537 : vector<8x128xf32>
    %574 = arith.mulf %558, %566 : vector<8x128xf32>
    %575 = arith.addf %573, %574 : vector<8x128xf32>
    %576 = math.tanh %575 : vector<8x128xf32>
    %577 = arith.mulf %572, %576 : vector<8x128xf32>
    %578 = arith.addi %4, %c11_i32 : i32
    %579 = vector.broadcast %578 : i32 to vector<8x1xi32>
    %580 = arith.cmpi slt, %579, %3 : vector<8x1xi32>
    %581 = vector.shape_cast %580 : vector<8x1xi1> to vector<8x1xi1>
    %582 = vector.broadcast %581 : vector<8x1xi1> to vector<8x128xi1>
    %583 = arith.select %582, %577, %534 : vector<8x128xi1>, vector<8x128xf32>
    %584 = vector.shape_cast %580 : vector<8x1xi1> to vector<8x1xi1>
    %585 = vector.broadcast %584 : vector<8x1xi1> to vector<8x128xi1>
    %586 = arith.select %585, %575, %537 : vector<8x128xi1>, vector<8x128xf32>
    %cst_135 = arith.constant 0.000000e+00 : f32
    %587 = vector.broadcast %cst_135 : f32 to vector<8x128xf32>
    %588 = vector.shape_cast %580 : vector<8x1xi1> to vector<8x1xi1>
    %589 = vector.broadcast %588 : vector<8x1xi1> to vector<8x128xi1>
    %590 = arith.select %589, %577, %587 : vector<8x128xi1>, vector<8x128xf32>
    %591 = arith.index_cast %c11_i32 : i32 to index
    %c0_136 = arith.constant 0 : index
    %c0_137 = arith.constant 0 : index
    %592 = vector.load %arg5[%591, %c0_136, %c0_137] : memref<16x8x128xf32, #tpu.memory_space<vmem>>, vector<1x8x128xf32>
    %593 = vector.shape_cast %592 : vector<1x8x128xf32> to vector<8x128xf32>
    %594 = vector.shape_cast %590 : vector<8x128xf32> to vector<1x8x128xf32>
    tpu.vector_store %arg5[%591, %c0_136, %c0_137], %594 {strides = array<i32>} : memref<16x8x128xf32, #tpu.memory_space<vmem>>, vector<1x8x128xf32>,
    %c12_i32 = arith.constant 12 : i32
    %595 = arith.index_cast %c12_i32 : i32 to index
    %c0_138 = arith.constant 0 : index
    %c0_139 = arith.constant 0 : index
    %596 = vector.load %arg3[%595, %c0_138, %c0_139] : memref<16x8x512xf32, #tpu.memory_space<vmem>>, vector<1x8x512xf32>
    %597 = vector.shape_cast %596 : vector<1x8x512xf32> to vector<8x512xf32>
    %598 = arith.truncf %583 : vector<8x128xf32> to vector<8x128xbf16>
    %c0_140 = arith.constant 0 : index
    %c0_141 = arith.constant 0 : index
    %599 = vector.load %arg4[%c0_140, %c0_141] : memref<128x512xbf16, #tpu.memory_space<vmem>>, vector<128x512xbf16>
    %cst_142 = arith.constant dense<0.000000e+00> : vector<8x512xf32>
    %600 = tpu.matmul %598, %599, %cst_142 {dimension_numbers = #tpu.dot_dimension_numbers<[1], [0], [0], [1], [0, 0, 1, 1], [], []>} : vector<8x128xbf16>, vector<128x512xbf16>, vector<8x512xf32> -> vector<8x512xf32>
    %601 = arith.addf %597, %600 : vector<8x512xf32>
    %602 = vector.extract_strided_slice %601 {offsets = [0, 0], sizes = [8, 128], strides = [1, 1]} : vector<8x512xf32> to vector<8x128xf32>
    %603 = arith.negf %602 : vector<8x128xf32>
    %604 = math.exp %603 : vector<8x128xf32>
    %cst_143 = arith.constant 1.000000e+00 : f32
    %605 = vector.broadcast %cst_143 : f32 to vector<8x128xf32>
    %606 = arith.addf %605, %604 : vector<8x128xf32>
    %607 = arith.divf %605, %606 : vector<8x128xf32>
    %608 = vector.extract_strided_slice %601 {offsets = [0, 128], sizes = [8, 128], strides = [1, 1]} : vector<8x512xf32> to vector<8x128xf32>
    %609 = arith.negf %608 : vector<8x128xf32>
    %610 = math.exp %609 : vector<8x128xf32>
    %cst_144 = arith.constant 1.000000e+00 : f32
    %611 = vector.broadcast %cst_144 : f32 to vector<8x128xf32>
    %612 = arith.addf %611, %610 : vector<8x128xf32>
    %613 = arith.divf %611, %612 : vector<8x128xf32>
    %614 = vector.extract_strided_slice %601 {offsets = [0, 256], sizes = [8, 128], strides = [1, 1]} : vector<8x512xf32> to vector<8x128xf32>
    %615 = math.tanh %614 : vector<8x128xf32>
    %616 = vector.extract_strided_slice %601 {offsets = [0, 384], sizes = [8, 128], strides = [1, 1]} : vector<8x512xf32> to vector<8x128xf32>
    %617 = arith.negf %616 : vector<8x128xf32>
    %618 = math.exp %617 : vector<8x128xf32>
    %cst_145 = arith.constant 1.000000e+00 : f32
    %619 = vector.broadcast %cst_145 : f32 to vector<8x128xf32>
    %620 = arith.addf %619, %618 : vector<8x128xf32>
    %621 = arith.divf %619, %620 : vector<8x128xf32>
    %622 = arith.mulf %613, %586 : vector<8x128xf32>
    %623 = arith.mulf %607, %615 : vector<8x128xf32>
    %624 = arith.addf %622, %623 : vector<8x128xf32>
    %625 = math.tanh %624 : vector<8x128xf32>
    %626 = arith.mulf %621, %625 : vector<8x128xf32>
    %627 = arith.addi %4, %c12_i32 : i32
    %628 = vector.broadcast %627 : i32 to vector<8x1xi32>
    %629 = arith.cmpi slt, %628, %3 : vector<8x1xi32>
    %630 = vector.shape_cast %629 : vector<8x1xi1> to vector<8x1xi1>
    %631 = vector.broadcast %630 : vector<8x1xi1> to vector<8x128xi1>
    %632 = arith.select %631, %626, %583 : vector<8x128xi1>, vector<8x128xf32>
    %633 = vector.shape_cast %629 : vector<8x1xi1> to vector<8x1xi1>
    %634 = vector.broadcast %633 : vector<8x1xi1> to vector<8x128xi1>
    %635 = arith.select %634, %624, %586 : vector<8x128xi1>, vector<8x128xf32>
    %cst_146 = arith.constant 0.000000e+00 : f32
    %636 = vector.broadcast %cst_146 : f32 to vector<8x128xf32>
    %637 = vector.shape_cast %629 : vector<8x1xi1> to vector<8x1xi1>
    %638 = vector.broadcast %637 : vector<8x1xi1> to vector<8x128xi1>
    %639 = arith.select %638, %626, %636 : vector<8x128xi1>, vector<8x128xf32>
    %640 = arith.index_cast %c12_i32 : i32 to index
    %c0_147 = arith.constant 0 : index
    %c0_148 = arith.constant 0 : index
    %641 = vector.load %arg5[%640, %c0_147, %c0_148] : memref<16x8x128xf32, #tpu.memory_space<vmem>>, vector<1x8x128xf32>
    %642 = vector.shape_cast %641 : vector<1x8x128xf32> to vector<8x128xf32>
    %643 = vector.shape_cast %639 : vector<8x128xf32> to vector<1x8x128xf32>
    tpu.vector_store %arg5[%640, %c0_147, %c0_148], %643 {strides = array<i32>} : memref<16x8x128xf32, #tpu.memory_space<vmem>>, vector<1x8x128xf32>,
    %c13_i32 = arith.constant 13 : i32
    %644 = arith.index_cast %c13_i32 : i32 to index
    %c0_149 = arith.constant 0 : index
    %c0_150 = arith.constant 0 : index
    %645 = vector.load %arg3[%644, %c0_149, %c0_150] : memref<16x8x512xf32, #tpu.memory_space<vmem>>, vector<1x8x512xf32>
    %646 = vector.shape_cast %645 : vector<1x8x512xf32> to vector<8x512xf32>
    %647 = arith.truncf %632 : vector<8x128xf32> to vector<8x128xbf16>
    %c0_151 = arith.constant 0 : index
    %c0_152 = arith.constant 0 : index
    %648 = vector.load %arg4[%c0_151, %c0_152] : memref<128x512xbf16, #tpu.memory_space<vmem>>, vector<128x512xbf16>
    %cst_153 = arith.constant dense<0.000000e+00> : vector<8x512xf32>
    %649 = tpu.matmul %647, %648, %cst_153 {dimension_numbers = #tpu.dot_dimension_numbers<[1], [0], [0], [1], [0, 0, 1, 1], [], []>} : vector<8x128xbf16>, vector<128x512xbf16>, vector<8x512xf32> -> vector<8x512xf32>
    %650 = arith.addf %646, %649 : vector<8x512xf32>
    %651 = vector.extract_strided_slice %650 {offsets = [0, 0], sizes = [8, 128], strides = [1, 1]} : vector<8x512xf32> to vector<8x128xf32>
    %652 = arith.negf %651 : vector<8x128xf32>
    %653 = math.exp %652 : vector<8x128xf32>
    %cst_154 = arith.constant 1.000000e+00 : f32
    %654 = vector.broadcast %cst_154 : f32 to vector<8x128xf32>
    %655 = arith.addf %654, %653 : vector<8x128xf32>
    %656 = arith.divf %654, %655 : vector<8x128xf32>
    %657 = vector.extract_strided_slice %650 {offsets = [0, 128], sizes = [8, 128], strides = [1, 1]} : vector<8x512xf32> to vector<8x128xf32>
    %658 = arith.negf %657 : vector<8x128xf32>
    %659 = math.exp %658 : vector<8x128xf32>
    %cst_155 = arith.constant 1.000000e+00 : f32
    %660 = vector.broadcast %cst_155 : f32 to vector<8x128xf32>
    %661 = arith.addf %660, %659 : vector<8x128xf32>
    %662 = arith.divf %660, %661 : vector<8x128xf32>
    %663 = vector.extract_strided_slice %650 {offsets = [0, 256], sizes = [8, 128], strides = [1, 1]} : vector<8x512xf32> to vector<8x128xf32>
    %664 = math.tanh %663 : vector<8x128xf32>
    %665 = vector.extract_strided_slice %650 {offsets = [0, 384], sizes = [8, 128], strides = [1, 1]} : vector<8x512xf32> to vector<8x128xf32>
    %666 = arith.negf %665 : vector<8x128xf32>
    %667 = math.exp %666 : vector<8x128xf32>
    %cst_156 = arith.constant 1.000000e+00 : f32
    %668 = vector.broadcast %cst_156 : f32 to vector<8x128xf32>
    %669 = arith.addf %668, %667 : vector<8x128xf32>
    %670 = arith.divf %668, %669 : vector<8x128xf32>
    %671 = arith.mulf %662, %635 : vector<8x128xf32>
    %672 = arith.mulf %656, %664 : vector<8x128xf32>
    %673 = arith.addf %671, %672 : vector<8x128xf32>
    %674 = math.tanh %673 : vector<8x128xf32>
    %675 = arith.mulf %670, %674 : vector<8x128xf32>
    %676 = arith.addi %4, %c13_i32 : i32
    %677 = vector.broadcast %676 : i32 to vector<8x1xi32>
    %678 = arith.cmpi slt, %677, %3 : vector<8x1xi32>
    %679 = vector.shape_cast %678 : vector<8x1xi1> to vector<8x1xi1>
    %680 = vector.broadcast %679 : vector<8x1xi1> to vector<8x128xi1>
    %681 = arith.select %680, %675, %632 : vector<8x128xi1>, vector<8x128xf32>
    %682 = vector.shape_cast %678 : vector<8x1xi1> to vector<8x1xi1>
    %683 = vector.broadcast %682 : vector<8x1xi1> to vector<8x128xi1>
    %684 = arith.select %683, %673, %635 : vector<8x128xi1>, vector<8x128xf32>
    %cst_157 = arith.constant 0.000000e+00 : f32
    %685 = vector.broadcast %cst_157 : f32 to vector<8x128xf32>
    %686 = vector.shape_cast %678 : vector<8x1xi1> to vector<8x1xi1>
    %687 = vector.broadcast %686 : vector<8x1xi1> to vector<8x128xi1>
    %688 = arith.select %687, %675, %685 : vector<8x128xi1>, vector<8x128xf32>
    %689 = arith.index_cast %c13_i32 : i32 to index
    %c0_158 = arith.constant 0 : index
    %c0_159 = arith.constant 0 : index
    %690 = vector.load %arg5[%689, %c0_158, %c0_159] : memref<16x8x128xf32, #tpu.memory_space<vmem>>, vector<1x8x128xf32>
    %691 = vector.shape_cast %690 : vector<1x8x128xf32> to vector<8x128xf32>
    %692 = vector.shape_cast %688 : vector<8x128xf32> to vector<1x8x128xf32>
    tpu.vector_store %arg5[%689, %c0_158, %c0_159], %692 {strides = array<i32>} : memref<16x8x128xf32, #tpu.memory_space<vmem>>, vector<1x8x128xf32>,
    %c14_i32 = arith.constant 14 : i32
    %693 = arith.index_cast %c14_i32 : i32 to index
    %c0_160 = arith.constant 0 : index
    %c0_161 = arith.constant 0 : index
    %694 = vector.load %arg3[%693, %c0_160, %c0_161] : memref<16x8x512xf32, #tpu.memory_space<vmem>>, vector<1x8x512xf32>
    %695 = vector.shape_cast %694 : vector<1x8x512xf32> to vector<8x512xf32>
    %696 = arith.truncf %681 : vector<8x128xf32> to vector<8x128xbf16>
    %c0_162 = arith.constant 0 : index
    %c0_163 = arith.constant 0 : index
    %697 = vector.load %arg4[%c0_162, %c0_163] : memref<128x512xbf16, #tpu.memory_space<vmem>>, vector<128x512xbf16>
    %cst_164 = arith.constant dense<0.000000e+00> : vector<8x512xf32>
    %698 = tpu.matmul %696, %697, %cst_164 {dimension_numbers = #tpu.dot_dimension_numbers<[1], [0], [0], [1], [0, 0, 1, 1], [], []>} : vector<8x128xbf16>, vector<128x512xbf16>, vector<8x512xf32> -> vector<8x512xf32>
    %699 = arith.addf %695, %698 : vector<8x512xf32>
    %700 = vector.extract_strided_slice %699 {offsets = [0, 0], sizes = [8, 128], strides = [1, 1]} : vector<8x512xf32> to vector<8x128xf32>
    %701 = arith.negf %700 : vector<8x128xf32>
    %702 = math.exp %701 : vector<8x128xf32>
    %cst_165 = arith.constant 1.000000e+00 : f32
    %703 = vector.broadcast %cst_165 : f32 to vector<8x128xf32>
    %704 = arith.addf %703, %702 : vector<8x128xf32>
    %705 = arith.divf %703, %704 : vector<8x128xf32>
    %706 = vector.extract_strided_slice %699 {offsets = [0, 128], sizes = [8, 128], strides = [1, 1]} : vector<8x512xf32> to vector<8x128xf32>
    %707 = arith.negf %706 : vector<8x128xf32>
    %708 = math.exp %707 : vector<8x128xf32>
    %cst_166 = arith.constant 1.000000e+00 : f32
    %709 = vector.broadcast %cst_166 : f32 to vector<8x128xf32>
    %710 = arith.addf %709, %708 : vector<8x128xf32>
    %711 = arith.divf %709, %710 : vector<8x128xf32>
    %712 = vector.extract_strided_slice %699 {offsets = [0, 256], sizes = [8, 128], strides = [1, 1]} : vector<8x512xf32> to vector<8x128xf32>
    %713 = math.tanh %712 : vector<8x128xf32>
    %714 = vector.extract_strided_slice %699 {offsets = [0, 384], sizes = [8, 128], strides = [1, 1]} : vector<8x512xf32> to vector<8x128xf32>
    %715 = arith.negf %714 : vector<8x128xf32>
    %716 = math.exp %715 : vector<8x128xf32>
    %cst_167 = arith.constant 1.000000e+00 : f32
    %717 = vector.broadcast %cst_167 : f32 to vector<8x128xf32>
    %718 = arith.addf %717, %716 : vector<8x128xf32>
    %719 = arith.divf %717, %718 : vector<8x128xf32>
    %720 = arith.mulf %711, %684 : vector<8x128xf32>
    %721 = arith.mulf %705, %713 : vector<8x128xf32>
    %722 = arith.addf %720, %721 : vector<8x128xf32>
    %723 = math.tanh %722 : vector<8x128xf32>
    %724 = arith.mulf %719, %723 : vector<8x128xf32>
    %725 = arith.addi %4, %c14_i32 : i32
    %726 = vector.broadcast %725 : i32 to vector<8x1xi32>
    %727 = arith.cmpi slt, %726, %3 : vector<8x1xi32>
    %728 = vector.shape_cast %727 : vector<8x1xi1> to vector<8x1xi1>
    %729 = vector.broadcast %728 : vector<8x1xi1> to vector<8x128xi1>
    %730 = arith.select %729, %724, %681 : vector<8x128xi1>, vector<8x128xf32>
    %731 = vector.shape_cast %727 : vector<8x1xi1> to vector<8x1xi1>
    %732 = vector.broadcast %731 : vector<8x1xi1> to vector<8x128xi1>
    %733 = arith.select %732, %722, %684 : vector<8x128xi1>, vector<8x128xf32>
    %cst_168 = arith.constant 0.000000e+00 : f32
    %734 = vector.broadcast %cst_168 : f32 to vector<8x128xf32>
    %735 = vector.shape_cast %727 : vector<8x1xi1> to vector<8x1xi1>
    %736 = vector.broadcast %735 : vector<8x1xi1> to vector<8x128xi1>
    %737 = arith.select %736, %724, %734 : vector<8x128xi1>, vector<8x128xf32>
    %738 = arith.index_cast %c14_i32 : i32 to index
    %c0_169 = arith.constant 0 : index
    %c0_170 = arith.constant 0 : index
    %739 = vector.load %arg5[%738, %c0_169, %c0_170] : memref<16x8x128xf32, #tpu.memory_space<vmem>>, vector<1x8x128xf32>
    %740 = vector.shape_cast %739 : vector<1x8x128xf32> to vector<8x128xf32>
    %741 = vector.shape_cast %737 : vector<8x128xf32> to vector<1x8x128xf32>
    tpu.vector_store %arg5[%738, %c0_169, %c0_170], %741 {strides = array<i32>} : memref<16x8x128xf32, #tpu.memory_space<vmem>>, vector<1x8x128xf32>,
    %c15_i32 = arith.constant 15 : i32
    %742 = arith.index_cast %c15_i32 : i32 to index
    %c0_171 = arith.constant 0 : index
    %c0_172 = arith.constant 0 : index
    %743 = vector.load %arg3[%742, %c0_171, %c0_172] : memref<16x8x512xf32, #tpu.memory_space<vmem>>, vector<1x8x512xf32>
    %744 = vector.shape_cast %743 : vector<1x8x512xf32> to vector<8x512xf32>
    %745 = arith.truncf %730 : vector<8x128xf32> to vector<8x128xbf16>
    %c0_173 = arith.constant 0 : index
    %c0_174 = arith.constant 0 : index
    %746 = vector.load %arg4[%c0_173, %c0_174] : memref<128x512xbf16, #tpu.memory_space<vmem>>, vector<128x512xbf16>
    %cst_175 = arith.constant dense<0.000000e+00> : vector<8x512xf32>
    %747 = tpu.matmul %745, %746, %cst_175 {dimension_numbers = #tpu.dot_dimension_numbers<[1], [0], [0], [1], [0, 0, 1, 1], [], []>} : vector<8x128xbf16>, vector<128x512xbf16>, vector<8x512xf32> -> vector<8x512xf32>
    %748 = arith.addf %744, %747 : vector<8x512xf32>
    %749 = vector.extract_strided_slice %748 {offsets = [0, 0], sizes = [8, 128], strides = [1, 1]} : vector<8x512xf32> to vector<8x128xf32>
    %750 = arith.negf %749 : vector<8x128xf32>
    %751 = math.exp %750 : vector<8x128xf32>
    %cst_176 = arith.constant 1.000000e+00 : f32
    %752 = vector.broadcast %cst_176 : f32 to vector<8x128xf32>
    %753 = arith.addf %752, %751 : vector<8x128xf32>
    %754 = arith.divf %752, %753 : vector<8x128xf32>
    %755 = vector.extract_strided_slice %748 {offsets = [0, 128], sizes = [8, 128], strides = [1, 1]} : vector<8x512xf32> to vector<8x128xf32>
    %756 = arith.negf %755 : vector<8x128xf32>
    %757 = math.exp %756 : vector<8x128xf32>
    %cst_177 = arith.constant 1.000000e+00 : f32
    %758 = vector.broadcast %cst_177 : f32 to vector<8x128xf32>
    %759 = arith.addf %758, %757 : vector<8x128xf32>
    %760 = arith.divf %758, %759 : vector<8x128xf32>
    %761 = vector.extract_strided_slice %748 {offsets = [0, 256], sizes = [8, 128], strides = [1, 1]} : vector<8x512xf32> to vector<8x128xf32>
    %762 = math.tanh %761 : vector<8x128xf32>
    %763 = vector.extract_strided_slice %748 {offsets = [0, 384], sizes = [8, 128], strides = [1, 1]} : vector<8x512xf32> to vector<8x128xf32>
    %764 = arith.negf %763 : vector<8x128xf32>
    %765 = math.exp %764 : vector<8x128xf32>
    %cst_178 = arith.constant 1.000000e+00 : f32
    %766 = vector.broadcast %cst_178 : f32 to vector<8x128xf32>
    %767 = arith.addf %766, %765 : vector<8x128xf32>
    %768 = arith.divf %766, %767 : vector<8x128xf32>
    %769 = arith.mulf %760, %733 : vector<8x128xf32>
    %770 = arith.mulf %754, %762 : vector<8x128xf32>
    %771 = arith.addf %769, %770 : vector<8x128xf32>
    %772 = math.tanh %771 : vector<8x128xf32>
    %773 = arith.mulf %768, %772 : vector<8x128xf32>
    %774 = arith.addi %4, %c15_i32 : i32
    %775 = vector.broadcast %774 : i32 to vector<8x1xi32>
    %776 = arith.cmpi slt, %775, %3 : vector<8x1xi32>
    %777 = vector.shape_cast %776 : vector<8x1xi1> to vector<8x1xi1>
    %778 = vector.broadcast %777 : vector<8x1xi1> to vector<8x128xi1>
    %779 = arith.select %778, %773, %730 : vector<8x128xi1>, vector<8x128xf32>
    %780 = vector.shape_cast %776 : vector<8x1xi1> to vector<8x1xi1>
    %781 = vector.broadcast %780 : vector<8x1xi1> to vector<8x128xi1>
    %782 = arith.select %781, %771, %733 : vector<8x128xi1>, vector<8x128xf32>
    %cst_179 = arith.constant 0.000000e+00 : f32
    %783 = vector.broadcast %cst_179 : f32 to vector<8x128xf32>
    %784 = vector.shape_cast %776 : vector<8x1xi1> to vector<8x1xi1>
    %785 = vector.broadcast %784 : vector<8x1xi1> to vector<8x128xi1>
    %786 = arith.select %785, %773, %783 : vector<8x128xi1>, vector<8x128xf32>
    %787 = arith.index_cast %c15_i32 : i32 to index
    %c0_180 = arith.constant 0 : index
    %c0_181 = arith.constant 0 : index
    %788 = vector.load %arg5[%787, %c0_180, %c0_181] : memref<16x8x128xf32, #tpu.memory_space<vmem>>, vector<1x8x128xf32>
    %789 = vector.shape_cast %788 : vector<1x8x128xf32> to vector<8x128xf32>
    %790 = vector.shape_cast %786 : vector<8x128xf32> to vector<1x8x128xf32>
    tpu.vector_store %arg5[%787, %c0_180, %c0_181], %790 {strides = array<i32>} : memref<16x8x128xf32, #tpu.memory_space<vmem>>, vector<1x8x128xf32>,
    %c16_i32_182 = arith.constant 16 : i32
    %c0_183 = arith.constant 0 : index
    %c0_184 = arith.constant 0 : index
    %791 = vector.load %arg8[%c0_183, %c0_184] : memref<8x128xf32, #tpu.memory_space<vmem>>, vector<8x128xf32>
    tpu.vector_store %arg8[%c0_183, %c0_184], %779 {strides = array<i32>} : memref<8x128xf32, #tpu.memory_space<vmem>>, vector<8x128xf32>,
    %c0_185 = arith.constant 0 : index
    %c0_186 = arith.constant 0 : index
    %792 = vector.load %arg9[%c0_185, %c0_186] : memref<8x128xf32, #tpu.memory_space<vmem>>, vector<8x128xf32>
    tpu.vector_store %arg9[%c0_185, %c0_186], %782 {strides = array<i32>} : memref<8x128xf32, #tpu.memory_space<vmem>>, vector<8x128xf32>,
    %c0_i32_187 = arith.constant 0 : i32
    %793 = arith.cmpi eq, %arg1, %c0_i32_187 : i32
    %794 = arith.extui %793 : i1 to i32
    %c0_i32_188 = arith.constant 0 : i32
    %795 = arith.cmpi ne, %794, %c0_i32_188 : i32
    scf.if %795 {
      %c0_189 = arith.constant 0 : index
      %c0_190 = arith.constant 0 : index
      %796 = vector.load %arg6[%c0_189, %c0_190] : memref<8x128xf32, #tpu.memory_space<vmem>>, vector<8x128xf32>
      tpu.vector_store %arg6[%c0_189, %c0_190], %779 {strides = array<i32>} : memref<8x128xf32, #tpu.memory_space<vmem>>, vector<8x128xf32>,
      %c0_191 = arith.constant 0 : index
      %c0_192 = arith.constant 0 : index
      %797 = vector.load %arg7[%c0_191, %c0_192] : memref<8x128xf32, #tpu.memory_space<vmem>>, vector<8x128xf32>
      tpu.vector_store %arg7[%c0_191, %c0_192], %782 {strides = array<i32>} : memref<8x128xf32, #tpu.memory_space<vmem>>, vector<8x128xf32>,
    } else {
    }
    return
  }
  func.func @transform_0(%arg0: i32, %arg1: i32) -> (i32, i32) {
    %c0_i32 = arith.constant 0 : i32
    %c0_i32_0 = arith.constant 0 : i32
    return %arg0, %c0_i32 : i32, i32
  }
  func.func @transform_1(%arg0: i32, %arg1: i32) -> (i32, i32, i32) {
    %c0_i32 = arith.constant 0 : i32
    %c0_i32_0 = arith.constant 0 : i32
    return %arg1, %arg0, %c0_i32 : i32, i32, i32
  }
  func.func @transform_2(%arg0: i32, %arg1: i32) -> (i32, i32) {
    %c0_i32 = arith.constant 0 : i32
    %c0_i32_0 = arith.constant 0 : i32
    %c0_i32_1 = arith.constant 0 : i32
    return %c0_i32, %c0_i32_0 : i32, i32
  }
  func.func @transform_3(%arg0: i32, %arg1: i32) -> (i32, i32, i32) {
    %c0_i32 = arith.constant 0 : i32
    %c0_i32_0 = arith.constant 0 : i32
    return %arg1, %arg0, %c0_i32 : i32, i32, i32
  }
  func.func @transform_4(%arg0: i32, %arg1: i32) -> (i32, i32) {
    %c0_i32 = arith.constant 0 : i32
    %c0_i32_0 = arith.constant 0 : i32
    return %arg0, %c0_i32 : i32, i32
  }
  func.func @transform_5(%arg0: i32, %arg1: i32) -> (i32, i32) {
    %c0_i32 = arith.constant 0 : i32
    %c0_i32_0 = arith.constant 0 : i32
    return %arg0, %c0_i32 : i32, i32
  }
}

</mosaic_0001>

<llo_original>
// kernel: rnn_forward.9
$region0: #{rnn_forward.9}
  #allocation0 [shape = 'u32[]', space=smem, size = 0x4, offset = 0x4, fixed_abs, tag = 'smem constant byte address 0x4 - core index']
  #allocation1 [shape = 'u32[144,128]{1,0:T(1,128)}', space=vmem, size = 0x12000, scoped, tag = 'internal scratch']
  #allocation2 [shape = 'f32[128,128]{1,0:T(8,128)}', space=vmem, size = 0x10000, scoped, tag = 'scratch operand']
  %s0 = inlined_call_operand.vmem [shape: bf16[128,128], index: 0, kind: input, shape index: {}]
  %s1 = inlined_call_operand.vmem [shape: bf16[128,128], index: 1, kind: input, shape index: {}]
  %s2 = inlined_call_operand.vmem [shape: f32[1,128], index: 2, kind: input, shape index: {}]
  %s3 = inlined_call_operand.vmem [shape: f32[128,128], index: 3, kind: output, shape index: {}]
  %s4 = sld [smem:[#allocation0]]
  $region30: #{rnn_forward.9} parent=0
    _
  %s6 = ssub.s32 1, %s4
  %s7 = scalar_select 0, %s6, %s4
  // Predicated region
  $region2: #{rnn_forward.9} parent=0 // pred_check
    _
  $region3: #{rnn_forward.9} parent=0 // pred_check_branch
    %9 = sbr.rel (0) target = $region5
  $region4: #{rnn_forward.9} parent=0 // pred_region
    _
  $region5: #{rnn_forward.9} parent=0 // pred_fallthru
    _
  // Predicated region
  $region6: #{rnn_forward.9} parent=0 // pred_check
    _
  $region7: #{rnn_forward.9} parent=0 // pred_check_branch
    %11 = sbr.rel (0) target = $region9
  $region8: #{rnn_forward.9} parent=0 // pred_region
    _
  $region9: #{rnn_forward.9} parent=0 // pred_fallthru
    _
  // Predicated region
  $region10: #{rnn_forward.9} parent=0 // pred_check
    _
  $region11: #{rnn_forward.9} parent=0 // pred_check_branch
    %13 = sbr.rel (0) target = $region13
  $region12: #{rnn_forward.9} parent=0 // pred_region
    _
  $region13: #{rnn_forward.9} parent=0 // pred_fallthru
    _
  %p15 = scmp.eq.s32.totalorder 0, 0
  // Predicated region
  $region14: #{rnn_forward.9} parent=0 // pred_check
    %p16 = pneg %p15
  $region15: #{rnn_forward.9} parent=0 // pred_check_branch
    %18 = sbr.rel (%p16) target = $region17
  $region16: #{rnn_forward.9} parent=0 // pred_region
    %19 = vst [vmem:[#allocation2] sm:$0xff] 0.0
    %20 = vst [vmem:[#allocation2 + $0x8] sm:$0xff] 0.0
    %21 = vst [vmem:[#allocation2 + $0x10] sm:$0xff] 0.0
    %22 = vst [vmem:[#allocation2 + $0x18] sm:$0xff] 0.0
    %23 = vst [vmem:[#allocation2 + $0x20] sm:$0xff] 0.0
    %24 = vst [vmem:[#allocation2 + $0x28] sm:$0xff] 0.0
    %25 = vst [vmem:[#allocation2 + $0x30] sm:$0xff] 0.0
    %26 = vst [vmem:[#allocation2 + $0x38] sm:$0xff] 0.0
    %27 = vst [vmem:[#allocation2 + $0x40] sm:$0xff] 0.0
    %28 = vst [vmem:[#allocation2 + $0x48] sm:$0xff] 0.0
    %29 = vst [vmem:[#allocation2 + $0x50] sm:$0xff] 0.0
    %30 = vst [vmem:[#allocation2 + $0x58] sm:$0xff] 0.0
    %31 = vst [vmem:[#allocation2 + $0x60] sm:$0xff] 0.0
    %32 = vst [vmem:[#allocation2 + $0x68] sm:$0xff] 0.0
    %33 = vst [vmem:[#allocation2 + $0x70] sm:$0xff] 0.0
    %34 = vst [vmem:[#allocation2 + $0x78] sm:$0xff] 0.0
  $region17: #{rnn_forward.9} parent=0 // pred_fallthru
    _
  %v35 = vld [vmem:[#allocation2] sm:$0xff]
  %v36 = vld [vmem:[#allocation2 + $0x8] sm:$0xff]
  %v37 = vld [vmem:[#allocation2 + $0x10] sm:$0xff]
  %v38 = vld [vmem:[#allocation2 + $0x18] sm:$0xff]
  %v39 = vld [vmem:[#allocation2 + $0x20] sm:$0xff]
  %v40 = vld [vmem:[#allocation2 + $0x28] sm:$0xff]
  %v41 = vld [vmem:[#allocation2 + $0x30] sm:$0xff]
  %v42 = vld [vmem:[#allocation2 + $0x38] sm:$0xff]
  %v43 = vld [vmem:[#allocation2 + $0x40] sm:$0xff]
  %v44 = vld [vmem:[#allocation2 + $0x48] sm:$0xff]
  %v45 = vld [vmem:[#allocation2 + $0x50] sm:$0xff]
  %v46 = vld [vmem:[#allocation2 + $0x58] sm:$0xff]
  %v47 = vld [vmem:[#allocation2 + $0x60] sm:$0xff]
  %v48 = vld [vmem:[#allocation2 + $0x68] sm:$0xff]
  %v49 = vld [vmem:[#allocation2 + $0x70] sm:$0xff]
  %v50 = vld [vmem:[#allocation2 + $0x78] sm:$0xff]
  %v51 = vld [vmem:[%s0] sm:$0xf]
  %v52 = vld [vmem:[%s0 + $0x4] sm:$0xf]
  %v53 = vld [vmem:[%s0 + $0x8] sm:$0xf]
  %v54 = vld [vmem:[%s0 + $0xc] sm:$0xf]
  %v55 = vld [vmem:[%s0 + $0x10] sm:$0xf]
  %v56 = vld [vmem:[%s0 + $0x14] sm:$0xf]
  %v57 = vld [vmem:[%s0 + $0x18] sm:$0xf]
  %v58 = vld [vmem:[%s0 + $0x1c] sm:$0xf]
  %v59 = vld [vmem:[%s0 + $0x20] sm:$0xf]
  %v60 = vld [vmem:[%s0 + $0x24] sm:$0xf]
  %v61 = vld [vmem:[%s0 + $0x28] sm:$0xf]
  %v62 = vld [vmem:[%s0 + $0x2c] sm:$0xf]
  %v63 = vld [vmem:[%s0 + $0x30] sm:$0xf]
  %v64 = vld [vmem:[%s0 + $0x34] sm:$0xf]
  %v65 = vld [vmem:[%s0 + $0x38] sm:$0xf]
  %v66 = vld [vmem:[%s0 + $0x3c] sm:$0xf]
  %v67 = vld [vmem:[%s1] sm:$0xf]
  %v68 = vld [vmem:[%s1 + $0x4] sm:$0xf]
  %v69 = vld [vmem:[%s1 + $0x8] sm:$0xf]
  %v70 = vld [vmem:[%s1 + $0xc] sm:$0xf]
  %v71 = vld [vmem:[%s1 + $0x10] sm:$0xf]
  %v72 = vld [vmem:[%s1 + $0x14] sm:$0xf]
  %v73 = vld [vmem:[%s1 + $0x18] sm:$0xf]
  %v74 = vld [vmem:[%s1 + $0x1c] sm:$0xf]
  %v75 = vld [vmem:[%s1 + $0x20] sm:$0xf]
  %v76 = vld [vmem:[%s1 + $0x24] sm:$0xf]
  %v77 = vld [vmem:[%s1 + $0x28] sm:$0xf]
  %v78 = vld [vmem:[%s1 + $0x2c] sm:$0xf]
  %v79 = vld [vmem:[%s1 + $0x30] sm:$0xf]
  %v80 = vld [vmem:[%s1 + $0x34] sm:$0xf]
  %v81 = vld [vmem:[%s1 + $0x38] sm:$0xf]
  %v82 = vld [vmem:[%s1 + $0x3c] sm:$0xf]
  %v99 = vunpack.c.l.b16 %v51
  %v100 = vunpack.c.l.b16 %v52
  %v101 = vunpack.c.l.b16 %v53
  %v102 = vunpack.c.l.b16 %v54
  %v103 = vunpack.c.l.b16 %v55
  %v104 = vunpack.c.l.b16 %v56
  %v105 = vunpack.c.l.b16 %v57
  %v106 = vunpack.c.l.b16 %v58
  %v107 = vunpack.c.l.b16 %v59
  %v108 = vunpack.c.l.b16 %v60
  %v109 = vunpack.c.l.b16 %v61
  %v110 = vunpack.c.l.b16 %v62
  %v111 = vunpack.c.l.b16 %v63
  %v112 = vunpack.c.l.b16 %v64
  %v113 = vunpack.c.l.b16 %v65
  %v114 = vunpack.c.l.b16 %v66
  %v115 = vpack.c.b16 %v100, %v99
  %v116 = vpack.c.b16 %v102, %v101
  %v117 = vpack.c.b16 %v104, %v103
  %v118 = vpack.c.b16 %v106, %v105
  %v119 = vpack.c.b16 %v108, %v107
  %v120 = vpack.c.b16 %v110, %v109
  %v121 = vpack.c.b16 %v112, %v111
  %v122 = vpack.c.b16 %v114, %v113
  %v147 = vunpack.c.l.b16 %v67
  %v148 = vunpack.c.l.b16 %v68
  %v149 = vunpack.c.l.b16 %v69
  %v150 = vunpack.c.l.b16 %v70
  %v151 = vunpack.c.l.b16 %v71
  %v152 = vunpack.c.l.b16 %v72
  %v153 = vunpack.c.l.b16 %v73
  %v154 = vunpack.c.l.b16 %v74
  %v155 = vunpack.c.l.b16 %v75
  %v156 = vunpack.c.l.b16 %v76
  %v157 = vunpack.c.l.b16 %v77
  %v158 = vunpack.c.l.b16 %v78
  %v159 = vunpack.c.l.b16 %v79
  %v160 = vunpack.c.l.b16 %v80
  %v161 = vunpack.c.l.b16 %v81
  %v162 = vunpack.c.l.b16 %v82
  %v163 = vpack.c.b16 %v148, %v147
  %v164 = vpack.c.b16 %v150, %v149
  %v165 = vpack.c.b16 %v152, %v151
  %v166 = vpack.c.b16 %v154, %v153
  %v167 = vpack.c.b16 %v156, %v155
  %v168 = vpack.c.b16 %v158, %v157
  %v169 = vpack.c.b16 %v160, %v159
  %v170 = vpack.c.b16 %v162, %v161
  %179 = vmatprep.subr.bf16.mxu0 0
  %180 = vmatpush1.bf16.msra.mxu0 %v170
  %181 = vmatprep.subr.bf16.mxu0 0
  %182 = vmatpush1.bf16.msra.mxu0 %v169
  %183 = vmatprep.subr.bf16.mxu0 0
  %184 = vmatpush1.bf16.msra.mxu0 %v168
  %185 = vmatprep.subr.bf16.mxu0 0
  %186 = vmatpush1.bf16.msra.mxu0 %v167
  %187 = vmatprep.subr.bf16.mxu0 0
  %188 = vmatpush1.bf16.msra.mxu0 %v166
  %189 = vmatprep.subr.bf16.mxu0 0
  %190 = vmatpush1.bf16.msra.mxu0 %v165
  %191 = vmatprep.subr.bf16.mxu0 0
  %192 = vmatpush1.bf16.msra.mxu0 %v164
  %193 = vmatprep.subr.bf16.mxu0 0
  %194 = vmatpush1.bf16.msra.mxu0 %v163
  %195 = vmatprep.subr.bf16.mxu0 0
  %196 = vmatpush2.bf16.msra.mxu0 0
  %197 = vmatprep.subr.bf16.mxu0 0
  %198 = vmatpush2.bf16.msra.mxu0 0
  %199 = vmatprep.subr.bf16.mxu0 0
  %200 = vmatpush2.bf16.msra.mxu0 0
  %201 = vmatprep.subr.bf16.mxu0 0
  %202 = vmatpush2.bf16.msra.mxu0 0
  %203 = vmatprep.subr.bf16.mxu0 0
  %204 = vmatpush2.bf16.msra.mxu0 0
  %205 = vmatprep.subr.bf16.mxu0 0
  %206 = vmatpush2.bf16.msra.mxu0 0
  %207 = vmatprep.subr.bf16.mxu0 0
  %208 = vmatpush2.bf16.msra.mxu0 0
  %209 = vmatprep.subr.bf16.mxu0 0
  %210 = vmatpush2.bf16.msra.mxu0 0
  %211 = vmatprep.mubr.bf16.mxu0 0
  %212 = vmatmul.mubr.bf16.gmra.mxu0 %v115
  %v213 = vpop.f32.mrf.mxu0
  %v214 = vadd.f32 0.0, %v213
  %v215 = vpop.f32.mrf.mxu0
  %v216 = vpop.f32.mrf.mxu0
  %v217 = vadd.f32 0.0, %v216
  %v218 = vpop.f32.mrf.mxu0
  %219 = vmatprep.mubr.bf16.mxu0 0
  %220 = vmatmul.mubr.bf16.gmra.mxu0 %v116
  %v221 = vpop.f32.mrf.mxu0
  %v222 = vadd.f32 0.0, %v221
  %v223 = vpop.f32.mrf.mxu0
  %v224 = vpop.f32.mrf.mxu0
  %v225 = vadd.f32 0.0, %v224
  %v226 = vpop.f32.mrf.mxu0
  %227 = vmatprep.mubr.bf16.mxu0 0
  %228 = vmatmul.mubr.bf16.gmra.mxu0 %v117
  %v229 = vpop.f32.mrf.mxu0
  %v230 = vadd.f32 0.0, %v229
  %v231 = vpop.f32.mrf.mxu0
  %v232 = vpop.f32.mrf.mxu0
  %v233 = vadd.f32 0.0, %v232
  %v234 = vpop.f32.mrf.mxu0
  %235 = vmatprep.mubr.bf16.mxu0 0
  %236 = vmatmul.mubr.bf16.gmra.mxu0 %v118
  %v237 = vpop.f32.mrf.mxu0
  %v238 = vadd.f32 0.0, %v237
  %v239 = vpop.f32.mrf.mxu0
  %v240 = vpop.f32.mrf.mxu0
  %v241 = vadd.f32 0.0, %v240
  %v242 = vpop.f32.mrf.mxu0
  %243 = vmatprep.mubr.bf16.mxu0 0
  %244 = vmatmul.mubr.bf16.gmra.mxu0 %v119
  %v245 = vpop.f32.mrf.mxu0
  %v246 = vadd.f32 0.0, %v245
  %v247 = vpop.f32.mrf.mxu0
  %v248 = vpop.f32.mrf.mxu0
  %v249 = vadd.f32 0.0, %v248
  %v250 = vpop.f32.mrf.mxu0
  %251 = vmatprep.mubr.bf16.mxu0 0
  %252 = vmatmul.mubr.bf16.gmra.mxu0 %v120
  %v253 = vpop.f32.mrf.mxu0
  %v254 = vadd.f32 0.0, %v253
  %v255 = vpop.f32.mrf.mxu0
  %v256 = vpop.f32.mrf.mxu0
  %v257 = vadd.f32 0.0, %v256
  %v258 = vpop.f32.mrf.mxu0
  %259 = vmatprep.mubr.bf16.mxu0 0
  %260 = vmatmul.mubr.bf16.gmra.mxu0 %v121
  %v261 = vpop.f32.mrf.mxu0
  %v262 = vadd.f32 0.0, %v261
  %v263 = vpop.f32.mrf.mxu0
  %v264 = vpop.f32.mrf.mxu0
  %v265 = vadd.f32 0.0, %v264
  %v266 = vpop.f32.mrf.mxu0
  %267 = vmatprep.mubr.bf16.mxu0 0
  %268 = vmatmul.mubr.bf16.gmra.mxu0 %v122
  %v269 = vpop.f32.mrf.mxu0
  %v270 = vadd.f32 0.0, %v269
  %v271 = vpop.f32.mrf.mxu0
  %v272 = vpop.f32.mrf.mxu0
  %v273 = vadd.f32 0.0, %v272
  %v274 = vpop.f32.mrf.mxu0
  %275 = vdwg.mxu0
  %v276 = vadd.f32 %v35, %v214
  %v277 = vadd.f32 %v36, %v217
  %v278 = vadd.f32 %v37, %v222
  %v279 = vadd.f32 %v38, %v225
  %v280 = vadd.f32 %v39, %v230
  %v281 = vadd.f32 %v40, %v233
  %v282 = vadd.f32 %v41, %v238
  %v283 = vadd.f32 %v42, %v241
  %v284 = vadd.f32 %v43, %v246
  %v285 = vadd.f32 %v44, %v249
  %v286 = vadd.f32 %v45, %v254
  %v287 = vadd.f32 %v46, %v257
  %v288 = vadd.f32 %v47, %v262
  %v289 = vadd.f32 %v48, %v265
  %v290 = vadd.f32 %v49, %v270
  %v291 = vadd.f32 %v50, %v273
  %292 = vst [vmem:[#allocation2] sm:$0xff] %v276
  %293 = vst [vmem:[#allocation2 + $0x8] sm:$0xff] %v277
  %294 = vst [vmem:[#allocation2 + $0x10] sm:$0xff] %v278
  %295 = vst [vmem:[#allocation2 + $0x18] sm:$0xff] %v279
  %296 = vst [vmem:[#allocation2 + $0x20] sm:$0xff] %v280
  %297 = vst [vmem:[#allocation2 + $0x28] sm:$0xff] %v281
  %298 = vst [vmem:[#allocation2 + $0x30] sm:$0xff] %v282
  %299 = vst [vmem:[#allocation2 + $0x38] sm:$0xff] %v283
  %300 = vst [vmem:[#allocation2 + $0x40] sm:$0xff] %v284
  %301 = vst [vmem:[#allocation2 + $0x48] sm:$0xff] %v285
  %302 = vst [vmem:[#allocation2 + $0x50] sm:$0xff] %v286
  %303 = vst [vmem:[#allocation2 + $0x58] sm:$0xff] %v287
  %304 = vst [vmem:[#allocation2 + $0x60] sm:$0xff] %v288
  %305 = vst [vmem:[#allocation2 + $0x68] sm:$0xff] %v289
  %306 = vst [vmem:[#allocation2 + $0x70] sm:$0xff] %v290
  %307 = vst [vmem:[#allocation2 + $0x78] sm:$0xff] %v291
  // Predicated region
  $region18: #{rnn_forward.9} parent=0 // pred_check
    %p308 = pneg %p15
  $region19: #{rnn_forward.9} parent=0 // pred_check_branch
    %310 = sbr.rel (%p308) target = $region21
  $region20: #{rnn_forward.9} parent=0 // pred_region
    %v311 = vld [vmem:[#allocation2] sm:$0xff]
    %v312 = vld [vmem:[#allocation2 + $0x8] sm:$0xff]
    %v313 = vld [vmem:[#allocation2 + $0x10] sm:$0xff]
    %v314 = vld [vmem:[#allocation2 + $0x18] sm:$0xff]
    %v315 = vld [vmem:[#allocation2 + $0x20] sm:$0xff]
    %v316 = vld [vmem:[#allocation2 + $0x28] sm:$0xff]
    %v317 = vld [vmem:[#allocation2 + $0x30] sm:$0xff]
    %v318 = vld [vmem:[#allocation2 + $0x38] sm:$0xff]
    %v319 = vld [vmem:[#allocation2 + $0x40] sm:$0xff]
    %v320 = vld [vmem:[#allocation2 + $0x48] sm:$0xff]
    %v321 = vld [vmem:[#allocation2 + $0x50] sm:$0xff]
    %v322 = vld [vmem:[#allocation2 + $0x58] sm:$0xff]
    %v323 = vld [vmem:[#allocation2 + $0x60] sm:$0xff]
    %v324 = vld [vmem:[#allocation2 + $0x68] sm:$0xff]
    %v325 = vld [vmem:[#allocation2 + $0x70] sm:$0xff]
    %v326 = vld [vmem:[#allocation2 + $0x78] sm:$0xff]
    %v327 = vld [vmem:[%s2] sm:$0x1]
    %v329 = vlaneseq
    %v330 = vshrl.u32 %v329, 7
    %v331 = vsub.s32 0, %v330
    %v332 = vrot.slane %v327, %v331
    %v334 = vadd.f32 %v311, %v332
    %v335 = vadd.f32 %v312, %v332
    %v336 = vadd.f32 %v313, %v332
    %v337 = vadd.f32 %v314, %v332
    %v338 = vadd.f32 %v315, %v332
    %v339 = vadd.f32 %v316, %v332
    %v340 = vadd.f32 %v317, %v332
    %v341 = vadd.f32 %v318, %v332
    %v342 = vadd.f32 %v319, %v332
    %v343 = vadd.f32 %v320, %v332
    %v344 = vadd.f32 %v321, %v332
    %v345 = vadd.f32 %v322, %v332
    %v346 = vadd.f32 %v323, %v332
    %v347 = vadd.f32 %v324, %v332
    %v348 = vadd.f32 %v325, %v332
    %v349 = vadd.f32 %v326, %v332
    %350 = vst [vmem:[%s3] sm:$0xff] %v334
    %351 = vst [vmem:[%s3 + $0x8] sm:$0xff] %v335
    %352 = vst [vmem:[%s3 + $0x10] sm:$0xff] %v336
    %353 = vst [vmem:[%s3 + $0x18] sm:$0xff] %v337
    %354 = vst [vmem:[%s3 + $0x20] sm:$0xff] %v338
    %355 = vst [vmem:[%s3 + $0x28] sm:$0xff] %v339
    %356 = vst [vmem:[%s3 + $0x30] sm:$0xff] %v340
    %357 = vst [vmem:[%s3 + $0x38] sm:$0xff] %v341
    %358 = vst [vmem:[%s3 + $0x40] sm:$0xff] %v342
    %359 = vst [vmem:[%s3 + $0x48] sm:$0xff] %v343
    %360 = vst [vmem:[%s3 + $0x50] sm:$0xff] %v344
    %361 = vst [vmem:[%s3 + $0x58] sm:$0xff] %v345
    %362 = vst [vmem:[%s3 + $0x60] sm:$0xff] %v346
    %363 = vst [vmem:[%s3 + $0x68] sm:$0xff] %v347
    %364 = vst [vmem:[%s3 + $0x70] sm:$0xff] %v348
    %365 = vst [vmem:[%s3 + $0x78] sm:$0xff] %v349
  $region21: #{rnn_forward.9} parent=0 // pred_fallthru
    _
  // Predicated region
  $region22: #{rnn_forward.9} parent=0 // pred_check
    _
  $region23: #{rnn_forward.9} parent=0 // pred_check_branch
    %367 = sbr.rel (0) target = $region25
  $region24: #{rnn_forward.9} parent=0 // pred_region
    _
  $region25: #{rnn_forward.9} parent=0 // pred_fallthru
    _
  // Predicated region
  $region26: #{rnn_forward.9} parent=0 // pred_check
    _
  $region27: #{rnn_forward.9} parent=0 // pred_check_branch
    %369 = sbr.rel (0) target = $region29
  $region28: #{rnn_forward.9} parent=0 // pred_region
    _
  $region29: #{rnn_forward.9} parent=0 // pred_fallthru
    _

// kernel: rnn_forward.5
$region0: #{rnn_forward.5}
  #allocation0 [shape = 'u32[]', space=smem, size = 0x4, offset = 0x4, fixed_abs, tag = 'smem constant byte address 0x4 - core index']
  #allocation1 [shape = 'u32[144,128]{1,0:T(1,128)}', space=vmem, size = 0x12000, scoped, tag = 'internal scratch']
  #allocation2 [shape = 'f32[128,512]{1,0:T(8,128)}', space=vmem, size = 0x40000, scoped, tag = 'scratch operand']
  %s0 = inlined_call_operand.vmem [shape: bf16[128,128], index: 0, kind: input, shape index: {}]
  %s1 = inlined_call_operand.vmem [shape: bf16[128,512], index: 1, kind: input, shape index: {}]
  %s2 = inlined_call_operand.vmem [shape: f32[1,512], index: 2, kind: input, shape index: {}]
  %s3 = inlined_call_operand.vmem [shape: f32[128,512], index: 3, kind: output, shape index: {}]
  %s4 = sld [smem:[#allocation0]]
  $region30: #{rnn_forward.5} parent=0
    _
  %s6 = ssub.s32 1, %s4
  %s7 = scalar_select 0, %s6, %s4
  // Predicated region
  $region2: #{rnn_forward.5} parent=0 // pred_check
    _
  $region3: #{rnn_forward.5} parent=0 // pred_check_branch
    %9 = sbr.rel (0) target = $region5
  $region4: #{rnn_forward.5} parent=0 // pred_region
    _
  $region5: #{rnn_forward.5} parent=0 // pred_fallthru
    _
  // Predicated region
  $region6: #{rnn_forward.5} parent=0 // pred_check
    _
  $region7: #{rnn_forward.5} parent=0 // pred_check_branch
    %11 = sbr.rel (0) target = $region9
  $region8: #{rnn_forward.5} parent=0 // pred_region
    _
  $region9: #{rnn_forward.5} parent=0 // pred_fallthru
    _
  // Predicated region
  $region10: #{rnn_forward.5} parent=0 // pred_check
    _
  $region11: #{rnn_forward.5} parent=0 // pred_check_branch
    %13 = sbr.rel (0) target = $region13
  $region12: #{rnn_forward.5} parent=0 // pred_region
    _
  $region13: #{rnn_forward.5} parent=0 // pred_fallthru
    _
  %p15 = scmp.eq.s32.totalorder 0, 0
  // Predicated region
  $region14: #{rnn_forward.5} parent=0 // pred_check
    %p16 = pneg %p15
  $region15: #{rnn_forward.5} parent=0 // pred_check_branch
    %18 = sbr.rel (%p16) target = $region17
  $region16: #{rnn_forward.5} parent=0 // pred_region
    %19 = vst [vmem:[#allocation2] sm:$0xff] 0.0
    %20 = vst [vmem:[#allocation2 + $0x8] sm:$0xff] 0.0
    %21 = vst [vmem:[#allocation2 + $0x10] sm:$0xff] 0.0
    %22 = vst [vmem:[#allocation2 + $0x18] sm:$0xff] 0.0
    %23 = vst [vmem:[#allocation2 + $0x20] sm:$0xff] 0.0
    %24 = vst [vmem:[#allocation2 + $0x28] sm:$0xff] 0.0
    %25 = vst [vmem:[#allocation2 + $0x30] sm:$0xff] 0.0
    %26 = vst [vmem:[#allocation2 + $0x38] sm:$0xff] 0.0
    %27 = vst [vmem:[#allocation2 + $0x40] sm:$0xff] 0.0
    %28 = vst [vmem:[#allocation2 + $0x48] sm:$0xff] 0.0
    %29 = vst [vmem:[#allocation2 + $0x50] sm:$0xff] 0.0
    %30 = vst [vmem:[#allocation2 + $0x58] sm:$0xff] 0.0
    %31 = vst [vmem:[#allocation2 + $0x60] sm:$0xff] 0.0
    %32 = vst [vmem:[#allocation2 + $0x68] sm:$0xff] 0.0
    %33 = vst [vmem:[#allocation2 + $0x70] sm:$0xff] 0.0
    %34 = vst [vmem:[#allocation2 + $0x78] sm:$0xff] 0.0
    %35 = vst [vmem:[#allocation2 + $0x80] sm:$0xff] 0.0
    %36 = vst [vmem:[#allocation2 + $0x88] sm:$0xff] 0.0
    %37 = vst [vmem:[#allocation2 + $0x90] sm:$0xff] 0.0
    %38 = vst [vmem:[#allocation2 + $0x98] sm:$0xff] 0.0
    %39 = vst [vmem:[#allocation2 + $0xa0] sm:$0xff] 0.0
    %40 = vst [vmem:[#allocation2 + $0xa8] sm:$0xff] 0.0
    %41 = vst [vmem:[#allocation2 + $0xb0] sm:$0xff] 0.0
    %42 = vst [vmem:[#allocation2 + $0xb8] sm:$0xff] 0.0
    %43 = vst [vmem:[#allocation2 + $0xc0] sm:$0xff] 0.0
    %44 = vst [vmem:[#allocation2 + $0xc8] sm:$0xff] 0.0
    %45 = vst [vmem:[#allocation2 + $0xd0] sm:$0xff] 0.0
    %46 = vst [vmem:[#allocation2 + $0xd8] sm:$0xff] 0.0
    %47 = vst [vmem:[#allocation2 + $0xe0] sm:$0xff] 0.0
    %48 = vst [vmem:[#allocation2 + $0xe8] sm:$0xff] 0.0
    %49 = vst [vmem:[#allocation2 + $0xf0] sm:$0xff] 0.0
    %50 = vst [vmem:[#allocation2 + $0xf8] sm:$0xff] 0.0
    %51 = vst [vmem:[#allocation2 + $0x100] sm:$0xff] 0.0
    %52 = vst [vmem:[#allocation2 + $0x108] sm:$0xff] 0.0
    %53 = vst [vmem:[#allocation2 + $0x110] sm:$0xff] 0.0
    %54 = vst [vmem:[#allocation2 + $0x118] sm:$0xff] 0.0
    %55 = vst [vmem:[#allocation2 + $0x120] sm:$0xff] 0.0
    %56 = vst [vmem:[#allocation2 + $0x128] sm:$0xff] 0.0
    %57 = vst [vmem:[#allocation2 + $0x130] sm:$0xff] 0.0
    %58 = vst [vmem:[#allocation2 + $0x138] sm:$0xff] 0.0
    %59 = vst [vmem:[#allocation2 + $0x140] sm:$0xff] 0.0
    %60 = vst [vmem:[#allocation2 + $0x148] sm:$0xff] 0.0
    %61 = vst [vmem:[#allocation2 + $0x150] sm:$0xff] 0.0
    %62 = vst [vmem:[#allocation2 + $0x158] sm:$0xff] 0.0
    %63 = vst [vmem:[#allocation2 + $0x160] sm:$0xff] 0.0
    %64 = vst [vmem:[#allocation2 + $0x168] sm:$0xff] 0.0
    %65 = vst [vmem:[#allocation2 + $0x170] sm:$0xff] 0.0
    %66 = vst [vmem:[#allocation2 + $0x178] sm:$0xff] 0.0
    %67 = vst [vmem:[#allocation2 + $0x180] sm:$0xff] 0.0
    %68 = vst [vmem:[#allocation2 + $0x188] sm:$0xff] 0.0
    %69 = vst [vmem:[#allocation2 + $0x190] sm:$0xff] 0.0
    %70 = vst [vmem:[#allocation2 + $0x198] sm:$0xff] 0.0
    %71 = vst [vmem:[#allocation2 + $0x1a0] sm:$0xff] 0.0
    %72 = vst [vmem:[#allocation2 + $0x1a8] sm:$0xff] 0.0
    %73 = vst [vmem:[#allocation2 + $0x1b0] sm:$0xff] 0.0
    %74 = vst [vmem:[#allocation2 + $0x1b8] sm:$0xff] 0.0
    %75 = vst [vmem:[#allocation2 + $0x1c0] sm:$0xff] 0.0
    %76 = vst [vmem:[#allocation2 + $0x1c8] sm:$0xff] 0.0
    %77 = vst [vmem:[#allocation2 + $0x1d0] sm:$0xff] 0.0
    %78 = vst [vmem:[#allocation2 + $0x1d8] sm:$0xff] 0.0
    %79 = vst [vmem:[#allocation2 + $0x1e0] sm:$0xff] 0.0
    %80 = vst [vmem:[#allocation2 + $0x1e8] sm:$0xff] 0.0
    %81 = vst [vmem:[#allocation2 + $0x1f0] sm:$0xff] 0.0
    %82 = vst [vmem:[#allocation2 + $0x1f8] sm:$0xff] 0.0
  $region17: #{rnn_forward.5} parent=0 // pred_fallthru
    _
  %v83 = vld [vmem:[#allocation2] sm:$0xff]
  %v84 = vld [vmem:[#allocation2 + $0x8] sm:$0xff]
  %v85 = vld [vmem:[#allocation2 + $0x10] sm:$0xff]
  %v86 = vld [vmem:[#allocation2 + $0x18] sm:$0xff]
  %v87 = vld [vmem:[#allocation2 + $0x20] sm:$0xff]
  %v88 = vld [vmem:[#allocation2 + $0x28] sm:$0xff]
  %v89 = vld [vmem:[#allocation2 + $0x30] sm:$0xff]
  %v90 = vld [vmem:[#allocation2 + $0x38] sm:$0xff]
  %v91 = vld [vmem:[#allocation2 + $0x40] sm:$0xff]
  %v92 = vld [vmem:[#allocation2 + $0x48] sm:$0xff]
  %v93 = vld [vmem:[#allocation2 + $0x50] sm:$0xff]
  %v94 = vld [vmem:[#allocation2 + $0x58] sm:$0xff]
  %v95 = vld [vmem:[#allocation2 + $0x60] sm:$0xff]
  %v96 = vld [vmem:[#allocation2 + $0x68] sm:$0xff]
  %v97 = vld [vmem:[#allocation2 + $0x70] sm:$0xff]
  %v98 = vld [vmem:[#allocation2 + $0x78] sm:$0xff]
  %v99 = vld [vmem:[#allocation2 + $0x80] sm:$0xff]
  %v100 = vld [vmem:[#allocation2 + $0x88] sm:$0xff]
  %v101 = vld [vmem:[#allocation2 + $0x90] sm:$0xff]
  %v102 = vld [vmem:[#allocation2 + $0x98] sm:$0xff]
  %v103 = vld [vmem:[#allocation2 + $0xa0] sm:$0xff]
  %v104 = vld [vmem:[#allocation2 + $0xa8] sm:$0xff]
  %v105 = vld [vmem:[#allocation2 + $0xb0] sm:$0xff]
  %v106 = vld [vmem:[#allocation2 + $0xb8] sm:$0xff]
  %v107 = vld [vmem:[#allocation2 + $0xc0] sm:$0xff]
  %v108 = vld [vmem:[#allocation2 + $0xc8] sm:$0xff]
  %v109 = vld [vmem:[#allocation2 + $0xd0] sm:$0xff]
  %v110 = vld [vmem:[#allocation2 + $0xd8] sm:$0xff]
  %v111 = vld [vmem:[#allocation2 + $0xe0] sm:$0xff]
  %v112 = vld [vmem:[#allocation2 + $0xe8] sm:$0xff]
  %v113 = vld [vmem:[#allocation2 + $0xf0] sm:$0xff]
  %v114 = vld [vmem:[#allocation2 + $0xf8] sm:$0xff]
  %v115 = vld [vmem:[#allocation2 + $0x100] sm:$0xff]
  %v116 = vld [vmem:[#allocation2 + $0x108] sm:$0xff]
  %v117 = vld [vmem:[#allocation2 + $0x110] sm:$0xff]
  %v118 = vld [vmem:[#allocation2 + $0x118] sm:$0xff]
  %v119 = vld [vmem:[#allocation2 + $0x120] sm:$0xff]
  %v120 = vld [vmem:[#allocation2 + $0x128] sm:$0xff]
  %v121 = vld [vmem:[#allocation2 + $0x130] sm:$0xff]
  %v122 = vld [vmem:[#allocation2 + $0x138] sm:$0xff]
  %v123 = vld [vmem:[#allocation2 + $0x140] sm:$0xff]
  %v124 = vld [vmem:[#allocation2 + $0x148] sm:$0xff]
  %v125 = vld [vmem:[#allocation2 + $0x150] sm:$0xff]
  %v126 = vld [vmem:[#allocation2 + $0x158] sm:$0xff]
  %v127 = vld [vmem:[#allocation2 + $0x160] sm:$0xff]
  %v128 = vld [vmem:[#allocation2 + $0x168] sm:$0xff]
  %v129 = vld [vmem:[#allocation2 + $0x170] sm:$0xff]
  %v130 = vld [vmem:[#allocation2 + $0x178] sm:$0xff]
  %v131 = vld [vmem:[#allocation2 + $0x180] sm:$0xff]
  %v132 = vld [vmem:[#allocation2 + $0x188] sm:$0xff]
  %v133 = vld [vmem:[#allocation2 + $0x190] sm:$0xff]
  %v134 = vld [vmem:[#allocation2 + $0x198] sm:$0xff]
  %v135 = vld [vmem:[#allocation2 + $0x1a0] sm:$0xff]
  %v136 = vld [vmem:[#allocation2 + $0x1a8] sm:$0xff]
  %v137 = vld [vmem:[#allocation2 + $0x1b0] sm:$0xff]
  %v138 = vld [vmem:[#allocation2 + $0x1b8] sm:$0xff]
  %v139 = vld [vmem:[#allocation2 + $0x1c0] sm:$0xff]
  %v140 = vld [vmem:[#allocation2 + $0x1c8] sm:$0xff]
  %v141 = vld [vmem:[#allocation2 + $0x1d0] sm:$0xff]
  %v142 = vld [vmem:[#allocation2 + $0x1d8] sm:$0xff]
  %v143 = vld [vmem:[#allocation2 + $0x1e0] sm:$0xff]
  %v144 = vld [vmem:[#allocation2 + $0x1e8] sm:$0xff]
  %v145 = vld [vmem:[#allocation2 + $0x1f0] sm:$0xff]
  %v146 = vld [vmem:[#allocation2 + $0x1f8] sm:$0xff]
  %v147 = vld [vmem:[%s0] sm:$0xf]
  %v148 = vld [vmem:[%s0 + $0x4] sm:$0xf]
  %v149 = vld [vmem:[%s0 + $0x8] sm:$0xf]
  %v150 = vld [vmem:[%s0 + $0xc] sm:$0xf]
  %v151 = vld [vmem:[%s0 + $0x10] sm:$0xf]
  %v152 = vld [vmem:[%s0 + $0x14] sm:$0xf]
  %v153 = vld [vmem:[%s0 + $0x18] sm:$0xf]
  %v154 = vld [vmem:[%s0 + $0x1c] sm:$0xf]
  %v155 = vld [vmem:[%s0 + $0x20] sm:$0xf]
  %v156 = vld [vmem:[%s0 + $0x24] sm:$0xf]
  %v157 = vld [vmem:[%s0 + $0x28] sm:$0xf]
  %v158 = vld [vmem:[%s0 + $0x2c] sm:$0xf]
  %v159 = vld [vmem:[%s0 + $0x30] sm:$0xf]
  %v160 = vld [vmem:[%s0 + $0x34] sm:$0xf]
  %v161 = vld [vmem:[%s0 + $0x38] sm:$0xf]
  %v162 = vld [vmem:[%s0 + $0x3c] sm:$0xf]
  %v163 = vld [vmem:[%s1] sm:$0xff]
  %v164 = vld [vmem:[%s1 + $0x8] sm:$0xff]
  %v165 = vld [vmem:[%s1 + $0x10] sm:$0xff]
  %v166 = vld [vmem:[%s1 + $0x18] sm:$0xff]
  %v167 = vld [vmem:[%s1 + $0x20] sm:$0xff]
  %v168 = vld [vmem:[%s1 + $0x28] sm:$0xff]
  %v169 = vld [vmem:[%s1 + $0x30] sm:$0xff]
  %v170 = vld [vmem:[%s1 + $0x38] sm:$0xff]
  %v171 = vld [vmem:[%s1 + $0x40] sm:$0xff]
  %v172 = vld [vmem:[%s1 + $0x48] sm:$0xff]
  %v173 = vld [vmem:[%s1 + $0x50] sm:$0xff]
  %v174 = vld [vmem:[%s1 + $0x58] sm:$0xff]
  %v175 = vld [vmem:[%s1 + $0x60] sm:$0xff]
  %v176 = vld [vmem:[%s1 + $0x68] sm:$0xff]
  %v177 = vld [vmem:[%s1 + $0x70] sm:$0xff]
  %v178 = vld [vmem:[%s1 + $0x78] sm:$0xff]
  %v179 = vld [vmem:[%s1 + $0x80] sm:$0xff]
  %v180 = vld [vmem:[%s1 + $0x88] sm:$0xff]
  %v181 = vld [vmem:[%s1 + $0x90] sm:$0xff]
  %v182 = vld [vmem:[%s1 + $0x98] sm:$0xff]
  %v183 = vld [vmem:[%s1 + $0xa0] sm:$0xff]
  %v184 = vld [vmem:[%s1 + $0xa8] sm:$0xff]
  %v185 = vld [vmem:[%s1 + $0xb0] sm:$0xff]
  %v186 = vld [vmem:[%s1 + $0xb8] sm:$0xff]
  %v187 = vld [vmem:[%s1 + $0xc0] sm:$0xff]
  %v188 = vld [vmem:[%s1 + $0xc8] sm:$0xff]
  %v189 = vld [vmem:[%s1 + $0xd0] sm:$0xff]
  %v190 = vld [vmem:[%s1 + $0xd8] sm:$0xff]
  %v191 = vld [vmem:[%s1 + $0xe0] sm:$0xff]
  %v192 = vld [vmem:[%s1 + $0xe8] sm:$0xff]
  %v193 = vld [vmem:[%s1 + $0xf0] sm:$0xff]
  %v194 = vld [vmem:[%s1 + $0xf8] sm:$0xff]
  %v211 = vunpack.c.l.b16 %v147
  %v212 = vunpack.c.l.b16 %v148
  %v213 = vunpack.c.l.b16 %v149
  %v214 = vunpack.c.l.b16 %v150
  %v215 = vunpack.c.l.b16 %v151
  %v216 = vunpack.c.l.b16 %v152
  %v217 = vunpack.c.l.b16 %v153
  %v218 = vunpack.c.l.b16 %v154
  %v219 = vunpack.c.l.b16 %v155
  %v220 = vunpack.c.l.b16 %v156
  %v221 = vunpack.c.l.b16 %v157
  %v222 = vunpack.c.l.b16 %v158
  %v223 = vunpack.c.l.b16 %v159
  %v224 = vunpack.c.l.b16 %v160
  %v225 = vunpack.c.l.b16 %v161
  %v226 = vunpack.c.l.b16 %v162
  %v227 = vpack.c.b16 %v212, %v211
  %v228 = vpack.c.b16 %v214, %v213
  %v229 = vpack.c.b16 %v216, %v215
  %v230 = vpack.c.b16 %v218, %v217
  %v231 = vpack.c.b16 %v220, %v219
  %v232 = vpack.c.b16 %v222, %v221
  %v233 = vpack.c.b16 %v224, %v223
  %v234 = vpack.c.b16 %v226, %v225
  %v275 = vunpack.c.l.b16 %v163
  %v276 = vunpack.c.h.b16 %v163
  %v277 = vunpack.c.l.b16 %v164
  %v278 = vunpack.c.h.b16 %v164
  %v279 = vunpack.c.l.b16 %v165
  %v280 = vunpack.c.h.b16 %v165
  %v281 = vunpack.c.l.b16 %v166
  %v282 = vunpack.c.h.b16 %v166
  %v283 = vunpack.c.l.b16 %v167
  %v284 = vunpack.c.h.b16 %v167
  %v285 = vunpack.c.l.b16 %v168
  %v286 = vunpack.c.h.b16 %v168
  %v287 = vunpack.c.l.b16 %v169
  %v288 = vunpack.c.h.b16 %v169
  %v289 = vunpack.c.l.b16 %v170
  %v290 = vunpack.c.h.b16 %v170
  %v291 = vunpack.c.l.b16 %v171
  %v292 = vunpack.c.h.b16 %v171
  %v293 = vunpack.c.l.b16 %v172
  %v294 = vunpack.c.h.b16 %v172
  %v295 = vunpack.c.l.b16 %v173
  %v296 = vunpack.c.h.b16 %v173
  %v297 = vunpack.c.l.b16 %v174
  %v298 = vunpack.c.h.b16 %v174
  %v299 = vunpack.c.l.b16 %v175
  %v300 = vunpack.c.h.b16 %v175
  %v301 = vunpack.c.l.b16 %v176
  %v302 = vunpack.c.h.b16 %v176
  %v303 = vunpack.c.l.b16 %v177
  %v304 = vunpack.c.h.b16 %v177
  %v305 = vunpack.c.l.b16 %v178
  %v306 = vunpack.c.h.b16 %v178
  %v307 = vunpack.c.l.b16 %v179
  %v308 = vunpack.c.h.b16 %v179
  %v309 = vunpack.c.l.b16 %v180
  %v310 = vunpack.c.h.b16 %v180
  %v311 = vunpack.c.l.b16 %v181
  %v312 = vunpack.c.h.b16 %v181
  %v313 = vunpack.c.l.b16 %v182
  %v314 = vunpack.c.h.b16 %v182
  %v315 = vunpack.c.l.b16 %v183
  %v316 = vunpack.c.h.b16 %v183
  %v317 = vunpack.c.l.b16 %v184
  %v318 = vunpack.c.h.b16 %v184
  %v319 = vunpack.c.l.b16 %v185
  %v320 = vunpack.c.h.b16 %v185
  %v321 = vunpack.c.l.b16 %v186
  %v322 = vunpack.c.h.b16 %v186
  %v323 = vunpack.c.l.b16 %v187
  %v324 = vunpack.c.h.b16 %v187
  %v325 = vunpack.c.l.b16 %v188
  %v326 = vunpack.c.h.b16 %v188
  %v327 = vunpack.c.l.b16 %v189
  %v328 = vunpack.c.h.b16 %v189
  %v329 = vunpack.c.l.b16 %v190
  %v330 = vunpack.c.h.b16 %v190
  %v331 = vunpack.c.l.b16 %v191
  %v332 = vunpack.c.h.b16 %v191
  %v333 = vunpack.c.l.b16 %v192
  %v334 = vunpack.c.h.b16 %v192
  %v335 = vunpack.c.l.b16 %v193
  %v336 = vunpack.c.h.b16 %v193
  %v337 = vunpack.c.l.b16 %v194
  %v338 = vunpack.c.h.b16 %v194
  %v339 = vpack.c.b16 %v279, %v275
  %v340 = vpack.c.b16 %v280, %v276
  %v341 = vpack.c.b16 %v281, %v277
  %v342 = vpack.c.b16 %v282, %v278
  %v343 = vpack.c.b16 %v287, %v283
  %v344 = vpack.c.b16 %v288, %v284
  %v345 = vpack.c.b16 %v289, %v285
  %v346 = vpack.c.b16 %v290, %v286
  %v347 = vpack.c.b16 %v295, %v291
  %v348 = vpack.c.b16 %v296, %v292
  %v349 = vpack.c.b16 %v297, %v293
  %v350 = vpack.c.b16 %v298, %v294
  %v351 = vpack.c.b16 %v303, %v299
  %v352 = vpack.c.b16 %v304, %v300
  %v353 = vpack.c.b16 %v305, %v301
  %v354 = vpack.c.b16 %v306, %v302
  %v355 = vpack.c.b16 %v311, %v307
  %v356 = vpack.c.b16 %v312, %v308
  %v357 = vpack.c.b16 %v313, %v309
  %v358 = vpack.c.b16 %v314, %v310
  %v359 = vpack.c.b16 %v319, %v315
  %v360 = vpack.c.b16 %v320, %v316
  %v361 = vpack.c.b16 %v321, %v317
  %v362 = vpack.c.b16 %v322, %v318
  %v363 = vpack.c.b16 %v327, %v323
  %v364 = vpack.c.b16 %v328, %v324
  %v365 = vpack.c.b16 %v329, %v325
  %v366 = vpack.c.b16 %v330, %v326
  %v367 = vpack.c.b16 %v335, %v331
  %v368 = vpack.c.b16 %v336, %v332
  %v369 = vpack.c.b16 %v337, %v333
  %v370 = vpack.c.b16 %v338, %v334
  %403 = vmatprep.subr.bf16.mxu0 %v368
  %404 = vmatpush1.bf16.msra.mxu0 %v367
  %405 = vmatprep.subr.bf16.mxu0 %v364
  %406 = vmatpush1.bf16.msra.mxu0 %v363
  %407 = vmatprep.subr.bf16.mxu0 %v360
  %408 = vmatpush1.bf16.msra.mxu0 %v359
  %409 = vmatprep.subr.bf16.mxu0 %v356
  %410 = vmatpush1.bf16.msra.mxu0 %v355
  %411 = vmatprep.subr.bf16.mxu0 %v352
  %412 = vmatpush1.bf16.msra.mxu0 %v351
  %413 = vmatprep.subr.bf16.mxu0 %v348
  %414 = vmatpush1.bf16.msra.mxu0 %v347
  %415 = vmatprep.subr.bf16.mxu0 %v344
  %416 = vmatpush1.bf16.msra.mxu0 %v343
  %417 = vmatprep.subr.bf16.mxu0 %v340
  %418 = vmatpush1.bf16.msra.mxu0 %v339
  %419 = vmatprep.subr.bf16.mxu0 0
  %420 = vmatpush2.bf16.msra.mxu0 0
  %421 = vmatprep.subr.bf16.mxu0 0
  %422 = vmatpush2.bf16.msra.mxu0 0
  %423 = vmatprep.subr.bf16.mxu0 0
  %424 = vmatpush2.bf16.msra.mxu0 0
  %425 = vmatprep.subr.bf16.mxu0 0
  %426 = vmatpush2.bf16.msra.mxu0 0
  %427 = vmatprep.subr.bf16.mxu0 0
  %428 = vmatpush2.bf16.msra.mxu0 0
  %429 = vmatprep.subr.bf16.mxu0 0
  %430 = vmatpush2.bf16.msra.mxu0 0
  %431 = vmatprep.subr.bf16.mxu0 0
  %432 = vmatpush2.bf16.msra.mxu0 0
  %433 = vmatprep.subr.bf16.mxu0 0
  %434 = vmatpush2.bf16.msra.mxu0 0
  %435 = vmatprep.mubr.bf16.mxu0 0
  %436 = vmatmul.mubr.bf16.gmra.mxu0 %v227
  %v437 = vpop.f32.mrf.mxu0
  %v438 = vadd.f32 0.0, %v437
  %v439 = vpop.f32.mrf.mxu0
  %v440 = vadd.f32 0.0, %v439
  %v441 = vpop.f32.mrf.mxu0
  %v442 = vadd.f32 0.0, %v441
  %v443 = vpop.f32.mrf.mxu0
  %v444 = vadd.f32 0.0, %v443
  %445 = vmatprep.mubr.bf16.mxu0 0
  %446 = vmatmul.mubr.bf16.gmra.mxu0 %v228
  %v447 = vpop.f32.mrf.mxu0
  %v448 = vadd.f32 0.0, %v447
  %v449 = vpop.f32.mrf.mxu0
  %v450 = vadd.f32 0.0, %v449
  %v451 = vpop.f32.mrf.mxu0
  %v452 = vadd.f32 0.0, %v451
  %v453 = vpop.f32.mrf.mxu0
  %v454 = vadd.f32 0.0, %v453
  %455 = vmatprep.mubr.bf16.mxu0 0
  %456 = vmatmul.mubr.bf16.gmra.mxu0 %v229
  %v457 = vpop.f32.mrf.mxu0
  %v458 = vadd.f32 0.0, %v457
  %v459 = vpop.f32.mrf.mxu0
  %v460 = vadd.f32 0.0, %v459
  %v461 = vpop.f32.mrf.mxu0
  %v462 = vadd.f32 0.0, %v461
  %v463 = vpop.f32.mrf.mxu0
  %v464 = vadd.f32 0.0, %v463
  %465 = vmatprep.mubr.bf16.mxu0 0
  %466 = vmatmul.mubr.bf16.gmra.mxu0 %v230
  %v467 = vpop.f32.mrf.mxu0
  %v468 = vadd.f32 0.0, %v467
  %v469 = vpop.f32.mrf.mxu0
  %v470 = vadd.f32 0.0, %v469
  %v471 = vpop.f32.mrf.mxu0
  %v472 = vadd.f32 0.0, %v471
  %v473 = vpop.f32.mrf.mxu0
  %v474 = vadd.f32 0.0, %v473
  %475 = vmatprep.mubr.bf16.mxu0 0
  %476 = vmatmul.mubr.bf16.gmra.mxu0 %v231
  %v477 = vpop.f32.mrf.mxu0
  %v478 = vadd.f32 0.0, %v477
  %v479 = vpop.f32.mrf.mxu0
  %v480 = vadd.f32 0.0, %v479
  %v481 = vpop.f32.mrf.mxu0
  %v482 = vadd.f32 0.0, %v481
  %v483 = vpop.f32.mrf.mxu0
  %v484 = vadd.f32 0.0, %v483
  %485 = vmatprep.mubr.bf16.mxu0 0
  %486 = vmatmul.mubr.bf16.gmra.mxu0 %v232
  %v487 = vpop.f32.mrf.mxu0
  %v488 = vadd.f32 0.0, %v487
  %v489 = vpop.f32.mrf.mxu0
  %v490 = vadd.f32 0.0, %v489
  %v491 = vpop.f32.mrf.mxu0
  %v492 = vadd.f32 0.0, %v491
  %v493 = vpop.f32.mrf.mxu0
  %v494 = vadd.f32 0.0, %v493
  %495 = vmatprep.mubr.bf16.mxu0 0
  %496 = vmatmul.mubr.bf16.gmra.mxu0 %v233
  %v497 = vpop.f32.mrf.mxu0
  %v498 = vadd.f32 0.0, %v497
  %v499 = vpop.f32.mrf.mxu0
  %v500 = vadd.f32 0.0, %v499
  %v501 = vpop.f32.mrf.mxu0
  %v502 = vadd.f32 0.0, %v501
  %v503 = vpop.f32.mrf.mxu0
  %v504 = vadd.f32 0.0, %v503
  %505 = vmatprep.mubr.bf16.mxu0 0
  %506 = vmatmul.mubr.bf16.gmra.mxu0 %v234
  %v507 = vpop.f32.mrf.mxu0
  %v508 = vadd.f32 0.0, %v507
  %v509 = vpop.f32.mrf.mxu0
  %v510 = vadd.f32 0.0, %v509
  %v511 = vpop.f32.mrf.mxu0
  %v512 = vadd.f32 0.0, %v511
  %v513 = vpop.f32.mrf.mxu0
  %v514 = vadd.f32 0.0, %v513
  %515 = vdwg.mxu0
  %516 = vmatprep.subr.bf16.mxu0 %v370
  %517 = vmatpush1.bf16.msra.mxu0 %v369
  %518 = vmatprep.subr.bf16.mxu0 %v366
  %519 = vmatpush1.bf16.msra.mxu0 %v365
  %520 = vmatprep.subr.bf16.mxu0 %v362
  %521 = vmatpush1.bf16.msra.mxu0 %v361
  %522 = vmatprep.subr.bf16.mxu0 %v358
  %523 = vmatpush1.bf16.msra.mxu0 %v357
  %524 = vmatprep.subr.bf16.mxu0 %v354
  %525 = vmatpush1.bf16.msra.mxu0 %v353
  %526 = vmatprep.subr.bf16.mxu0 %v350
  %527 = vmatpush1.bf16.msra.mxu0 %v349
  %528 = vmatprep.subr.bf16.mxu0 %v346
  %529 = vmatpush1.bf16.msra.mxu0 %v345
  %530 = vmatprep.subr.bf16.mxu0 %v342
  %531 = vmatpush1.bf16.msra.mxu0 %v341
  %532 = vmatprep.subr.bf16.mxu0 0
  %533 = vmatpush2.bf16.msra.mxu0 0
  %534 = vmatprep.subr.bf16.mxu0 0
  %535 = vmatpush2.bf16.msra.mxu0 0
  %536 = vmatprep.subr.bf16.mxu0 0
  %537 = vmatpush2.bf16.msra.mxu0 0
  %538 = vmatprep.subr.bf16.mxu0 0
  %539 = vmatpush2.bf16.msra.mxu0 0
  %540 = vmatprep.subr.bf16.mxu0 0
  %541 = vmatpush2.bf16.msra.mxu0 0
  %542 = vmatprep.subr.bf16.mxu0 0
  %543 = vmatpush2.bf16.msra.mxu0 0
  %544 = vmatprep.subr.bf16.mxu0 0
  %545 = vmatpush2.bf16.msra.mxu0 0
  %546 = vmatprep.subr.bf16.mxu0 0
  %547 = vmatpush2.bf16.msra.mxu0 0
  %548 = vmatprep.mubr.bf16.mxu0 0
  %549 = vmatmul.mubr.bf16.gmra.mxu0 %v227
  %v550 = vpop.f32.mrf.mxu0
  %v551 = vadd.f32 0.0, %v550
  %v552 = vpop.f32.mrf.mxu0
  %v553 = vadd.f32 0.0, %v552
  %v554 = vpop.f32.mrf.mxu0
  %v555 = vadd.f32 0.0, %v554
  %v556 = vpop.f32.mrf.mxu0
  %v557 = vadd.f32 0.0, %v556
  %558 = vmatprep.mubr.bf16.mxu0 0
  %559 = vmatmul.mubr.bf16.gmra.mxu0 %v228
  %v560 = vpop.f32.mrf.mxu0
  %v561 = vadd.f32 0.0, %v560
  %v562 = vpop.f32.mrf.mxu0
  %v563 = vadd.f32 0.0, %v562
  %v564 = vpop.f32.mrf.mxu0
  %v565 = vadd.f32 0.0, %v564
  %v566 = vpop.f32.mrf.mxu0
  %v567 = vadd.f32 0.0, %v566
  %568 = vmatprep.mubr.bf16.mxu0 0
  %569 = vmatmul.mubr.bf16.gmra.mxu0 %v229
  %v570 = vpop.f32.mrf.mxu0
  %v571 = vadd.f32 0.0, %v570
  %v572 = vpop.f32.mrf.mxu0
  %v573 = vadd.f32 0.0, %v572
  %v574 = vpop.f32.mrf.mxu0
  %v575 = vadd.f32 0.0, %v574
  %v576 = vpop.f32.mrf.mxu0
  %v577 = vadd.f32 0.0, %v576
  %578 = vmatprep.mubr.bf16.mxu0 0
  %579 = vmatmul.mubr.bf16.gmra.mxu0 %v230
  %v580 = vpop.f32.mrf.mxu0
  %v581 = vadd.f32 0.0, %v580
  %v582 = vpop.f32.mrf.mxu0
  %v583 = vadd.f32 0.0, %v582
  %v584 = vpop.f32.mrf.mxu0
  %v585 = vadd.f32 0.0, %v584
  %v586 = vpop.f32.mrf.mxu0
  %v587 = vadd.f32 0.0, %v586
  %588 = vmatprep.mubr.bf16.mxu0 0
  %589 = vmatmul.mubr.bf16.gmra.mxu0 %v231
  %v590 = vpop.f32.mrf.mxu0
  %v591 = vadd.f32 0.0, %v590
  %v592 = vpop.f32.mrf.mxu0
  %v593 = vadd.f32 0.0, %v592
  %v594 = vpop.f32.mrf.mxu0
  %v595 = vadd.f32 0.0, %v594
  %v596 = vpop.f32.mrf.mxu0
  %v597 = vadd.f32 0.0, %v596
  %598 = vmatprep.mubr.bf16.mxu0 0
  %599 = vmatmul.mubr.bf16.gmra.mxu0 %v232
  %v600 = vpop.f32.mrf.mxu0
  %v601 = vadd.f32 0.0, %v600
  %v602 = vpop.f32.mrf.mxu0
  %v603 = vadd.f32 0.0, %v602
  %v604 = vpop.f32.mrf.mxu0
  %v605 = vadd.f32 0.0, %v604
  %v606 = vpop.f32.mrf.mxu0
  %v607 = vadd.f32 0.0, %v606
  %608 = vmatprep.mubr.bf16.mxu0 0
  %609 = vmatmul.mubr.bf16.gmra.mxu0 %v233
  %v610 = vpop.f32.mrf.mxu0
  %v611 = vadd.f32 0.0, %v610
  %v612 = vpop.f32.mrf.mxu0
  %v613 = vadd.f32 0.0, %v612
  %v614 = vpop.f32.mrf.mxu0
  %v615 = vadd.f32 0.0, %v614
  %v616 = vpop.f32.mrf.mxu0
  %v617 = vadd.f32 0.0, %v616
  %618 = vmatprep.mubr.bf16.mxu0 0
  %619 = vmatmul.mubr.bf16.gmra.mxu0 %v234
  %v620 = vpop.f32.mrf.mxu0
  %v621 = vadd.f32 0.0, %v620
  %v622 = vpop.f32.mrf.mxu0
  %v623 = vadd.f32 0.0, %v622
  %v624 = vpop.f32.mrf.mxu0
  %v625 = vadd.f32 0.0, %v624
  %v626 = vpop.f32.mrf.mxu0
  %v627 = vadd.f32 0.0, %v626
  %628 = vdwg.mxu0
  %v629 = vadd.f32 %v83, %v438
  %v630 = vadd.f32 %v84, %v440
  %v631 = vadd.f32 %v85, %v551
  %v632 = vadd.f32 %v86, %v553
  %v633 = vadd.f32 %v87, %v442
  %v634 = vadd.f32 %v88, %v444
  %v635 = vadd.f32 %v89, %v555
  %v636 = vadd.f32 %v90, %v557
  %v637 = vadd.f32 %v91, %v448
  %v638 = vadd.f32 %v92, %v450
  %v639 = vadd.f32 %v93, %v561
  %v640 = vadd.f32 %v94, %v563
  %v641 = vadd.f32 %v95, %v452
  %v642 = vadd.f32 %v96, %v454
  %v643 = vadd.f32 %v97, %v565
  %v644 = vadd.f32 %v98, %v567
  %v645 = vadd.f32 %v99, %v458
  %v646 = vadd.f32 %v100, %v460
  %v647 = vadd.f32 %v101, %v571
  %v648 = vadd.f32 %v102, %v573
  %v649 = vadd.f32 %v103, %v462
  %v650 = vadd.f32 %v104, %v464
  %v651 = vadd.f32 %v105, %v575
  %v652 = vadd.f32 %v106, %v577
  %v653 = vadd.f32 %v107, %v468
  %v654 = vadd.f32 %v108, %v470
  %v655 = vadd.f32 %v109, %v581
  %v656 = vadd.f32 %v110, %v583
  %v657 = vadd.f32 %v111, %v472
  %v658 = vadd.f32 %v112, %v474
  %v659 = vadd.f32 %v113, %v585
  %v660 = vadd.f32 %v114, %v587
  %v661 = vadd.f32 %v115, %v478
  %v662 = vadd.f32 %v116, %v480
  %v663 = vadd.f32 %v117, %v591
  %v664 = vadd.f32 %v118, %v593
  %v665 = vadd.f32 %v119, %v482
  %v666 = vadd.f32 %v120, %v484
  %v667 = vadd.f32 %v121, %v595
  %v668 = vadd.f32 %v122, %v597
  %v669 = vadd.f32 %v123, %v488
  %v670 = vadd.f32 %v124, %v490
  %v671 = vadd.f32 %v125, %v601
  %v672 = vadd.f32 %v126, %v603
  %v673 = vadd.f32 %v127, %v492
  %v674 = vadd.f32 %v128, %v494
  %v675 = vadd.f32 %v129, %v605
  %v676 = vadd.f32 %v130, %v607
  %v677 = vadd.f32 %v131, %v498
  %v678 = vadd.f32 %v132, %v500
  %v679 = vadd.f32 %v133, %v611
  %v680 = vadd.f32 %v134, %v613
  %v681 = vadd.f32 %v135, %v502
  %v682 = vadd.f32 %v136, %v504
  %v683 = vadd.f32 %v137, %v615
  %v684 = vadd.f32 %v138, %v617
  %v685 = vadd.f32 %v139, %v508
  %v686 = vadd.f32 %v140, %v510
  %v687 = vadd.f32 %v141, %v621
  %v688 = vadd.f32 %v142, %v623
  %v689 = vadd.f32 %v143, %v512
  %v690 = vadd.f32 %v144, %v514
  %v691 = vadd.f32 %v145, %v625
  %v692 = vadd.f32 %v146, %v627
  %693 = vst [vmem:[#allocation2] sm:$0xff] %v629
  %694 = vst [vmem:[#allocation2 + $0x8] sm:$0xff] %v630
  %695 = vst [vmem:[#allocation2 + $0x10] sm:$0xff] %v631
  %696 = vst [vmem:[#allocation2 + $0x18] sm:$0xff] %v632
  %697 = vst [vmem:[#allocation2 + $0x20] sm:$0xff] %v633
  %698 = vst [vmem:[#allocation2 + $0x28] sm:$0xff] %v634
  %699 = vst [vmem:[#allocation2 + $0x30] sm:$0xff] %v635
  %700 = vst [vmem:[#allocation2 + $0x38] sm:$0xff] %v636
  %701 = vst [vmem:[#allocation2 + $0x40] sm:$0xff] %v637
  %702 = vst [vmem:[#allocation2 + $0x48] sm:$0xff] %v638
  %703 = vst [vmem:[#allocation2 + $0x50] sm:$0xff] %v639
  %704 = vst [vmem:[#allocation2 + $0x58] sm:$0xff] %v640
  %705 = vst [vmem:[#allocation2 + $0x60] sm:$0xff] %v641
  %706 = vst [vmem:[#allocation2 + $0x68] sm:$0xff] %v642
  %707 = vst [vmem:[#allocation2 + $0x70] sm:$0xff] %v643
  %708 = vst [vmem:[#allocation2 + $0x78] sm:$0xff] %v644
  %709 = vst [vmem:[#allocation2 + $0x80] sm:$0xff] %v645
  %710 = vst [vmem:[#allocation2 + $0x88] sm:$0xff] %v646
  %711 = vst [vmem:[#allocation2 + $0x90] sm:$0xff] %v647
  %712 = vst [vmem:[#allocation2 + $0x98] sm:$0xff] %v648
  %713 = vst [vmem:[#allocation2 + $0xa0] sm:$0xff] %v649
  %714 = vst [vmem:[#allocation2 + $0xa8] sm:$0xff] %v650
  %715 = vst [vmem:[#allocation2 + $0xb0] sm:$0xff] %v651
  %716 = vst [vmem:[#allocation2 + $0xb8] sm:$0xff] %v652
  %717 = vst [vmem:[#allocation2 + $0xc0] sm:$0xff] %v653
  %718 = vst [vmem:[#allocation2 + $0xc8] sm:$0xff] %v654
  %719 = vst [vmem:[#allocation2 + $0xd0] sm:$0xff] %v655
  %720 = vst [vmem:[#allocation2 + $0xd8] sm:$0xff] %v656
  %721 = vst [vmem:[#allocation2 + $0xe0] sm:$0xff] %v657
  %722 = vst [vmem:[#allocation2 + $0xe8] sm:$0xff] %v658
  %723 = vst [vmem:[#allocation2 + $0xf0] sm:$0xff] %v659
  %724 = vst [vmem:[#allocation2 + $0xf8] sm:$0xff] %v660
  %725 = vst [vmem:[#allocation2 + $0x100] sm:$0xff] %v661
  %726 = vst [vmem:[#allocation2 + $0x108] sm:$0xff] %v662
  %727 = vst [vmem:[#allocation2 + $0x110] sm:$0xff] %v663
  %728 = vst [vmem:[#allocation2 + $0x118] sm:$0xff] %v664
  %729 = vst [vmem:[#allocation2 + $0x120] sm:$0xff] %v665
  %730 = vst [vmem:[#allocation2 + $0x128] sm:$0xff] %v666
  %731 = vst [vmem:[#allocation2 + $0x130] sm:$0xff] %v667
  %732 = vst [vmem:[#allocation2 + $0x138] sm:$0xff] %v668
  %733 = vst [vmem:[#allocation2 + $0x140] sm:$0xff] %v669
  %734 = vst [vmem:[#allocation2 + $0x148] sm:$0xff] %v670
  %735 = vst [vmem:[#allocation2 + $0x150] sm:$0xff] %v671
  %736 = vst [vmem:[#allocation2 + $0x158] sm:$0xff] %v672
  %737 = vst [vmem:[#allocation2 + $0x160] sm:$0xff] %v673
  %738 = vst [vmem:[#allocation2 + $0x168] sm:$0xff] %v674
  %739 = vst [vmem:[#allocation2 + $0x170] sm:$0xff] %v675
  %740 = vst [vmem:[#allocation2 + $0x178] sm:$0xff] %v676
  %741 = vst [vmem:[#allocation2 + $0x180] sm:$0xff] %v677
  %742 = vst [vmem:[#allocation2 + $0x188] sm:$0xff] %v678
  %743 = vst [vmem:[#allocation2 + $0x190] sm:$0xff] %v679
  %744 = vst [vmem:[#allocation2 + $0x198] sm:$0xff] %v680
  %745 = vst [vmem:[#allocation2 + $0x1a0] sm:$0xff] %v681
  %746 = vst [vmem:[#allocation2 + $0x1a8] sm:$0xff] %v682
  %747 = vst [vmem:[#allocation2 + $0x1b0] sm:$0xff] %v683
  %748 = vst [vmem:[#allocation2 + $0x1b8] sm:$0xff] %v684
  %749 = vst [vmem:[#allocation2 + $0x1c0] sm:$0xff] %v685
  %750 = vst [vmem:[#allocation2 + $0x1c8] sm:$0xff] %v686
  %751 = vst [vmem:[#allocation2 + $0x1d0] sm:$0xff] %v687
  %752 = vst [vmem:[#allocation2 + $0x1d8] sm:$0xff] %v688
  %753 = vst [vmem:[#allocation2 + $0x1e0] sm:$0xff] %v689
  %754 = vst [vmem:[#allocation2 + $0x1e8] sm:$0xff] %v690
  %755 = vst [vmem:[#allocation2 + $0x1f0] sm:$0xff] %v691
  %756 = vst [vmem:[#allocation2 + $0x1f8] sm:$0xff] %v692
  // Predicated region
  $region18: #{rnn_forward.5} parent=0 // pred_check
    %p757 = pneg %p15
  $region19: #{rnn_forward.5} parent=0 // pred_check_branch
    %759 = sbr.rel (%p757) target = $region21
  $region20: #{rnn_forward.5} parent=0 // pred_region
    %v760 = vld [vmem:[#allocation2] sm:$0xff]
    %v761 = vld [vmem:[#allocation2 + $0x8] sm:$0xff]
    %v762 = vld [vmem:[#allocation2 + $0x10] sm:$0xff]
    %v763 = vld [vmem:[#allocation2 + $0x18] sm:$0xff]
    %v764 = vld [vmem:[#allocation2 + $0x20] sm:$0xff]
    %v765 = vld [vmem:[#allocation2 + $0x28] sm:$0xff]
    %v766 = vld [vmem:[#allocation2 + $0x30] sm:$0xff]
    %v767 = vld [vmem:[#allocation2 + $0x38] sm:$0xff]
    %v768 = vld [vmem:[#allocation2 + $0x40] sm:$0xff]
    %v769 = vld [vmem:[#allocation2 + $0x48] sm:$0xff]
    %v770 = vld [vmem:[#allocation2 + $0x50] sm:$0xff]
    %v771 = vld [vmem:[#allocation2 + $0x58] sm:$0xff]
    %v772 = vld [vmem:[#allocation2 + $0x60] sm:$0xff]
    %v773 = vld [vmem:[#allocation2 + $0x68] sm:$0xff]
    %v774 = vld [vmem:[#allocation2 + $0x70] sm:$0xff]
    %v775 = vld [vmem:[#allocation2 + $0x78] sm:$0xff]
    %v776 = vld [vmem:[#allocation2 + $0x80] sm:$0xff]
    %v777 = vld [vmem:[#allocation2 + $0x88] sm:$0xff]
    %v778 = vld [vmem:[#allocation2 + $0x90] sm:$0xff]
    %v779 = vld [vmem:[#allocation2 + $0x98] sm:$0xff]
    %v780 = vld [vmem:[#allocation2 + $0xa0] sm:$0xff]
    %v781 = vld [vmem:[#allocation2 + $0xa8] sm:$0xff]
    %v782 = vld [vmem:[#allocation2 + $0xb0] sm:$0xff]
    %v783 = vld [vmem:[#allocation2 + $0xb8] sm:$0xff]
    %v784 = vld [vmem:[#allocation2 + $0xc0] sm:$0xff]
    %v785 = vld [vmem:[#allocation2 + $0xc8] sm:$0xff]
    %v786 = vld [vmem:[#allocation2 + $0xd0] sm:$0xff]
    %v787 = vld [vmem:[#allocation2 + $0xd8] sm:$0xff]
    %v788 = vld [vmem:[#allocation2 + $0xe0] sm:$0xff]
    %v789 = vld [vmem:[#allocation2 + $0xe8] sm:$0xff]
    %v790 = vld [vmem:[#allocation2 + $0xf0] sm:$0xff]
    %v791 = vld [vmem:[#allocation2 + $0xf8] sm:$0xff]
    %v792 = vld [vmem:[#allocation2 + $0x100] sm:$0xff]
    %v793 = vld [vmem:[#allocation2 + $0x108] sm:$0xff]
    %v794 = vld [vmem:[#allocation2 + $0x110] sm:$0xff]
    %v795 = vld [vmem:[#allocation2 + $0x118] sm:$0xff]
    %v796 = vld [vmem:[#allocation2 + $0x120] sm:$0xff]
    %v797 = vld [vmem:[#allocation2 + $0x128] sm:$0xff]
    %v798 = vld [vmem:[#allocation2 + $0x130] sm:$0xff]
    %v799 = vld [vmem:[#allocation2 + $0x138] sm:$0xff]
    %v800 = vld [vmem:[#allocation2 + $0x140] sm:$0xff]
    %v801 = vld [vmem:[#allocation2 + $0x148] sm:$0xff]
    %v802 = vld [vmem:[#allocation2 + $0x150] sm:$0xff]
    %v803 = vld [vmem:[#allocation2 + $0x158] sm:$0xff]
    %v804 = vld [vmem:[#allocation2 + $0x160] sm:$0xff]
    %v805 = vld [vmem:[#allocation2 + $0x168] sm:$0xff]
    %v806 = vld [vmem:[#allocation2 + $0x170] sm:$0xff]
    %v807 = vld [vmem:[#allocation2 + $0x178] sm:$0xff]
    %v808 = vld [vmem:[#allocation2 + $0x180] sm:$0xff]
    %v809 = vld [vmem:[#allocation2 + $0x188] sm:$0xff]
    %v810 = vld [vmem:[#allocation2 + $0x190] sm:$0xff]
    %v811 = vld [vmem:[#allocation2 + $0x198] sm:$0xff]
    %v812 = vld [vmem:[#allocation2 + $0x1a0] sm:$0xff]
    %v813 = vld [vmem:[#allocation2 + $0x1a8] sm:$0xff]
    %v814 = vld [vmem:[#allocation2 + $0x1b0] sm:$0xff]
    %v815 = vld [vmem:[#allocation2 + $0x1b8] sm:$0xff]
    %v816 = vld [vmem:[#allocation2 + $0x1c0] sm:$0xff]
    %v817 = vld [vmem:[#allocation2 + $0x1c8] sm:$0xff]
    %v818 = vld [vmem:[#allocation2 + $0x1d0] sm:$0xff]
    %v819 = vld [vmem:[#allocation2 + $0x1d8] sm:$0xff]
    %v820 = vld [vmem:[#allocation2 + $0x1e0] sm:$0xff]
    %v821 = vld [vmem:[#allocation2 + $0x1e8] sm:$0xff]
    %v822 = vld [vmem:[#allocation2 + $0x1f0] sm:$0xff]
    %v823 = vld [vmem:[#allocation2 + $0x1f8] sm:$0xff]
    %v824 = vld [vmem:[%s2] sm:$0xf]
    %v826 = vlaneseq
    %v827 = vshrl.u32 %v826, 7
    %v828 = vsub.s32 0, %v827
    %v829 = vrot.slane %v824, %v828
    %v830 = vlaneseq
    %v831 = vshrl.u32 %v830, 7
    %v832 = vsub.s32 1, %v831
    %v833 = vrot.slane %v824, %v832
    %v834 = vlaneseq
    %v835 = vshrl.u32 %v834, 7
    %v836 = vsub.s32 2, %v835
    %v837 = vrot.slane %v824, %v836
    %v838 = vlaneseq
    %v839 = vshrl.u32 %v838, 7
    %v840 = vsub.s32 3, %v839
    %v841 = vrot.slane %v824, %v840
    %v846 = vadd.f32 %v760, %v829
    %v847 = vadd.f32 %v761, %v833
    %v848 = vadd.f32 %v762, %v837
    %v849 = vadd.f32 %v763, %v841
    %v850 = vadd.f32 %v764, %v829
    %v851 = vadd.f32 %v765, %v833
    %v852 = vadd.f32 %v766, %v837
    %v853 = vadd.f32 %v767, %v841
    %v854 = vadd.f32 %v768, %v829
    %v855 = vadd.f32 %v769, %v833
    %v856 = vadd.f32 %v770, %v837
    %v857 = vadd.f32 %v771, %v841
    %v858 = vadd.f32 %v772, %v829
    %v859 = vadd.f32 %v773, %v833
    %v860 = vadd.f32 %v774, %v837
    %v861 = vadd.f32 %v775, %v841
    %v862 = vadd.f32 %v776, %v829
    %v863 = vadd.f32 %v777, %v833
    %v864 = vadd.f32 %v778, %v837
    %v865 = vadd.f32 %v779, %v841
    %v866 = vadd.f32 %v780, %v829
    %v867 = vadd.f32 %v781, %v833
    %v868 = vadd.f32 %v782, %v837
    %v869 = vadd.f32 %v783, %v841
    %v870 = vadd.f32 %v784, %v829
    %v871 = vadd.f32 %v785, %v833
    %v872 = vadd.f32 %v786, %v837
    %v873 = vadd.f32 %v787, %v841
    %v874 = vadd.f32 %v788, %v829
    %v875 = vadd.f32 %v789, %v833
    %v876 = vadd.f32 %v790, %v837
    %v877 = vadd.f32 %v791, %v841
    %v878 = vadd.f32 %v792, %v829
    %v879 = vadd.f32 %v793, %v833
    %v880 = vadd.f32 %v794, %v837
    %v881 = vadd.f32 %v795, %v841
    %v882 = vadd.f32 %v796, %v829
    %v883 = vadd.f32 %v797, %v833
    %v884 = vadd.f32 %v798, %v837
    %v885 = vadd.f32 %v799, %v841
    %v886 = vadd.f32 %v800, %v829
    %v887 = vadd.f32 %v801, %v833
    %v888 = vadd.f32 %v802, %v837
    %v889 = vadd.f32 %v803, %v841
    %v890 = vadd.f32 %v804, %v829
    %v891 = vadd.f32 %v805, %v833
    %v892 = vadd.f32 %v806, %v837
    %v893 = vadd.f32 %v807, %v841
    %v894 = vadd.f32 %v808, %v829
    %v895 = vadd.f32 %v809, %v833
    %v896 = vadd.f32 %v810, %v837
    %v897 = vadd.f32 %v811, %v841
    %v898 = vadd.f32 %v812, %v829
    %v899 = vadd.f32 %v813, %v833
    %v900 = vadd.f32 %v814, %v837
    %v901 = vadd.f32 %v815, %v841
    %v902 = vadd.f32 %v816, %v829
    %v903 = vadd.f32 %v817, %v833
    %v904 = vadd.f32 %v818, %v837
    %v905 = vadd.f32 %v819, %v841
    %v906 = vadd.f32 %v820, %v829
    %v907 = vadd.f32 %v821, %v833
    %v908 = vadd.f32 %v822, %v837
    %v909 = vadd.f32 %v823, %v841
    %910 = vst [vmem:[%s3] sm:$0xff] %v846
    %911 = vst [vmem:[%s3 + $0x8] sm:$0xff] %v847
    %912 = vst [vmem:[%s3 + $0x10] sm:$0xff] %v848
    %913 = vst [vmem:[%s3 + $0x18] sm:$0xff] %v849
    %914 = vst [vmem:[%s3 + $0x20] sm:$0xff] %v850
    %915 = vst [vmem:[%s3 + $0x28] sm:$0xff] %v851
    %916 = vst [vmem:[%s3 + $0x30] sm:$0xff] %v852
    %917 = vst [vmem:[%s3 + $0x38] sm:$0xff] %v853
    %918 = vst [vmem:[%s3 + $0x40] sm:$0xff] %v854
    %919 = vst [vmem:[%s3 + $0x48] sm:$0xff] %v855
    %920 = vst [vmem:[%s3 + $0x50] sm:$0xff] %v856
    %921 = vst [vmem:[%s3 + $0x58] sm:$0xff] %v857
    %922 = vst [vmem:[%s3 + $0x60] sm:$0xff] %v858
    %923 = vst [vmem:[%s3 + $0x68] sm:$0xff] %v859
    %924 = vst [vmem:[%s3 + $0x70] sm:$0xff] %v860
    %925 = vst [vmem:[%s3 + $0x78] sm:$0xff] %v861
    %926 = vst [vmem:[%s3 + $0x80] sm:$0xff] %v862
    %927 = vst [vmem:[%s3 + $0x88] sm:$0xff] %v863
    %928 = vst [vmem:[%s3 + $0x90] sm:$0xff] %v864
    %929 = vst [vmem:[%s3 + $0x98] sm:$0xff] %v865
    %930 = vst [vmem:[%s3 + $0xa0] sm:$0xff] %v866
    %931 = vst [vmem:[%s3 + $0xa8] sm:$0xff] %v867
    %932 = vst [vmem:[%s3 + $0xb0] sm:$0xff] %v868
    %933 = vst [vmem:[%s3 + $0xb8] sm:$0xff] %v869
    %934 = vst [vmem:[%s3 + $0xc0] sm:$0xff] %v870
    %935 = vst [vmem:[%s3 + $0xc8] sm:$0xff] %v871
    %936 = vst [vmem:[%s3 + $0xd0] sm:$0xff] %v872
    %937 = vst [vmem:[%s3 + $0xd8] sm:$0xff] %v873
    %938 = vst [vmem:[%s3 + $0xe0] sm:$0xff] %v874
    %939 = vst [vmem:[%s3 + $0xe8] sm:$0xff] %v875
    %940 = vst [vmem:[%s3 + $0xf0] sm:$0xff] %v876
    %941 = vst [vmem:[%s3 + $0xf8] sm:$0xff] %v877
    %942 = vst [vmem:[%s3 + $0x100] sm:$0xff] %v878
    %943 = vst [vmem:[%s3 + $0x108] sm:$0xff] %v879
    %944 = vst [vmem:[%s3 + $0x110] sm:$0xff] %v880
    %945 = vst [vmem:[%s3 + $0x118] sm:$0xff] %v881
    %946 = vst [vmem:[%s3 + $0x120] sm:$0xff] %v882
    %947 = vst [vmem:[%s3 + $0x128] sm:$0xff] %v883
    %948 = vst [vmem:[%s3 + $0x130] sm:$0xff] %v884
    %949 = vst [vmem:[%s3 + $0x138] sm:$0xff] %v885
    %950 = vst [vmem:[%s3 + $0x140] sm:$0xff] %v886
    %951 = vst [vmem:[%s3 + $0x148] sm:$0xff] %v887
    %952 = vst [vmem:[%s3 + $0x150] sm:$0xff] %v888
    %953 = vst [vmem:[%s3 + $0x158] sm:$0xff] %v889
    %954 = vst [vmem:[%s3 + $0x160] sm:$0xff] %v890
    %955 = vst [vmem:[%s3 + $0x168] sm:$0xff] %v891
    %956 = vst [vmem:[%s3 + $0x170] sm:$0xff] %v892
    %957 = vst [vmem:[%s3 + $0x178] sm:$0xff] %v893
    %958 = vst [vmem:[%s3 + $0x180] sm:$0xff] %v894
    %959 = vst [vmem:[%s3 + $0x188] sm:$0xff] %v895
    %960 = vst [vmem:[%s3 + $0x190] sm:$0xff] %v896
    %961 = vst [vmem:[%s3 + $0x198] sm:$0xff] %v897
    %962 = vst [vmem:[%s3 + $0x1a0] sm:$0xff] %v898
    %963 = vst [vmem:[%s3 + $0x1a8] sm:$0xff] %v899
    %964 = vst [vmem:[%s3 + $0x1b0] sm:$0xff] %v900
    %965 = vst [vmem:[%s3 + $0x1b8] sm:$0xff] %v901
    %966 = vst [vmem:[%s3 + $0x1c0] sm:$0xff] %v902
    %967 = vst [vmem:[%s3 + $0x1c8] sm:$0xff] %v903
    %968 = vst [vmem:[%s3 + $0x1d0] sm:$0xff] %v904
    %969 = vst [vmem:[%s3 + $0x1d8] sm:$0xff] %v905
    %970 = vst [vmem:[%s3 + $0x1e0] sm:$0xff] %v906
    %971 = vst [vmem:[%s3 + $0x1e8] sm:$0xff] %v907
    %972 = vst [vmem:[%s3 + $0x1f0] sm:$0xff] %v908
    %973 = vst [vmem:[%s3 + $0x1f8] sm:$0xff] %v909
  $region21: #{rnn_forward.5} parent=0 // pred_fallthru
    _
  // Predicated region
  $region22: #{rnn_forward.5} parent=0 // pred_check
    _
  $region23: #{rnn_forward.5} parent=0 // pred_check_branch
    %975 = sbr.rel (0) target = $region25
  $region24: #{rnn_forward.5} parent=0 // pred_region
    _
  $region25: #{rnn_forward.5} parent=0 // pred_fallthru
    _
  // Predicated region
  $region26: #{rnn_forward.5} parent=0 // pred_check
    _
  $region27: #{rnn_forward.5} parent=0 // pred_check_branch
    %977 = sbr.rel (0) target = $region29
  $region28: #{rnn_forward.5} parent=0 // pred_region
    _
  $region29: #{rnn_forward.5} parent=0 // pred_fallthru
    _

// kernel: rnn_forward.6
$region0: #{rnn_forward.6}
  #allocation0 [shape = 'u32[]', space=smem, size = 0x4, offset = 0x4, fixed_abs, tag = 'smem constant byte address 0x4 - core index']
  #allocation1 [shape = 'u32[144,128]{1,0:T(1,128)}', space=vmem, size = 0x12000, scoped, tag = 'internal scratch']
  #allocation2 [shape = 'f32[8,128]{1,0:T(8,128)}', space=vmem, size = 0x1000, scoped, tag = 'scratch operand']
  #allocation3 [shape = 'f32[8,128]{1,0:T(8,128)}', space=vmem, size = 0x1000, scoped, tag = 'scratch operand']
  %s0 = inlined_call_operand.vmem [shape: s32[8,1], index: 0, kind: input, shape index: {}]
  %s1 = inlined_call_operand.vmem [shape: f32[16,8,512], index: 1, kind: input, shape index: {}]
  %s2 = inlined_call_operand.vmem [shape: bf16[128,512], index: 2, kind: input, shape index: {}]
  %s3 = inlined_call_operand.vmem [shape: f32[16,8,128], index: 3, kind: output, shape index: {0}]
  %s4 = inlined_call_operand.vmem [shape: f32[8,128], index: 4, kind: output, shape index: {1}]
  %s5 = inlined_call_operand.vmem [shape: f32[8,128], index: 5, kind: output, shape index: {2}]
  %6 = xla_tuple %s3, %s4, %s5
  %s7 = sld [smem:[#allocation0]]
  $region46: #{rnn_forward.6} parent=0
    _
  %s9 = ssub.s32 1, %s7
  %s10 = scalar_select 0, %s9, %s7
  // Predicated region
  $region2: #{rnn_forward.6} parent=0 // pred_check
    _
  $region3: #{rnn_forward.6} parent=0 // pred_check_branch
    %12 = sbr.rel (0) target = $region5
  $region4: #{rnn_forward.6} parent=0 // pred_region
    _
  $region5: #{rnn_forward.6} parent=0 // pred_fallthru
    _
  // Predicated region
  $region6: #{rnn_forward.6} parent=0 // pred_check
    _
  $region7: #{rnn_forward.6} parent=0 // pred_check_branch
    %14 = sbr.rel (0) target = $region9
  $region8: #{rnn_forward.6} parent=0 // pred_region
    _
  $region9: #{rnn_forward.6} parent=0 // pred_fallthru
    _
  // Predicated region
  $region10: #{rnn_forward.6} parent=0 // pred_check
    _
  $region11: #{rnn_forward.6} parent=0 // pred_check_branch
    %16 = sbr.rel (0) target = $region13
  $region12: #{rnn_forward.6} parent=0 // pred_region
    _
  $region13: #{rnn_forward.6} parent=0 // pred_fallthru
    _
  %p18 = scmp.eq.s32.totalorder 0, 0
  // Predicated region
  $region14: #{rnn_forward.6} parent=0 // pred_check
    %p19 = pneg %p18
  $region15: #{rnn_forward.6} parent=0 // pred_check_branch
    %21 = sbr.rel (%p19) target = $region17
  $region16: #{rnn_forward.6} parent=0 // pred_region
    %22 = vst [vmem:[#allocation2] sm:$0xff] 0.0
    %23 = vst [vmem:[#allocation3] sm:$0xff] 0.0
  $region17: #{rnn_forward.6} parent=0 // pred_fallthru
    _
  %v24 = vld [vmem:[%s0] sm:$0xff]
  %s25 = smul.u32 0, 16
  %v26 = vld [vmem:[#allocation2] sm:$0xff]
  %v27 = vld [vmem:[#allocation3] sm:$0xff]
  %v28 = vld [vmem:[%s1] sm:$0xff]
  %v29 = vld [vmem:[%s1 + $0x8] sm:$0xff]
  %v30 = vld [vmem:[%s1 + $0x10] sm:$0xff]
  %v31 = vld [vmem:[%s1 + $0x18] sm:$0xff]
  %v32 = vpack.c.bf16 %v26, %v26
  %v33 = vld [vmem:[%s2] sm:$0xff]
  %v34 = vld [vmem:[%s2 + $0x8] sm:$0xff]
  %v35 = vld [vmem:[%s2 + $0x10] sm:$0xff]
  %v36 = vld [vmem:[%s2 + $0x18] sm:$0xff]
  %v37 = vld [vmem:[%s2 + $0x20] sm:$0xff]
  %v38 = vld [vmem:[%s2 + $0x28] sm:$0xff]
  %v39 = vld [vmem:[%s2 + $0x30] sm:$0xff]
  %v40 = vld [vmem:[%s2 + $0x38] sm:$0xff]
  %v41 = vld [vmem:[%s2 + $0x40] sm:$0xff]
  %v42 = vld [vmem:[%s2 + $0x48] sm:$0xff]
  %v43 = vld [vmem:[%s2 + $0x50] sm:$0xff]
  %v44 = vld [vmem:[%s2 + $0x58] sm:$0xff]
  %v45 = vld [vmem:[%s2 + $0x60] sm:$0xff]
  %v46 = vld [vmem:[%s2 + $0x68] sm:$0xff]
  %v47 = vld [vmem:[%s2 + $0x70] sm:$0xff]
  %v48 = vld [vmem:[%s2 + $0x78] sm:$0xff]
  %v49 = vld [vmem:[%s2 + $0x80] sm:$0xff]
  %v50 = vld [vmem:[%s2 + $0x88] sm:$0xff]
  %v51 = vld [vmem:[%s2 + $0x90] sm:$0xff]
  %v52 = vld [vmem:[%s2 + $0x98] sm:$0xff]
  %v53 = vld [vmem:[%s2 + $0xa0] sm:$0xff]
  %v54 = vld [vmem:[%s2 + $0xa8] sm:$0xff]
  %v55 = vld [vmem:[%s2 + $0xb0] sm:$0xff]
  %v56 = vld [vmem:[%s2 + $0xb8] sm:$0xff]
  %v57 = vld [vmem:[%s2 + $0xc0] sm:$0xff]
  %v58 = vld [vmem:[%s2 + $0xc8] sm:$0xff]
  %v59 = vld [vmem:[%s2 + $0xd0] sm:$0xff]
  %v60 = vld [vmem:[%s2 + $0xd8] sm:$0xff]
  %v61 = vld [vmem:[%s2 + $0xe0] sm:$0xff]
  %v62 = vld [vmem:[%s2 + $0xe8] sm:$0xff]
  %v63 = vld [vmem:[%s2 + $0xf0] sm:$0xff]
  %v64 = vld [vmem:[%s2 + $0xf8] sm:$0xff]
  %v97 = vunpack.c.l.b16 %v33
  %v98 = vunpack.c.h.b16 %v33
  %v99 = vunpack.c.l.b16 %v34
  %v100 = vunpack.c.h.b16 %v34
  %v101 = vunpack.c.l.b16 %v35
  %v102 = vunpack.c.h.b16 %v35
  %v103 = vunpack.c.l.b16 %v36
  %v104 = vunpack.c.h.b16 %v36
  %v105 = vunpack.c.l.b16 %v37
  %v106 = vunpack.c.h.b16 %v37
  %v107 = vunpack.c.l.b16 %v38
  %v108 = vunpack.c.h.b16 %v38
  %v109 = vunpack.c.l.b16 %v39
  %v110 = vunpack.c.h.b16 %v39
  %v111 = vunpack.c.l.b16 %v40
  %v112 = vunpack.c.h.b16 %v40
  %v113 = vunpack.c.l.b16 %v41
  %v114 = vunpack.c.h.b16 %v41
  %v115 = vunpack.c.l.b16 %v42
  %v116 = vunpack.c.h.b16 %v42
  %v117 = vunpack.c.l.b16 %v43
  %v118 = vunpack.c.h.b16 %v43
  %v119 = vunpack.c.l.b16 %v44
  %v120 = vunpack.c.h.b16 %v44
  %v121 = vunpack.c.l.b16 %v45
  %v122 = vunpack.c.h.b16 %v45
  %v123 = vunpack.c.l.b16 %v46
  %v124 = vunpack.c.h.b16 %v46
  %v125 = vunpack.c.l.b16 %v47
  %v126 = vunpack.c.h.b16 %v47
  %v127 = vunpack.c.l.b16 %v48
  %v128 = vunpack.c.h.b16 %v48
  %v129 = vunpack.c.l.b16 %v49
  %v130 = vunpack.c.h.b16 %v49
  %v131 = vunpack.c.l.b16 %v50
  %v132 = vunpack.c.h.b16 %v50
  %v133 = vunpack.c.l.b16 %v51
  %v134 = vunpack.c.h.b16 %v51
  %v135 = vunpack.c.l.b16 %v52
  %v136 = vunpack.c.h.b16 %v52
  %v137 = vunpack.c.l.b16 %v53
  %v138 = vunpack.c.h.b16 %v53
  %v139 = vunpack.c.l.b16 %v54
  %v140 = vunpack.c.h.b16 %v54
  %v141 = vunpack.c.l.b16 %v55
  %v142 = vunpack.c.h.b16 %v55
  %v143 = vunpack.c.l.b16 %v56
  %v144 = vunpack.c.h.b16 %v56
  %v145 = vunpack.c.l.b16 %v57
  %v146 = vunpack.c.h.b16 %v57
  %v147 = vunpack.c.l.b16 %v58
  %v148 = vunpack.c.h.b16 %v58
  %v149 = vunpack.c.l.b16 %v59
  %v150 = vunpack.c.h.b16 %v59
  %v151 = vunpack.c.l.b16 %v60
  %v152 = vunpack.c.h.b16 %v60
  %v153 = vunpack.c.l.b16 %v61
  %v154 = vunpack.c.h.b16 %v61
  %v155 = vunpack.c.l.b16 %v62
  %v156 = vunpack.c.h.b16 %v62
  %v157 = vunpack.c.l.b16 %v63
  %v158 = vunpack.c.h.b16 %v63
  %v159 = vunpack.c.l.b16 %v64
  %v160 = vunpack.c.h.b16 %v64
  %v161 = vpack.c.b16 %v101, %v97
  %v162 = vpack.c.b16 %v102, %v98
  %v163 = vpack.c.b16 %v103, %v99
  %v164 = vpack.c.b16 %v104, %v100
  %v165 = vpack.c.b16 %v109, %v105
  %v166 = vpack.c.b16 %v110, %v106
  %v167 = vpack.c.b16 %v111, %v107
  %v168 = vpack.c.b16 %v112, %v108
  %v169 = vpack.c.b16 %v117, %v113
  %v170 = vpack.c.b16 %v118, %v114
  %v171 = vpack.c.b16 %v119, %v115
  %v172 = vpack.c.b16 %v120, %v116
  %v173 = vpack.c.b16 %v125, %v121
  %v174 = vpack.c.b16 %v126, %v122
  %v175 = vpack.c.b16 %v127, %v123
  %v176 = vpack.c.b16 %v128, %v124
  %v177 = vpack.c.b16 %v133, %v129
  %v178 = vpack.c.b16 %v134, %v130
  %v179 = vpack.c.b16 %v135, %v131
  %v180 = vpack.c.b16 %v136, %v132
  %v181 = vpack.c.b16 %v141, %v137
  %v182 = vpack.c.b16 %v142, %v138
  %v183 = vpack.c.b16 %v143, %v139
  %v184 = vpack.c.b16 %v144, %v140
  %v185 = vpack.c.b16 %v149, %v145
  %v186 = vpack.c.b16 %v150, %v146
  %v187 = vpack.c.b16 %v151, %v147
  %v188 = vpack.c.b16 %v152, %v148
  %v189 = vpack.c.b16 %v157, %v153
  %v190 = vpack.c.b16 %v158, %v154
  %v191 = vpack.c.b16 %v159, %v155
  %v192 = vpack.c.b16 %v160, %v156
  %225 = vmatprep.subr.bf16.mxu0 %v190
  %226 = vmatpush1.bf16.msra.mxu0 %v189
  %227 = vmatprep.subr.bf16.mxu0 %v186
  %228 = vmatpush1.bf16.msra.mxu0 %v185
  %229 = vmatprep.subr.bf16.mxu0 %v182
  %230 = vmatpush1.bf16.msra.mxu0 %v181
  %231 = vmatprep.subr.bf16.mxu0 %v178
  %232 = vmatpush1.bf16.msra.mxu0 %v177
  %233 = vmatprep.subr.bf16.mxu0 %v174
  %234 = vmatpush1.bf16.msra.mxu0 %v173
  %235 = vmatprep.subr.bf16.mxu0 %v170
  %236 = vmatpush1.bf16.msra.mxu0 %v169
  %237 = vmatprep.subr.bf16.mxu0 %v166
  %238 = vmatpush1.bf16.msra.mxu0 %v165
  %239 = vmatprep.subr.bf16.mxu0 %v162
  %240 = vmatpush1.bf16.msra.mxu0 %v161
  %241 = vmatprep.subr.bf16.mxu0 0
  %242 = vmatpush2.bf16.msra.mxu0 0
  %243 = vmatprep.subr.bf16.mxu0 0
  %244 = vmatpush2.bf16.msra.mxu0 0
  %245 = vmatprep.subr.bf16.mxu0 0
  %246 = vmatpush2.bf16.msra.mxu0 0
  %247 = vmatprep.subr.bf16.mxu0 0
  %248 = vmatpush2.bf16.msra.mxu0 0
  %249 = vmatprep.subr.bf16.mxu0 0
  %250 = vmatpush2.bf16.msra.mxu0 0
  %251 = vmatprep.subr.bf16.mxu0 0
  %252 = vmatpush2.bf16.msra.mxu0 0
  %253 = vmatprep.subr.bf16.mxu0 0
  %254 = vmatpush2.bf16.msra.mxu0 0
  %255 = vmatprep.subr.bf16.mxu0 0
  %256 = vmatpush2.bf16.msra.mxu0 0
  %257 = vmatprep.mubr.bf16.mxu0 0
  %258 = vmatmul.mubr.bf16.gmra.mxu0 %v32
  %v259 = vpop.f32.mrf.mxu0
  %v260 = vadd.f32 0.0, %v259
  %v261 = vpop.f32.mrf.mxu0
  %v262 = vadd.f32 0.0, %v261
  %v263 = vpop.f32.mrf.mxu0
  %v264 = vpop.f32.mrf.mxu0
  %265 = vdwg.mxu0
  %266 = vmatprep.subr.bf16.mxu0 %v192
  %267 = vmatpush1.bf16.msra.mxu0 %v191
  %268 = vmatprep.subr.bf16.mxu0 %v188
  %269 = vmatpush1.bf16.msra.mxu0 %v187
  %270 = vmatprep.subr.bf16.mxu0 %v184
  %271 = vmatpush1.bf16.msra.mxu0 %v183
  %272 = vmatprep.subr.bf16.mxu0 %v180
  %273 = vmatpush1.bf16.msra.mxu0 %v179
  %274 = vmatprep.subr.bf16.mxu0 %v176
  %275 = vmatpush1.bf16.msra.mxu0 %v175
  %276 = vmatprep.subr.bf16.mxu0 %v172
  %277 = vmatpush1.bf16.msra.mxu0 %v171
  %278 = vmatprep.subr.bf16.mxu0 %v168
  %279 = vmatpush1.bf16.msra.mxu0 %v167
  %280 = vmatprep.subr.bf16.mxu0 %v164
  %281 = vmatpush1.bf16.msra.mxu0 %v163
  %282 = vmatprep.subr.bf16.mxu0 0
  %283 = vmatpush2.bf16.msra.mxu0 0
  %284 = vmatprep.subr.bf16.mxu0 0
  %285 = vmatpush2.bf16.msra.mxu0 0
  %286 = vmatprep.subr.bf16.mxu0 0
  %287 = vmatpush2.bf16.msra.mxu0 0
  %288 = vmatprep.subr.bf16.mxu0 0
  %289 = vmatpush2.bf16.msra.mxu0 0
  %290 = vmatprep.subr.bf16.mxu0 0
  %291 = vmatpush2.bf16.msra.mxu0 0
  %292 = vmatprep.subr.bf16.mxu0 0
  %293 = vmatpush2.bf16.msra.mxu0 0
  %294 = vmatprep.subr.bf16.mxu0 0
  %295 = vmatpush2.bf16.msra.mxu0 0
  %296 = vmatprep.subr.bf16.mxu0 0
  %297 = vmatpush2.bf16.msra.mxu0 0
  %298 = vmatprep.mubr.bf16.mxu0 0
  %299 = vmatmul.mubr.bf16.gmra.mxu0 %v32
  %v300 = vpop.f32.mrf.mxu0
  %v301 = vadd.f32 0.0, %v300
  %v302 = vpop.f32.mrf.mxu0
  %v303 = vadd.f32 0.0, %v302
  %v304 = vpop.f32.mrf.mxu0
  %v305 = vpop.f32.mrf.mxu0
  %306 = vdwg.mxu0
  %v307 = vadd.f32 %v28, %v260
  %v308 = vadd.f32 %v29, %v262
  %v309 = vadd.f32 %v30, %v301
  %v310 = vadd.f32 %v31, %v303
  %v311 = vxor.u32 %v307, 2147483648
  %v312 = vmul.f32 %v311, 1.442695
  %v313 = vpow.pop %v312
  %v314 = vadd.f32 %v313, 1.0
  %v315 = vrcp.pop %v314
  %v316 = vmul.f32 1.0, %v315
  %v317 = vxor.u32 %v308, 2147483648
  %v318 = vmul.f32 %v317, 1.442695
  %v319 = vpow.pop %v318
  %v320 = vadd.f32 %v319, 1.0
  %v321 = vrcp.pop %v320
  %v322 = vmul.f32 1.0, %v321
  %v323 = vtanh.pop %v309
  %v324 = vxor.u32 %v310, 2147483648
  %v325 = vmul.f32 %v324, 1.442695
  %v326 = vpow.pop %v325
  %v327 = vadd.f32 %v326, 1.0
  %v328 = vrcp.pop %v327
  %v329 = vmul.f32 1.0, %v328
  %v330 = vmul.f32 %v322, %v27
  %v331 = vmul.f32 %v316, %v323
  %v332 = vadd.f32 %v330, %v331
  %v333 = vtanh.pop %v332
  %v334 = vmul.f32 %v329, %v333
  %v335 = vstv %s25
  %vm336 = vcmp.lt.s32.totalorder %v335, %v24
  %v337 = vsel %vm336, 1, 0
  %338 = vset.pattern.permute.xlu0 0
  %339 = vperm.xlu0 %338, %v337
  %v340 = vpop.permute.xlu0 %339
  %vm341 = vcmp.eq.s32.totalorder %v340, 1
  %v342 = vsel %vm341, %v334, %v26
  %v343 = vsel %vm341, %v332, %v27
  %v344 = vsel %vm341, %v334, 0.0
  %345 = vst [vmem:[%s3] sm:$0xff] %v344
  %s346 = scalar_lea.vmem %s1, 32
  %v347 = vld [vmem:[%s346] sm:$0xff]
  %v348 = vld [vmem:[%s346 + $0x8] sm:$0xff]
  %v349 = vld [vmem:[%s346 + $0x10] sm:$0xff]
  %v350 = vld [vmem:[%s346 + $0x18] sm:$0xff]
  %v351 = vpack.c.bf16 %v342, %v342
  %v352 = vld [vmem:[%s2] sm:$0xff]
  %v353 = vld [vmem:[%s2 + $0x8] sm:$0xff]
  %v354 = vld [vmem:[%s2 + $0x10] sm:$0xff]
  %v355 = vld [vmem:[%s2 + $0x18] sm:$0xff]
  %v356 = vld [vmem:[%s2 + $0x20] sm:$0xff]
  %v357 = vld [vmem:[%s2 + $0x28] sm:$0xff]
  %v358 = vld [vmem:[%s2 + $0x30] sm:$0xff]
  %v359 = vld [vmem:[%s2 + $0x38] sm:$0xff]
  %v360 = vld [vmem:[%s2 + $0x40] sm:$0xff]
  %v361 = vld [vmem:[%s2 + $0x48] sm:$0xff]
  %v362 = vld [vmem:[%s2 + $0x50] sm:$0xff]
  %v363 = vld [vmem:[%s2 + $0x58] sm:$0xff]
  %v364 = vld [vmem:[%s2 + $0x60] sm:$0xff]
  %v365 = vld [vmem:[%s2 + $0x68] sm:$0xff]
  %v366 = vld [vmem:[%s2 + $0x70] sm:$0xff]
  %v367 = vld [vmem:[%s2 + $0x78] sm:$0xff]
  %v368 = vld [vmem:[%s2 + $0x80] sm:$0xff]
  %v369 = vld [vmem:[%s2 + $0x88] sm:$0xff]
  %v370 = vld [vmem:[%s2 + $0x90] sm:$0xff]
  %v371 = vld [vmem:[%s2 + $0x98] sm:$0xff]
  %v372 = vld [vmem:[%s2 + $0xa0] sm:$0xff]
  %v373 = vld [vmem:[%s2 + $0xa8] sm:$0xff]
  %v374 = vld [vmem:[%s2 + $0xb0] sm:$0xff]
  %v375 = vld [vmem:[%s2 + $0xb8] sm:$0xff]
  %v376 = vld [vmem:[%s2 + $0xc0] sm:$0xff]
  %v377 = vld [vmem:[%s2 + $0xc8] sm:$0xff]
  %v378 = vld [vmem:[%s2 + $0xd0] sm:$0xff]
  %v379 = vld [vmem:[%s2 + $0xd8] sm:$0xff]
  %v380 = vld [vmem:[%s2 + $0xe0] sm:$0xff]
  %v381 = vld [vmem:[%s2 + $0xe8] sm:$0xff]
  %v382 = vld [vmem:[%s2 + $0xf0] sm:$0xff]
  %v383 = vld [vmem:[%s2 + $0xf8] sm:$0xff]
  %v416 = vunpack.c.l.b16 %v352
  %v417 = vunpack.c.h.b16 %v352
  %v418 = vunpack.c.l.b16 %v353
  %v419 = vunpack.c.h.b16 %v353
  %v420 = vunpack.c.l.b16 %v354
  %v421 = vunpack.c.h.b16 %v354
  %v422 = vunpack.c.l.b16 %v355
  %v423 = vunpack.c.h.b16 %v355
  %v424 = vunpack.c.l.b16 %v356
  %v425 = vunpack.c.h.b16 %v356
  %v426 = vunpack.c.l.b16 %v357
  %v427 = vunpack.c.h.b16 %v357
  %v428 = vunpack.c.l.b16 %v358
  %v429 = vunpack.c.h.b16 %v358
  %v430 = vunpack.c.l.b16 %v359
  %v431 = vunpack.c.h.b16 %v359
  %v432 = vunpack.c.l.b16 %v360
  %v433 = vunpack.c.h.b16 %v360
  %v434 = vunpack.c.l.b16 %v361
  %v435 = vunpack.c.h.b16 %v361
  %v436 = vunpack.c.l.b16 %v362
  %v437 = vunpack.c.h.b16 %v362
  %v438 = vunpack.c.l.b16 %v363
  %v439 = vunpack.c.h.b16 %v363
  %v440 = vunpack.c.l.b16 %v364
  %v441 = vunpack.c.h.b16 %v364
  %v442 = vunpack.c.l.b16 %v365
  %v443 = vunpack.c.h.b16 %v365
  %v444 = vunpack.c.l.b16 %v366
  %v445 = vunpack.c.h.b16 %v366
  %v446 = vunpack.c.l.b16 %v367
  %v447 = vunpack.c.h.b16 %v367
  %v448 = vunpack.c.l.b16 %v368
  %v449 = vunpack.c.h.b16 %v368
  %v450 = vunpack.c.l.b16 %v369
  %v451 = vunpack.c.h.b16 %v369
  %v452 = vunpack.c.l.b16 %v370
  %v453 = vunpack.c.h.b16 %v370
  %v454 = vunpack.c.l.b16 %v371
  %v455 = vunpack.c.h.b16 %v371
  %v456 = vunpack.c.l.b16 %v372
  %v457 = vunpack.c.h.b16 %v372
  %v458 = vunpack.c.l.b16 %v373
  %v459 = vunpack.c.h.b16 %v373
  %v460 = vunpack.c.l.b16 %v374
  %v461 = vunpack.c.h.b16 %v374
  %v462 = vunpack.c.l.b16 %v375
  %v463 = vunpack.c.h.b16 %v375
  %v464 = vunpack.c.l.b16 %v376
  %v465 = vunpack.c.h.b16 %v376
  %v466 = vunpack.c.l.b16 %v377
  %v467 = vunpack.c.h.b16 %v377
  %v468 = vunpack.c.l.b16 %v378
  %v469 = vunpack.c.h.b16 %v378
  %v470 = vunpack.c.l.b16 %v379
  %v471 = vunpack.c.h.b16 %v379
  %v472 = vunpack.c.l.b16 %v380
  %v473 = vunpack.c.h.b16 %v380
  %v474 = vunpack.c.l.b16 %v381
  %v475 = vunpack.c.h.b16 %v381
  %v476 = vunpack.c.l.b16 %v382
  %v477 = vunpack.c.h.b16 %v382
  %v478 = vunpack.c.l.b16 %v383
  %v479 = vunpack.c.h.b16 %v383
  %v480 = vpack.c.b16 %v420, %v416
  %v481 = vpack.c.b16 %v421, %v417
  %v482 = vpack.c.b16 %v422, %v418
  %v483 = vpack.c.b16 %v423, %v419
  %v484 = vpack.c.b16 %v428, %v424
  %v485 = vpack.c.b16 %v429, %v425
  %v486 = vpack.c.b16 %v430, %v426
  %v487 = vpack.c.b16 %v431, %v427
  %v488 = vpack.c.b16 %v436, %v432
  %v489 = vpack.c.b16 %v437, %v433
  %v490 = vpack.c.b16 %v438, %v434
  %v491 = vpack.c.b16 %v439, %v435
  %v492 = vpack.c.b16 %v444, %v440
  %v493 = vpack.c.b16 %v445, %v441
  %v494 = vpack.c.b16 %v446, %v442
  %v495 = vpack.c.b16 %v447, %v443
  %v496 = vpack.c.b16 %v452, %v448
  %v497 = vpack.c.b16 %v453, %v449
  %v498 = vpack.c.b16 %v454, %v450
  %v499 = vpack.c.b16 %v455, %v451
  %v500 = vpack.c.b16 %v460, %v456
  %v501 = vpack.c.b16 %v461, %v457
  %v502 = vpack.c.b16 %v462, %v458
  %v503 = vpack.c.b16 %v463, %v459
  %v504 = vpack.c.b16 %v468, %v464
  %v505 = vpack.c.b16 %v469, %v465
  %v506 = vpack.c.b16 %v470, %v466
  %v507 = vpack.c.b16 %v471, %v467
  %v508 = vpack.c.b16 %v476, %v472
  %v509 = vpack.c.b16 %v477, %v473
  %v510 = vpack.c.b16 %v478, %v474
  %v511 = vpack.c.b16 %v479, %v475
  %544 = vmatprep.subr.bf16.mxu0 %v509
  %545 = vmatpush1.bf16.msra.mxu0 %v508
  %546 = vmatprep.subr.bf16.mxu0 %v505
  %547 = vmatpush1.bf16.msra.mxu0 %v504
  %548 = vmatprep.subr.bf16.mxu0 %v501
  %549 = vmatpush1.bf16.msra.mxu0 %v500
  %550 = vmatprep.subr.bf16.mxu0 %v497
  %551 = vmatpush1.bf16.msra.mxu0 %v496
  %552 = vmatprep.subr.bf16.mxu0 %v493
  %553 = vmatpush1.bf16.msra.mxu0 %v492
  %554 = vmatprep.subr.bf16.mxu0 %v489
  %555 = vmatpush1.bf16.msra.mxu0 %v488
  %556 = vmatprep.subr.bf16.mxu0 %v485
  %557 = vmatpush1.bf16.msra.mxu0 %v484
  %558 = vmatprep.subr.bf16.mxu0 %v481
  %559 = vmatpush1.bf16.msra.mxu0 %v480
  %560 = vmatprep.subr.bf16.mxu0 0
  %561 = vmatpush2.bf16.msra.mxu0 0
  %562 = vmatprep.subr.bf16.mxu0 0
  %563 = vmatpush2.bf16.msra.mxu0 0
  %564 = vmatprep.subr.bf16.mxu0 0
  %565 = vmatpush2.bf16.msra.mxu0 0
  %566 = vmatprep.subr.bf16.mxu0 0
  %567 = vmatpush2.bf16.msra.mxu0 0
  %568 = vmatprep.subr.bf16.mxu0 0
  %569 = vmatpush2.bf16.msra.mxu0 0
  %570 = vmatprep.subr.bf16.mxu0 0
  %571 = vmatpush2.bf16.msra.mxu0 0
  %572 = vmatprep.subr.bf16.mxu0 0
  %573 = vmatpush2.bf16.msra.mxu0 0
  %574 = vmatprep.subr.bf16.mxu0 0
  %575 = vmatpush2.bf16.msra.mxu0 0
  %576 = vmatprep.mubr.bf16.mxu0 0
  %577 = vmatmul.mubr.bf16.gmra.mxu0 %v351
  %v578 = vpop.f32.mrf.mxu0
  %v579 = vadd.f32 0.0, %v578
  %v580 = vpop.f32.mrf.mxu0
  %v581 = vadd.f32 0.0, %v580
  %v582 = vpop.f32.mrf.mxu0
  %v583 = vpop.f32.mrf.mxu0
  %584 = vdwg.mxu0
  %585 = vmatprep.subr.bf16.mxu0 %v511
  %586 = vmatpush1.bf16.msra.mxu0 %v510
  %587 = vmatprep.subr.bf16.mxu0 %v507
  %588 = vmatpush1.bf16.msra.mxu0 %v506
  %589 = vmatprep.subr.bf16.mxu0 %v503
  %590 = vmatpush1.bf16.msra.mxu0 %v502
  %591 = vmatprep.subr.bf16.mxu0 %v499
  %592 = vmatpush1.bf16.msra.mxu0 %v498
  %593 = vmatprep.subr.bf16.mxu0 %v495
  %594 = vmatpush1.bf16.msra.mxu0 %v494
  %595 = vmatprep.subr.bf16.mxu0 %v491
  %596 = vmatpush1.bf16.msra.mxu0 %v490
  %597 = vmatprep.subr.bf16.mxu0 %v487
  %598 = vmatpush1.bf16.msra.mxu0 %v486
  %599 = vmatprep.subr.bf16.mxu0 %v483
  %600 = vmatpush1.bf16.msra.mxu0 %v482
  %601 = vmatprep.subr.bf16.mxu0 0
  %602 = vmatpush2.bf16.msra.mxu0 0
  %603 = vmatprep.subr.bf16.mxu0 0
  %604 = vmatpush2.bf16.msra.mxu0 0
  %605 = vmatprep.subr.bf16.mxu0 0
  %606 = vmatpush2.bf16.msra.mxu0 0
  %607 = vmatprep.subr.bf16.mxu0 0
  %608 = vmatpush2.bf16.msra.mxu0 0
  %609 = vmatprep.subr.bf16.mxu0 0
  %610 = vmatpush2.bf16.msra.mxu0 0
  %611 = vmatprep.subr.bf16.mxu0 0
  %612 = vmatpush2.bf16.msra.mxu0 0
  %613 = vmatprep.subr.bf16.mxu0 0
  %614 = vmatpush2.bf16.msra.mxu0 0
  %615 = vmatprep.subr.bf16.mxu0 0
  %616 = vmatpush2.bf16.msra.mxu0 0
  %617 = vmatprep.mubr.bf16.mxu0 0
  %618 = vmatmul.mubr.bf16.gmra.mxu0 %v351
  %v619 = vpop.f32.mrf.mxu0
  %v620 = vadd.f32 0.0, %v619
  %v621 = vpop.f32.mrf.mxu0
  %v622 = vadd.f32 0.0, %v621
  %v623 = vpop.f32.mrf.mxu0
  %v624 = vpop.f32.mrf.mxu0
  %625 = vdwg.mxu0
  %v626 = vadd.f32 %v347, %v579
  %v627 = vadd.f32 %v348, %v581
  %v628 = vadd.f32 %v349, %v620
  %v629 = vadd.f32 %v350, %v622
  %v630 = vxor.u32 %v626, 2147483648
  %v631 = vmul.f32 %v630, 1.442695
  %v632 = vpow.pop %v631
  %v633 = vadd.f32 %v632, 1.0
  %v634 = vrcp.pop %v633
  %v635 = vmul.f32 1.0, %v634
  %v636 = vxor.u32 %v627, 2147483648
  %v637 = vmul.f32 %v636, 1.442695
  %v638 = vpow.pop %v637
  %v639 = vadd.f32 %v638, 1.0
  %v640 = vrcp.pop %v639
  %v641 = vmul.f32 1.0, %v640
  %v642 = vtanh.pop %v628
  %v643 = vxor.u32 %v629, 2147483648
  %v644 = vmul.f32 %v643, 1.442695
  %v645 = vpow.pop %v644
  %v646 = vadd.f32 %v645, 1.0
  %v647 = vrcp.pop %v646
  %v648 = vmul.f32 1.0, %v647
  %v649 = vmul.f32 %v641, %v343
  %v650 = vmul.f32 %v635, %v642
  %v651 = vadd.f32 %v649, %v650
  %v652 = vtanh.pop %v651
  %v653 = vmul.f32 %v648, %v652
  %s654 = sadd.s32 %s25, 1
  %v655 = vstv %s654
  %vm656 = vcmp.lt.s32.totalorder %v655, %v24
  %v657 = vsel %vm656, 1, 0
  %658 = vset.pattern.permute.xlu0 0
  %659 = vperm.xlu0 %658, %v657
  %v660 = vpop.permute.xlu0 %659
  %vm661 = vcmp.eq.s32.totalorder %v660, 1
  %v662 = vsel %vm661, %v653, %v342
  %v663 = vsel %vm661, %v651, %v343
  %v664 = vsel %vm661, %v653, 0.0
  %s665 = scalar_lea.vmem %s3, 8
  %666 = vst [vmem:[%s665] sm:$0xff] %v664
  %s667 = scalar_lea.vmem %s1, 64
  %v668 = vld [vmem:[%s667] sm:$0xff]
  %v669 = vld [vmem:[%s667 + $0x8] sm:$0xff]
  %v670 = vld [vmem:[%s667 + $0x10] sm:$0xff]
  %v671 = vld [vmem:[%s667 + $0x18] sm:$0xff]
  %v672 = vpack.c.bf16 %v662, %v662
  %v673 = vld [vmem:[%s2] sm:$0xff]
  %v674 = vld [vmem:[%s2 + $0x8] sm:$0xff]
  %v675 = vld [vmem:[%s2 + $0x10] sm:$0xff]
  %v676 = vld [vmem:[%s2 + $0x18] sm:$0xff]
  %v677 = vld [vmem:[%s2 + $0x20] sm:$0xff]
  %v678 = vld [vmem:[%s2 + $0x28] sm:$0xff]
  %v679 = vld [vmem:[%s2 + $0x30] sm:$0xff]
  %v680 = vld [vmem:[%s2 + $0x38] sm:$0xff]
  %v681 = vld [vmem:[%s2 + $0x40] sm:$0xff]
  %v682 = vld [vmem:[%s2 + $0x48] sm:$0xff]
  %v683 = vld [vmem:[%s2 + $0x50] sm:$0xff]
  %v684 = vld [vmem:[%s2 + $0x58] sm:$0xff]
  %v685 = vld [vmem:[%s2 + $0x60] sm:$0xff]
  %v686 = vld [vmem:[%s2 + $0x68] sm:$0xff]
  %v687 = vld [vmem:[%s2 + $0x70] sm:$0xff]
  %v688 = vld [vmem:[%s2 + $0x78] sm:$0xff]
  %v689 = vld [vmem:[%s2 + $0x80] sm:$0xff]
  %v690 = vld [vmem:[%s2 + $0x88] sm:$0xff]
  %v691 = vld [vmem:[%s2 + $0x90] sm:$0xff]
  %v692 = vld [vmem:[%s2 + $0x98] sm:$0xff]
  %v693 = vld [vmem:[%s2 + $0xa0] sm:$0xff]
  %v694 = vld [vmem:[%s2 + $0xa8] sm:$0xff]
  %v695 = vld [vmem:[%s2 + $0xb0] sm:$0xff]
  %v696 = vld [vmem:[%s2 + $0xb8] sm:$0xff]
  %v697 = vld [vmem:[%s2 + $0xc0] sm:$0xff]
  %v698 = vld [vmem:[%s2 + $0xc8] sm:$0xff]
  %v699 = vld [vmem:[%s2 + $0xd0] sm:$0xff]
  %v700 = vld [vmem:[%s2 + $0xd8] sm:$0xff]
  %v701 = vld [vmem:[%s2 + $0xe0] sm:$0xff]
  %v702 = vld [vmem:[%s2 + $0xe8] sm:$0xff]
  %v703 = vld [vmem:[%s2 + $0xf0] sm:$0xff]
  %v704 = vld [vmem:[%s2 + $0xf8] sm:$0xff]
  %v737 = vunpack.c.l.b16 %v673
  %v738 = vunpack.c.h.b16 %v673
  %v739 = vunpack.c.l.b16 %v674
  %v740 = vunpack.c.h.b16 %v674
  %v741 = vunpack.c.l.b16 %v675
  %v742 = vunpack.c.h.b16 %v675
  %v743 = vunpack.c.l.b16 %v676
  %v744 = vunpack.c.h.b16 %v676
  %v745 = vunpack.c.l.b16 %v677
  %v746 = vunpack.c.h.b16 %v677
  %v747 = vunpack.c.l.b16 %v678
  %v748 = vunpack.c.h.b16 %v678
  %v749 = vunpack.c.l.b16 %v679
  %v750 = vunpack.c.h.b16 %v679
  %v751 = vunpack.c.l.b16 %v680
  %v752 = vunpack.c.h.b16 %v680
  %v753 = vunpack.c.l.b16 %v681
  %v754 = vunpack.c.h.b16 %v681
  %v755 = vunpack.c.l.b16 %v682
  %v756 = vunpack.c.h.b16 %v682
  %v757 = vunpack.c.l.b16 %v683
  %v758 = vunpack.c.h.b16 %v683
  %v759 = vunpack.c.l.b16 %v684
  %v760 = vunpack.c.h.b16 %v684
  %v761 = vunpack.c.l.b16 %v685
  %v762 = vunpack.c.h.b16 %v685
  %v763 = vunpack.c.l.b16 %v686
  %v764 = vunpack.c.h.b16 %v686
  %v765 = vunpack.c.l.b16 %v687
  %v766 = vunpack.c.h.b16 %v687
  %v767 = vunpack.c.l.b16 %v688
  %v768 = vunpack.c.h.b16 %v688
  %v769 = vunpack.c.l.b16 %v689
  %v770 = vunpack.c.h.b16 %v689
  %v771 = vunpack.c.l.b16 %v690
  %v772 = vunpack.c.h.b16 %v690
  %v773 = vunpack.c.l.b16 %v691
  %v774 = vunpack.c.h.b16 %v691
  %v775 = vunpack.c.l.b16 %v692
  %v776 = vunpack.c.h.b16 %v692
  %v777 = vunpack.c.l.b16 %v693
  %v778 = vunpack.c.h.b16 %v693
  %v779 = vunpack.c.l.b16 %v694
  %v780 = vunpack.c.h.b16 %v694
  %v781 = vunpack.c.l.b16 %v695
  %v782 = vunpack.c.h.b16 %v695
  %v783 = vunpack.c.l.b16 %v696
  %v784 = vunpack.c.h.b16 %v696
  %v785 = vunpack.c.l.b16 %v697
  %v786 = vunpack.c.h.b16 %v697
  %v787 = vunpack.c.l.b16 %v698
  %v788 = vunpack.c.h.b16 %v698
  %v789 = vunpack.c.l.b16 %v699
  %v790 = vunpack.c.h.b16 %v699
  %v791 = vunpack.c.l.b16 %v700
  %v792 = vunpack.c.h.b16 %v700
  %v793 = vunpack.c.l.b16 %v701
  %v794 = vunpack.c.h.b16 %v701
  %v795 = vunpack.c.l.b16 %v702
  %v796 = vunpack.c.h.b16 %v702
  %v797 = vunpack.c.l.b16 %v703
  %v798 = vunpack.c.h.b16 %v703
  %v799 = vunpack.c.l.b16 %v704
  %v800 = vunpack.c.h.b16 %v704
  %v801 = vpack.c.b16 %v741, %v737
  %v802 = vpack.c.b16 %v742, %v738
  %v803 = vpack.c.b16 %v743, %v739
  %v804 = vpack.c.b16 %v744, %v740
  %v805 = vpack.c.b16 %v749, %v745
  %v806 = vpack.c.b16 %v750, %v746
  %v807 = vpack.c.b16 %v751, %v747
  %v808 = vpack.c.b16 %v752, %v748
  %v809 = vpack.c.b16 %v757, %v753
  %v810 = vpack.c.b16 %v758, %v754
  %v811 = vpack.c.b16 %v759, %v755
  %v812 = vpack.c.b16 %v760, %v756
  %v813 = vpack.c.b16 %v765, %v761
  %v814 = vpack.c.b16 %v766, %v762
  %v815 = vpack.c.b16 %v767, %v763
  %v816 = vpack.c.b16 %v768, %v764
  %v817 = vpack.c.b16 %v773, %v769
  %v818 = vpack.c.b16 %v774, %v770
  %v819 = vpack.c.b16 %v775, %v771
  %v820 = vpack.c.b16 %v776, %v772
  %v821 = vpack.c.b16 %v781, %v777
  %v822 = vpack.c.b16 %v782, %v778
  %v823 = vpack.c.b16 %v783, %v779
  %v824 = vpack.c.b16 %v784, %v780
  %v825 = vpack.c.b16 %v789, %v785
  %v826 = vpack.c.b16 %v790, %v786
  %v827 = vpack.c.b16 %v791, %v787
  %v828 = vpack.c.b16 %v792, %v788
  %v829 = vpack.c.b16 %v797, %v793
  %v830 = vpack.c.b16 %v798, %v794
  %v831 = vpack.c.b16 %v799, %v795
  %v832 = vpack.c.b16 %v800, %v796
  %865 = vmatprep.subr.bf16.mxu0 %v830
  %866 = vmatpush1.bf16.msra.mxu0 %v829
  %867 = vmatprep.subr.bf16.mxu0 %v826
  %868 = vmatpush1.bf16.msra.mxu0 %v825
  %869 = vmatprep.subr.bf16.mxu0 %v822
  %870 = vmatpush1.bf16.msra.mxu0 %v821
  %871 = vmatprep.subr.bf16.mxu0 %v818
  %872 = vmatpush1.bf16.msra.mxu0 %v817
  %873 = vmatprep.subr.bf16.mxu0 %v814
  %874 = vmatpush1.bf16.msra.mxu0 %v813
  %875 = vmatprep.subr.bf16.mxu0 %v810
  %876 = vmatpush1.bf16.msra.mxu0 %v809
  %877 = vmatprep.subr.bf16.mxu0 %v806
  %878 = vmatpush1.bf16.msra.mxu0 %v805
  %879 = vmatprep.subr.bf16.mxu0 %v802
  %880 = vmatpush1.bf16.msra.mxu0 %v801
  %881 = vmatprep.subr.bf16.mxu0 0
  %882 = vmatpush2.bf16.msra.mxu0 0
  %883 = vmatprep.subr.bf16.mxu0 0
  %884 = vmatpush2.bf16.msra.mxu0 0
  %885 = vmatprep.subr.bf16.mxu0 0
  %886 = vmatpush2.bf16.msra.mxu0 0
  %887 = vmatprep.subr.bf16.mxu0 0
  %888 = vmatpush2.bf16.msra.mxu0 0
  %889 = vmatprep.subr.bf16.mxu0 0
  %890 = vmatpush2.bf16.msra.mxu0 0
  %891 = vmatprep.subr.bf16.mxu0 0
  %892 = vmatpush2.bf16.msra.mxu0 0
  %893 = vmatprep.subr.bf16.mxu0 0
  %894 = vmatpush2.bf16.msra.mxu0 0
  %895 = vmatprep.subr.bf16.mxu0 0
  %896 = vmatpush2.bf16.msra.mxu0 0
  %897 = vmatprep.mubr.bf16.mxu0 0
  %898 = vmatmul.mubr.bf16.gmra.mxu0 %v672
  %v899 = vpop.f32.mrf.mxu0
  %v900 = vadd.f32 0.0, %v899
  %v901 = vpop.f32.mrf.mxu0
  %v902 = vadd.f32 0.0, %v901
  %v903 = vpop.f32.mrf.mxu0
  %v904 = vpop.f32.mrf.mxu0
  %905 = vdwg.mxu0
  %906 = vmatprep.subr.bf16.mxu0 %v832
  %907 = vmatpush1.bf16.msra.mxu0 %v831
  %908 = vmatprep.subr.bf16.mxu0 %v828
  %909 = vmatpush1.bf16.msra.mxu0 %v827
  %910 = vmatprep.subr.bf16.mxu0 %v824
  %911 = vmatpush1.bf16.msra.mxu0 %v823
  %912 = vmatprep.subr.bf16.mxu0 %v820
  %913 = vmatpush1.bf16.msra.mxu0 %v819
  %914 = vmatprep.subr.bf16.mxu0 %v816
  %915 = vmatpush1.bf16.msra.mxu0 %v815
  %916 = vmatprep.subr.bf16.mxu0 %v812
  %917 = vmatpush1.bf16.msra.mxu0 %v811
  %918 = vmatprep.subr.bf16.mxu0 %v808
  %919 = vmatpush1.bf16.msra.mxu0 %v807
  %920 = vmatprep.subr.bf16.mxu0 %v804
  %921 = vmatpush1.bf16.msra.mxu0 %v803
  %922 = vmatprep.subr.bf16.mxu0 0
  %923 = vmatpush2.bf16.msra.mxu0 0
  %924 = vmatprep.subr.bf16.mxu0 0
  %925 = vmatpush2.bf16.msra.mxu0 0
  %926 = vmatprep.subr.bf16.mxu0 0
  %927 = vmatpush2.bf16.msra.mxu0 0
  %928 = vmatprep.subr.bf16.mxu0 0
  %929 = vmatpush2.bf16.msra.mxu0 0
  %930 = vmatprep.subr.bf16.mxu0 0
  %931 = vmatpush2.bf16.msra.mxu0 0
  %932 = vmatprep.subr.bf16.mxu0 0
  %933 = vmatpush2.bf16.msra.mxu0 0
  %934 = vmatprep.subr.bf16.mxu0 0
  %935 = vmatpush2.bf16.msra.mxu0 0
  %936 = vmatprep.subr.bf16.mxu0 0
  %937 = vmatpush2.bf16.msra.mxu0 0
  %938 = vmatprep.mubr.bf16.mxu0 0
  %939 = vmatmul.mubr.bf16.gmra.mxu0 %v672
  %v940 = vpop.f32.mrf.mxu0
  %v941 = vadd.f32 0.0, %v940
  %v942 = vpop.f32.mrf.mxu0
  %v943 = vadd.f32 0.0, %v942
  %v944 = vpop.f32.mrf.mxu0
  %v945 = vpop.f32.mrf.mxu0
  %946 = vdwg.mxu0
  %v947 = vadd.f32 %v668, %v900
  %v948 = vadd.f32 %v669, %v902
  %v949 = vadd.f32 %v670, %v941
  %v950 = vadd.f32 %v671, %v943
  %v951 = vxor.u32 %v947, 2147483648
  %v952 = vmul.f32 %v951, 1.442695
  %v953 = vpow.pop %v952
  %v954 = vadd.f32 %v953, 1.0
  %v955 = vrcp.pop %v954
  %v956 = vmul.f32 1.0, %v955
  %v957 = vxor.u32 %v948, 2147483648
  %v958 = vmul.f32 %v957, 1.442695
  %v959 = vpow.pop %v958
  %v960 = vadd.f32 %v959, 1.0
  %v961 = vrcp.pop %v960
  %v962 = vmul.f32 1.0, %v961
  %v963 = vtanh.pop %v949
  %v964 = vxor.u32 %v950, 2147483648
  %v965 = vmul.f32 %v964, 1.442695
  %v966 = vpow.pop %v965
  %v967 = vadd.f32 %v966, 1.0
  %v968 = vrcp.pop %v967
  %v969 = vmul.f32 1.0, %v968
  %v970 = vmul.f32 %v962, %v663
  %v971 = vmul.f32 %v956, %v963
  %v972 = vadd.f32 %v970, %v971
  %v973 = vtanh.pop %v972
  %v974 = vmul.f32 %v969, %v973
  %s975 = sadd.s32 %s25, 2
  %v976 = vstv %s975
  %vm977 = vcmp.lt.s32.totalorder %v976, %v24
  %v978 = vsel %vm977, 1, 0
  %979 = vset.pattern.permute.xlu0 0
  %980 = vperm.xlu0 %979, %v978
  %v981 = vpop.permute.xlu0 %980
  %vm982 = vcmp.eq.s32.totalorder %v981, 1
  %v983 = vsel %vm982, %v974, %v662
  %v984 = vsel %vm982, %v972, %v663
  %v985 = vsel %vm982, %v974, 0.0
  %s986 = scalar_lea.vmem %s3, 16
  %987 = vst [vmem:[%s986] sm:$0xff] %v985
  %s988 = scalar_lea.vmem %s1, 96
  %v989 = vld [vmem:[%s988] sm:$0xff]
  %v990 = vld [vmem:[%s988 + $0x8] sm:$0xff]
  %v991 = vld [vmem:[%s988 + $0x10] sm:$0xff]
  %v992 = vld [vmem:[%s988 + $0x18] sm:$0xff]
  %v993 = vpack.c.bf16 %v983, %v983
  %v994 = vld [vmem:[%s2] sm:$0xff]
  %v995 = vld [vmem:[%s2 + $0x8] sm:$0xff]
  %v996 = vld [vmem:[%s2 + $0x10] sm:$0xff]
  %v997 = vld [vmem:[%s2 + $0x18] sm:$0xff]
  %v998 = vld [vmem:[%s2 + $0x20] sm:$0xff]
  %v999 = vld [vmem:[%s2 + $0x28] sm:$0xff]
  %v1000 = vld [vmem:[%s2 + $0x30] sm:$0xff]
  %v1001 = vld [vmem:[%s2 + $0x38] sm:$0xff]
  %v1002 = vld [vmem:[%s2 + $0x40] sm:$0xff]
  %v1003 = vld [vmem:[%s2 + $0x48] sm:$0xff]
  %v1004 = vld [vmem:[%s2 + $0x50] sm:$0xff]
  %v1005 = vld [vmem:[%s2 + $0x58] sm:$0xff]
  %v1006 = vld [vmem:[%s2 + $0x60] sm:$0xff]
  %v1007 = vld [vmem:[%s2 + $0x68] sm:$0xff]
  %v1008 = vld [vmem:[%s2 + $0x70] sm:$0xff]
  %v1009 = vld [vmem:[%s2 + $0x78] sm:$0xff]
  %v1010 = vld [vmem:[%s2 + $0x80] sm:$0xff]
  %v1011 = vld [vmem:[%s2 + $0x88] sm:$0xff]
  %v1012 = vld [vmem:[%s2 + $0x90] sm:$0xff]
  %v1013 = vld [vmem:[%s2 + $0x98] sm:$0xff]
  %v1014 = vld [vmem:[%s2 + $0xa0] sm:$0xff]
  %v1015 = vld [vmem:[%s2 + $0xa8] sm:$0xff]
  %v1016 = vld [vmem:[%s2 + $0xb0] sm:$0xff]
  %v1017 = vld [vmem:[%s2 + $0xb8] sm:$0xff]
  %v1018 = vld [vmem:[%s2 + $0xc0] sm:$0xff]
  %v1019 = vld [vmem:[%s2 + $0xc8] sm:$0xff]
  %v1020 = vld [vmem:[%s2 + $0xd0] sm:$0xff]
  %v1021 = vld [vmem:[%s2 + $0xd8] sm:$0xff]
  %v1022 = vld [vmem:[%s2 + $0xe0] sm:$0xff]
  %v1023 = vld [vmem:[%s2 + $0xe8] sm:$0xff]
  %v1024 = vld [vmem:[%s2 + $0xf0] sm:$0xff]
  %v1025 = vld [vmem:[%s2 + $0xf8] sm:$0xff]
  %v1058 = vunpack.c.l.b16 %v994
  %v1059 = vunpack.c.h.b16 %v994
  %v1060 = vunpack.c.l.b16 %v995
  %v1061 = vunpack.c.h.b16 %v995
  %v1062 = vunpack.c.l.b16 %v996
  %v1063 = vunpack.c.h.b16 %v996
  %v1064 = vunpack.c.l.b16 %v997
  %v1065 = vunpack.c.h.b16 %v997
  %v1066 = vunpack.c.l.b16 %v998
  %v1067 = vunpack.c.h.b16 %v998
  %v1068 = vunpack.c.l.b16 %v999
  %v1069 = vunpack.c.h.b16 %v999
  %v1070 = vunpack.c.l.b16 %v1000
  %v1071 = vunpack.c.h.b16 %v1000
  %v1072 = vunpack.c.l.b16 %v1001
  %v1073 = vunpack.c.h.b16 %v1001
  %v1074 = vunpack.c.l.b16 %v1002
  %v1075 = vunpack.c.h.b16 %v1002
  %v1076 = vunpack.c.l.b16 %v1003
  %v1077 = vunpack.c.h.b16 %v1003
  %v1078 = vunpack.c.l.b16 %v1004
  %v1079 = vunpack.c.h.b16 %v1004
  %v1080 = vunpack.c.l.b16 %v1005
  %v1081 = vunpack.c.h.b16 %v1005
  %v1082 = vunpack.c.l.b16 %v1006
  %v1083 = vunpack.c.h.b16 %v1006
  %v1084 = vunpack.c.l.b16 %v1007
  %v1085 = vunpack.c.h.b16 %v1007
  %v1086 = vunpack.c.l.b16 %v1008
  %v1087 = vunpack.c.h.b16 %v1008
  %v1088 = vunpack.c.l.b16 %v1009
  %v1089 = vunpack.c.h.b16 %v1009
  %v1090 = vunpack.c.l.b16 %v1010
  %v1091 = vunpack.c.h.b16 %v1010
  %v1092 = vunpack.c.l.b16 %v1011
  %v1093 = vunpack.c.h.b16 %v1011
  %v1094 = vunpack.c.l.b16 %v1012
  %v1095 = vunpack.c.h.b16 %v1012
  %v1096 = vunpack.c.l.b16 %v1013
  %v1097 = vunpack.c.h.b16 %v1013
  %v1098 = vunpack.c.l.b16 %v1014
  %v1099 = vunpack.c.h.b16 %v1014
  %v1100 = vunpack.c.l.b16 %v1015
  %v1101 = vunpack.c.h.b16 %v1015
  %v1102 = vunpack.c.l.b16 %v1016
  %v1103 = vunpack.c.h.b16 %v1016
  %v1104 = vunpack.c.l.b16 %v1017
  %v1105 = vunpack.c.h.b16 %v1017
  %v1106 = vunpack.c.l.b16 %v1018
  %v1107 = vunpack.c.h.b16 %v1018
  %v1108 = vunpack.c.l.b16 %v1019
  %v1109 = vunpack.c.h.b16 %v1019
  %v1110 = vunpack.c.l.b16 %v1020
  %v1111 = vunpack.c.h.b16 %v1020
  %v1112 = vunpack.c.l.b16 %v1021
  %v1113 = vunpack.c.h.b16 %v1021
  %v1114 = vunpack.c.l.b16 %v1022
  %v1115 = vunpack.c.h.b16 %v1022
  %v1116 = vunpack.c.l.b16 %v1023
  %v1117 = vunpack.c.h.b16 %v1023
  %v1118 = vunpack.c.l.b16 %v1024
  %v1119 = vunpack.c.h.b16 %v1024
  %v1120 = vunpack.c.l.b16 %v1025
  %v1121 = vunpack.c.h.b16 %v1025
  %v1122 = vpack.c.b16 %v1062, %v1058
  %v1123 = vpack.c.b16 %v1063, %v1059
  %v1124 = vpack.c.b16 %v1064, %v1060
  %v1125 = vpack.c.b16 %v1065, %v1061
  %v1126 = vpack.c.b16 %v1070, %v1066
  %v1127 = vpack.c.b16 %v1071, %v1067
  %v1128 = vpack.c.b16 %v1072, %v1068
  %v1129 = vpack.c.b16 %v1073, %v1069
  %v1130 = vpack.c.b16 %v1078, %v1074
  %v1131 = vpack.c.b16 %v1079, %v1075
  %v1132 = vpack.c.b16 %v1080, %v1076
  %v1133 = vpack.c.b16 %v1081, %v1077
  %v1134 = vpack.c.b16 %v1086, %v1082
  %v1135 = vpack.c.b16 %v1087, %v1083
  %v1136 = vpack.c.b16 %v1088, %v1084
  %v1137 = vpack.c.b16 %v1089, %v1085
  %v1138 = vpack.c.b16 %v1094, %v1090
  %v1139 = vpack.c.b16 %v1095, %v1091
  %v1140 = vpack.c.b16 %v1096, %v1092
  %v1141 = vpack.c.b16 %v1097, %v1093
  %v1142 = vpack.c.b16 %v1102, %v1098
  %v1143 = vpack.c.b16 %v1103, %v1099
  %v1144 = vpack.c.b16 %v1104, %v1100
  %v1145 = vpack.c.b16 %v1105, %v1101
  %v1146 = vpack.c.b16 %v1110, %v1106
  %v1147 = vpack.c.b16 %v1111, %v1107
  %v1148 = vpack.c.b16 %v1112, %v1108
  %v1149 = vpack.c.b16 %v1113, %v1109
  %v1150 = vpack.c.b16 %v1118, %v1114
  %v1151 = vpack.c.b16 %v1119, %v1115
  %v1152 = vpack.c.b16 %v1120, %v1116
  %v1153 = vpack.c.b16 %v1121, %v1117
  %1186 = vmatprep.subr.bf16.mxu0 %v1151
  %1187 = vmatpush1.bf16.msra.mxu0 %v1150
  %1188 = vmatprep.subr.bf16.mxu0 %v1147
  %1189 = vmatpush1.bf16.msra.mxu0 %v1146
  %1190 = vmatprep.subr.bf16.mxu0 %v1143
  %1191 = vmatpush1.bf16.msra.mxu0 %v1142
  %1192 = vmatprep.subr.bf16.mxu0 %v1139
  %1193 = vmatpush1.bf16.msra.mxu0 %v1138
  %1194 = vmatprep.subr.bf16.mxu0 %v1135
  %1195 = vmatpush1.bf16.msra.mxu0 %v1134
  %1196 = vmatprep.subr.bf16.mxu0 %v1131
  %1197 = vmatpush1.bf16.msra.mxu0 %v1130
  %1198 = vmatprep.subr.bf16.mxu0 %v1127
  %1199 = vmatpush1.bf16.msra.mxu0 %v1126
  %1200 = vmatprep.subr.bf16.mxu0 %v1123
  %1201 = vmatpush1.bf16.msra.mxu0 %v1122
  %1202 = vmatprep.subr.bf16.mxu0 0
  %1203 = vmatpush2.bf16.msra.mxu0 0
  %1204 = vmatprep.subr.bf16.mxu0 0
  %1205 = vmatpush2.bf16.msra.mxu0 0
  %1206 = vmatprep.subr.bf16.mxu0 0
  %1207 = vmatpush2.bf16.msra.mxu0 0
  %1208 = vmatprep.subr.bf16.mxu0 0
  %1209 = vmatpush2.bf16.msra.mxu0 0
  %1210 = vmatprep.subr.bf16.mxu0 0
  %1211 = vmatpush2.bf16.msra.mxu0 0
  %1212 = vmatprep.subr.bf16.mxu0 0
  %1213 = vmatpush2.bf16.msra.mxu0 0
  %1214 = vmatprep.subr.bf16.mxu0 0
  %1215 = vmatpush2.bf16.msra.mxu0 0
  %1216 = vmatprep.subr.bf16.mxu0 0
  %1217 = vmatpush2.bf16.msra.mxu0 0
  %1218 = vmatprep.mubr.bf16.mxu0 0
  %1219 = vmatmul.mubr.bf16.gmra.mxu0 %v993
  %v1220 = vpop.f32.mrf.mxu0
  %v1221 = vadd.f32 0.0, %v1220
  %v1222 = vpop.f32.mrf.mxu0
  %v1223 = vadd.f32 0.0, %v1222
  %v1224 = vpop.f32.mrf.mxu0
  %v1225 = vpop.f32.mrf.mxu0
  %1226 = vdwg.mxu0
  %1227 = vmatprep.subr.bf16.mxu0 %v1153
  %1228 = vmatpush1.bf16.msra.mxu0 %v1152
  %1229 = vmatprep.subr.bf16.mxu0 %v1149
  %1230 = vmatpush1.bf16.msra.mxu0 %v1148
  %1231 = vmatprep.subr.bf16.mxu0 %v1145
  %1232 = vmatpush1.bf16.msra.mxu0 %v1144
  %1233 = vmatprep.subr.bf16.mxu0 %v1141
  %1234 = vmatpush1.bf16.msra.mxu0 %v1140
  %1235 = vmatprep.subr.bf16.mxu0 %v1137
  %1236 = vmatpush1.bf16.msra.mxu0 %v1136
  %1237 = vmatprep.subr.bf16.mxu0 %v1133
  %1238 = vmatpush1.bf16.msra.mxu0 %v1132
  %1239 = vmatprep.subr.bf16.mxu0 %v1129
  %1240 = vmatpush1.bf16.msra.mxu0 %v1128
  %1241 = vmatprep.subr.bf16.mxu0 %v1125
  %1242 = vmatpush1.bf16.msra.mxu0 %v1124
  %1243 = vmatprep.subr.bf16.mxu0 0
  %1244 = vmatpush2.bf16.msra.mxu0 0
  %1245 = vmatprep.subr.bf16.mxu0 0
  %1246 = vmatpush2.bf16.msra.mxu0 0
  %1247 = vmatprep.subr.bf16.mxu0 0
  %1248 = vmatpush2.bf16.msra.mxu0 0
  %1249 = vmatprep.subr.bf16.mxu0 0
  %1250 = vmatpush2.bf16.msra.mxu0 0
  %1251 = vmatprep.subr.bf16.mxu0 0
  %1252 = vmatpush2.bf16.msra.mxu0 0
  %1253 = vmatprep.subr.bf16.mxu0 0
  %1254 = vmatpush2.bf16.msra.mxu0 0
  %1255 = vmatprep.subr.bf16.mxu0 0
  %1256 = vmatpush2.bf16.msra.mxu0 0
  %1257 = vmatprep.subr.bf16.mxu0 0
  %1258 = vmatpush2.bf16.msra.mxu0 0
  %1259 = vmatprep.mubr.bf16.mxu0 0
  %1260 = vmatmul.mubr.bf16.gmra.mxu0 %v993
  %v1261 = vpop.f32.mrf.mxu0
  %v1262 = vadd.f32 0.0, %v1261
  %v1263 = vpop.f32.mrf.mxu0
  %v1264 = vadd.f32 0.0, %v1263
  %v1265 = vpop.f32.mrf.mxu0
  %v1266 = vpop.f32.mrf.mxu0
  %1267 = vdwg.mxu0
  %v1268 = vadd.f32 %v989, %v1221
  %v1269 = vadd.f32 %v990, %v1223
  %v1270 = vadd.f32 %v991, %v1262
  %v1271 = vadd.f32 %v992, %v1264
  %v1272 = vxor.u32 %v1268, 2147483648
  %v1273 = vmul.f32 %v1272, 1.442695
  %v1274 = vpow.pop %v1273
  %v1275 = vadd.f32 %v1274, 1.0
  %v1276 = vrcp.pop %v1275
  %v1277 = vmul.f32 1.0, %v1276
  %v1278 = vxor.u32 %v1269, 2147483648
  %v1279 = vmul.f32 %v1278, 1.442695
  %v1280 = vpow.pop %v1279
  %v1281 = vadd.f32 %v1280, 1.0
  %v1282 = vrcp.pop %v1281
  %v1283 = vmul.f32 1.0, %v1282
  %v1284 = vtanh.pop %v1270
  %v1285 = vxor.u32 %v1271, 2147483648
  %v1286 = vmul.f32 %v1285, 1.442695
  %v1287 = vpow.pop %v1286
  %v1288 = vadd.f32 %v1287, 1.0
  %v1289 = vrcp.pop %v1288
  %v1290 = vmul.f32 1.0, %v1289
  %v1291 = vmul.f32 %v1283, %v984
  %v1292 = vmul.f32 %v1277, %v1284
  %v1293 = vadd.f32 %v1291, %v1292
  %v1294 = vtanh.pop %v1293
  %v1295 = vmul.f32 %v1290, %v1294
  %s1296 = sadd.s32 %s25, 3
  %v1297 = vstv %s1296
  %vm1298 = vcmp.lt.s32.totalorder %v1297, %v24
  %v1299 = vsel %vm1298, 1, 0
  %1300 = vset.pattern.permute.xlu0 0
  %1301 = vperm.xlu0 %1300, %v1299
  %v1302 = vpop.permute.xlu0 %1301
  %vm1303 = vcmp.eq.s32.totalorder %v1302, 1
  %v1304 = vsel %vm1303, %v1295, %v983
  %v1305 = vsel %vm1303, %v1293, %v984
  %v1306 = vsel %vm1303, %v1295, 0.0
  %s1307 = scalar_lea.vmem %s3, 24
  %1308 = vst [vmem:[%s1307] sm:$0xff] %v1306
  %s1309 = scalar_lea.vmem %s1, 128
  %v1310 = vld [vmem:[%s1309] sm:$0xff]
  %v1311 = vld [vmem:[%s1309 + $0x8] sm:$0xff]
  %v1312 = vld [vmem:[%s1309 + $0x10] sm:$0xff]
  %v1313 = vld [vmem:[%s1309 + $0x18] sm:$0xff]
  %v1314 = vpack.c.bf16 %v1304, %v1304
  %v1315 = vld [vmem:[%s2] sm:$0xff]
  %v1316 = vld [vmem:[%s2 + $0x8] sm:$0xff]
  %v1317 = vld [vmem:[%s2 + $0x10] sm:$0xff]
  %v1318 = vld [vmem:[%s2 + $0x18] sm:$0xff]
  %v1319 = vld [vmem:[%s2 + $0x20] sm:$0xff]
  %v1320 = vld [vmem:[%s2 + $0x28] sm:$0xff]
  %v1321 = vld [vmem:[%s2 + $0x30] sm:$0xff]
  %v1322 = vld [vmem:[%s2 + $0x38] sm:$0xff]
  %v1323 = vld [vmem:[%s2 + $0x40] sm:$0xff]
  %v1324 = vld [vmem:[%s2 + $0x48] sm:$0xff]
  %v1325 = vld [vmem:[%s2 + $0x50] sm:$0xff]
  %v1326 = vld [vmem:[%s2 + $0x58] sm:$0xff]
  %v1327 = vld [vmem:[%s2 + $0x60] sm:$0xff]
  %v1328 = vld [vmem:[%s2 + $0x68] sm:$0xff]
  %v1329 = vld [vmem:[%s2 + $0x70] sm:$0xff]
  %v1330 = vld [vmem:[%s2 + $0x78] sm:$0xff]
  %v1331 = vld [vmem:[%s2 + $0x80] sm:$0xff]
  %v1332 = vld [vmem:[%s2 + $0x88] sm:$0xff]
  %v1333 = vld [vmem:[%s2 + $0x90] sm:$0xff]
  %v1334 = vld [vmem:[%s2 + $0x98] sm:$0xff]
  %v1335 = vld [vmem:[%s2 + $0xa0] sm:$0xff]
  %v1336 = vld [vmem:[%s2 + $0xa8] sm:$0xff]
  %v1337 = vld [vmem:[%s2 + $0xb0] sm:$0xff]
  %v1338 = vld [vmem:[%s2 + $0xb8] sm:$0xff]
  %v1339 = vld [vmem:[%s2 + $0xc0] sm:$0xff]
  %v1340 = vld [vmem:[%s2 + $0xc8] sm:$0xff]
  %v1341 = vld [vmem:[%s2 + $0xd0] sm:$0xff]
  %v1342 = vld [vmem:[%s2 + $0xd8] sm:$0xff]
  %v1343 = vld [vmem:[%s2 + $0xe0] sm:$0xff]
  %v1344 = vld [vmem:[%s2 + $0xe8] sm:$0xff]
  %v1345 = vld [vmem:[%s2 + $0xf0] sm:$0xff]
  %v1346 = vld [vmem:[%s2 + $0xf8] sm:$0xff]
  %v1379 = vunpack.c.l.b16 %v1315
  %v1380 = vunpack.c.h.b16 %v1315
  %v1381 = vunpack.c.l.b16 %v1316
  %v1382 = vunpack.c.h.b16 %v1316
  %v1383 = vunpack.c.l.b16 %v1317
  %v1384 = vunpack.c.h.b16 %v1317
  %v1385 = vunpack.c.l.b16 %v1318
  %v1386 = vunpack.c.h.b16 %v1318
  %v1387 = vunpack.c.l.b16 %v1319
  %v1388 = vunpack.c.h.b16 %v1319
  %v1389 = vunpack.c.l.b16 %v1320
  %v1390 = vunpack.c.h.b16 %v1320
  %v1391 = vunpack.c.l.b16 %v1321
  %v1392 = vunpack.c.h.b16 %v1321
  %v1393 = vunpack.c.l.b16 %v1322
  %v1394 = vunpack.c.h.b16 %v1322
  %v1395 = vunpack.c.l.b16 %v1323
  %v1396 = vunpack.c.h.b16 %v1323
  %v1397 = vunpack.c.l.b16 %v1324
  %v1398 = vunpack.c.h.b16 %v1324
  %v1399 = vunpack.c.l.b16 %v1325
  %v1400 = vunpack.c.h.b16 %v1325
  %v1401 = vunpack.c.l.b16 %v1326
  %v1402 = vunpack.c.h.b16 %v1326
  %v1403 = vunpack.c.l.b16 %v1327
  %v1404 = vunpack.c.h.b16 %v1327
  %v1405 = vunpack.c.l.b16 %v1328
  %v1406 = vunpack.c.h.b16 %v1328
  %v1407 = vunpack.c.l.b16 %v1329
  %v1408 = vunpack.c.h.b16 %v1329
  %v1409 = vunpack.c.l.b16 %v1330
  %v1410 = vunpack.c.h.b16 %v1330
  %v1411 = vunpack.c.l.b16 %v1331
  %v1412 = vunpack.c.h.b16 %v1331
  %v1413 = vunpack.c.l.b16 %v1332
  %v1414 = vunpack.c.h.b16 %v1332
  %v1415 = vunpack.c.l.b16 %v1333
  %v1416 = vunpack.c.h.b16 %v1333
  %v1417 = vunpack.c.l.b16 %v1334
  %v1418 = vunpack.c.h.b16 %v1334
  %v1419 = vunpack.c.l.b16 %v1335
  %v1420 = vunpack.c.h.b16 %v1335
  %v1421 = vunpack.c.l.b16 %v1336
  %v1422 = vunpack.c.h.b16 %v1336
  %v1423 = vunpack.c.l.b16 %v1337
  %v1424 = vunpack.c.h.b16 %v1337
  %v1425 = vunpack.c.l.b16 %v1338
  %v1426 = vunpack.c.h.b16 %v1338
  %v1427 = vunpack.c.l.b16 %v1339
  %v1428 = vunpack.c.h.b16 %v1339
  %v1429 = vunpack.c.l.b16 %v1340
  %v1430 = vunpack.c.h.b16 %v1340
  %v1431 = vunpack.c.l.b16 %v1341
  %v1432 = vunpack.c.h.b16 %v1341
  %v1433 = vunpack.c.l.b16 %v1342
  %v1434 = vunpack.c.h.b16 %v1342
  %v1435 = vunpack.c.l.b16 %v1343
  %v1436 = vunpack.c.h.b16 %v1343
  %v1437 = vunpack.c.l.b16 %v1344
  %v1438 = vunpack.c.h.b16 %v1344
  %v1439 = vunpack.c.l.b16 %v1345
  %v1440 = vunpack.c.h.b16 %v1345
  %v1441 = vunpack.c.l.b16 %v1346
  %v1442 = vunpack.c.h.b16 %v1346
  %v1443 = vpack.c.b16 %v1383, %v1379
  %v1444 = vpack.c.b16 %v1384, %v1380
  %v1445 = vpack.c.b16 %v1385, %v1381
  %v1446 = vpack.c.b16 %v1386, %v1382
  %v1447 = vpack.c.b16 %v1391, %v1387
  %v1448 = vpack.c.b16 %v1392, %v1388
  %v1449 = vpack.c.b16 %v1393, %v1389
  %v1450 = vpack.c.b16 %v1394, %v1390
  %v1451 = vpack.c.b16 %v1399, %v1395
  %v1452 = vpack.c.b16 %v1400, %v1396
  %v1453 = vpack.c.b16 %v1401, %v1397
  %v1454 = vpack.c.b16 %v1402, %v1398
  %v1455 = vpack.c.b16 %v1407, %v1403
  %v1456 = vpack.c.b16 %v1408, %v1404
  %v1457 = vpack.c.b16 %v1409, %v1405
  %v1458 = vpack.c.b16 %v1410, %v1406
  %v1459 = vpack.c.b16 %v1415, %v1411
  %v1460 = vpack.c.b16 %v1416, %v1412
  %v1461 = vpack.c.b16 %v1417, %v1413
  %v1462 = vpack.c.b16 %v1418, %v1414
  %v1463 = vpack.c.b16 %v1423, %v1419
  %v1464 = vpack.c.b16 %v1424, %v1420
  %v1465 = vpack.c.b16 %v1425, %v1421
  %v1466 = vpack.c.b16 %v1426, %v1422
  %v1467 = vpack.c.b16 %v1431, %v1427
  %v1468 = vpack.c.b16 %v1432, %v1428
  %v1469 = vpack.c.b16 %v1433, %v1429
  %v1470 = vpack.c.b16 %v1434, %v1430
  %v1471 = vpack.c.b16 %v1439, %v1435
  %v1472 = vpack.c.b16 %v1440, %v1436
  %v1473 = vpack.c.b16 %v1441, %v1437
  %v1474 = vpack.c.b16 %v1442, %v1438
  %1507 = vmatprep.subr.bf16.mxu0 %v1472
  %1508 = vmatpush1.bf16.msra.mxu0 %v1471
  %1509 = vmatprep.subr.bf16.mxu0 %v1468
  %1510 = vmatpush1.bf16.msra.mxu0 %v1467
  %1511 = vmatprep.subr.bf16.mxu0 %v1464
  %1512 = vmatpush1.bf16.msra.mxu0 %v1463
  %1513 = vmatprep.subr.bf16.mxu0 %v1460
  %1514 = vmatpush1.bf16.msra.mxu0 %v1459
  %1515 = vmatprep.subr.bf16.mxu0 %v1456
  %1516 = vmatpush1.bf16.msra.mxu0 %v1455
  %1517 = vmatprep.subr.bf16.mxu0 %v1452
  %1518 = vmatpush1.bf16.msra.mxu0 %v1451
  %1519 = vmatprep.subr.bf16.mxu0 %v1448
  %1520 = vmatpush1.bf16.msra.mxu0 %v1447
  %1521 = vmatprep.subr.bf16.mxu0 %v1444
  %1522 = vmatpush1.bf16.msra.mxu0 %v1443
  %1523 = vmatprep.subr.bf16.mxu0 0
  %1524 = vmatpush2.bf16.msra.mxu0 0
  %1525 = vmatprep.subr.bf16.mxu0 0
  %1526 = vmatpush2.bf16.msra.mxu0 0
  %1527 = vmatprep.subr.bf16.mxu0 0
  %1528 = vmatpush2.bf16.msra.mxu0 0
  %1529 = vmatprep.subr.bf16.mxu0 0
  %1530 = vmatpush2.bf16.msra.mxu0 0
  %1531 = vmatprep.subr.bf16.mxu0 0
  %1532 = vmatpush2.bf16.msra.mxu0 0
  %1533 = vmatprep.subr.bf16.mxu0 0
  %1534 = vmatpush2.bf16.msra.mxu0 0
  %1535 = vmatprep.subr.bf16.mxu0 0
  %1536 = vmatpush2.bf16.msra.mxu0 0
  %1537 = vmatprep.subr.bf16.mxu0 0
  %1538 = vmatpush2.bf16.msra.mxu0 0
  %1539 = vmatprep.mubr.bf16.mxu0 0
  %1540 = vmatmul.mubr.bf16.gmra.mxu0 %v1314
  %v1541 = vpop.f32.mrf.mxu0
  %v1542 = vadd.f32 0.0, %v1541
  %v1543 = vpop.f32.mrf.mxu0
  %v1544 = vadd.f32 0.0, %v1543
  %v1545 = vpop.f32.mrf.mxu0
  %v1546 = vpop.f32.mrf.mxu0
  %1547 = vdwg.mxu0
  %1548 = vmatprep.subr.bf16.mxu0 %v1474
  %1549 = vmatpush1.bf16.msra.mxu0 %v1473
  %1550 = vmatprep.subr.bf16.mxu0 %v1470
  %1551 = vmatpush1.bf16.msra.mxu0 %v1469
  %1552 = vmatprep.subr.bf16.mxu0 %v1466
  %1553 = vmatpush1.bf16.msra.mxu0 %v1465
  %1554 = vmatprep.subr.bf16.mxu0 %v1462
  %1555 = vmatpush1.bf16.msra.mxu0 %v1461
  %1556 = vmatprep.subr.bf16.mxu0 %v1458
  %1557 = vmatpush1.bf16.msra.mxu0 %v1457
  %1558 = vmatprep.subr.bf16.mxu0 %v1454
  %1559 = vmatpush1.bf16.msra.mxu0 %v1453
  %1560 = vmatprep.subr.bf16.mxu0 %v1450
  %1561 = vmatpush1.bf16.msra.mxu0 %v1449
  %1562 = vmatprep.subr.bf16.mxu0 %v1446
  %1563 = vmatpush1.bf16.msra.mxu0 %v1445
  %1564 = vmatprep.subr.bf16.mxu0 0
  %1565 = vmatpush2.bf16.msra.mxu0 0
  %1566 = vmatprep.subr.bf16.mxu0 0
  %1567 = vmatpush2.bf16.msra.mxu0 0
  %1568 = vmatprep.subr.bf16.mxu0 0
  %1569 = vmatpush2.bf16.msra.mxu0 0
  %1570 = vmatprep.subr.bf16.mxu0 0
  %1571 = vmatpush2.bf16.msra.mxu0 0
  %1572 = vmatprep.subr.bf16.mxu0 0
  %1573 = vmatpush2.bf16.msra.mxu0 0
  %1574 = vmatprep.subr.bf16.mxu0 0
  %1575 = vmatpush2.bf16.msra.mxu0 0
  %1576 = vmatprep.subr.bf16.mxu0 0
  %1577 = vmatpush2.bf16.msra.mxu0 0
  %1578 = vmatprep.subr.bf16.mxu0 0
  %1579 = vmatpush2.bf16.msra.mxu0 0
  %1580 = vmatprep.mubr.bf16.mxu0 0
  %1581 = vmatmul.mubr.bf16.gmra.mxu0 %v1314
  %v1582 = vpop.f32.mrf.mxu0
  %v1583 = vadd.f32 0.0, %v1582
  %v1584 = vpop.f32.mrf.mxu0
  %v1585 = vadd.f32 0.0, %v1584
  %v1586 = vpop.f32.mrf.mxu0
  %v1587 = vpop.f32.mrf.mxu0
  %1588 = vdwg.mxu0
  %v1589 = vadd.f32 %v1310, %v1542
  %v1590 = vadd.f32 %v1311, %v1544
  %v1591 = vadd.f32 %v1312, %v1583
  %v1592 = vadd.f32 %v1313, %v1585
  %v1593 = vxor.u32 %v1589, 2147483648
  %v1594 = vmul.f32 %v1593, 1.442695
  %v1595 = vpow.pop %v1594
  %v1596 = vadd.f32 %v1595, 1.0
  %v1597 = vrcp.pop %v1596
  %v1598 = vmul.f32 1.0, %v1597
  %v1599 = vxor.u32 %v1590, 2147483648
  %v1600 = vmul.f32 %v1599, 1.442695
  %v1601 = vpow.pop %v1600
  %v1602 = vadd.f32 %v1601, 1.0
  %v1603 = vrcp.pop %v1602
  %v1604 = vmul.f32 1.0, %v1603
  %v1605 = vtanh.pop %v1591
  %v1606 = vxor.u32 %v1592, 2147483648
  %v1607 = vmul.f32 %v1606, 1.442695
  %v1608 = vpow.pop %v1607
  %v1609 = vadd.f32 %v1608, 1.0
  %v1610 = vrcp.pop %v1609
  %v1611 = vmul.f32 1.0, %v1610
  %v1612 = vmul.f32 %v1604, %v1305
  %v1613 = vmul.f32 %v1598, %v1605
  %v1614 = vadd.f32 %v1612, %v1613
  %v1615 = vtanh.pop %v1614
  %v1616 = vmul.f32 %v1611, %v1615
  %s1617 = sadd.s32 %s25, 4
  %v1618 = vstv %s1617
  %vm1619 = vcmp.lt.s32.totalorder %v1618, %v24
  %v1620 = vsel %vm1619, 1, 0
  %1621 = vset.pattern.permute.xlu0 0
  %1622 = vperm.xlu0 %1621, %v1620
  %v1623 = vpop.permute.xlu0 %1622
  %vm1624 = vcmp.eq.s32.totalorder %v1623, 1
  %v1625 = vsel %vm1624, %v1616, %v1304
  %v1626 = vsel %vm1624, %v1614, %v1305
  %v1627 = vsel %vm1624, %v1616, 0.0
  %s1628 = scalar_lea.vmem %s3, 32
  %1629 = vst [vmem:[%s1628] sm:$0xff] %v1627
  %s1630 = scalar_lea.vmem %s1, 160
  %v1631 = vld [vmem:[%s1630] sm:$0xff]
  %v1632 = vld [vmem:[%s1630 + $0x8] sm:$0xff]
  %v1633 = vld [vmem:[%s1630 + $0x10] sm:$0xff]
  %v1634 = vld [vmem:[%s1630 + $0x18] sm:$0xff]
  %v1635 = vpack.c.bf16 %v1625, %v1625
  %v1636 = vld [vmem:[%s2] sm:$0xff]
  %v1637 = vld [vmem:[%s2 + $0x8] sm:$0xff]
  %v1638 = vld [vmem:[%s2 + $0x10] sm:$0xff]
  %v1639 = vld [vmem:[%s2 + $0x18] sm:$0xff]
  %v1640 = vld [vmem:[%s2 + $0x20] sm:$0xff]
  %v1641 = vld [vmem:[%s2 + $0x28] sm:$0xff]
  %v1642 = vld [vmem:[%s2 + $0x30] sm:$0xff]
  %v1643 = vld [vmem:[%s2 + $0x38] sm:$0xff]
  %v1644 = vld [vmem:[%s2 + $0x40] sm:$0xff]
  %v1645 = vld [vmem:[%s2 + $0x48] sm:$0xff]
  %v1646 = vld [vmem:[%s2 + $0x50] sm:$0xff]
  %v1647 = vld [vmem:[%s2 + $0x58] sm:$0xff]
  %v1648 = vld [vmem:[%s2 + $0x60] sm:$0xff]
  %v1649 = vld [vmem:[%s2 + $0x68] sm:$0xff]
  %v1650 = vld [vmem:[%s2 + $0x70] sm:$0xff]
  %v1651 = vld [vmem:[%s2 + $0x78] sm:$0xff]
  %v1652 = vld [vmem:[%s2 + $0x80] sm:$0xff]
  %v1653 = vld [vmem:[%s2 + $0x88] sm:$0xff]
  %v1654 = vld [vmem:[%s2 + $0x90] sm:$0xff]
  %v1655 = vld [vmem:[%s2 + $0x98] sm:$0xff]
  %v1656 = vld [vmem:[%s2 + $0xa0] sm:$0xff]
  %v1657 = vld [vmem:[%s2 + $0xa8] sm:$0xff]
  %v1658 = vld [vmem:[%s2 + $0xb0] sm:$0xff]
  %v1659 = vld [vmem:[%s2 + $0xb8] sm:$0xff]
  %v1660 = vld [vmem:[%s2 + $0xc0] sm:$0xff]
  %v1661 = vld [vmem:[%s2 + $0xc8] sm:$0xff]
  %v1662 = vld [vmem:[%s2 + $0xd0] sm:$0xff]
  %v1663 = vld [vmem:[%s2 + $0xd8] sm:$0xff]
  %v1664 = vld [vmem:[%s2 + $0xe0] sm:$0xff]
  %v1665 = vld [vmem:[%s2 + $0xe8] sm:$0xff]
  %v1666 = vld [vmem:[%s2 + $0xf0] sm:$0xff]
  %v1667 = vld [vmem:[%s2 + $0xf8] sm:$0xff]
  %v1700 = vunpack.c.l.b16 %v1636
  %v1701 = vunpack.c.h.b16 %v1636
  %v1702 = vunpack.c.l.b16 %v1637
  %v1703 = vunpack.c.h.b16 %v1637
  %v1704 = vunpack.c.l.b16 %v1638
  %v1705 = vunpack.c.h.b16 %v1638
  %v1706 = vunpack.c.l.b16 %v1639
  %v1707 = vunpack.c.h.b16 %v1639
  %v1708 = vunpack.c.l.b16 %v1640
  %v1709 = vunpack.c.h.b16 %v1640
  %v1710 = vunpack.c.l.b16 %v1641
  %v1711 = vunpack.c.h.b16 %v1641
  %v1712 = vunpack.c.l.b16 %v1642
  %v1713 = vunpack.c.h.b16 %v1642
  %v1714 = vunpack.c.l.b16 %v1643
  %v1715 = vunpack.c.h.b16 %v1643
  %v1716 = vunpack.c.l.b16 %v1644
  %v1717 = vunpack.c.h.b16 %v1644
  %v1718 = vunpack.c.l.b16 %v1645
  %v1719 = vunpack.c.h.b16 %v1645
  %v1720 = vunpack.c.l.b16 %v1646
  %v1721 = vunpack.c.h.b16 %v1646
  %v1722 = vunpack.c.l.b16 %v1647
  %v1723 = vunpack.c.h.b16 %v1647
  %v1724 = vunpack.c.l.b16 %v1648
  %v1725 = vunpack.c.h.b16 %v1648
  %v1726 = vunpack.c.l.b16 %v1649
  %v1727 = vunpack.c.h.b16 %v1649
  %v1728 = vunpack.c.l.b16 %v1650
  %v1729 = vunpack.c.h.b16 %v1650
  %v1730 = vunpack.c.l.b16 %v1651
  %v1731 = vunpack.c.h.b16 %v1651
  %v1732 = vunpack.c.l.b16 %v1652
  %v1733 = vunpack.c.h.b16 %v1652
  %v1734 = vunpack.c.l.b16 %v1653
  %v1735 = vunpack.c.h.b16 %v1653
  %v1736 = vunpack.c.l.b16 %v1654
  %v1737 = vunpack.c.h.b16 %v1654
  %v1738 = vunpack.c.l.b16 %v1655
  %v1739 = vunpack.c.h.b16 %v1655
  %v1740 = vunpack.c.l.b16 %v1656
  %v1741 = vunpack.c.h.b16 %v1656
  %v1742 = vunpack.c.l.b16 %v1657
  %v1743 = vunpack.c.h.b16 %v1657
  %v1744 = vunpack.c.l.b16 %v1658
  %v1745 = vunpack.c.h.b16 %v1658
  %v1746 = vunpack.c.l.b16 %v1659
  %v1747 = vunpack.c.h.b16 %v1659
  %v1748 = vunpack.c.l.b16 %v1660
  %v1749 = vunpack.c.h.b16 %v1660
  %v1750 = vunpack.c.l.b16 %v1661
  %v1751 = vunpack.c.h.b16 %v1661
  %v1752 = vunpack.c.l.b16 %v1662
  %v1753 = vunpack.c.h.b16 %v1662
  %v1754 = vunpack.c.l.b16 %v1663
  %v1755 = vunpack.c.h.b16 %v1663
  %v1756 = vunpack.c.l.b16 %v1664
  %v1757 = vunpack.c.h.b16 %v1664
  %v1758 = vunpack.c.l.b16 %v1665
  %v1759 = vunpack.c.h.b16 %v1665
  %v1760 = vunpack.c.l.b16 %v1666
  %v1761 = vunpack.c.h.b16 %v1666
  %v1762 = vunpack.c.l.b16 %v1667
  %v1763 = vunpack.c.h.b16 %v1667
  %v1764 = vpack.c.b16 %v1704, %v1700
  %v1765 = vpack.c.b16 %v1705, %v1701
  %v1766 = vpack.c.b16 %v1706, %v1702
  %v1767 = vpack.c.b16 %v1707, %v1703
  %v1768 = vpack.c.b16 %v1712, %v1708
  %v1769 = vpack.c.b16 %v1713, %v1709
  %v1770 = vpack.c.b16 %v1714, %v1710
  %v1771 = vpack.c.b16 %v1715, %v1711
  %v1772 = vpack.c.b16 %v1720, %v1716
  %v1773 = vpack.c.b16 %v1721, %v1717
  %v1774 = vpack.c.b16 %v1722, %v1718
  %v1775 = vpack.c.b16 %v1723, %v1719
  %v1776 = vpack.c.b16 %v1728, %v1724
  %v1777 = vpack.c.b16 %v1729, %v1725
  %v1778 = vpack.c.b16 %v1730, %v1726
  %v1779 = vpack.c.b16 %v1731, %v1727
  %v1780 = vpack.c.b16 %v1736, %v1732
  %v1781 = vpack.c.b16 %v1737, %v1733
  %v1782 = vpack.c.b16 %v1738, %v1734
  %v1783 = vpack.c.b16 %v1739, %v1735
  %v1784 = vpack.c.b16 %v1744, %v1740
  %v1785 = vpack.c.b16 %v1745, %v1741
  %v1786 = vpack.c.b16 %v1746, %v1742
  %v1787 = vpack.c.b16 %v1747, %v1743
  %v1788 = vpack.c.b16 %v1752, %v1748
  %v1789 = vpack.c.b16 %v1753, %v1749
  %v1790 = vpack.c.b16 %v1754, %v1750
  %v1791 = vpack.c.b16 %v1755, %v1751
  %v1792 = vpack.c.b16 %v1760, %v1756
  %v1793 = vpack.c.b16 %v1761, %v1757
  %v1794 = vpack.c.b16 %v1762, %v1758
  %v1795 = vpack.c.b16 %v1763, %v1759
  %1828 = vmatprep.subr.bf16.mxu0 %v1793
  %1829 = vmatpush1.bf16.msra.mxu0 %v1792
  %1830 = vmatprep.subr.bf16.mxu0 %v1789
  %1831 = vmatpush1.bf16.msra.mxu0 %v1788
  %1832 = vmatprep.subr.bf16.mxu0 %v1785
  %1833 = vmatpush1.bf16.msra.mxu0 %v1784
  %1834 = vmatprep.subr.bf16.mxu0 %v1781
  %1835 = vmatpush1.bf16.msra.mxu0 %v1780
  %1836 = vmatprep.subr.bf16.mxu0 %v1777
  %1837 = vmatpush1.bf16.msra.mxu0 %v1776
  %1838 = vmatprep.subr.bf16.mxu0 %v1773
  %1839 = vmatpush1.bf16.msra.mxu0 %v1772
  %1840 = vmatprep.subr.bf16.mxu0 %v1769
  %1841 = vmatpush1.bf16.msra.mxu0 %v1768
  %1842 = vmatprep.subr.bf16.mxu0 %v1765
  %1843 = vmatpush1.bf16.msra.mxu0 %v1764
  %1844 = vmatprep.subr.bf16.mxu0 0
  %1845 = vmatpush2.bf16.msra.mxu0 0
  %1846 = vmatprep.subr.bf16.mxu0 0
  %1847 = vmatpush2.bf16.msra.mxu0 0
  %1848 = vmatprep.subr.bf16.mxu0 0
  %1849 = vmatpush2.bf16.msra.mxu0 0
  %1850 = vmatprep.subr.bf16.mxu0 0
  %1851 = vmatpush2.bf16.msra.mxu0 0
  %1852 = vmatprep.subr.bf16.mxu0 0
  %1853 = vmatpush2.bf16.msra.mxu0 0
  %1854 = vmatprep.subr.bf16.mxu0 0
  %1855 = vmatpush2.bf16.msra.mxu0 0
  %1856 = vmatprep.subr.bf16.mxu0 0
  %1857 = vmatpush2.bf16.msra.mxu0 0
  %1858 = vmatprep.subr.bf16.mxu0 0
  %1859 = vmatpush2.bf16.msra.mxu0 0
  %1860 = vmatprep.mubr.bf16.mxu0 0
  %1861 = vmatmul.mubr.bf16.gmra.mxu0 %v1635
  %v1862 = vpop.f32.mrf.mxu0
  %v1863 = vadd.f32 0.0, %v1862
  %v1864 = vpop.f32.mrf.mxu0
  %v1865 = vadd.f32 0.0, %v1864
  %v1866 = vpop.f32.mrf.mxu0
  %v1867 = vpop.f32.mrf.mxu0
  %1868 = vdwg.mxu0
  %1869 = vmatprep.subr.bf16.mxu0 %v1795
  %1870 = vmatpush1.bf16.msra.mxu0 %v1794
  %1871 = vmatprep.subr.bf16.mxu0 %v1791
  %1872 = vmatpush1.bf16.msra.mxu0 %v1790
  %1873 = vmatprep.subr.bf16.mxu0 %v1787
  %1874 = vmatpush1.bf16.msra.mxu0 %v1786
  %1875 = vmatprep.subr.bf16.mxu0 %v1783
  %1876 = vmatpush1.bf16.msra.mxu0 %v1782
  %1877 = vmatprep.subr.bf16.mxu0 %v1779
  %1878 = vmatpush1.bf16.msra.mxu0 %v1778
  %1879 = vmatprep.subr.bf16.mxu0 %v1775
  %1880 = vmatpush1.bf16.msra.mxu0 %v1774
  %1881 = vmatprep.subr.bf16.mxu0 %v1771
  %1882 = vmatpush1.bf16.msra.mxu0 %v1770
  %1883 = vmatprep.subr.bf16.mxu0 %v1767
  %1884 = vmatpush1.bf16.msra.mxu0 %v1766
  %1885 = vmatprep.subr.bf16.mxu0 0
  %1886 = vmatpush2.bf16.msra.mxu0 0
  %1887 = vmatprep.subr.bf16.mxu0 0
  %1888 = vmatpush2.bf16.msra.mxu0 0
  %1889 = vmatprep.subr.bf16.mxu0 0
  %1890 = vmatpush2.bf16.msra.mxu0 0
  %1891 = vmatprep.subr.bf16.mxu0 0
  %1892 = vmatpush2.bf16.msra.mxu0 0
  %1893 = vmatprep.subr.bf16.mxu0 0
  %1894 = vmatpush2.bf16.msra.mxu0 0
  %1895 = vmatprep.subr.bf16.mxu0 0
  %1896 = vmatpush2.bf16.msra.mxu0 0
  %1897 = vmatprep.subr.bf16.mxu0 0
  %1898 = vmatpush2.bf16.msra.mxu0 0
  %1899 = vmatprep.subr.bf16.mxu0 0
  %1900 = vmatpush2.bf16.msra.mxu0 0
  %1901 = vmatprep.mubr.bf16.mxu0 0
  %1902 = vmatmul.mubr.bf16.gmra.mxu0 %v1635
  %v1903 = vpop.f32.mrf.mxu0
  %v1904 = vadd.f32 0.0, %v1903
  %v1905 = vpop.f32.mrf.mxu0
  %v1906 = vadd.f32 0.0, %v1905
  %v1907 = vpop.f32.mrf.mxu0
  %v1908 = vpop.f32.mrf.mxu0
  %1909 = vdwg.mxu0
  %v1910 = vadd.f32 %v1631, %v1863
  %v1911 = vadd.f32 %v1632, %v1865
  %v1912 = vadd.f32 %v1633, %v1904
  %v1913 = vadd.f32 %v1634, %v1906
  %v1914 = vxor.u32 %v1910, 2147483648
  %v1915 = vmul.f32 %v1914, 1.442695
  %v1916 = vpow.pop %v1915
  %v1917 = vadd.f32 %v1916, 1.0
  %v1918 = vrcp.pop %v1917
  %v1919 = vmul.f32 1.0, %v1918
  %v1920 = vxor.u32 %v1911, 2147483648
  %v1921 = vmul.f32 %v1920, 1.442695
  %v1922 = vpow.pop %v1921
  %v1923 = vadd.f32 %v1922, 1.0
  %v1924 = vrcp.pop %v1923
  %v1925 = vmul.f32 1.0, %v1924
  %v1926 = vtanh.pop %v1912
  %v1927 = vxor.u32 %v1913, 2147483648
  %v1928 = vmul.f32 %v1927, 1.442695
  %v1929 = vpow.pop %v1928
  %v1930 = vadd.f32 %v1929, 1.0
  %v1931 = vrcp.pop %v1930
  %v1932 = vmul.f32 1.0, %v1931
  %v1933 = vmul.f32 %v1925, %v1626
  %v1934 = vmul.f32 %v1919, %v1926
  %v1935 = vadd.f32 %v1933, %v1934
  %v1936 = vtanh.pop %v1935
  %v1937 = vmul.f32 %v1932, %v1936
  %s1938 = sadd.s32 %s25, 5
  %v1939 = vstv %s1938
  %vm1940 = vcmp.lt.s32.totalorder %v1939, %v24
  %v1941 = vsel %vm1940, 1, 0
  %1942 = vset.pattern.permute.xlu0 0
  %1943 = vperm.xlu0 %1942, %v1941
  %v1944 = vpop.permute.xlu0 %1943
  %vm1945 = vcmp.eq.s32.totalorder %v1944, 1
  %v1946 = vsel %vm1945, %v1937, %v1625
  %v1947 = vsel %vm1945, %v1935, %v1626
  %v1948 = vsel %vm1945, %v1937, 0.0
  %s1949 = scalar_lea.vmem %s3, 40
  %1950 = vst [vmem:[%s1949] sm:$0xff] %v1948
  %s1951 = scalar_lea.vmem %s1, 192
  %v1952 = vld [vmem:[%s1951] sm:$0xff]
  %v1953 = vld [vmem:[%s1951 + $0x8] sm:$0xff]
  %v1954 = vld [vmem:[%s1951 + $0x10] sm:$0xff]
  %v1955 = vld [vmem:[%s1951 + $0x18] sm:$0xff]
  %v1956 = vpack.c.bf16 %v1946, %v1946
  %v1957 = vld [vmem:[%s2] sm:$0xff]
  %v1958 = vld [vmem:[%s2 + $0x8] sm:$0xff]
  %v1959 = vld [vmem:[%s2 + $0x10] sm:$0xff]
  %v1960 = vld [vmem:[%s2 + $0x18] sm:$0xff]
  %v1961 = vld [vmem:[%s2 + $0x20] sm:$0xff]
  %v1962 = vld [vmem:[%s2 + $0x28] sm:$0xff]
  %v1963 = vld [vmem:[%s2 + $0x30] sm:$0xff]
  %v1964 = vld [vmem:[%s2 + $0x38] sm:$0xff]
  %v1965 = vld [vmem:[%s2 + $0x40] sm:$0xff]
  %v1966 = vld [vmem:[%s2 + $0x48] sm:$0xff]
  %v1967 = vld [vmem:[%s2 + $0x50] sm:$0xff]
  %v1968 = vld [vmem:[%s2 + $0x58] sm:$0xff]
  %v1969 = vld [vmem:[%s2 + $0x60] sm:$0xff]
  %v1970 = vld [vmem:[%s2 + $0x68] sm:$0xff]
  %v1971 = vld [vmem:[%s2 + $0x70] sm:$0xff]
  %v1972 = vld [vmem:[%s2 + $0x78] sm:$0xff]
  %v1973 = vld [vmem:[%s2 + $0x80] sm:$0xff]
  %v1974 = vld [vmem:[%s2 + $0x88] sm:$0xff]
  %v1975 = vld [vmem:[%s2 + $0x90] sm:$0xff]
  %v1976 = vld [vmem:[%s2 + $0x98] sm:$0xff]
  %v1977 = vld [vmem:[%s2 + $0xa0] sm:$0xff]
  %v1978 = vld [vmem:[%s2 + $0xa8] sm:$0xff]
  %v1979 = vld [vmem:[%s2 + $0xb0] sm:$0xff]
  %v1980 = vld [vmem:[%s2 + $0xb8] sm:$0xff]
  %v1981 = vld [vmem:[%s2 + $0xc0] sm:$0xff]
  %v1982 = vld [vmem:[%s2 + $0xc8] sm:$0xff]
  %v1983 = vld [vmem:[%s2 + $0xd0] sm:$0xff]
  %v1984 = vld [vmem:[%s2 + $0xd8] sm:$0xff]
  %v1985 = vld [vmem:[%s2 + $0xe0] sm:$0xff]
  %v1986 = vld [vmem:[%s2 + $0xe8] sm:$0xff]
  %v1987 = vld [vmem:[%s2 + $0xf0] sm:$0xff]
  %v1988 = vld [vmem:[%s2 + $0xf8] sm:$0xff]
  %v2021 = vunpack.c.l.b16 %v1957
  %v2022 = vunpack.c.h.b16 %v1957
  %v2023 = vunpack.c.l.b16 %v1958
  %v2024 = vunpack.c.h.b16 %v1958
  %v2025 = vunpack.c.l.b16 %v1959
  %v2026 = vunpack.c.h.b16 %v1959
  %v2027 = vunpack.c.l.b16 %v1960
  %v2028 = vunpack.c.h.b16 %v1960
  %v2029 = vunpack.c.l.b16 %v1961
  %v2030 = vunpack.c.h.b16 %v1961
  %v2031 = vunpack.c.l.b16 %v1962
  %v2032 = vunpack.c.h.b16 %v1962
  %v2033 = vunpack.c.l.b16 %v1963
  %v2034 = vunpack.c.h.b16 %v1963
  %v2035 = vunpack.c.l.b16 %v1964
  %v2036 = vunpack.c.h.b16 %v1964
  %v2037 = vunpack.c.l.b16 %v1965
  %v2038 = vunpack.c.h.b16 %v1965
  %v2039 = vunpack.c.l.b16 %v1966
  %v2040 = vunpack.c.h.b16 %v1966
  %v2041 = vunpack.c.l.b16 %v1967
  %v2042 = vunpack.c.h.b16 %v1967
  %v2043 = vunpack.c.l.b16 %v1968
  %v2044 = vunpack.c.h.b16 %v1968
  %v2045 = vunpack.c.l.b16 %v1969
  %v2046 = vunpack.c.h.b16 %v1969
  %v2047 = vunpack.c.l.b16 %v1970
  %v2048 = vunpack.c.h.b16 %v1970
  %v2049 = vunpack.c.l.b16 %v1971
  %v2050 = vunpack.c.h.b16 %v1971
  %v2051 = vunpack.c.l.b16 %v1972
  %v2052 = vunpack.c.h.b16 %v1972
  %v2053 = vunpack.c.l.b16 %v1973
  %v2054 = vunpack.c.h.b16 %v1973
  %v2055 = vunpack.c.l.b16 %v1974
  %v2056 = vunpack.c.h.b16 %v1974
  %v2057 = vunpack.c.l.b16 %v1975
  %v2058 = vunpack.c.h.b16 %v1975
  %v2059 = vunpack.c.l.b16 %v1976
  %v2060 = vunpack.c.h.b16 %v1976
  %v2061 = vunpack.c.l.b16 %v1977
  %v2062 = vunpack.c.h.b16 %v1977
  %v2063 = vunpack.c.l.b16 %v1978
  %v2064 = vunpack.c.h.b16 %v1978
  %v2065 = vunpack.c.l.b16 %v1979
  %v2066 = vunpack.c.h.b16 %v1979
  %v2067 = vunpack.c.l.b16 %v1980
  %v2068 = vunpack.c.h.b16 %v1980
  %v2069 = vunpack.c.l.b16 %v1981
  %v2070 = vunpack.c.h.b16 %v1981
  %v2071 = vunpack.c.l.b16 %v1982
  %v2072 = vunpack.c.h.b16 %v1982
  %v2073 = vunpack.c.l.b16 %v1983
  %v2074 = vunpack.c.h.b16 %v1983
  %v2075 = vunpack.c.l.b16 %v1984
  %v2076 = vunpack.c.h.b16 %v1984
  %v2077 = vunpack.c.l.b16 %v1985
  %v2078 = vunpack.c.h.b16 %v1985
  %v2079 = vunpack.c.l.b16 %v1986
  %v2080 = vunpack.c.h.b16 %v1986
  %v2081 = vunpack.c.l.b16 %v1987
  %v2082 = vunpack.c.h.b16 %v1987
  %v2083 = vunpack.c.l.b16 %v1988
  %v2084 = vunpack.c.h.b16 %v1988
  %v2085 = vpack.c.b16 %v2025, %v2021
  %v2086 = vpack.c.b16 %v2026, %v2022
  %v2087 = vpack.c.b16 %v2027, %v2023
  %v2088 = vpack.c.b16 %v2028, %v2024
  %v2089 = vpack.c.b16 %v2033, %v2029
  %v2090 = vpack.c.b16 %v2034, %v2030
  %v2091 = vpack.c.b16 %v2035, %v2031
  %v2092 = vpack.c.b16 %v2036, %v2032
  %v2093 = vpack.c.b16 %v2041, %v2037
  %v2094 = vpack.c.b16 %v2042, %v2038
  %v2095 = vpack.c.b16 %v2043, %v2039
  %v2096 = vpack.c.b16 %v2044, %v2040
  %v2097 = vpack.c.b16 %v2049, %v2045
  %v2098 = vpack.c.b16 %v2050, %v2046
  %v2099 = vpack.c.b16 %v2051, %v2047
  %v2100 = vpack.c.b16 %v2052, %v2048
  %v2101 = vpack.c.b16 %v2057, %v2053
  %v2102 = vpack.c.b16 %v2058, %v2054
  %v2103 = vpack.c.b16 %v2059, %v2055
  %v2104 = vpack.c.b16 %v2060, %v2056
  %v2105 = vpack.c.b16 %v2065, %v2061
  %v2106 = vpack.c.b16 %v2066, %v2062
  %v2107 = vpack.c.b16 %v2067, %v2063
  %v2108 = vpack.c.b16 %v2068, %v2064
  %v2109 = vpack.c.b16 %v2073, %v2069
  %v2110 = vpack.c.b16 %v2074, %v2070
  %v2111 = vpack.c.b16 %v2075, %v2071
  %v2112 = vpack.c.b16 %v2076, %v2072
  %v2113 = vpack.c.b16 %v2081, %v2077
  %v2114 = vpack.c.b16 %v2082, %v2078
  %v2115 = vpack.c.b16 %v2083, %v2079
  %v2116 = vpack.c.b16 %v2084, %v2080
  %2149 = vmatprep.subr.bf16.mxu0 %v2114
  %2150 = vmatpush1.bf16.msra.mxu0 %v2113
  %2151 = vmatprep.subr.bf16.mxu0 %v2110
  %2152 = vmatpush1.bf16.msra.mxu0 %v2109
  %2153 = vmatprep.subr.bf16.mxu0 %v2106
  %2154 = vmatpush1.bf16.msra.mxu0 %v2105
  %2155 = vmatprep.subr.bf16.mxu0 %v2102
  %2156 = vmatpush1.bf16.msra.mxu0 %v2101
  %2157 = vmatprep.subr.bf16.mxu0 %v2098
  %2158 = vmatpush1.bf16.msra.mxu0 %v2097
  %2159 = vmatprep.subr.bf16.mxu0 %v2094
  %2160 = vmatpush1.bf16.msra.mxu0 %v2093
  %2161 = vmatprep.subr.bf16.mxu0 %v2090
  %2162 = vmatpush1.bf16.msra.mxu0 %v2089
  %2163 = vmatprep.subr.bf16.mxu0 %v2086
  %2164 = vmatpush1.bf16.msra.mxu0 %v2085
  %2165 = vmatprep.subr.bf16.mxu0 0
  %2166 = vmatpush2.bf16.msra.mxu0 0
  %2167 = vmatprep.subr.bf16.mxu0 0
  %2168 = vmatpush2.bf16.msra.mxu0 0
  %2169 = vmatprep.subr.bf16.mxu0 0
  %2170 = vmatpush2.bf16.msra.mxu0 0
  %2171 = vmatprep.subr.bf16.mxu0 0
  %2172 = vmatpush2.bf16.msra.mxu0 0
  %2173 = vmatprep.subr.bf16.mxu0 0
  %2174 = vmatpush2.bf16.msra.mxu0 0
  %2175 = vmatprep.subr.bf16.mxu0 0
  %2176 = vmatpush2.bf16.msra.mxu0 0
  %2177 = vmatprep.subr.bf16.mxu0 0
  %2178 = vmatpush2.bf16.msra.mxu0 0
  %2179 = vmatprep.subr.bf16.mxu0 0
  %2180 = vmatpush2.bf16.msra.mxu0 0
  %2181 = vmatprep.mubr.bf16.mxu0 0
  %2182 = vmatmul.mubr.bf16.gmra.mxu0 %v1956
  %v2183 = vpop.f32.mrf.mxu0
  %v2184 = vadd.f32 0.0, %v2183
  %v2185 = vpop.f32.mrf.mxu0
  %v2186 = vadd.f32 0.0, %v2185
  %v2187 = vpop.f32.mrf.mxu0
  %v2188 = vpop.f32.mrf.mxu0
  %2189 = vdwg.mxu0
  %2190 = vmatprep.subr.bf16.mxu0 %v2116
  %2191 = vmatpush1.bf16.msra.mxu0 %v2115
  %2192 = vmatprep.subr.bf16.mxu0 %v2112
  %2193 = vmatpush1.bf16.msra.mxu0 %v2111
  %2194 = vmatprep.subr.bf16.mxu0 %v2108
  %2195 = vmatpush1.bf16.msra.mxu0 %v2107
  %2196 = vmatprep.subr.bf16.mxu0 %v2104
  %2197 = vmatpush1.bf16.msra.mxu0 %v2103
  %2198 = vmatprep.subr.bf16.mxu0 %v2100
  %2199 = vmatpush1.bf16.msra.mxu0 %v2099
  %2200 = vmatprep.subr.bf16.mxu0 %v2096
  %2201 = vmatpush1.bf16.msra.mxu0 %v2095
  %2202 = vmatprep.subr.bf16.mxu0 %v2092
  %2203 = vmatpush1.bf16.msra.mxu0 %v2091
  %2204 = vmatprep.subr.bf16.mxu0 %v2088
  %2205 = vmatpush1.bf16.msra.mxu0 %v2087
  %2206 = vmatprep.subr.bf16.mxu0 0
  %2207 = vmatpush2.bf16.msra.mxu0 0
  %2208 = vmatprep.subr.bf16.mxu0 0
  %2209 = vmatpush2.bf16.msra.mxu0 0
  %2210 = vmatprep.subr.bf16.mxu0 0
  %2211 = vmatpush2.bf16.msra.mxu0 0
  %2212 = vmatprep.subr.bf16.mxu0 0
  %2213 = vmatpush2.bf16.msra.mxu0 0
  %2214 = vmatprep.subr.bf16.mxu0 0
  %2215 = vmatpush2.bf16.msra.mxu0 0
  %2216 = vmatprep.subr.bf16.mxu0 0
  %2217 = vmatpush2.bf16.msra.mxu0 0
  %2218 = vmatprep.subr.bf16.mxu0 0
  %2219 = vmatpush2.bf16.msra.mxu0 0
  %2220 = vmatprep.subr.bf16.mxu0 0
  %2221 = vmatpush2.bf16.msra.mxu0 0
  %2222 = vmatprep.mubr.bf16.mxu0 0
  %2223 = vmatmul.mubr.bf16.gmra.mxu0 %v1956
  %v2224 = vpop.f32.mrf.mxu0
  %v2225 = vadd.f32 0.0, %v2224
  %v2226 = vpop.f32.mrf.mxu0
  %v2227 = vadd.f32 0.0, %v2226
  %v2228 = vpop.f32.mrf.mxu0
  %v2229 = vpop.f32.mrf.mxu0
  %2230 = vdwg.mxu0
  %v2231 = vadd.f32 %v1952, %v2184
  %v2232 = vadd.f32 %v1953, %v2186
  %v2233 = vadd.f32 %v1954, %v2225
  %v2234 = vadd.f32 %v1955, %v2227
  %v2235 = vxor.u32 %v2231, 2147483648
  %v2236 = vmul.f32 %v2235, 1.442695
  %v2237 = vpow.pop %v2236
  %v2238 = vadd.f32 %v2237, 1.0
  %v2239 = vrcp.pop %v2238
  %v2240 = vmul.f32 1.0, %v2239
  %v2241 = vxor.u32 %v2232, 2147483648
  %v2242 = vmul.f32 %v2241, 1.442695
  %v2243 = vpow.pop %v2242
  %v2244 = vadd.f32 %v2243, 1.0
  %v2245 = vrcp.pop %v2244
  %v2246 = vmul.f32 1.0, %v2245
  %v2247 = vtanh.pop %v2233
  %v2248 = vxor.u32 %v2234, 2147483648
  %v2249 = vmul.f32 %v2248, 1.442695
  %v2250 = vpow.pop %v2249
  %v2251 = vadd.f32 %v2250, 1.0
  %v2252 = vrcp.pop %v2251
  %v2253 = vmul.f32 1.0, %v2252
  %v2254 = vmul.f32 %v2246, %v1947
  %v2255 = vmul.f32 %v2240, %v2247
  %v2256 = vadd.f32 %v2254, %v2255
  %v2257 = vtanh.pop %v2256
  %v2258 = vmul.f32 %v2253, %v2257
  %s2259 = sadd.s32 %s25, 6
  %v2260 = vstv %s2259
  %vm2261 = vcmp.lt.s32.totalorder %v2260, %v24
  %v2262 = vsel %vm2261, 1, 0
  %2263 = vset.pattern.permute.xlu0 0
  %2264 = vperm.xlu0 %2263, %v2262
  %v2265 = vpop.permute.xlu0 %2264
  %vm2266 = vcmp.eq.s32.totalorder %v2265, 1
  %v2267 = vsel %vm2266, %v2258, %v1946
  %v2268 = vsel %vm2266, %v2256, %v1947
  %v2269 = vsel %vm2266, %v2258, 0.0
  %s2270 = scalar_lea.vmem %s3, 48
  %2271 = vst [vmem:[%s2270] sm:$0xff] %v2269
  %s2272 = scalar_lea.vmem %s1, 224
  %v2273 = vld [vmem:[%s2272] sm:$0xff]
  %v2274 = vld [vmem:[%s2272 + $0x8] sm:$0xff]
  %v2275 = vld [vmem:[%s2272 + $0x10] sm:$0xff]
  %v2276 = vld [vmem:[%s2272 + $0x18] sm:$0xff]
  %v2277 = vpack.c.bf16 %v2267, %v2267
  %v2278 = vld [vmem:[%s2] sm:$0xff]
  %v2279 = vld [vmem:[%s2 + $0x8] sm:$0xff]
  %v2280 = vld [vmem:[%s2 + $0x10] sm:$0xff]
  %v2281 = vld [vmem:[%s2 + $0x18] sm:$0xff]
  %v2282 = vld [vmem:[%s2 + $0x20] sm:$0xff]
  %v2283 = vld [vmem:[%s2 + $0x28] sm:$0xff]
  %v2284 = vld [vmem:[%s2 + $0x30] sm:$0xff]
  %v2285 = vld [vmem:[%s2 + $0x38] sm:$0xff]
  %v2286 = vld [vmem:[%s2 + $0x40] sm:$0xff]
  %v2287 = vld [vmem:[%s2 + $0x48] sm:$0xff]
  %v2288 = vld [vmem:[%s2 + $0x50] sm:$0xff]
  %v2289 = vld [vmem:[%s2 + $0x58] sm:$0xff]
  %v2290 = vld [vmem:[%s2 + $0x60] sm:$0xff]
  %v2291 = vld [vmem:[%s2 + $0x68] sm:$0xff]
  %v2292 = vld [vmem:[%s2 + $0x70] sm:$0xff]
  %v2293 = vld [vmem:[%s2 + $0x78] sm:$0xff]
  %v2294 = vld [vmem:[%s2 + $0x80] sm:$0xff]
  %v2295 = vld [vmem:[%s2 + $0x88] sm:$0xff]
  %v2296 = vld [vmem:[%s2 + $0x90] sm:$0xff]
  %v2297 = vld [vmem:[%s2 + $0x98] sm:$0xff]
  %v2298 = vld [vmem:[%s2 + $0xa0] sm:$0xff]
  %v2299 = vld [vmem:[%s2 + $0xa8] sm:$0xff]
  %v2300 = vld [vmem:[%s2 + $0xb0] sm:$0xff]
  %v2301 = vld [vmem:[%s2 + $0xb8] sm:$0xff]
  %v2302 = vld [vmem:[%s2 + $0xc0] sm:$0xff]
  %v2303 = vld [vmem:[%s2 + $0xc8] sm:$0xff]
  %v2304 = vld [vmem:[%s2 + $0xd0] sm:$0xff]
  %v2305 = vld [vmem:[%s2 + $0xd8] sm:$0xff]
  %v2306 = vld [vmem:[%s2 + $0xe0] sm:$0xff]
  %v2307 = vld [vmem:[%s2 + $0xe8] sm:$0xff]
  %v2308 = vld [vmem:[%s2 + $0xf0] sm:$0xff]
  %v2309 = vld [vmem:[%s2 + $0xf8] sm:$0xff]
  %v2342 = vunpack.c.l.b16 %v2278
  %v2343 = vunpack.c.h.b16 %v2278
  %v2344 = vunpack.c.l.b16 %v2279
  %v2345 = vunpack.c.h.b16 %v2279
  %v2346 = vunpack.c.l.b16 %v2280
  %v2347 = vunpack.c.h.b16 %v2280
  %v2348 = vunpack.c.l.b16 %v2281
  %v2349 = vunpack.c.h.b16 %v2281
  %v2350 = vunpack.c.l.b16 %v2282
  %v2351 = vunpack.c.h.b16 %v2282
  %v2352 = vunpack.c.l.b16 %v2283
  %v2353 = vunpack.c.h.b16 %v2283
  %v2354 = vunpack.c.l.b16 %v2284
  %v2355 = vunpack.c.h.b16 %v2284
  %v2356 = vunpack.c.l.b16 %v2285
  %v2357 = vunpack.c.h.b16 %v2285
  %v2358 = vunpack.c.l.b16 %v2286
  %v2359 = vunpack.c.h.b16 %v2286
  %v2360 = vunpack.c.l.b16 %v2287
  %v2361 = vunpack.c.h.b16 %v2287
  %v2362 = vunpack.c.l.b16 %v2288
  %v2363 = vunpack.c.h.b16 %v2288
  %v2364 = vunpack.c.l.b16 %v2289
  %v2365 = vunpack.c.h.b16 %v2289
  %v2366 = vunpack.c.l.b16 %v2290
  %v2367 = vunpack.c.h.b16 %v2290
  %v2368 = vunpack.c.l.b16 %v2291
  %v2369 = vunpack.c.h.b16 %v2291
  %v2370 = vunpack.c.l.b16 %v2292
  %v2371 = vunpack.c.h.b16 %v2292
  %v2372 = vunpack.c.l.b16 %v2293
  %v2373 = vunpack.c.h.b16 %v2293
  %v2374 = vunpack.c.l.b16 %v2294
  %v2375 = vunpack.c.h.b16 %v2294
  %v2376 = vunpack.c.l.b16 %v2295
  %v2377 = vunpack.c.h.b16 %v2295
  %v2378 = vunpack.c.l.b16 %v2296
  %v2379 = vunpack.c.h.b16 %v2296
  %v2380 = vunpack.c.l.b16 %v2297
  %v2381 = vunpack.c.h.b16 %v2297
  %v2382 = vunpack.c.l.b16 %v2298
  %v2383 = vunpack.c.h.b16 %v2298
  %v2384 = vunpack.c.l.b16 %v2299
  %v2385 = vunpack.c.h.b16 %v2299
  %v2386 = vunpack.c.l.b16 %v2300
  %v2387 = vunpack.c.h.b16 %v2300
  %v2388 = vunpack.c.l.b16 %v2301
  %v2389 = vunpack.c.h.b16 %v2301
  %v2390 = vunpack.c.l.b16 %v2302
  %v2391 = vunpack.c.h.b16 %v2302
  %v2392 = vunpack.c.l.b16 %v2303
  %v2393 = vunpack.c.h.b16 %v2303
  %v2394 = vunpack.c.l.b16 %v2304
  %v2395 = vunpack.c.h.b16 %v2304
  %v2396 = vunpack.c.l.b16 %v2305
  %v2397 = vunpack.c.h.b16 %v2305
  %v2398 = vunpack.c.l.b16 %v2306
  %v2399 = vunpack.c.h.b16 %v2306
  %v2400 = vunpack.c.l.b16 %v2307
  %v2401 = vunpack.c.h.b16 %v2307
  %v2402 = vunpack.c.l.b16 %v2308
  %v2403 = vunpack.c.h.b16 %v2308
  %v2404 = vunpack.c.l.b16 %v2309
  %v2405 = vunpack.c.h.b16 %v2309
  %v2406 = vpack.c.b16 %v2346, %v2342
  %v2407 = vpack.c.b16 %v2347, %v2343
  %v2408 = vpack.c.b16 %v2348, %v2344
  %v2409 = vpack.c.b16 %v2349, %v2345
  %v2410 = vpack.c.b16 %v2354, %v2350
  %v2411 = vpack.c.b16 %v2355, %v2351
  %v2412 = vpack.c.b16 %v2356, %v2352
  %v2413 = vpack.c.b16 %v2357, %v2353
  %v2414 = vpack.c.b16 %v2362, %v2358
  %v2415 = vpack.c.b16 %v2363, %v2359
  %v2416 = vpack.c.b16 %v2364, %v2360
  %v2417 = vpack.c.b16 %v2365, %v2361
  %v2418 = vpack.c.b16 %v2370, %v2366
  %v2419 = vpack.c.b16 %v2371, %v2367
  %v2420 = vpack.c.b16 %v2372, %v2368
  %v2421 = vpack.c.b16 %v2373, %v2369
  %v2422 = vpack.c.b16 %v2378, %v2374
  %v2423 = vpack.c.b16 %v2379, %v2375
  %v2424 = vpack.c.b16 %v2380, %v2376
  %v2425 = vpack.c.b16 %v2381, %v2377
  %v2426 = vpack.c.b16 %v2386, %v2382
  %v2427 = vpack.c.b16 %v2387, %v2383
  %v2428 = vpack.c.b16 %v2388, %v2384
  %v2429 = vpack.c.b16 %v2389, %v2385
  %v2430 = vpack.c.b16 %v2394, %v2390
  %v2431 = vpack.c.b16 %v2395, %v2391
  %v2432 = vpack.c.b16 %v2396, %v2392
  %v2433 = vpack.c.b16 %v2397, %v2393
  %v2434 = vpack.c.b16 %v2402, %v2398
  %v2435 = vpack.c.b16 %v2403, %v2399
  %v2436 = vpack.c.b16 %v2404, %v2400
  %v2437 = vpack.c.b16 %v2405, %v2401
  %2470 = vmatprep.subr.bf16.mxu0 %v2435
  %2471 = vmatpush1.bf16.msra.mxu0 %v2434
  %2472 = vmatprep.subr.bf16.mxu0 %v2431
  %2473 = vmatpush1.bf16.msra.mxu0 %v2430
  %2474 = vmatprep.subr.bf16.mxu0 %v2427
  %2475 = vmatpush1.bf16.msra.mxu0 %v2426
  %2476 = vmatprep.subr.bf16.mxu0 %v2423
  %2477 = vmatpush1.bf16.msra.mxu0 %v2422
  %2478 = vmatprep.subr.bf16.mxu0 %v2419
  %2479 = vmatpush1.bf16.msra.mxu0 %v2418
  %2480 = vmatprep.subr.bf16.mxu0 %v2415
  %2481 = vmatpush1.bf16.msra.mxu0 %v2414
  %2482 = vmatprep.subr.bf16.mxu0 %v2411
  %2483 = vmatpush1.bf16.msra.mxu0 %v2410
  %2484 = vmatprep.subr.bf16.mxu0 %v2407
  %2485 = vmatpush1.bf16.msra.mxu0 %v2406
  %2486 = vmatprep.subr.bf16.mxu0 0
  %2487 = vmatpush2.bf16.msra.mxu0 0
  %2488 = vmatprep.subr.bf16.mxu0 0
  %2489 = vmatpush2.bf16.msra.mxu0 0
  %2490 = vmatprep.subr.bf16.mxu0 0
  %2491 = vmatpush2.bf16.msra.mxu0 0
  %2492 = vmatprep.subr.bf16.mxu0 0
  %2493 = vmatpush2.bf16.msra.mxu0 0
  %2494 = vmatprep.subr.bf16.mxu0 0
  %2495 = vmatpush2.bf16.msra.mxu0 0
  %2496 = vmatprep.subr.bf16.mxu0 0
  %2497 = vmatpush2.bf16.msra.mxu0 0
  %2498 = vmatprep.subr.bf16.mxu0 0
  %2499 = vmatpush2.bf16.msra.mxu0 0
  %2500 = vmatprep.subr.bf16.mxu0 0
  %2501 = vmatpush2.bf16.msra.mxu0 0
  %2502 = vmatprep.mubr.bf16.mxu0 0
  %2503 = vmatmul.mubr.bf16.gmra.mxu0 %v2277
  %v2504 = vpop.f32.mrf.mxu0
  %v2505 = vadd.f32 0.0, %v2504
  %v2506 = vpop.f32.mrf.mxu0
  %v2507 = vadd.f32 0.0, %v2506
  %v2508 = vpop.f32.mrf.mxu0
  %v2509 = vpop.f32.mrf.mxu0
  %2510 = vdwg.mxu0
  %2511 = vmatprep.subr.bf16.mxu0 %v2437
  %2512 = vmatpush1.bf16.msra.mxu0 %v2436
  %2513 = vmatprep.subr.bf16.mxu0 %v2433
  %2514 = vmatpush1.bf16.msra.mxu0 %v2432
  %2515 = vmatprep.subr.bf16.mxu0 %v2429
  %2516 = vmatpush1.bf16.msra.mxu0 %v2428
  %2517 = vmatprep.subr.bf16.mxu0 %v2425
  %2518 = vmatpush1.bf16.msra.mxu0 %v2424
  %2519 = vmatprep.subr.bf16.mxu0 %v2421
  %2520 = vmatpush1.bf16.msra.mxu0 %v2420
  %2521 = vmatprep.subr.bf16.mxu0 %v2417
  %2522 = vmatpush1.bf16.msra.mxu0 %v2416
  %2523 = vmatprep.subr.bf16.mxu0 %v2413
  %2524 = vmatpush1.bf16.msra.mxu0 %v2412
  %2525 = vmatprep.subr.bf16.mxu0 %v2409
  %2526 = vmatpush1.bf16.msra.mxu0 %v2408
  %2527 = vmatprep.subr.bf16.mxu0 0
  %2528 = vmatpush2.bf16.msra.mxu0 0
  %2529 = vmatprep.subr.bf16.mxu0 0
  %2530 = vmatpush2.bf16.msra.mxu0 0
  %2531 = vmatprep.subr.bf16.mxu0 0
  %2532 = vmatpush2.bf16.msra.mxu0 0
  %2533 = vmatprep.subr.bf16.mxu0 0
  %2534 = vmatpush2.bf16.msra.mxu0 0
  %2535 = vmatprep.subr.bf16.mxu0 0
  %2536 = vmatpush2.bf16.msra.mxu0 0
  %2537 = vmatprep.subr.bf16.mxu0 0
  %2538 = vmatpush2.bf16.msra.mxu0 0
  %2539 = vmatprep.subr.bf16.mxu0 0
  %2540 = vmatpush2.bf16.msra.mxu0 0
  %2541 = vmatprep.subr.bf16.mxu0 0
  %2542 = vmatpush2.bf16.msra.mxu0 0
  %2543 = vmatprep.mubr.bf16.mxu0 0
  %2544 = vmatmul.mubr.bf16.gmra.mxu0 %v2277
  %v2545 = vpop.f32.mrf.mxu0
  %v2546 = vadd.f32 0.0, %v2545
  %v2547 = vpop.f32.mrf.mxu0
  %v2548 = vadd.f32 0.0, %v2547
  %v2549 = vpop.f32.mrf.mxu0
  %v2550 = vpop.f32.mrf.mxu0
  %2551 = vdwg.mxu0
  %v2552 = vadd.f32 %v2273, %v2505
  %v2553 = vadd.f32 %v2274, %v2507
  %v2554 = vadd.f32 %v2275, %v2546
  %v2555 = vadd.f32 %v2276, %v2548
  %v2556 = vxor.u32 %v2552, 2147483648
  %v2557 = vmul.f32 %v2556, 1.442695
  %v2558 = vpow.pop %v2557
  %v2559 = vadd.f32 %v2558, 1.0
  %v2560 = vrcp.pop %v2559
  %v2561 = vmul.f32 1.0, %v2560
  %v2562 = vxor.u32 %v2553, 2147483648
  %v2563 = vmul.f32 %v2562, 1.442695
  %v2564 = vpow.pop %v2563
  %v2565 = vadd.f32 %v2564, 1.0
  %v2566 = vrcp.pop %v2565
  %v2567 = vmul.f32 1.0, %v2566
  %v2568 = vtanh.pop %v2554
  %v2569 = vxor.u32 %v2555, 2147483648
  %v2570 = vmul.f32 %v2569, 1.442695
  %v2571 = vpow.pop %v2570
  %v2572 = vadd.f32 %v2571, 1.0
  %v2573 = vrcp.pop %v2572
  %v2574 = vmul.f32 1.0, %v2573
  %v2575 = vmul.f32 %v2567, %v2268
  %v2576 = vmul.f32 %v2561, %v2568
  %v2577 = vadd.f32 %v2575, %v2576
  %v2578 = vtanh.pop %v2577
  %v2579 = vmul.f32 %v2574, %v2578
  %s2580 = sadd.s32 %s25, 7
  %v2581 = vstv %s2580
  %vm2582 = vcmp.lt.s32.totalorder %v2581, %v24
  %v2583 = vsel %vm2582, 1, 0
  %2584 = vset.pattern.permute.xlu0 0
  %2585 = vperm.xlu0 %2584, %v2583
  %v2586 = vpop.permute.xlu0 %2585
  %vm2587 = vcmp.eq.s32.totalorder %v2586, 1
  %v2588 = vsel %vm2587, %v2579, %v2267
  %v2589 = vsel %vm2587, %v2577, %v2268
  %v2590 = vsel %vm2587, %v2579, 0.0
  %s2591 = scalar_lea.vmem %s3, 56
  %2592 = vst [vmem:[%s2591] sm:$0xff] %v2590
  %s2593 = scalar_lea.vmem %s1, 256
  %v2594 = vld [vmem:[%s2593] sm:$0xff]
  %v2595 = vld [vmem:[%s2593 + $0x8] sm:$0xff]
  %v2596 = vld [vmem:[%s2593 + $0x10] sm:$0xff]
  %v2597 = vld [vmem:[%s2593 + $0x18] sm:$0xff]
  %v2598 = vpack.c.bf16 %v2588, %v2588
  %v2599 = vld [vmem:[%s2] sm:$0xff]
  %v2600 = vld [vmem:[%s2 + $0x8] sm:$0xff]
  %v2601 = vld [vmem:[%s2 + $0x10] sm:$0xff]
  %v2602 = vld [vmem:[%s2 + $0x18] sm:$0xff]
  %v2603 = vld [vmem:[%s2 + $0x20] sm:$0xff]
  %v2604 = vld [vmem:[%s2 + $0x28] sm:$0xff]
  %v2605 = vld [vmem:[%s2 + $0x30] sm:$0xff]
  %v2606 = vld [vmem:[%s2 + $0x38] sm:$0xff]
  %v2607 = vld [vmem:[%s2 + $0x40] sm:$0xff]
  %v2608 = vld [vmem:[%s2 + $0x48] sm:$0xff]
  %v2609 = vld [vmem:[%s2 + $0x50] sm:$0xff]
  %v2610 = vld [vmem:[%s2 + $0x58] sm:$0xff]
  %v2611 = vld [vmem:[%s2 + $0x60] sm:$0xff]
  %v2612 = vld [vmem:[%s2 + $0x68] sm:$0xff]
  %v2613 = vld [vmem:[%s2 + $0x70] sm:$0xff]
  %v2614 = vld [vmem:[%s2 + $0x78] sm:$0xff]
  %v2615 = vld [vmem:[%s2 + $0x80] sm:$0xff]
  %v2616 = vld [vmem:[%s2 + $0x88] sm:$0xff]
  %v2617 = vld [vmem:[%s2 + $0x90] sm:$0xff]
  %v2618 = vld [vmem:[%s2 + $0x98] sm:$0xff]
  %v2619 = vld [vmem:[%s2 + $0xa0] sm:$0xff]
  %v2620 = vld [vmem:[%s2 + $0xa8] sm:$0xff]
  %v2621 = vld [vmem:[%s2 + $0xb0] sm:$0xff]
  %v2622 = vld [vmem:[%s2 + $0xb8] sm:$0xff]
  %v2623 = vld [vmem:[%s2 + $0xc0] sm:$0xff]
  %v2624 = vld [vmem:[%s2 + $0xc8] sm:$0xff]
  %v2625 = vld [vmem:[%s2 + $0xd0] sm:$0xff]
  %v2626 = vld [vmem:[%s2 + $0xd8] sm:$0xff]
  %v2627 = vld [vmem:[%s2 + $0xe0] sm:$0xff]
  %v2628 = vld [vmem:[%s2 + $0xe8] sm:$0xff]
  %v2629 = vld [vmem:[%s2 + $0xf0] sm:$0xff]
  %v2630 = vld [vmem:[%s2 + $0xf8] sm:$0xff]
  %v2663 = vunpack.c.l.b16 %v2599
  %v2664 = vunpack.c.h.b16 %v2599
  %v2665 = vunpack.c.l.b16 %v2600
  %v2666 = vunpack.c.h.b16 %v2600
  %v2667 = vunpack.c.l.b16 %v2601
  %v2668 = vunpack.c.h.b16 %v2601
  %v2669 = vunpack.c.l.b16 %v2602
  %v2670 = vunpack.c.h.b16 %v2602
  %v2671 = vunpack.c.l.b16 %v2603
  %v2672 = vunpack.c.h.b16 %v2603
  %v2673 = vunpack.c.l.b16 %v2604
  %v2674 = vunpack.c.h.b16 %v2604
  %v2675 = vunpack.c.l.b16 %v2605
  %v2676 = vunpack.c.h.b16 %v2605
  %v2677 = vunpack.c.l.b16 %v2606
  %v2678 = vunpack.c.h.b16 %v2606
  %v2679 = vunpack.c.l.b16 %v2607
  %v2680 = vunpack.c.h.b16 %v2607
  %v2681 = vunpack.c.l.b16 %v2608
  %v2682 = vunpack.c.h.b16 %v2608
  %v2683 = vunpack.c.l.b16 %v2609
  %v2684 = vunpack.c.h.b16 %v2609
  %v2685 = vunpack.c.l.b16 %v2610
  %v2686 = vunpack.c.h.b16 %v2610
  %v2687 = vunpack.c.l.b16 %v2611
  %v2688 = vunpack.c.h.b16 %v2611
  %v2689 = vunpack.c.l.b16 %v2612
  %v2690 = vunpack.c.h.b16 %v2612
  %v2691 = vunpack.c.l.b16 %v2613
  %v2692 = vunpack.c.h.b16 %v2613
  %v2693 = vunpack.c.l.b16 %v2614
  %v2694 = vunpack.c.h.b16 %v2614
  %v2695 = vunpack.c.l.b16 %v2615
  %v2696 = vunpack.c.h.b16 %v2615
  %v2697 = vunpack.c.l.b16 %v2616
  %v2698 = vunpack.c.h.b16 %v2616
  %v2699 = vunpack.c.l.b16 %v2617
  %v2700 = vunpack.c.h.b16 %v2617
  %v2701 = vunpack.c.l.b16 %v2618
  %v2702 = vunpack.c.h.b16 %v2618
  %v2703 = vunpack.c.l.b16 %v2619
  %v2704 = vunpack.c.h.b16 %v2619
  %v2705 = vunpack.c.l.b16 %v2620
  %v2706 = vunpack.c.h.b16 %v2620
  %v2707 = vunpack.c.l.b16 %v2621
  %v2708 = vunpack.c.h.b16 %v2621
  %v2709 = vunpack.c.l.b16 %v2622
  %v2710 = vunpack.c.h.b16 %v2622
  %v2711 = vunpack.c.l.b16 %v2623
  %v2712 = vunpack.c.h.b16 %v2623
  %v2713 = vunpack.c.l.b16 %v2624
  %v2714 = vunpack.c.h.b16 %v2624
  %v2715 = vunpack.c.l.b16 %v2625
  %v2716 = vunpack.c.h.b16 %v2625
  %v2717 = vunpack.c.l.b16 %v2626
  %v2718 = vunpack.c.h.b16 %v2626
  %v2719 = vunpack.c.l.b16 %v2627
  %v2720 = vunpack.c.h.b16 %v2627
  %v2721 = vunpack.c.l.b16 %v2628
  %v2722 = vunpack.c.h.b16 %v2628
  %v2723 = vunpack.c.l.b16 %v2629
  %v2724 = vunpack.c.h.b16 %v2629
  %v2725 = vunpack.c.l.b16 %v2630
  %v2726 = vunpack.c.h.b16 %v2630
  %v2727 = vpack.c.b16 %v2667, %v2663
  %v2728 = vpack.c.b16 %v2668, %v2664
  %v2729 = vpack.c.b16 %v2669, %v2665
  %v2730 = vpack.c.b16 %v2670, %v2666
  %v2731 = vpack.c.b16 %v2675, %v2671
  %v2732 = vpack.c.b16 %v2676, %v2672
  %v2733 = vpack.c.b16 %v2677, %v2673
  %v2734 = vpack.c.b16 %v2678, %v2674
  %v2735 = vpack.c.b16 %v2683, %v2679
  %v2736 = vpack.c.b16 %v2684, %v2680
  %v2737 = vpack.c.b16 %v2685, %v2681
  %v2738 = vpack.c.b16 %v2686, %v2682
  %v2739 = vpack.c.b16 %v2691, %v2687
  %v2740 = vpack.c.b16 %v2692, %v2688
  %v2741 = vpack.c.b16 %v2693, %v2689
  %v2742 = vpack.c.b16 %v2694, %v2690
  %v2743 = vpack.c.b16 %v2699, %v2695
  %v2744 = vpack.c.b16 %v2700, %v2696
  %v2745 = vpack.c.b16 %v2701, %v2697
  %v2746 = vpack.c.b16 %v2702, %v2698
  %v2747 = vpack.c.b16 %v2707, %v2703
  %v2748 = vpack.c.b16 %v2708, %v2704
  %v2749 = vpack.c.b16 %v2709, %v2705
  %v2750 = vpack.c.b16 %v2710, %v2706
  %v2751 = vpack.c.b16 %v2715, %v2711
  %v2752 = vpack.c.b16 %v2716, %v2712
  %v2753 = vpack.c.b16 %v2717, %v2713
  %v2754 = vpack.c.b16 %v2718, %v2714
  %v2755 = vpack.c.b16 %v2723, %v2719
  %v2756 = vpack.c.b16 %v2724, %v2720
  %v2757 = vpack.c.b16 %v2725, %v2721
  %v2758 = vpack.c.b16 %v2726, %v2722
  %2791 = vmatprep.subr.bf16.mxu0 %v2756
  %2792 = vmatpush1.bf16.msra.mxu0 %v2755
  %2793 = vmatprep.subr.bf16.mxu0 %v2752
  %2794 = vmatpush1.bf16.msra.mxu0 %v2751
  %2795 = vmatprep.subr.bf16.mxu0 %v2748
  %2796 = vmatpush1.bf16.msra.mxu0 %v2747
  %2797 = vmatprep.subr.bf16.mxu0 %v2744
  %2798 = vmatpush1.bf16.msra.mxu0 %v2743
  %2799 = vmatprep.subr.bf16.mxu0 %v2740
  %2800 = vmatpush1.bf16.msra.mxu0 %v2739
  %2801 = vmatprep.subr.bf16.mxu0 %v2736
  %2802 = vmatpush1.bf16.msra.mxu0 %v2735
  %2803 = vmatprep.subr.bf16.mxu0 %v2732
  %2804 = vmatpush1.bf16.msra.mxu0 %v2731
  %2805 = vmatprep.subr.bf16.mxu0 %v2728
  %2806 = vmatpush1.bf16.msra.mxu0 %v2727
  %2807 = vmatprep.subr.bf16.mxu0 0
  %2808 = vmatpush2.bf16.msra.mxu0 0
  %2809 = vmatprep.subr.bf16.mxu0 0
  %2810 = vmatpush2.bf16.msra.mxu0 0
  %2811 = vmatprep.subr.bf16.mxu0 0
  %2812 = vmatpush2.bf16.msra.mxu0 0
  %2813 = vmatprep.subr.bf16.mxu0 0
  %2814 = vmatpush2.bf16.msra.mxu0 0
  %2815 = vmatprep.subr.bf16.mxu0 0
  %2816 = vmatpush2.bf16.msra.mxu0 0
  %2817 = vmatprep.subr.bf16.mxu0 0
  %2818 = vmatpush2.bf16.msra.mxu0 0
  %2819 = vmatprep.subr.bf16.mxu0 0
  %2820 = vmatpush2.bf16.msra.mxu0 0
  %2821 = vmatprep.subr.bf16.mxu0 0
  %2822 = vmatpush2.bf16.msra.mxu0 0
  %2823 = vmatprep.mubr.bf16.mxu0 0
  %2824 = vmatmul.mubr.bf16.gmra.mxu0 %v2598
  %v2825 = vpop.f32.mrf.mxu0
  %v2826 = vadd.f32 0.0, %v2825
  %v2827 = vpop.f32.mrf.mxu0
  %v2828 = vadd.f32 0.0, %v2827
  %v2829 = vpop.f32.mrf.mxu0
  %v2830 = vpop.f32.mrf.mxu0
  %2831 = vdwg.mxu0
  %2832 = vmatprep.subr.bf16.mxu0 %v2758
  %2833 = vmatpush1.bf16.msra.mxu0 %v2757
  %2834 = vmatprep.subr.bf16.mxu0 %v2754
  %2835 = vmatpush1.bf16.msra.mxu0 %v2753
  %2836 = vmatprep.subr.bf16.mxu0 %v2750
  %2837 = vmatpush1.bf16.msra.mxu0 %v2749
  %2838 = vmatprep.subr.bf16.mxu0 %v2746
  %2839 = vmatpush1.bf16.msra.mxu0 %v2745
  %2840 = vmatprep.subr.bf16.mxu0 %v2742
  %2841 = vmatpush1.bf16.msra.mxu0 %v2741
  %2842 = vmatprep.subr.bf16.mxu0 %v2738
  %2843 = vmatpush1.bf16.msra.mxu0 %v2737
  %2844 = vmatprep.subr.bf16.mxu0 %v2734
  %2845 = vmatpush1.bf16.msra.mxu0 %v2733
  %2846 = vmatprep.subr.bf16.mxu0 %v2730
  %2847 = vmatpush1.bf16.msra.mxu0 %v2729
  %2848 = vmatprep.subr.bf16.mxu0 0
  %2849 = vmatpush2.bf16.msra.mxu0 0
  %2850 = vmatprep.subr.bf16.mxu0 0
  %2851 = vmatpush2.bf16.msra.mxu0 0
  %2852 = vmatprep.subr.bf16.mxu0 0
  %2853 = vmatpush2.bf16.msra.mxu0 0
  %2854 = vmatprep.subr.bf16.mxu0 0
  %2855 = vmatpush2.bf16.msra.mxu0 0
  %2856 = vmatprep.subr.bf16.mxu0 0
  %2857 = vmatpush2.bf16.msra.mxu0 0
  %2858 = vmatprep.subr.bf16.mxu0 0
  %2859 = vmatpush2.bf16.msra.mxu0 0
  %2860 = vmatprep.subr.bf16.mxu0 0
  %2861 = vmatpush2.bf16.msra.mxu0 0
  %2862 = vmatprep.subr.bf16.mxu0 0
  %2863 = vmatpush2.bf16.msra.mxu0 0
  %2864 = vmatprep.mubr.bf16.mxu0 0
  %2865 = vmatmul.mubr.bf16.gmra.mxu0 %v2598
  %v2866 = vpop.f32.mrf.mxu0
  %v2867 = vadd.f32 0.0, %v2866
  %v2868 = vpop.f32.mrf.mxu0
  %v2869 = vadd.f32 0.0, %v2868
  %v2870 = vpop.f32.mrf.mxu0
  %v2871 = vpop.f32.mrf.mxu0
  %2872 = vdwg.mxu0
  %v2873 = vadd.f32 %v2594, %v2826
  %v2874 = vadd.f32 %v2595, %v2828
  %v2875 = vadd.f32 %v2596, %v2867
  %v2876 = vadd.f32 %v2597, %v2869
  %v2877 = vxor.u32 %v2873, 2147483648
  %v2878 = vmul.f32 %v2877, 1.442695
  %v2879 = vpow.pop %v2878
  %v2880 = vadd.f32 %v2879, 1.0
  %v2881 = vrcp.pop %v2880
  %v2882 = vmul.f32 1.0, %v2881
  %v2883 = vxor.u32 %v2874, 2147483648
  %v2884 = vmul.f32 %v2883, 1.442695
  %v2885 = vpow.pop %v2884
  %v2886 = vadd.f32 %v2885, 1.0
  %v2887 = vrcp.pop %v2886
  %v2888 = vmul.f32 1.0, %v2887
  %v2889 = vtanh.pop %v2875
  %v2890 = vxor.u32 %v2876, 2147483648
  %v2891 = vmul.f32 %v2890, 1.442695
  %v2892 = vpow.pop %v2891
  %v2893 = vadd.f32 %v2892, 1.0
  %v2894 = vrcp.pop %v2893
  %v2895 = vmul.f32 1.0, %v2894
  %v2896 = vmul.f32 %v2888, %v2589
  %v2897 = vmul.f32 %v2882, %v2889
  %v2898 = vadd.f32 %v2896, %v2897
  %v2899 = vtanh.pop %v2898
  %v2900 = vmul.f32 %v2895, %v2899
  %s2901 = sadd.s32 %s25, 8
  %v2902 = vstv %s2901
  %vm2903 = vcmp.lt.s32.totalorder %v2902, %v24
  %v2904 = vsel %vm2903, 1, 0
  %2905 = vset.pattern.permute.xlu0 0
  %2906 = vperm.xlu0 %2905, %v2904
  %v2907 = vpop.permute.xlu0 %2906
  %vm2908 = vcmp.eq.s32.totalorder %v2907, 1
  %v2909 = vsel %vm2908, %v2900, %v2588
  %v2910 = vsel %vm2908, %v2898, %v2589
  %v2911 = vsel %vm2908, %v2900, 0.0
  %s2912 = scalar_lea.vmem %s3, 64
  %2913 = vst [vmem:[%s2912] sm:$0xff] %v2911
  %s2914 = scalar_lea.vmem %s1, 288
  %v2915 = vld [vmem:[%s2914] sm:$0xff]
  %v2916 = vld [vmem:[%s2914 + $0x8] sm:$0xff]
  %v2917 = vld [vmem:[%s2914 + $0x10] sm:$0xff]
  %v2918 = vld [vmem:[%s2914 + $0x18] sm:$0xff]
  %v2919 = vpack.c.bf16 %v2909, %v2909
  %v2920 = vld [vmem:[%s2] sm:$0xff]
  %v2921 = vld [vmem:[%s2 + $0x8] sm:$0xff]
  %v2922 = vld [vmem:[%s2 + $0x10] sm:$0xff]
  %v2923 = vld [vmem:[%s2 + $0x18] sm:$0xff]
  %v2924 = vld [vmem:[%s2 + $0x20] sm:$0xff]
  %v2925 = vld [vmem:[%s2 + $0x28] sm:$0xff]
  %v2926 = vld [vmem:[%s2 + $0x30] sm:$0xff]
  %v2927 = vld [vmem:[%s2 + $0x38] sm:$0xff]
  %v2928 = vld [vmem:[%s2 + $0x40] sm:$0xff]
  %v2929 = vld [vmem:[%s2 + $0x48] sm:$0xff]
  %v2930 = vld [vmem:[%s2 + $0x50] sm:$0xff]
  %v2931 = vld [vmem:[%s2 + $0x58] sm:$0xff]
  %v2932 = vld [vmem:[%s2 + $0x60] sm:$0xff]
  %v2933 = vld [vmem:[%s2 + $0x68] sm:$0xff]
  %v2934 = vld [vmem:[%s2 + $0x70] sm:$0xff]
  %v2935 = vld [vmem:[%s2 + $0x78] sm:$0xff]
  %v2936 = vld [vmem:[%s2 + $0x80] sm:$0xff]
  %v2937 = vld [vmem:[%s2 + $0x88] sm:$0xff]
  %v2938 = vld [vmem:[%s2 + $0x90] sm:$0xff]
  %v2939 = vld [vmem:[%s2 + $0x98] sm:$0xff]
  %v2940 = vld [vmem:[%s2 + $0xa0] sm:$0xff]
  %v2941 = vld [vmem:[%s2 + $0xa8] sm:$0xff]
  %v2942 = vld [vmem:[%s2 + $0xb0] sm:$0xff]
  %v2943 = vld [vmem:[%s2 + $0xb8] sm:$0xff]
  %v2944 = vld [vmem:[%s2 + $0xc0] sm:$0xff]
  %v2945 = vld [vmem:[%s2 + $0xc8] sm:$0xff]
  %v2946 = vld [vmem:[%s2 + $0xd0] sm:$0xff]
  %v2947 = vld [vmem:[%s2 + $0xd8] sm:$0xff]
  %v2948 = vld [vmem:[%s2 + $0xe0] sm:$0xff]
  %v2949 = vld [vmem:[%s2 + $0xe8] sm:$0xff]
  %v2950 = vld [vmem:[%s2 + $0xf0] sm:$0xff]
  %v2951 = vld [vmem:[%s2 + $0xf8] sm:$0xff]
  %v2984 = vunpack.c.l.b16 %v2920
  %v2985 = vunpack.c.h.b16 %v2920
  %v2986 = vunpack.c.l.b16 %v2921
  %v2987 = vunpack.c.h.b16 %v2921
  %v2988 = vunpack.c.l.b16 %v2922
  %v2989 = vunpack.c.h.b16 %v2922
  %v2990 = vunpack.c.l.b16 %v2923
  %v2991 = vunpack.c.h.b16 %v2923
  %v2992 = vunpack.c.l.b16 %v2924
  %v2993 = vunpack.c.h.b16 %v2924
  %v2994 = vunpack.c.l.b16 %v2925
  %v2995 = vunpack.c.h.b16 %v2925
  %v2996 = vunpack.c.l.b16 %v2926
  %v2997 = vunpack.c.h.b16 %v2926
  %v2998 = vunpack.c.l.b16 %v2927
  %v2999 = vunpack.c.h.b16 %v2927
  %v3000 = vunpack.c.l.b16 %v2928
  %v3001 = vunpack.c.h.b16 %v2928
  %v3002 = vunpack.c.l.b16 %v2929
  %v3003 = vunpack.c.h.b16 %v2929
  %v3004 = vunpack.c.l.b16 %v2930
  %v3005 = vunpack.c.h.b16 %v2930
  %v3006 = vunpack.c.l.b16 %v2931
  %v3007 = vunpack.c.h.b16 %v2931
  %v3008 = vunpack.c.l.b16 %v2932
  %v3009 = vunpack.c.h.b16 %v2932
  %v3010 = vunpack.c.l.b16 %v2933
  %v3011 = vunpack.c.h.b16 %v2933
  %v3012 = vunpack.c.l.b16 %v2934
  %v3013 = vunpack.c.h.b16 %v2934
  %v3014 = vunpack.c.l.b16 %v2935
  %v3015 = vunpack.c.h.b16 %v2935
  %v3016 = vunpack.c.l.b16 %v2936
  %v3017 = vunpack.c.h.b16 %v2936
  %v3018 = vunpack.c.l.b16 %v2937
  %v3019 = vunpack.c.h.b16 %v2937
  %v3020 = vunpack.c.l.b16 %v2938
  %v3021 = vunpack.c.h.b16 %v2938
  %v3022 = vunpack.c.l.b16 %v2939
  %v3023 = vunpack.c.h.b16 %v2939
  %v3024 = vunpack.c.l.b16 %v2940
  %v3025 = vunpack.c.h.b16 %v2940
  %v3026 = vunpack.c.l.b16 %v2941
  %v3027 = vunpack.c.h.b16 %v2941
  %v3028 = vunpack.c.l.b16 %v2942
  %v3029 = vunpack.c.h.b16 %v2942
  %v3030 = vunpack.c.l.b16 %v2943
  %v3031 = vunpack.c.h.b16 %v2943
  %v3032 = vunpack.c.l.b16 %v2944
  %v3033 = vunpack.c.h.b16 %v2944
  %v3034 = vunpack.c.l.b16 %v2945
  %v3035 = vunpack.c.h.b16 %v2945
  %v3036 = vunpack.c.l.b16 %v2946
  %v3037 = vunpack.c.h.b16 %v2946
  %v3038 = vunpack.c.l.b16 %v2947
  %v3039 = vunpack.c.h.b16 %v2947
  %v3040 = vunpack.c.l.b16 %v2948
  %v3041 = vunpack.c.h.b16 %v2948
  %v3042 = vunpack.c.l.b16 %v2949
  %v3043 = vunpack.c.h.b16 %v2949
  %v3044 = vunpack.c.l.b16 %v2950
  %v3045 = vunpack.c.h.b16 %v2950
  %v3046 = vunpack.c.l.b16 %v2951
  %v3047 = vunpack.c.h.b16 %v2951
  %v3048 = vpack.c.b16 %v2988, %v2984
  %v3049 = vpack.c.b16 %v2989, %v2985
  %v3050 = vpack.c.b16 %v2990, %v2986
  %v3051 = vpack.c.b16 %v2991, %v2987
  %v3052 = vpack.c.b16 %v2996, %v2992
  %v3053 = vpack.c.b16 %v2997, %v2993
  %v3054 = vpack.c.b16 %v2998, %v2994
  %v3055 = vpack.c.b16 %v2999, %v2995
  %v3056 = vpack.c.b16 %v3004, %v3000
  %v3057 = vpack.c.b16 %v3005, %v3001
  %v3058 = vpack.c.b16 %v3006, %v3002
  %v3059 = vpack.c.b16 %v3007, %v3003
  %v3060 = vpack.c.b16 %v3012, %v3008
  %v3061 = vpack.c.b16 %v3013, %v3009
  %v3062 = vpack.c.b16 %v3014, %v3010
  %v3063 = vpack.c.b16 %v3015, %v3011
  %v3064 = vpack.c.b16 %v3020, %v3016
  %v3065 = vpack.c.b16 %v3021, %v3017
  %v3066 = vpack.c.b16 %v3022, %v3018
  %v3067 = vpack.c.b16 %v3023, %v3019
  %v3068 = vpack.c.b16 %v3028, %v3024
  %v3069 = vpack.c.b16 %v3029, %v3025
  %v3070 = vpack.c.b16 %v3030, %v3026
  %v3071 = vpack.c.b16 %v3031, %v3027
  %v3072 = vpack.c.b16 %v3036, %v3032
  %v3073 = vpack.c.b16 %v3037, %v3033
  %v3074 = vpack.c.b16 %v3038, %v3034
  %v3075 = vpack.c.b16 %v3039, %v3035
  %v3076 = vpack.c.b16 %v3044, %v3040
  %v3077 = vpack.c.b16 %v3045, %v3041
  %v3078 = vpack.c.b16 %v3046, %v3042
  %v3079 = vpack.c.b16 %v3047, %v3043
  %3112 = vmatprep.subr.bf16.mxu0 %v3077
  %3113 = vmatpush1.bf16.msra.mxu0 %v3076
  %3114 = vmatprep.subr.bf16.mxu0 %v3073
  %3115 = vmatpush1.bf16.msra.mxu0 %v3072
  %3116 = vmatprep.subr.bf16.mxu0 %v3069
  %3117 = vmatpush1.bf16.msra.mxu0 %v3068
  %3118 = vmatprep.subr.bf16.mxu0 %v3065
  %3119 = vmatpush1.bf16.msra.mxu0 %v3064
  %3120 = vmatprep.subr.bf16.mxu0 %v3061
  %3121 = vmatpush1.bf16.msra.mxu0 %v3060
  %3122 = vmatprep.subr.bf16.mxu0 %v3057
  %3123 = vmatpush1.bf16.msra.mxu0 %v3056
  %3124 = vmatprep.subr.bf16.mxu0 %v3053
  %3125 = vmatpush1.bf16.msra.mxu0 %v3052
  %3126 = vmatprep.subr.bf16.mxu0 %v3049
  %3127 = vmatpush1.bf16.msra.mxu0 %v3048
  %3128 = vmatprep.subr.bf16.mxu0 0
  %3129 = vmatpush2.bf16.msra.mxu0 0
  %3130 = vmatprep.subr.bf16.mxu0 0
  %3131 = vmatpush2.bf16.msra.mxu0 0
  %3132 = vmatprep.subr.bf16.mxu0 0
  %3133 = vmatpush2.bf16.msra.mxu0 0
  %3134 = vmatprep.subr.bf16.mxu0 0
  %3135 = vmatpush2.bf16.msra.mxu0 0
  %3136 = vmatprep.subr.bf16.mxu0 0
  %3137 = vmatpush2.bf16.msra.mxu0 0
  %3138 = vmatprep.subr.bf16.mxu0 0
  %3139 = vmatpush2.bf16.msra.mxu0 0
  %3140 = vmatprep.subr.bf16.mxu0 0
  %3141 = vmatpush2.bf16.msra.mxu0 0
  %3142 = vmatprep.subr.bf16.mxu0 0
  %3143 = vmatpush2.bf16.msra.mxu0 0
  %3144 = vmatprep.mubr.bf16.mxu0 0
  %3145 = vmatmul.mubr.bf16.gmra.mxu0 %v2919
  %v3146 = vpop.f32.mrf.mxu0
  %v3147 = vadd.f32 0.0, %v3146
  %v3148 = vpop.f32.mrf.mxu0
  %v3149 = vadd.f32 0.0, %v3148
  %v3150 = vpop.f32.mrf.mxu0
  %v3151 = vpop.f32.mrf.mxu0
  %3152 = vdwg.mxu0
  %3153 = vmatprep.subr.bf16.mxu0 %v3079
  %3154 = vmatpush1.bf16.msra.mxu0 %v3078
  %3155 = vmatprep.subr.bf16.mxu0 %v3075
  %3156 = vmatpush1.bf16.msra.mxu0 %v3074
  %3157 = vmatprep.subr.bf16.mxu0 %v3071
  %3158 = vmatpush1.bf16.msra.mxu0 %v3070
  %3159 = vmatprep.subr.bf16.mxu0 %v3067
  %3160 = vmatpush1.bf16.msra.mxu0 %v3066
  %3161 = vmatprep.subr.bf16.mxu0 %v3063
  %3162 = vmatpush1.bf16.msra.mxu0 %v3062
  %3163 = vmatprep.subr.bf16.mxu0 %v3059
  %3164 = vmatpush1.bf16.msra.mxu0 %v3058
  %3165 = vmatprep.subr.bf16.mxu0 %v3055
  %3166 = vmatpush1.bf16.msra.mxu0 %v3054
  %3167 = vmatprep.subr.bf16.mxu0 %v3051
  %3168 = vmatpush1.bf16.msra.mxu0 %v3050
  %3169 = vmatprep.subr.bf16.mxu0 0
  %3170 = vmatpush2.bf16.msra.mxu0 0
  %3171 = vmatprep.subr.bf16.mxu0 0
  %3172 = vmatpush2.bf16.msra.mxu0 0
  %3173 = vmatprep.subr.bf16.mxu0 0
  %3174 = vmatpush2.bf16.msra.mxu0 0
  %3175 = vmatprep.subr.bf16.mxu0 0
  %3176 = vmatpush2.bf16.msra.mxu0 0
  %3177 = vmatprep.subr.bf16.mxu0 0
  %3178 = vmatpush2.bf16.msra.mxu0 0
  %3179 = vmatprep.subr.bf16.mxu0 0
  %3180 = vmatpush2.bf16.msra.mxu0 0
  %3181 = vmatprep.subr.bf16.mxu0 0
  %3182 = vmatpush2.bf16.msra.mxu0 0
  %3183 = vmatprep.subr.bf16.mxu0 0
  %3184 = vmatpush2.bf16.msra.mxu0 0
  %3185 = vmatprep.mubr.bf16.mxu0 0
  %3186 = vmatmul.mubr.bf16.gmra.mxu0 %v2919
  %v3187 = vpop.f32.mrf.mxu0
  %v3188 = vadd.f32 0.0, %v3187
  %v3189 = vpop.f32.mrf.mxu0
  %v3190 = vadd.f32 0.0, %v3189
  %v3191 = vpop.f32.mrf.mxu0
  %v3192 = vpop.f32.mrf.mxu0
  %3193 = vdwg.mxu0
  %v3194 = vadd.f32 %v2915, %v3147
  %v3195 = vadd.f32 %v2916, %v3149
  %v3196 = vadd.f32 %v2917, %v3188
  %v3197 = vadd.f32 %v2918, %v3190
  %v3198 = vxor.u32 %v3194, 2147483648
  %v3199 = vmul.f32 %v3198, 1.442695
  %v3200 = vpow.pop %v3199
  %v3201 = vadd.f32 %v3200, 1.0
  %v3202 = vrcp.pop %v3201
  %v3203 = vmul.f32 1.0, %v3202
  %v3204 = vxor.u32 %v3195, 2147483648
  %v3205 = vmul.f32 %v3204, 1.442695
  %v3206 = vpow.pop %v3205
  %v3207 = vadd.f32 %v3206, 1.0
  %v3208 = vrcp.pop %v3207
  %v3209 = vmul.f32 1.0, %v3208
  %v3210 = vtanh.pop %v3196
  %v3211 = vxor.u32 %v3197, 2147483648
  %v3212 = vmul.f32 %v3211, 1.442695
  %v3213 = vpow.pop %v3212
  %v3214 = vadd.f32 %v3213, 1.0
  %v3215 = vrcp.pop %v3214
  %v3216 = vmul.f32 1.0, %v3215
  %v3217 = vmul.f32 %v3209, %v2910
  %v3218 = vmul.f32 %v3203, %v3210
  %v3219 = vadd.f32 %v3217, %v3218
  %v3220 = vtanh.pop %v3219
  %v3221 = vmul.f32 %v3216, %v3220
  %s3222 = sadd.s32 %s25, 9
  %v3223 = vstv %s3222
  %vm3224 = vcmp.lt.s32.totalorder %v3223, %v24
  %v3225 = vsel %vm3224, 1, 0
  %3226 = vset.pattern.permute.xlu0 0
  %3227 = vperm.xlu0 %3226, %v3225
  %v3228 = vpop.permute.xlu0 %3227
  %vm3229 = vcmp.eq.s32.totalorder %v3228, 1
  %v3230 = vsel %vm3229, %v3221, %v2909
  %v3231 = vsel %vm3229, %v3219, %v2910
  %v3232 = vsel %vm3229, %v3221, 0.0
  %s3233 = scalar_lea.vmem %s3, 72
  %3234 = vst [vmem:[%s3233] sm:$0xff] %v3232
  %s3235 = scalar_lea.vmem %s1, 320
  %v3236 = vld [vmem:[%s3235] sm:$0xff]
  %v3237 = vld [vmem:[%s3235 + $0x8] sm:$0xff]
  %v3238 = vld [vmem:[%s3235 + $0x10] sm:$0xff]
  %v3239 = vld [vmem:[%s3235 + $0x18] sm:$0xff]
  %v3240 = vpack.c.bf16 %v3230, %v3230
  %v3241 = vld [vmem:[%s2] sm:$0xff]
  %v3242 = vld [vmem:[%s2 + $0x8] sm:$0xff]
  %v3243 = vld [vmem:[%s2 + $0x10] sm:$0xff]
  %v3244 = vld [vmem:[%s2 + $0x18] sm:$0xff]
  %v3245 = vld [vmem:[%s2 + $0x20] sm:$0xff]
  %v3246 = vld [vmem:[%s2 + $0x28] sm:$0xff]
  %v3247 = vld [vmem:[%s2 + $0x30] sm:$0xff]
  %v3248 = vld [vmem:[%s2 + $0x38] sm:$0xff]
  %v3249 = vld [vmem:[%s2 + $0x40] sm:$0xff]
  %v3250 = vld [vmem:[%s2 + $0x48] sm:$0xff]
  %v3251 = vld [vmem:[%s2 + $0x50] sm:$0xff]
  %v3252 = vld [vmem:[%s2 + $0x58] sm:$0xff]
  %v3253 = vld [vmem:[%s2 + $0x60] sm:$0xff]
  %v3254 = vld [vmem:[%s2 + $0x68] sm:$0xff]
  %v3255 = vld [vmem:[%s2 + $0x70] sm:$0xff]
  %v3256 = vld [vmem:[%s2 + $0x78] sm:$0xff]
  %v3257 = vld [vmem:[%s2 + $0x80] sm:$0xff]
  %v3258 = vld [vmem:[%s2 + $0x88] sm:$0xff]
  %v3259 = vld [vmem:[%s2 + $0x90] sm:$0xff]
  %v3260 = vld [vmem:[%s2 + $0x98] sm:$0xff]
  %v3261 = vld [vmem:[%s2 + $0xa0] sm:$0xff]
  %v3262 = vld [vmem:[%s2 + $0xa8] sm:$0xff]
  %v3263 = vld [vmem:[%s2 + $0xb0] sm:$0xff]
  %v3264 = vld [vmem:[%s2 + $0xb8] sm:$0xff]
  %v3265 = vld [vmem:[%s2 + $0xc0] sm:$0xff]
  %v3266 = vld [vmem:[%s2 + $0xc8] sm:$0xff]
  %v3267 = vld [vmem:[%s2 + $0xd0] sm:$0xff]
  %v3268 = vld [vmem:[%s2 + $0xd8] sm:$0xff]
  %v3269 = vld [vmem:[%s2 + $0xe0] sm:$0xff]
  %v3270 = vld [vmem:[%s2 + $0xe8] sm:$0xff]
  %v3271 = vld [vmem:[%s2 + $0xf0] sm:$0xff]
  %v3272 = vld [vmem:[%s2 + $0xf8] sm:$0xff]
  %v3305 = vunpack.c.l.b16 %v3241
  %v3306 = vunpack.c.h.b16 %v3241
  %v3307 = vunpack.c.l.b16 %v3242
  %v3308 = vunpack.c.h.b16 %v3242
  %v3309 = vunpack.c.l.b16 %v3243
  %v3310 = vunpack.c.h.b16 %v3243
  %v3311 = vunpack.c.l.b16 %v3244
  %v3312 = vunpack.c.h.b16 %v3244
  %v3313 = vunpack.c.l.b16 %v3245
  %v3314 = vunpack.c.h.b16 %v3245
  %v3315 = vunpack.c.l.b16 %v3246
  %v3316 = vunpack.c.h.b16 %v3246
  %v3317 = vunpack.c.l.b16 %v3247
  %v3318 = vunpack.c.h.b16 %v3247
  %v3319 = vunpack.c.l.b16 %v3248
  %v3320 = vunpack.c.h.b16 %v3248
  %v3321 = vunpack.c.l.b16 %v3249
  %v3322 = vunpack.c.h.b16 %v3249
  %v3323 = vunpack.c.l.b16 %v3250
  %v3324 = vunpack.c.h.b16 %v3250
  %v3325 = vunpack.c.l.b16 %v3251
  %v3326 = vunpack.c.h.b16 %v3251
  %v3327 = vunpack.c.l.b16 %v3252
  %v3328 = vunpack.c.h.b16 %v3252
  %v3329 = vunpack.c.l.b16 %v3253
  %v3330 = vunpack.c.h.b16 %v3253
  %v3331 = vunpack.c.l.b16 %v3254
  %v3332 = vunpack.c.h.b16 %v3254
  %v3333 = vunpack.c.l.b16 %v3255
  %v3334 = vunpack.c.h.b16 %v3255
  %v3335 = vunpack.c.l.b16 %v3256
  %v3336 = vunpack.c.h.b16 %v3256
  %v3337 = vunpack.c.l.b16 %v3257
  %v3338 = vunpack.c.h.b16 %v3257
  %v3339 = vunpack.c.l.b16 %v3258
  %v3340 = vunpack.c.h.b16 %v3258
  %v3341 = vunpack.c.l.b16 %v3259
  %v3342 = vunpack.c.h.b16 %v3259
  %v3343 = vunpack.c.l.b16 %v3260
  %v3344 = vunpack.c.h.b16 %v3260
  %v3345 = vunpack.c.l.b16 %v3261
  %v3346 = vunpack.c.h.b16 %v3261
  %v3347 = vunpack.c.l.b16 %v3262
  %v3348 = vunpack.c.h.b16 %v3262
  %v3349 = vunpack.c.l.b16 %v3263
  %v3350 = vunpack.c.h.b16 %v3263
  %v3351 = vunpack.c.l.b16 %v3264
  %v3352 = vunpack.c.h.b16 %v3264
  %v3353 = vunpack.c.l.b16 %v3265
  %v3354 = vunpack.c.h.b16 %v3265
  %v3355 = vunpack.c.l.b16 %v3266
  %v3356 = vunpack.c.h.b16 %v3266
  %v3357 = vunpack.c.l.b16 %v3267
  %v3358 = vunpack.c.h.b16 %v3267
  %v3359 = vunpack.c.l.b16 %v3268
  %v3360 = vunpack.c.h.b16 %v3268
  %v3361 = vunpack.c.l.b16 %v3269
  %v3362 = vunpack.c.h.b16 %v3269
  %v3363 = vunpack.c.l.b16 %v3270
  %v3364 = vunpack.c.h.b16 %v3270
  %v3365 = vunpack.c.l.b16 %v3271
  %v3366 = vunpack.c.h.b16 %v3271
  %v3367 = vunpack.c.l.b16 %v3272
  %v3368 = vunpack.c.h.b16 %v3272
  %v3369 = vpack.c.b16 %v3309, %v3305
  %v3370 = vpack.c.b16 %v3310, %v3306
  %v3371 = vpack.c.b16 %v3311, %v3307
  %v3372 = vpack.c.b16 %v3312, %v3308
  %v3373 = vpack.c.b16 %v3317, %v3313
  %v3374 = vpack.c.b16 %v3318, %v3314
  %v3375 = vpack.c.b16 %v3319, %v3315
  %v3376 = vpack.c.b16 %v3320, %v3316
  %v3377 = vpack.c.b16 %v3325, %v3321
  %v3378 = vpack.c.b16 %v3326, %v3322
  %v3379 = vpack.c.b16 %v3327, %v3323
  %v3380 = vpack.c.b16 %v3328, %v3324
  %v3381 = vpack.c.b16 %v3333, %v3329
  %v3382 = vpack.c.b16 %v3334, %v3330
  %v3383 = vpack.c.b16 %v3335, %v3331
  %v3384 = vpack.c.b16 %v3336, %v3332
  %v3385 = vpack.c.b16 %v3341, %v3337
  %v3386 = vpack.c.b16 %v3342, %v3338
  %v3387 = vpack.c.b16 %v3343, %v3339
  %v3388 = vpack.c.b16 %v3344, %v3340
  %v3389 = vpack.c.b16 %v3349, %v3345
  %v3390 = vpack.c.b16 %v3350, %v3346
  %v3391 = vpack.c.b16 %v3351, %v3347
  %v3392 = vpack.c.b16 %v3352, %v3348
  %v3393 = vpack.c.b16 %v3357, %v3353
  %v3394 = vpack.c.b16 %v3358, %v3354
  %v3395 = vpack.c.b16 %v3359, %v3355
  %v3396 = vpack.c.b16 %v3360, %v3356
  %v3397 = vpack.c.b16 %v3365, %v3361
  %v3398 = vpack.c.b16 %v3366, %v3362
  %v3399 = vpack.c.b16 %v3367, %v3363
  %v3400 = vpack.c.b16 %v3368, %v3364
  %3433 = vmatprep.subr.bf16.mxu0 %v3398
  %3434 = vmatpush1.bf16.msra.mxu0 %v3397
  %3435 = vmatprep.subr.bf16.mxu0 %v3394
  %3436 = vmatpush1.bf16.msra.mxu0 %v3393
  %3437 = vmatprep.subr.bf16.mxu0 %v3390
  %3438 = vmatpush1.bf16.msra.mxu0 %v3389
  %3439 = vmatprep.subr.bf16.mxu0 %v3386
  %3440 = vmatpush1.bf16.msra.mxu0 %v3385
  %3441 = vmatprep.subr.bf16.mxu0 %v3382
  %3442 = vmatpush1.bf16.msra.mxu0 %v3381
  %3443 = vmatprep.subr.bf16.mxu0 %v3378
  %3444 = vmatpush1.bf16.msra.mxu0 %v3377
  %3445 = vmatprep.subr.bf16.mxu0 %v3374
  %3446 = vmatpush1.bf16.msra.mxu0 %v3373
  %3447 = vmatprep.subr.bf16.mxu0 %v3370
  %3448 = vmatpush1.bf16.msra.mxu0 %v3369
  %3449 = vmatprep.subr.bf16.mxu0 0
  %3450 = vmatpush2.bf16.msra.mxu0 0
  %3451 = vmatprep.subr.bf16.mxu0 0
  %3452 = vmatpush2.bf16.msra.mxu0 0
  %3453 = vmatprep.subr.bf16.mxu0 0
  %3454 = vmatpush2.bf16.msra.mxu0 0
  %3455 = vmatprep.subr.bf16.mxu0 0
  %3456 = vmatpush2.bf16.msra.mxu0 0
  %3457 = vmatprep.subr.bf16.mxu0 0
  %3458 = vmatpush2.bf16.msra.mxu0 0
  %3459 = vmatprep.subr.bf16.mxu0 0
  %3460 = vmatpush2.bf16.msra.mxu0 0
  %3461 = vmatprep.subr.bf16.mxu0 0
  %3462 = vmatpush2.bf16.msra.mxu0 0
  %3463 = vmatprep.subr.bf16.mxu0 0
  %3464 = vmatpush2.bf16.msra.mxu0 0
  %3465 = vmatprep.mubr.bf16.mxu0 0
  %3466 = vmatmul.mubr.bf16.gmra.mxu0 %v3240
  %v3467 = vpop.f32.mrf.mxu0
  %v3468 = vadd.f32 0.0, %v3467
  %v3469 = vpop.f32.mrf.mxu0
  %v3470 = vadd.f32 0.0, %v3469
  %v3471 = vpop.f32.mrf.mxu0
  %v3472 = vpop.f32.mrf.mxu0
  %3473 = vdwg.mxu0
  %3474 = vmatprep.subr.bf16.mxu0 %v3400
  %3475 = vmatpush1.bf16.msra.mxu0 %v3399
  %3476 = vmatprep.subr.bf16.mxu0 %v3396
  %3477 = vmatpush1.bf16.msra.mxu0 %v3395
  %3478 = vmatprep.subr.bf16.mxu0 %v3392
  %3479 = vmatpush1.bf16.msra.mxu0 %v3391
  %3480 = vmatprep.subr.bf16.mxu0 %v3388
  %3481 = vmatpush1.bf16.msra.mxu0 %v3387
  %3482 = vmatprep.subr.bf16.mxu0 %v3384
  %3483 = vmatpush1.bf16.msra.mxu0 %v3383
  %3484 = vmatprep.subr.bf16.mxu0 %v3380
  %3485 = vmatpush1.bf16.msra.mxu0 %v3379
  %3486 = vmatprep.subr.bf16.mxu0 %v3376
  %3487 = vmatpush1.bf16.msra.mxu0 %v3375
  %3488 = vmatprep.subr.bf16.mxu0 %v3372
  %3489 = vmatpush1.bf16.msra.mxu0 %v3371
  %3490 = vmatprep.subr.bf16.mxu0 0
  %3491 = vmatpush2.bf16.msra.mxu0 0
  %3492 = vmatprep.subr.bf16.mxu0 0
  %3493 = vmatpush2.bf16.msra.mxu0 0
  %3494 = vmatprep.subr.bf16.mxu0 0
  %3495 = vmatpush2.bf16.msra.mxu0 0
  %3496 = vmatprep.subr.bf16.mxu0 0
  %3497 = vmatpush2.bf16.msra.mxu0 0
  %3498 = vmatprep.subr.bf16.mxu0 0
  %3499 = vmatpush2.bf16.msra.mxu0 0
  %3500 = vmatprep.subr.bf16.mxu0 0
  %3501 = vmatpush2.bf16.msra.mxu0 0
  %3502 = vmatprep.subr.bf16.mxu0 0
  %3503 = vmatpush2.bf16.msra.mxu0 0
  %3504 = vmatprep.subr.bf16.mxu0 0
  %3505 = vmatpush2.bf16.msra.mxu0 0
  %3506 = vmatprep.mubr.bf16.mxu0 0
  %3507 = vmatmul.mubr.bf16.gmra.mxu0 %v3240
  %v3508 = vpop.f32.mrf.mxu0
  %v3509 = vadd.f32 0.0, %v3508
  %v3510 = vpop.f32.mrf.mxu0
  %v3511 = vadd.f32 0.0, %v3510
  %v3512 = vpop.f32.mrf.mxu0
  %v3513 = vpop.f32.mrf.mxu0
  %3514 = vdwg.mxu0
  %v3515 = vadd.f32 %v3236, %v3468
  %v3516 = vadd.f32 %v3237, %v3470
  %v3517 = vadd.f32 %v3238, %v3509
  %v3518 = vadd.f32 %v3239, %v3511
  %v3519 = vxor.u32 %v3515, 2147483648
  %v3520 = vmul.f32 %v3519, 1.442695
  %v3521 = vpow.pop %v3520
  %v3522 = vadd.f32 %v3521, 1.0
  %v3523 = vrcp.pop %v3522
  %v3524 = vmul.f32 1.0, %v3523
  %v3525 = vxor.u32 %v3516, 2147483648
  %v3526 = vmul.f32 %v3525, 1.442695
  %v3527 = vpow.pop %v3526
  %v3528 = vadd.f32 %v3527, 1.0
  %v3529 = vrcp.pop %v3528
  %v3530 = vmul.f32 1.0, %v3529
  %v3531 = vtanh.pop %v3517
  %v3532 = vxor.u32 %v3518, 2147483648
  %v3533 = vmul.f32 %v3532, 1.442695
  %v3534 = vpow.pop %v3533
  %v3535 = vadd.f32 %v3534, 1.0
  %v3536 = vrcp.pop %v3535
  %v3537 = vmul.f32 1.0, %v3536
  %v3538 = vmul.f32 %v3530, %v3231
  %v3539 = vmul.f32 %v3524, %v3531
  %v3540 = vadd.f32 %v3538, %v3539
  %v3541 = vtanh.pop %v3540
  %v3542 = vmul.f32 %v3537, %v3541
  %s3543 = sadd.s32 %s25, 10
  %v3544 = vstv %s3543
  %vm3545 = vcmp.lt.s32.totalorder %v3544, %v24
  %v3546 = vsel %vm3545, 1, 0
  %3547 = vset.pattern.permute.xlu0 0
  %3548 = vperm.xlu0 %3547, %v3546
  %v3549 = vpop.permute.xlu0 %3548
  %vm3550 = vcmp.eq.s32.totalorder %v3549, 1
  %v3551 = vsel %vm3550, %v3542, %v3230
  %v3552 = vsel %vm3550, %v3540, %v3231
  %v3553 = vsel %vm3550, %v3542, 0.0
  %s3554 = scalar_lea.vmem %s3, 80
  %3555 = vst [vmem:[%s3554] sm:$0xff] %v3553
  %s3556 = scalar_lea.vmem %s1, 352
  %v3557 = vld [vmem:[%s3556] sm:$0xff]
  %v3558 = vld [vmem:[%s3556 + $0x8] sm:$0xff]
  %v3559 = vld [vmem:[%s3556 + $0x10] sm:$0xff]
  %v3560 = vld [vmem:[%s3556 + $0x18] sm:$0xff]
  %v3561 = vpack.c.bf16 %v3551, %v3551
  %v3562 = vld [vmem:[%s2] sm:$0xff]
  %v3563 = vld [vmem:[%s2 + $0x8] sm:$0xff]
  %v3564 = vld [vmem:[%s2 + $0x10] sm:$0xff]
  %v3565 = vld [vmem:[%s2 + $0x18] sm:$0xff]
  %v3566 = vld [vmem:[%s2 + $0x20] sm:$0xff]
  %v3567 = vld [vmem:[%s2 + $0x28] sm:$0xff]
  %v3568 = vld [vmem:[%s2 + $0x30] sm:$0xff]
  %v3569 = vld [vmem:[%s2 + $0x38] sm:$0xff]
  %v3570 = vld [vmem:[%s2 + $0x40] sm:$0xff]
  %v3571 = vld [vmem:[%s2 + $0x48] sm:$0xff]
  %v3572 = vld [vmem:[%s2 + $0x50] sm:$0xff]
  %v3573 = vld [vmem:[%s2 + $0x58] sm:$0xff]
  %v3574 = vld [vmem:[%s2 + $0x60] sm:$0xff]
  %v3575 = vld [vmem:[%s2 + $0x68] sm:$0xff]
  %v3576 = vld [vmem:[%s2 + $0x70] sm:$0xff]
  %v3577 = vld [vmem:[%s2 + $0x78] sm:$0xff]
  %v3578 = vld [vmem:[%s2 + $0x80] sm:$0xff]
  %v3579 = vld [vmem:[%s2 + $0x88] sm:$0xff]
  %v3580 = vld [vmem:[%s2 + $0x90] sm:$0xff]
  %v3581 = vld [vmem:[%s2 + $0x98] sm:$0xff]
  %v3582 = vld [vmem:[%s2 + $0xa0] sm:$0xff]
  %v3583 = vld [vmem:[%s2 + $0xa8] sm:$0xff]
  %v3584 = vld [vmem:[%s2 + $0xb0] sm:$0xff]
  %v3585 = vld [vmem:[%s2 + $0xb8] sm:$0xff]
  %v3586 = vld [vmem:[%s2 + $0xc0] sm:$0xff]
  %v3587 = vld [vmem:[%s2 + $0xc8] sm:$0xff]
  %v3588 = vld [vmem:[%s2 + $0xd0] sm:$0xff]
  %v3589 = vld [vmem:[%s2 + $0xd8] sm:$0xff]
  %v3590 = vld [vmem:[%s2 + $0xe0] sm:$0xff]
  %v3591 = vld [vmem:[%s2 + $0xe8] sm:$0xff]
  %v3592 = vld [vmem:[%s2 + $0xf0] sm:$0xff]
  %v3593 = vld [vmem:[%s2 + $0xf8] sm:$0xff]
  %v3626 = vunpack.c.l.b16 %v3562
  %v3627 = vunpack.c.h.b16 %v3562
  %v3628 = vunpack.c.l.b16 %v3563
  %v3629 = vunpack.c.h.b16 %v3563
  %v3630 = vunpack.c.l.b16 %v3564
  %v3631 = vunpack.c.h.b16 %v3564
  %v3632 = vunpack.c.l.b16 %v3565
  %v3633 = vunpack.c.h.b16 %v3565
  %v3634 = vunpack.c.l.b16 %v3566
  %v3635 = vunpack.c.h.b16 %v3566
  %v3636 = vunpack.c.l.b16 %v3567
  %v3637 = vunpack.c.h.b16 %v3567
  %v3638 = vunpack.c.l.b16 %v3568
  %v3639 = vunpack.c.h.b16 %v3568
  %v3640 = vunpack.c.l.b16 %v3569
  %v3641 = vunpack.c.h.b16 %v3569
  %v3642 = vunpack.c.l.b16 %v3570
  %v3643 = vunpack.c.h.b16 %v3570
  %v3644 = vunpack.c.l.b16 %v3571
  %v3645 = vunpack.c.h.b16 %v3571
  %v3646 = vunpack.c.l.b16 %v3572
  %v3647 = vunpack.c.h.b16 %v3572
  %v3648 = vunpack.c.l.b16 %v3573
  %v3649 = vunpack.c.h.b16 %v3573
  %v3650 = vunpack.c.l.b16 %v3574
  %v3651 = vunpack.c.h.b16 %v3574
  %v3652 = vunpack.c.l.b16 %v3575
  %v3653 = vunpack.c.h.b16 %v3575
  %v3654 = vunpack.c.l.b16 %v3576
  %v3655 = vunpack.c.h.b16 %v3576
  %v3656 = vunpack.c.l.b16 %v3577
  %v3657 = vunpack.c.h.b16 %v3577
  %v3658 = vunpack.c.l.b16 %v3578
  %v3659 = vunpack.c.h.b16 %v3578
  %v3660 = vunpack.c.l.b16 %v3579
  %v3661 = vunpack.c.h.b16 %v3579
  %v3662 = vunpack.c.l.b16 %v3580
  %v3663 = vunpack.c.h.b16 %v3580
  %v3664 = vunpack.c.l.b16 %v3581
  %v3665 = vunpack.c.h.b16 %v3581
  %v3666 = vunpack.c.l.b16 %v3582
  %v3667 = vunpack.c.h.b16 %v3582
  %v3668 = vunpack.c.l.b16 %v3583
  %v3669 = vunpack.c.h.b16 %v3583
  %v3670 = vunpack.c.l.b16 %v3584
  %v3671 = vunpack.c.h.b16 %v3584
  %v3672 = vunpack.c.l.b16 %v3585
  %v3673 = vunpack.c.h.b16 %v3585
  %v3674 = vunpack.c.l.b16 %v3586
  %v3675 = vunpack.c.h.b16 %v3586
  %v3676 = vunpack.c.l.b16 %v3587
  %v3677 = vunpack.c.h.b16 %v3587
  %v3678 = vunpack.c.l.b16 %v3588
  %v3679 = vunpack.c.h.b16 %v3588
  %v3680 = vunpack.c.l.b16 %v3589
  %v3681 = vunpack.c.h.b16 %v3589
  %v3682 = vunpack.c.l.b16 %v3590
  %v3683 = vunpack.c.h.b16 %v3590
  %v3684 = vunpack.c.l.b16 %v3591
  %v3685 = vunpack.c.h.b16 %v3591
  %v3686 = vunpack.c.l.b16 %v3592
  %v3687 = vunpack.c.h.b16 %v3592
  %v3688 = vunpack.c.l.b16 %v3593
  %v3689 = vunpack.c.h.b16 %v3593
  %v3690 = vpack.c.b16 %v3630, %v3626
  %v3691 = vpack.c.b16 %v3631, %v3627
  %v3692 = vpack.c.b16 %v3632, %v3628
  %v3693 = vpack.c.b16 %v3633, %v3629
  %v3694 = vpack.c.b16 %v3638, %v3634
  %v3695 = vpack.c.b16 %v3639, %v3635
  %v3696 = vpack.c.b16 %v3640, %v3636
  %v3697 = vpack.c.b16 %v3641, %v3637
  %v3698 = vpack.c.b16 %v3646, %v3642
  %v3699 = vpack.c.b16 %v3647, %v3643
  %v3700 = vpack.c.b16 %v3648, %v3644
  %v3701 = vpack.c.b16 %v3649, %v3645
  %v3702 = vpack.c.b16 %v3654, %v3650
  %v3703 = vpack.c.b16 %v3655, %v3651
  %v3704 = vpack.c.b16 %v3656, %v3652
  %v3705 = vpack.c.b16 %v3657, %v3653
  %v3706 = vpack.c.b16 %v3662, %v3658
  %v3707 = vpack.c.b16 %v3663, %v3659
  %v3708 = vpack.c.b16 %v3664, %v3660
  %v3709 = vpack.c.b16 %v3665, %v3661
  %v3710 = vpack.c.b16 %v3670, %v3666
  %v3711 = vpack.c.b16 %v3671, %v3667
  %v3712 = vpack.c.b16 %v3672, %v3668
  %v3713 = vpack.c.b16 %v3673, %v3669
  %v3714 = vpack.c.b16 %v3678, %v3674
  %v3715 = vpack.c.b16 %v3679, %v3675
  %v3716 = vpack.c.b16 %v3680, %v3676
  %v3717 = vpack.c.b16 %v3681, %v3677
  %v3718 = vpack.c.b16 %v3686, %v3682
  %v3719 = vpack.c.b16 %v3687, %v3683
  %v3720 = vpack.c.b16 %v3688, %v3684
  %v3721 = vpack.c.b16 %v3689, %v3685
  %3754 = vmatprep.subr.bf16.mxu0 %v3719
  %3755 = vmatpush1.bf16.msra.mxu0 %v3718
  %3756 = vmatprep.subr.bf16.mxu0 %v3715
  %3757 = vmatpush1.bf16.msra.mxu0 %v3714
  %3758 = vmatprep.subr.bf16.mxu0 %v3711
  %3759 = vmatpush1.bf16.msra.mxu0 %v3710
  %3760 = vmatprep.subr.bf16.mxu0 %v3707
  %3761 = vmatpush1.bf16.msra.mxu0 %v3706
  %3762 = vmatprep.subr.bf16.mxu0 %v3703
  %3763 = vmatpush1.bf16.msra.mxu0 %v3702
  %3764 = vmatprep.subr.bf16.mxu0 %v3699
  %3765 = vmatpush1.bf16.msra.mxu0 %v3698
  %3766 = vmatprep.subr.bf16.mxu0 %v3695
  %3767 = vmatpush1.bf16.msra.mxu0 %v3694
  %3768 = vmatprep.subr.bf16.mxu0 %v3691
  %3769 = vmatpush1.bf16.msra.mxu0 %v3690
  %3770 = vmatprep.subr.bf16.mxu0 0
  %3771 = vmatpush2.bf16.msra.mxu0 0
  %3772 = vmatprep.subr.bf16.mxu0 0
  %3773 = vmatpush2.bf16.msra.mxu0 0
  %3774 = vmatprep.subr.bf16.mxu0 0
  %3775 = vmatpush2.bf16.msra.mxu0 0
  %3776 = vmatprep.subr.bf16.mxu0 0
  %3777 = vmatpush2.bf16.msra.mxu0 0
  %3778 = vmatprep.subr.bf16.mxu0 0
  %3779 = vmatpush2.bf16.msra.mxu0 0
  %3780 = vmatprep.subr.bf16.mxu0 0
  %3781 = vmatpush2.bf16.msra.mxu0 0
  %3782 = vmatprep.subr.bf16.mxu0 0
  %3783 = vmatpush2.bf16.msra.mxu0 0
  %3784 = vmatprep.subr.bf16.mxu0 0
  %3785 = vmatpush2.bf16.msra.mxu0 0
  %3786 = vmatprep.mubr.bf16.mxu0 0
  %3787 = vmatmul.mubr.bf16.gmra.mxu0 %v3561
  %v3788 = vpop.f32.mrf.mxu0
  %v3789 = vadd.f32 0.0, %v3788
  %v3790 = vpop.f32.mrf.mxu0
  %v3791 = vadd.f32 0.0, %v3790
  %v3792 = vpop.f32.mrf.mxu0
  %v3793 = vpop.f32.mrf.mxu0
  %3794 = vdwg.mxu0
  %3795 = vmatprep.subr.bf16.mxu0 %v3721
  %3796 = vmatpush1.bf16.msra.mxu0 %v3720
  %3797 = vmatprep.subr.bf16.mxu0 %v3717
  %3798 = vmatpush1.bf16.msra.mxu0 %v3716
  %3799 = vmatprep.subr.bf16.mxu0 %v3713
  %3800 = vmatpush1.bf16.msra.mxu0 %v3712
  %3801 = vmatprep.subr.bf16.mxu0 %v3709
  %3802 = vmatpush1.bf16.msra.mxu0 %v3708
  %3803 = vmatprep.subr.bf16.mxu0 %v3705
  %3804 = vmatpush1.bf16.msra.mxu0 %v3704
  %3805 = vmatprep.subr.bf16.mxu0 %v3701
  %3806 = vmatpush1.bf16.msra.mxu0 %v3700
  %3807 = vmatprep.subr.bf16.mxu0 %v3697
  %3808 = vmatpush1.bf16.msra.mxu0 %v3696
  %3809 = vmatprep.subr.bf16.mxu0 %v3693
  %3810 = vmatpush1.bf16.msra.mxu0 %v3692
  %3811 = vmatprep.subr.bf16.mxu0 0
  %3812 = vmatpush2.bf16.msra.mxu0 0
  %3813 = vmatprep.subr.bf16.mxu0 0
  %3814 = vmatpush2.bf16.msra.mxu0 0
  %3815 = vmatprep.subr.bf16.mxu0 0
  %3816 = vmatpush2.bf16.msra.mxu0 0
  %3817 = vmatprep.subr.bf16.mxu0 0
  %3818 = vmatpush2.bf16.msra.mxu0 0
  %3819 = vmatprep.subr.bf16.mxu0 0
  %3820 = vmatpush2.bf16.msra.mxu0 0
  %3821 = vmatprep.subr.bf16.mxu0 0
  %3822 = vmatpush2.bf16.msra.mxu0 0
  %3823 = vmatprep.subr.bf16.mxu0 0
  %3824 = vmatpush2.bf16.msra.mxu0 0
  %3825 = vmatprep.subr.bf16.mxu0 0
  %3826 = vmatpush2.bf16.msra.mxu0 0
  %3827 = vmatprep.mubr.bf16.mxu0 0
  %3828 = vmatmul.mubr.bf16.gmra.mxu0 %v3561
  %v3829 = vpop.f32.mrf.mxu0
  %v3830 = vadd.f32 0.0, %v3829
  %v3831 = vpop.f32.mrf.mxu0
  %v3832 = vadd.f32 0.0, %v3831
  %v3833 = vpop.f32.mrf.mxu0
  %v3834 = vpop.f32.mrf.mxu0
  %3835 = vdwg.mxu0
  %v3836 = vadd.f32 %v3557, %v3789
  %v3837 = vadd.f32 %v3558, %v3791
  %v3838 = vadd.f32 %v3559, %v3830
  %v3839 = vadd.f32 %v3560, %v3832
  %v3840 = vxor.u32 %v3836, 2147483648
  %v3841 = vmul.f32 %v3840, 1.442695
  %v3842 = vpow.pop %v3841
  %v3843 = vadd.f32 %v3842, 1.0
  %v3844 = vrcp.pop %v3843
  %v3845 = vmul.f32 1.0, %v3844
  %v3846 = vxor.u32 %v3837, 2147483648
  %v3847 = vmul.f32 %v3846, 1.442695
  %v3848 = vpow.pop %v3847
  %v3849 = vadd.f32 %v3848, 1.0
  %v3850 = vrcp.pop %v3849
  %v3851 = vmul.f32 1.0, %v3850
  %v3852 = vtanh.pop %v3838
  %v3853 = vxor.u32 %v3839, 2147483648
  %v3854 = vmul.f32 %v3853, 1.442695
  %v3855 = vpow.pop %v3854
  %v3856 = vadd.f32 %v3855, 1.0
  %v3857 = vrcp.pop %v3856
  %v3858 = vmul.f32 1.0, %v3857
  %v3859 = vmul.f32 %v3851, %v3552
  %v3860 = vmul.f32 %v3845, %v3852
  %v3861 = vadd.f32 %v3859, %v3860
  %v3862 = vtanh.pop %v3861
  %v3863 = vmul.f32 %v3858, %v3862
  %s3864 = sadd.s32 %s25, 11
  %v3865 = vstv %s3864
  %vm3866 = vcmp.lt.s32.totalorder %v3865, %v24
  %v3867 = vsel %vm3866, 1, 0
  %3868 = vset.pattern.permute.xlu0 0
  %3869 = vperm.xlu0 %3868, %v3867
  %v3870 = vpop.permute.xlu0 %3869
  %vm3871 = vcmp.eq.s32.totalorder %v3870, 1
  %v3872 = vsel %vm3871, %v3863, %v3551
  %v3873 = vsel %vm3871, %v3861, %v3552
  %v3874 = vsel %vm3871, %v3863, 0.0
  %s3875 = scalar_lea.vmem %s3, 88
  %3876 = vst [vmem:[%s3875] sm:$0xff] %v3874
  %s3877 = scalar_lea.vmem %s1, 384
  %v3878 = vld [vmem:[%s3877] sm:$0xff]
  %v3879 = vld [vmem:[%s3877 + $0x8] sm:$0xff]
  %v3880 = vld [vmem:[%s3877 + $0x10] sm:$0xff]
  %v3881 = vld [vmem:[%s3877 + $0x18] sm:$0xff]
  %v3882 = vpack.c.bf16 %v3872, %v3872
  %v3883 = vld [vmem:[%s2] sm:$0xff]
  %v3884 = vld [vmem:[%s2 + $0x8] sm:$0xff]
  %v3885 = vld [vmem:[%s2 + $0x10] sm:$0xff]
  %v3886 = vld [vmem:[%s2 + $0x18] sm:$0xff]
  %v3887 = vld [vmem:[%s2 + $0x20] sm:$0xff]
  %v3888 = vld [vmem:[%s2 + $0x28] sm:$0xff]
  %v3889 = vld [vmem:[%s2 + $0x30] sm:$0xff]
  %v3890 = vld [vmem:[%s2 + $0x38] sm:$0xff]
  %v3891 = vld [vmem:[%s2 + $0x40] sm:$0xff]
  %v3892 = vld [vmem:[%s2 + $0x48] sm:$0xff]
  %v3893 = vld [vmem:[%s2 + $0x50] sm:$0xff]
  %v3894 = vld [vmem:[%s2 + $0x58] sm:$0xff]
  %v3895 = vld [vmem:[%s2 + $0x60] sm:$0xff]
  %v3896 = vld [vmem:[%s2 + $0x68] sm:$0xff]
  %v3897 = vld [vmem:[%s2 + $0x70] sm:$0xff]
  %v3898 = vld [vmem:[%s2 + $0x78] sm:$0xff]
  %v3899 = vld [vmem:[%s2 + $0x80] sm:$0xff]
  %v3900 = vld [vmem:[%s2 + $0x88] sm:$0xff]
  %v3901 = vld [vmem:[%s2 + $0x90] sm:$0xff]
  %v3902 = vld [vmem:[%s2 + $0x98] sm:$0xff]
  %v3903 = vld [vmem:[%s2 + $0xa0] sm:$0xff]
  %v3904 = vld [vmem:[%s2 + $0xa8] sm:$0xff]
  %v3905 = vld [vmem:[%s2 + $0xb0] sm:$0xff]
  %v3906 = vld [vmem:[%s2 + $0xb8] sm:$0xff]
  %v3907 = vld [vmem:[%s2 + $0xc0] sm:$0xff]
  %v3908 = vld [vmem:[%s2 + $0xc8] sm:$0xff]
  %v3909 = vld [vmem:[%s2 + $0xd0] sm:$0xff]
  %v3910 = vld [vmem:[%s2 + $0xd8] sm:$0xff]
  %v3911 = vld [vmem:[%s2 + $0xe0] sm:$0xff]
  %v3912 = vld [vmem:[%s2 + $0xe8] sm:$0xff]
  %v3913 = vld [vmem:[%s2 + $0xf0] sm:$0xff]
  %v3914 = vld [vmem:[%s2 + $0xf8] sm:$0xff]
  %v3947 = vunpack.c.l.b16 %v3883
  %v3948 = vunpack.c.h.b16 %v3883
  %v3949 = vunpack.c.l.b16 %v3884
  %v3950 = vunpack.c.h.b16 %v3884
  %v3951 = vunpack.c.l.b16 %v3885
  %v3952 = vunpack.c.h.b16 %v3885
  %v3953 = vunpack.c.l.b16 %v3886
  %v3954 = vunpack.c.h.b16 %v3886
  %v3955 = vunpack.c.l.b16 %v3887
  %v3956 = vunpack.c.h.b16 %v3887
  %v3957 = vunpack.c.l.b16 %v3888
  %v3958 = vunpack.c.h.b16 %v3888
  %v3959 = vunpack.c.l.b16 %v3889
  %v3960 = vunpack.c.h.b16 %v3889
  %v3961 = vunpack.c.l.b16 %v3890
  %v3962 = vunpack.c.h.b16 %v3890
  %v3963 = vunpack.c.l.b16 %v3891
  %v3964 = vunpack.c.h.b16 %v3891
  %v3965 = vunpack.c.l.b16 %v3892
  %v3966 = vunpack.c.h.b16 %v3892
  %v3967 = vunpack.c.l.b16 %v3893
  %v3968 = vunpack.c.h.b16 %v3893
  %v3969 = vunpack.c.l.b16 %v3894
  %v3970 = vunpack.c.h.b16 %v3894
  %v3971 = vunpack.c.l.b16 %v3895
  %v3972 = vunpack.c.h.b16 %v3895
  %v3973 = vunpack.c.l.b16 %v3896
  %v3974 = vunpack.c.h.b16 %v3896
  %v3975 = vunpack.c.l.b16 %v3897
  %v3976 = vunpack.c.h.b16 %v3897
  %v3977 = vunpack.c.l.b16 %v3898
  %v3978 = vunpack.c.h.b16 %v3898
  %v3979 = vunpack.c.l.b16 %v3899
  %v3980 = vunpack.c.h.b16 %v3899
  %v3981 = vunpack.c.l.b16 %v3900
  %v3982 = vunpack.c.h.b16 %v3900
  %v3983 = vunpack.c.l.b16 %v3901
  %v3984 = vunpack.c.h.b16 %v3901
  %v3985 = vunpack.c.l.b16 %v3902
  %v3986 = vunpack.c.h.b16 %v3902
  %v3987 = vunpack.c.l.b16 %v3903
  %v3988 = vunpack.c.h.b16 %v3903
  %v3989 = vunpack.c.l.b16 %v3904
  %v3990 = vunpack.c.h.b16 %v3904
  %v3991 = vunpack.c.l.b16 %v3905
  %v3992 = vunpack.c.h.b16 %v3905
  %v3993 = vunpack.c.l.b16 %v3906
  %v3994 = vunpack.c.h.b16 %v3906
  %v3995 = vunpack.c.l.b16 %v3907
  %v3996 = vunpack.c.h.b16 %v3907
  %v3997 = vunpack.c.l.b16 %v3908
  %v3998 = vunpack.c.h.b16 %v3908
  %v3999 = vunpack.c.l.b16 %v3909
  %v4000 = vunpack.c.h.b16 %v3909
  %v4001 = vunpack.c.l.b16 %v3910
  %v4002 = vunpack.c.h.b16 %v3910
  %v4003 = vunpack.c.l.b16 %v3911
  %v4004 = vunpack.c.h.b16 %v3911
  %v4005 = vunpack.c.l.b16 %v3912
  %v4006 = vunpack.c.h.b16 %v3912
  %v4007 = vunpack.c.l.b16 %v3913
  %v4008 = vunpack.c.h.b16 %v3913
  %v4009 = vunpack.c.l.b16 %v3914
  %v4010 = vunpack.c.h.b16 %v3914
  %v4011 = vpack.c.b16 %v3951, %v3947
  %v4012 = vpack.c.b16 %v3952, %v3948
  %v4013 = vpack.c.b16 %v3953, %v3949
  %v4014 = vpack.c.b16 %v3954, %v3950
  %v4015 = vpack.c.b16 %v3959, %v3955
  %v4016 = vpack.c.b16 %v3960, %v3956
  %v4017 = vpack.c.b16 %v3961, %v3957
  %v4018 = vpack.c.b16 %v3962, %v3958
  %v4019 = vpack.c.b16 %v3967, %v3963
  %v4020 = vpack.c.b16 %v3968, %v3964
  %v4021 = vpack.c.b16 %v3969, %v3965
  %v4022 = vpack.c.b16 %v3970, %v3966
  %v4023 = vpack.c.b16 %v3975, %v3971
  %v4024 = vpack.c.b16 %v3976, %v3972
  %v4025 = vpack.c.b16 %v3977, %v3973
  %v4026 = vpack.c.b16 %v3978, %v3974
  %v4027 = vpack.c.b16 %v3983, %v3979
  %v4028 = vpack.c.b16 %v3984, %v3980
  %v4029 = vpack.c.b16 %v3985, %v3981
  %v4030 = vpack.c.b16 %v3986, %v3982
  %v4031 = vpack.c.b16 %v3991, %v3987
  %v4032 = vpack.c.b16 %v3992, %v3988
  %v4033 = vpack.c.b16 %v3993, %v3989
  %v4034 = vpack.c.b16 %v3994, %v3990
  %v4035 = vpack.c.b16 %v3999, %v3995
  %v4036 = vpack.c.b16 %v4000, %v3996
  %v4037 = vpack.c.b16 %v4001, %v3997
  %v4038 = vpack.c.b16 %v4002, %v3998
  %v4039 = vpack.c.b16 %v4007, %v4003
  %v4040 = vpack.c.b16 %v4008, %v4004
  %v4041 = vpack.c.b16 %v4009, %v4005
  %v4042 = vpack.c.b16 %v4010, %v4006
  %4075 = vmatprep.subr.bf16.mxu0 %v4040
  %4076 = vmatpush1.bf16.msra.mxu0 %v4039
  %4077 = vmatprep.subr.bf16.mxu0 %v4036
  %4078 = vmatpush1.bf16.msra.mxu0 %v4035
  %4079 = vmatprep.subr.bf16.mxu0 %v4032
  %4080 = vmatpush1.bf16.msra.mxu0 %v4031
  %4081 = vmatprep.subr.bf16.mxu0 %v4028
  %4082 = vmatpush1.bf16.msra.mxu0 %v4027
  %4083 = vmatprep.subr.bf16.mxu0 %v4024
  %4084 = vmatpush1.bf16.msra.mxu0 %v4023
  %4085 = vmatprep.subr.bf16.mxu0 %v4020
  %4086 = vmatpush1.bf16.msra.mxu0 %v4019
  %4087 = vmatprep.subr.bf16.mxu0 %v4016
  %4088 = vmatpush1.bf16.msra.mxu0 %v4015
  %4089 = vmatprep.subr.bf16.mxu0 %v4012
  %4090 = vmatpush1.bf16.msra.mxu0 %v4011
  %4091 = vmatprep.subr.bf16.mxu0 0
  %4092 = vmatpush2.bf16.msra.mxu0 0
  %4093 = vmatprep.subr.bf16.mxu0 0
  %4094 = vmatpush2.bf16.msra.mxu0 0
  %4095 = vmatprep.subr.bf16.mxu0 0
  %4096 = vmatpush2.bf16.msra.mxu0 0
  %4097 = vmatprep.subr.bf16.mxu0 0
  %4098 = vmatpush2.bf16.msra.mxu0 0
  %4099 = vmatprep.subr.bf16.mxu0 0
  %4100 = vmatpush2.bf16.msra.mxu0 0
  %4101 = vmatprep.subr.bf16.mxu0 0
  %4102 = vmatpush2.bf16.msra.mxu0 0
  %4103 = vmatprep.subr.bf16.mxu0 0
  %4104 = vmatpush2.bf16.msra.mxu0 0
  %4105 = vmatprep.subr.bf16.mxu0 0
  %4106 = vmatpush2.bf16.msra.mxu0 0
  %4107 = vmatprep.mubr.bf16.mxu0 0
  %4108 = vmatmul.mubr.bf16.gmra.mxu0 %v3882
  %v4109 = vpop.f32.mrf.mxu0
  %v4110 = vadd.f32 0.0, %v4109
  %v4111 = vpop.f32.mrf.mxu0
  %v4112 = vadd.f32 0.0, %v4111
  %v4113 = vpop.f32.mrf.mxu0
  %v4114 = vpop.f32.mrf.mxu0
  %4115 = vdwg.mxu0
  %4116 = vmatprep.subr.bf16.mxu0 %v4042
  %4117 = vmatpush1.bf16.msra.mxu0 %v4041
  %4118 = vmatprep.subr.bf16.mxu0 %v4038
  %4119 = vmatpush1.bf16.msra.mxu0 %v4037
  %4120 = vmatprep.subr.bf16.mxu0 %v4034
  %4121 = vmatpush1.bf16.msra.mxu0 %v4033
  %4122 = vmatprep.subr.bf16.mxu0 %v4030
  %4123 = vmatpush1.bf16.msra.mxu0 %v4029
  %4124 = vmatprep.subr.bf16.mxu0 %v4026
  %4125 = vmatpush1.bf16.msra.mxu0 %v4025
  %4126 = vmatprep.subr.bf16.mxu0 %v4022
  %4127 = vmatpush1.bf16.msra.mxu0 %v4021
  %4128 = vmatprep.subr.bf16.mxu0 %v4018
  %4129 = vmatpush1.bf16.msra.mxu0 %v4017
  %4130 = vmatprep.subr.bf16.mxu0 %v4014
  %4131 = vmatpush1.bf16.msra.mxu0 %v4013
  %4132 = vmatprep.subr.bf16.mxu0 0
  %4133 = vmatpush2.bf16.msra.mxu0 0
  %4134 = vmatprep.subr.bf16.mxu0 0
  %4135 = vmatpush2.bf16.msra.mxu0 0
  %4136 = vmatprep.subr.bf16.mxu0 0
  %4137 = vmatpush2.bf16.msra.mxu0 0
  %4138 = vmatprep.subr.bf16.mxu0 0
  %4139 = vmatpush2.bf16.msra.mxu0 0
  %4140 = vmatprep.subr.bf16.mxu0 0
  %4141 = vmatpush2.bf16.msra.mxu0 0
  %4142 = vmatprep.subr.bf16.mxu0 0
  %4143 = vmatpush2.bf16.msra.mxu0 0
  %4144 = vmatprep.subr.bf16.mxu0 0
  %4145 = vmatpush2.bf16.msra.mxu0 0
  %4146 = vmatprep.subr.bf16.mxu0 0
  %4147 = vmatpush2.bf16.msra.mxu0 0
  %4148 = vmatprep.mubr.bf16.mxu0 0
  %4149 = vmatmul.mubr.bf16.gmra.mxu0 %v3882
  %v4150 = vpop.f32.mrf.mxu0
  %v4151 = vadd.f32 0.0, %v4150
  %v4152 = vpop.f32.mrf.mxu0
  %v4153 = vadd.f32 0.0, %v4152
  %v4154 = vpop.f32.mrf.mxu0
  %v4155 = vpop.f32.mrf.mxu0
  %4156 = vdwg.mxu0
  %v4157 = vadd.f32 %v3878, %v4110
  %v4158 = vadd.f32 %v3879, %v4112
  %v4159 = vadd.f32 %v3880, %v4151
  %v4160 = vadd.f32 %v3881, %v4153
  %v4161 = vxor.u32 %v4157, 2147483648
  %v4162 = vmul.f32 %v4161, 1.442695
  %v4163 = vpow.pop %v4162
  %v4164 = vadd.f32 %v4163, 1.0
  %v4165 = vrcp.pop %v4164
  %v4166 = vmul.f32 1.0, %v4165
  %v4167 = vxor.u32 %v4158, 2147483648
  %v4168 = vmul.f32 %v4167, 1.442695
  %v4169 = vpow.pop %v4168
  %v4170 = vadd.f32 %v4169, 1.0
  %v4171 = vrcp.pop %v4170
  %v4172 = vmul.f32 1.0, %v4171
  %v4173 = vtanh.pop %v4159
  %v4174 = vxor.u32 %v4160, 2147483648
  %v4175 = vmul.f32 %v4174, 1.442695
  %v4176 = vpow.pop %v4175
  %v4177 = vadd.f32 %v4176, 1.0
  %v4178 = vrcp.pop %v4177
  %v4179 = vmul.f32 1.0, %v4178
  %v4180 = vmul.f32 %v4172, %v3873
  %v4181 = vmul.f32 %v4166, %v4173
  %v4182 = vadd.f32 %v4180, %v4181
  %v4183 = vtanh.pop %v4182
  %v4184 = vmul.f32 %v4179, %v4183
  %s4185 = sadd.s32 %s25, 12
  %v4186 = vstv %s4185
  %vm4187 = vcmp.lt.s32.totalorder %v4186, %v24
  %v4188 = vsel %vm4187, 1, 0
  %4189 = vset.pattern.permute.xlu0 0
  %4190 = vperm.xlu0 %4189, %v4188
  %v4191 = vpop.permute.xlu0 %4190
  %vm4192 = vcmp.eq.s32.totalorder %v4191, 1
  %v4193 = vsel %vm4192, %v4184, %v3872
  %v4194 = vsel %vm4192, %v4182, %v3873
  %v4195 = vsel %vm4192, %v4184, 0.0
  %s4196 = scalar_lea.vmem %s3, 96
  %4197 = vst [vmem:[%s4196] sm:$0xff] %v4195
  %s4198 = scalar_lea.vmem %s1, 416
  %v4199 = vld [vmem:[%s4198] sm:$0xff]
  %v4200 = vld [vmem:[%s4198 + $0x8] sm:$0xff]
  %v4201 = vld [vmem:[%s4198 + $0x10] sm:$0xff]
  %v4202 = vld [vmem:[%s4198 + $0x18] sm:$0xff]
  %v4203 = vpack.c.bf16 %v4193, %v4193
  %v4204 = vld [vmem:[%s2] sm:$0xff]
  %v4205 = vld [vmem:[%s2 + $0x8] sm:$0xff]
  %v4206 = vld [vmem:[%s2 + $0x10] sm:$0xff]
  %v4207 = vld [vmem:[%s2 + $0x18] sm:$0xff]
  %v4208 = vld [vmem:[%s2 + $0x20] sm:$0xff]
  %v4209 = vld [vmem:[%s2 + $0x28] sm:$0xff]
  %v4210 = vld [vmem:[%s2 + $0x30] sm:$0xff]
  %v4211 = vld [vmem:[%s2 + $0x38] sm:$0xff]
  %v4212 = vld [vmem:[%s2 + $0x40] sm:$0xff]
  %v4213 = vld [vmem:[%s2 + $0x48] sm:$0xff]
  %v4214 = vld [vmem:[%s2 + $0x50] sm:$0xff]
  %v4215 = vld [vmem:[%s2 + $0x58] sm:$0xff]
  %v4216 = vld [vmem:[%s2 + $0x60] sm:$0xff]
  %v4217 = vld [vmem:[%s2 + $0x68] sm:$0xff]
  %v4218 = vld [vmem:[%s2 + $0x70] sm:$0xff]
  %v4219 = vld [vmem:[%s2 + $0x78] sm:$0xff]
  %v4220 = vld [vmem:[%s2 + $0x80] sm:$0xff]
  %v4221 = vld [vmem:[%s2 + $0x88] sm:$0xff]
  %v4222 = vld [vmem:[%s2 + $0x90] sm:$0xff]
  %v4223 = vld [vmem:[%s2 + $0x98] sm:$0xff]
  %v4224 = vld [vmem:[%s2 + $0xa0] sm:$0xff]
  %v4225 = vld [vmem:[%s2 + $0xa8] sm:$0xff]
  %v4226 = vld [vmem:[%s2 + $0xb0] sm:$0xff]
  %v4227 = vld [vmem:[%s2 + $0xb8] sm:$0xff]
  %v4228 = vld [vmem:[%s2 + $0xc0] sm:$0xff]
  %v4229 = vld [vmem:[%s2 + $0xc8] sm:$0xff]
  %v4230 = vld [vmem:[%s2 + $0xd0] sm:$0xff]
  %v4231 = vld [vmem:[%s2 + $0xd8] sm:$0xff]
  %v4232 = vld [vmem:[%s2 + $0xe0] sm:$0xff]
  %v4233 = vld [vmem:[%s2 + $0xe8] sm:$0xff]
  %v4234 = vld [vmem:[%s2 + $0xf0] sm:$0xff]
  %v4235 = vld [vmem:[%s2 + $0xf8] sm:$0xff]
  %v4268 = vunpack.c.l.b16 %v4204
  %v4269 = vunpack.c.h.b16 %v4204
  %v4270 = vunpack.c.l.b16 %v4205
  %v4271 = vunpack.c.h.b16 %v4205
  %v4272 = vunpack.c.l.b16 %v4206
  %v4273 = vunpack.c.h.b16 %v4206
  %v4274 = vunpack.c.l.b16 %v4207
  %v4275 = vunpack.c.h.b16 %v4207
  %v4276 = vunpack.c.l.b16 %v4208
  %v4277 = vunpack.c.h.b16 %v4208
  %v4278 = vunpack.c.l.b16 %v4209
  %v4279 = vunpack.c.h.b16 %v4209
  %v4280 = vunpack.c.l.b16 %v4210
  %v4281 = vunpack.c.h.b16 %v4210
  %v4282 = vunpack.c.l.b16 %v4211
  %v4283 = vunpack.c.h.b16 %v4211
  %v4284 = vunpack.c.l.b16 %v4212
  %v4285 = vunpack.c.h.b16 %v4212
  %v4286 = vunpack.c.l.b16 %v4213
  %v4287 = vunpack.c.h.b16 %v4213
  %v4288 = vunpack.c.l.b16 %v4214
  %v4289 = vunpack.c.h.b16 %v4214
  %v4290 = vunpack.c.l.b16 %v4215
  %v4291 = vunpack.c.h.b16 %v4215
  %v4292 = vunpack.c.l.b16 %v4216
  %v4293 = vunpack.c.h.b16 %v4216
  %v4294 = vunpack.c.l.b16 %v4217
  %v4295 = vunpack.c.h.b16 %v4217
  %v4296 = vunpack.c.l.b16 %v4218
  %v4297 = vunpack.c.h.b16 %v4218
  %v4298 = vunpack.c.l.b16 %v4219
  %v4299 = vunpack.c.h.b16 %v4219
  %v4300 = vunpack.c.l.b16 %v4220
  %v4301 = vunpack.c.h.b16 %v4220
  %v4302 = vunpack.c.l.b16 %v4221
  %v4303 = vunpack.c.h.b16 %v4221
  %v4304 = vunpack.c.l.b16 %v4222
  %v4305 = vunpack.c.h.b16 %v4222
  %v4306 = vunpack.c.l.b16 %v4223
  %v4307 = vunpack.c.h.b16 %v4223
  %v4308 = vunpack.c.l.b16 %v4224
  %v4309 = vunpack.c.h.b16 %v4224
  %v4310 = vunpack.c.l.b16 %v4225
  %v4311 = vunpack.c.h.b16 %v4225
  %v4312 = vunpack.c.l.b16 %v4226
  %v4313 = vunpack.c.h.b16 %v4226
  %v4314 = vunpack.c.l.b16 %v4227
  %v4315 = vunpack.c.h.b16 %v4227
  %v4316 = vunpack.c.l.b16 %v4228
  %v4317 = vunpack.c.h.b16 %v4228
  %v4318 = vunpack.c.l.b16 %v4229
  %v4319 = vunpack.c.h.b16 %v4229
  %v4320 = vunpack.c.l.b16 %v4230
  %v4321 = vunpack.c.h.b16 %v4230
  %v4322 = vunpack.c.l.b16 %v4231
  %v4323 = vunpack.c.h.b16 %v4231
  %v4324 = vunpack.c.l.b16 %v4232
  %v4325 = vunpack.c.h.b16 %v4232
  %v4326 = vunpack.c.l.b16 %v4233
  %v4327 = vunpack.c.h.b16 %v4233
  %v4328 = vunpack.c.l.b16 %v4234
  %v4329 = vunpack.c.h.b16 %v4234
  %v4330 = vunpack.c.l.b16 %v4235
  %v4331 = vunpack.c.h.b16 %v4235
  %v4332 = vpack.c.b16 %v4272, %v4268
  %v4333 = vpack.c.b16 %v4273, %v4269
  %v4334 = vpack.c.b16 %v4274, %v4270
  %v4335 = vpack.c.b16 %v4275, %v4271
  %v4336 = vpack.c.b16 %v4280, %v4276
  %v4337 = vpack.c.b16 %v4281, %v4277
  %v4338 = vpack.c.b16 %v4282, %v4278
  %v4339 = vpack.c.b16 %v4283, %v4279
  %v4340 = vpack.c.b16 %v4288, %v4284
  %v4341 = vpack.c.b16 %v4289, %v4285
  %v4342 = vpack.c.b16 %v4290, %v4286
  %v4343 = vpack.c.b16 %v4291, %v4287
  %v4344 = vpack.c.b16 %v4296, %v4292
  %v4345 = vpack.c.b16 %v4297, %v4293
  %v4346 = vpack.c.b16 %v4298, %v4294
  %v4347 = vpack.c.b16 %v4299, %v4295
  %v4348 = vpack.c.b16 %v4304, %v4300
  %v4349 = vpack.c.b16 %v4305, %v4301
  %v4350 = vpack.c.b16 %v4306, %v4302
  %v4351 = vpack.c.b16 %v4307, %v4303
  %v4352 = vpack.c.b16 %v4312, %v4308
  %v4353 = vpack.c.b16 %v4313, %v4309
  %v4354 = vpack.c.b16 %v4314, %v4310
  %v4355 = vpack.c.b16 %v4315, %v4311
  %v4356 = vpack.c.b16 %v4320, %v4316
  %v4357 = vpack.c.b16 %v4321, %v4317
  %v4358 = vpack.c.b16 %v4322, %v4318
  %v4359 = vpack.c.b16 %v4323, %v4319
  %v4360 = vpack.c.b16 %v4328, %v4324
  %v4361 = vpack.c.b16 %v4329, %v4325
  %v4362 = vpack.c.b16 %v4330, %v4326
  %v4363 = vpack.c.b16 %v4331, %v4327
  %4396 = vmatprep.subr.bf16.mxu0 %v4361
  %4397 = vmatpush1.bf16.msra.mxu0 %v4360
  %4398 = vmatprep.subr.bf16.mxu0 %v4357
  %4399 = vmatpush1.bf16.msra.mxu0 %v4356
  %4400 = vmatprep.subr.bf16.mxu0 %v4353
  %4401 = vmatpush1.bf16.msra.mxu0 %v4352
  %4402 = vmatprep.subr.bf16.mxu0 %v4349
  %4403 = vmatpush1.bf16.msra.mxu0 %v4348
  %4404 = vmatprep.subr.bf16.mxu0 %v4345
  %4405 = vmatpush1.bf16.msra.mxu0 %v4344
  %4406 = vmatprep.subr.bf16.mxu0 %v4341
  %4407 = vmatpush1.bf16.msra.mxu0 %v4340
  %4408 = vmatprep.subr.bf16.mxu0 %v4337
  %4409 = vmatpush1.bf16.msra.mxu0 %v4336
  %4410 = vmatprep.subr.bf16.mxu0 %v4333
  %4411 = vmatpush1.bf16.msra.mxu0 %v4332
  %4412 = vmatprep.subr.bf16.mxu0 0
  %4413 = vmatpush2.bf16.msra.mxu0 0
  %4414 = vmatprep.subr.bf16.mxu0 0
  %4415 = vmatpush2.bf16.msra.mxu0 0
  %4416 = vmatprep.subr.bf16.mxu0 0
  %4417 = vmatpush2.bf16.msra.mxu0 0
  %4418 = vmatprep.subr.bf16.mxu0 0
  %4419 = vmatpush2.bf16.msra.mxu0 0
  %4420 = vmatprep.subr.bf16.mxu0 0
  %4421 = vmatpush2.bf16.msra.mxu0 0
  %4422 = vmatprep.subr.bf16.mxu0 0
  %4423 = vmatpush2.bf16.msra.mxu0 0
  %4424 = vmatprep.subr.bf16.mxu0 0
  %4425 = vmatpush2.bf16.msra.mxu0 0
  %4426 = vmatprep.subr.bf16.mxu0 0
  %4427 = vmatpush2.bf16.msra.mxu0 0
  %4428 = vmatprep.mubr.bf16.mxu0 0
  %4429 = vmatmul.mubr.bf16.gmra.mxu0 %v4203
  %v4430 = vpop.f32.mrf.mxu0
  %v4431 = vadd.f32 0.0, %v4430
  %v4432 = vpop.f32.mrf.mxu0
  %v4433 = vadd.f32 0.0, %v4432
  %v4434 = vpop.f32.mrf.mxu0
  %v4435 = vpop.f32.mrf.mxu0
  %4436 = vdwg.mxu0
  %4437 = vmatprep.subr.bf16.mxu0 %v4363
  %4438 = vmatpush1.bf16.msra.mxu0 %v4362
  %4439 = vmatprep.subr.bf16.mxu0 %v4359
  %4440 = vmatpush1.bf16.msra.mxu0 %v4358
  %4441 = vmatprep.subr.bf16.mxu0 %v4355
  %4442 = vmatpush1.bf16.msra.mxu0 %v4354
  %4443 = vmatprep.subr.bf16.mxu0 %v4351
  %4444 = vmatpush1.bf16.msra.mxu0 %v4350
  %4445 = vmatprep.subr.bf16.mxu0 %v4347
  %4446 = vmatpush1.bf16.msra.mxu0 %v4346
  %4447 = vmatprep.subr.bf16.mxu0 %v4343
  %4448 = vmatpush1.bf16.msra.mxu0 %v4342
  %4449 = vmatprep.subr.bf16.mxu0 %v4339
  %4450 = vmatpush1.bf16.msra.mxu0 %v4338
  %4451 = vmatprep.subr.bf16.mxu0 %v4335
  %4452 = vmatpush1.bf16.msra.mxu0 %v4334
  %4453 = vmatprep.subr.bf16.mxu0 0
  %4454 = vmatpush2.bf16.msra.mxu0 0
  %4455 = vmatprep.subr.bf16.mxu0 0
  %4456 = vmatpush2.bf16.msra.mxu0 0
  %4457 = vmatprep.subr.bf16.mxu0 0
  %4458 = vmatpush2.bf16.msra.mxu0 0
  %4459 = vmatprep.subr.bf16.mxu0 0
  %4460 = vmatpush2.bf16.msra.mxu0 0
  %4461 = vmatprep.subr.bf16.mxu0 0
  %4462 = vmatpush2.bf16.msra.mxu0 0
  %4463 = vmatprep.subr.bf16.mxu0 0
  %4464 = vmatpush2.bf16.msra.mxu0 0
  %4465 = vmatprep.subr.bf16.mxu0 0
  %4466 = vmatpush2.bf16.msra.mxu0 0
  %4467 = vmatprep.subr.bf16.mxu0 0
  %4468 = vmatpush2.bf16.msra.mxu0 0
  %4469 = vmatprep.mubr.bf16.mxu0 0
  %4470 = vmatmul.mubr.bf16.gmra.mxu0 %v4203
  %v4471 = vpop.f32.mrf.mxu0
  %v4472 = vadd.f32 0.0, %v4471
  %v4473 = vpop.f32.mrf.mxu0
  %v4474 = vadd.f32 0.0, %v4473
  %v4475 = vpop.f32.mrf.mxu0
  %v4476 = vpop.f32.mrf.mxu0
  %4477 = vdwg.mxu0
  %v4478 = vadd.f32 %v4199, %v4431
  %v4479 = vadd.f32 %v4200, %v4433
  %v4480 = vadd.f32 %v4201, %v4472
  %v4481 = vadd.f32 %v4202, %v4474
  %v4482 = vxor.u32 %v4478, 2147483648
  %v4483 = vmul.f32 %v4482, 1.442695
  %v4484 = vpow.pop %v4483
  %v4485 = vadd.f32 %v4484, 1.0
  %v4486 = vrcp.pop %v4485
  %v4487 = vmul.f32 1.0, %v4486
  %v4488 = vxor.u32 %v4479, 2147483648
  %v4489 = vmul.f32 %v4488, 1.442695
  %v4490 = vpow.pop %v4489
  %v4491 = vadd.f32 %v4490, 1.0
  %v4492 = vrcp.pop %v4491
  %v4493 = vmul.f32 1.0, %v4492
  %v4494 = vtanh.pop %v4480
  %v4495 = vxor.u32 %v4481, 2147483648
  %v4496 = vmul.f32 %v4495, 1.442695
  %v4497 = vpow.pop %v4496
  %v4498 = vadd.f32 %v4497, 1.0
  %v4499 = vrcp.pop %v4498
  %v4500 = vmul.f32 1.0, %v4499
  %v4501 = vmul.f32 %v4493, %v4194
  %v4502 = vmul.f32 %v4487, %v4494
  %v4503 = vadd.f32 %v4501, %v4502
  %v4504 = vtanh.pop %v4503
  %v4505 = vmul.f32 %v4500, %v4504
  %s4506 = sadd.s32 %s25, 13
  %v4507 = vstv %s4506
  %vm4508 = vcmp.lt.s32.totalorder %v4507, %v24
  %v4509 = vsel %vm4508, 1, 0
  %4510 = vset.pattern.permute.xlu0 0
  %4511 = vperm.xlu0 %4510, %v4509
  %v4512 = vpop.permute.xlu0 %4511
  %vm4513 = vcmp.eq.s32.totalorder %v4512, 1
  %v4514 = vsel %vm4513, %v4505, %v4193
  %v4515 = vsel %vm4513, %v4503, %v4194
  %v4516 = vsel %vm4513, %v4505, 0.0
  %s4517 = scalar_lea.vmem %s3, 104
  %4518 = vst [vmem:[%s4517] sm:$0xff] %v4516
  %s4519 = scalar_lea.vmem %s1, 448
  %v4520 = vld [vmem:[%s4519] sm:$0xff]
  %v4521 = vld [vmem:[%s4519 + $0x8] sm:$0xff]
  %v4522 = vld [vmem:[%s4519 + $0x10] sm:$0xff]
  %v4523 = vld [vmem:[%s4519 + $0x18] sm:$0xff]
  %v4524 = vpack.c.bf16 %v4514, %v4514
  %v4525 = vld [vmem:[%s2] sm:$0xff]
  %v4526 = vld [vmem:[%s2 + $0x8] sm:$0xff]
  %v4527 = vld [vmem:[%s2 + $0x10] sm:$0xff]
  %v4528 = vld [vmem:[%s2 + $0x18] sm:$0xff]
  %v4529 = vld [vmem:[%s2 + $0x20] sm:$0xff]
  %v4530 = vld [vmem:[%s2 + $0x28] sm:$0xff]
  %v4531 = vld [vmem:[%s2 + $0x30] sm:$0xff]
  %v4532 = vld [vmem:[%s2 + $0x38] sm:$0xff]
  %v4533 = vld [vmem:[%s2 + $0x40] sm:$0xff]
  %v4534 = vld [vmem:[%s2 + $0x48] sm:$0xff]
  %v4535 = vld [vmem:[%s2 + $0x50] sm:$0xff]
  %v4536 = vld [vmem:[%s2 + $0x58] sm:$0xff]
  %v4537 = vld [vmem:[%s2 + $0x60] sm:$0xff]
  %v4538 = vld [vmem:[%s2 + $0x68] sm:$0xff]
  %v4539 = vld [vmem:[%s2 + $0x70] sm:$0xff]
  %v4540 = vld [vmem:[%s2 + $0x78] sm:$0xff]
  %v4541 = vld [vmem:[%s2 + $0x80] sm:$0xff]
  %v4542 = vld [vmem:[%s2 + $0x88] sm:$0xff]
  %v4543 = vld [vmem:[%s2 + $0x90] sm:$0xff]
  %v4544 = vld [vmem:[%s2 + $0x98] sm:$0xff]
  %v4545 = vld [vmem:[%s2 + $0xa0] sm:$0xff]
  %v4546 = vld [vmem:[%s2 + $0xa8] sm:$0xff]
  %v4547 = vld [vmem:[%s2 + $0xb0] sm:$0xff]
  %v4548 = vld [vmem:[%s2 + $0xb8] sm:$0xff]
  %v4549 = vld [vmem:[%s2 + $0xc0] sm:$0xff]
  %v4550 = vld [vmem:[%s2 + $0xc8] sm:$0xff]
  %v4551 = vld [vmem:[%s2 + $0xd0] sm:$0xff]
  %v4552 = vld [vmem:[%s2 + $0xd8] sm:$0xff]
  %v4553 = vld [vmem:[%s2 + $0xe0] sm:$0xff]
  %v4554 = vld [vmem:[%s2 + $0xe8] sm:$0xff]
  %v4555 = vld [vmem:[%s2 + $0xf0] sm:$0xff]
  %v4556 = vld [vmem:[%s2 + $0xf8] sm:$0xff]
  %v4589 = vunpack.c.l.b16 %v4525
  %v4590 = vunpack.c.h.b16 %v4525
  %v4591 = vunpack.c.l.b16 %v4526
  %v4592 = vunpack.c.h.b16 %v4526
  %v4593 = vunpack.c.l.b16 %v4527
  %v4594 = vunpack.c.h.b16 %v4527
  %v4595 = vunpack.c.l.b16 %v4528
  %v4596 = vunpack.c.h.b16 %v4528
  %v4597 = vunpack.c.l.b16 %v4529
  %v4598 = vunpack.c.h.b16 %v4529
  %v4599 = vunpack.c.l.b16 %v4530
  %v4600 = vunpack.c.h.b16 %v4530
  %v4601 = vunpack.c.l.b16 %v4531
  %v4602 = vunpack.c.h.b16 %v4531
  %v4603 = vunpack.c.l.b16 %v4532
  %v4604 = vunpack.c.h.b16 %v4532
  %v4605 = vunpack.c.l.b16 %v4533
  %v4606 = vunpack.c.h.b16 %v4533
  %v4607 = vunpack.c.l.b16 %v4534
  %v4608 = vunpack.c.h.b16 %v4534
  %v4609 = vunpack.c.l.b16 %v4535
  %v4610 = vunpack.c.h.b16 %v4535
  %v4611 = vunpack.c.l.b16 %v4536
  %v4612 = vunpack.c.h.b16 %v4536
  %v4613 = vunpack.c.l.b16 %v4537
  %v4614 = vunpack.c.h.b16 %v4537
  %v4615 = vunpack.c.l.b16 %v4538
  %v4616 = vunpack.c.h.b16 %v4538
  %v4617 = vunpack.c.l.b16 %v4539
  %v4618 = vunpack.c.h.b16 %v4539
  %v4619 = vunpack.c.l.b16 %v4540
  %v4620 = vunpack.c.h.b16 %v4540
  %v4621 = vunpack.c.l.b16 %v4541
  %v4622 = vunpack.c.h.b16 %v4541
  %v4623 = vunpack.c.l.b16 %v4542
  %v4624 = vunpack.c.h.b16 %v4542
  %v4625 = vunpack.c.l.b16 %v4543
  %v4626 = vunpack.c.h.b16 %v4543
  %v4627 = vunpack.c.l.b16 %v4544
  %v4628 = vunpack.c.h.b16 %v4544
  %v4629 = vunpack.c.l.b16 %v4545
  %v4630 = vunpack.c.h.b16 %v4545
  %v4631 = vunpack.c.l.b16 %v4546
  %v4632 = vunpack.c.h.b16 %v4546
  %v4633 = vunpack.c.l.b16 %v4547
  %v4634 = vunpack.c.h.b16 %v4547
  %v4635 = vunpack.c.l.b16 %v4548
  %v4636 = vunpack.c.h.b16 %v4548
  %v4637 = vunpack.c.l.b16 %v4549
  %v4638 = vunpack.c.h.b16 %v4549
  %v4639 = vunpack.c.l.b16 %v4550
  %v4640 = vunpack.c.h.b16 %v4550
  %v4641 = vunpack.c.l.b16 %v4551
  %v4642 = vunpack.c.h.b16 %v4551
  %v4643 = vunpack.c.l.b16 %v4552
  %v4644 = vunpack.c.h.b16 %v4552
  %v4645 = vunpack.c.l.b16 %v4553
  %v4646 = vunpack.c.h.b16 %v4553
  %v4647 = vunpack.c.l.b16 %v4554
  %v4648 = vunpack.c.h.b16 %v4554
  %v4649 = vunpack.c.l.b16 %v4555
  %v4650 = vunpack.c.h.b16 %v4555
  %v4651 = vunpack.c.l.b16 %v4556
  %v4652 = vunpack.c.h.b16 %v4556
  %v4653 = vpack.c.b16 %v4593, %v4589
  %v4654 = vpack.c.b16 %v4594, %v4590
  %v4655 = vpack.c.b16 %v4595, %v4591
  %v4656 = vpack.c.b16 %v4596, %v4592
  %v4657 = vpack.c.b16 %v4601, %v4597
  %v4658 = vpack.c.b16 %v4602, %v4598
  %v4659 = vpack.c.b16 %v4603, %v4599
  %v4660 = vpack.c.b16 %v4604, %v4600
  %v4661 = vpack.c.b16 %v4609, %v4605
  %v4662 = vpack.c.b16 %v4610, %v4606
  %v4663 = vpack.c.b16 %v4611, %v4607
  %v4664 = vpack.c.b16 %v4612, %v4608
  %v4665 = vpack.c.b16 %v4617, %v4613
  %v4666 = vpack.c.b16 %v4618, %v4614
  %v4667 = vpack.c.b16 %v4619, %v4615
  %v4668 = vpack.c.b16 %v4620, %v4616
  %v4669 = vpack.c.b16 %v4625, %v4621
  %v4670 = vpack.c.b16 %v4626, %v4622
  %v4671 = vpack.c.b16 %v4627, %v4623
  %v4672 = vpack.c.b16 %v4628, %v4624
  %v4673 = vpack.c.b16 %v4633, %v4629
  %v4674 = vpack.c.b16 %v4634, %v4630
  %v4675 = vpack.c.b16 %v4635, %v4631
  %v4676 = vpack.c.b16 %v4636, %v4632
  %v4677 = vpack.c.b16 %v4641, %v4637
  %v4678 = vpack.c.b16 %v4642, %v4638
  %v4679 = vpack.c.b16 %v4643, %v4639
  %v4680 = vpack.c.b16 %v4644, %v4640
  %v4681 = vpack.c.b16 %v4649, %v4645
  %v4682 = vpack.c.b16 %v4650, %v4646
  %v4683 = vpack.c.b16 %v4651, %v4647
  %v4684 = vpack.c.b16 %v4652, %v4648
  %4717 = vmatprep.subr.bf16.mxu0 %v4682
  %4718 = vmatpush1.bf16.msra.mxu0 %v4681
  %4719 = vmatprep.subr.bf16.mxu0 %v4678
  %4720 = vmatpush1.bf16.msra.mxu0 %v4677
  %4721 = vmatprep.subr.bf16.mxu0 %v4674
  %4722 = vmatpush1.bf16.msra.mxu0 %v4673
  %4723 = vmatprep.subr.bf16.mxu0 %v4670
  %4724 = vmatpush1.bf16.msra.mxu0 %v4669
  %4725 = vmatprep.subr.bf16.mxu0 %v4666
  %4726 = vmatpush1.bf16.msra.mxu0 %v4665
  %4727 = vmatprep.subr.bf16.mxu0 %v4662
  %4728 = vmatpush1.bf16.msra.mxu0 %v4661
  %4729 = vmatprep.subr.bf16.mxu0 %v4658
  %4730 = vmatpush1.bf16.msra.mxu0 %v4657
  %4731 = vmatprep.subr.bf16.mxu0 %v4654
  %4732 = vmatpush1.bf16.msra.mxu0 %v4653
  %4733 = vmatprep.subr.bf16.mxu0 0
  %4734 = vmatpush2.bf16.msra.mxu0 0
  %4735 = vmatprep.subr.bf16.mxu0 0
  %4736 = vmatpush2.bf16.msra.mxu0 0
  %4737 = vmatprep.subr.bf16.mxu0 0
  %4738 = vmatpush2.bf16.msra.mxu0 0
  %4739 = vmatprep.subr.bf16.mxu0 0
  %4740 = vmatpush2.bf16.msra.mxu0 0
  %4741 = vmatprep.subr.bf16.mxu0 0
  %4742 = vmatpush2.bf16.msra.mxu0 0
  %4743 = vmatprep.subr.bf16.mxu0 0
  %4744 = vmatpush2.bf16.msra.mxu0 0
  %4745 = vmatprep.subr.bf16.mxu0 0
  %4746 = vmatpush2.bf16.msra.mxu0 0
  %4747 = vmatprep.subr.bf16.mxu0 0
  %4748 = vmatpush2.bf16.msra.mxu0 0
  %4749 = vmatprep.mubr.bf16.mxu0 0
  %4750 = vmatmul.mubr.bf16.gmra.mxu0 %v4524
  %v4751 = vpop.f32.mrf.mxu0
  %v4752 = vadd.f32 0.0, %v4751
  %v4753 = vpop.f32.mrf.mxu0
  %v4754 = vadd.f32 0.0, %v4753
  %v4755 = vpop.f32.mrf.mxu0
  %v4756 = vpop.f32.mrf.mxu0
  %4757 = vdwg.mxu0
  %4758 = vmatprep.subr.bf16.mxu0 %v4684
  %4759 = vmatpush1.bf16.msra.mxu0 %v4683
  %4760 = vmatprep.subr.bf16.mxu0 %v4680
  %4761 = vmatpush1.bf16.msra.mxu0 %v4679
  %4762 = vmatprep.subr.bf16.mxu0 %v4676
  %4763 = vmatpush1.bf16.msra.mxu0 %v4675
  %4764 = vmatprep.subr.bf16.mxu0 %v4672
  %4765 = vmatpush1.bf16.msra.mxu0 %v4671
  %4766 = vmatprep.subr.bf16.mxu0 %v4668
  %4767 = vmatpush1.bf16.msra.mxu0 %v4667
  %4768 = vmatprep.subr.bf16.mxu0 %v4664
  %4769 = vmatpush1.bf16.msra.mxu0 %v4663
  %4770 = vmatprep.subr.bf16.mxu0 %v4660
  %4771 = vmatpush1.bf16.msra.mxu0 %v4659
  %4772 = vmatprep.subr.bf16.mxu0 %v4656
  %4773 = vmatpush1.bf16.msra.mxu0 %v4655
  %4774 = vmatprep.subr.bf16.mxu0 0
  %4775 = vmatpush2.bf16.msra.mxu0 0
  %4776 = vmatprep.subr.bf16.mxu0 0
  %4777 = vmatpush2.bf16.msra.mxu0 0
  %4778 = vmatprep.subr.bf16.mxu0 0
  %4779 = vmatpush2.bf16.msra.mxu0 0
  %4780 = vmatprep.subr.bf16.mxu0 0
  %4781 = vmatpush2.bf16.msra.mxu0 0
  %4782 = vmatprep.subr.bf16.mxu0 0
  %4783 = vmatpush2.bf16.msra.mxu0 0
  %4784 = vmatprep.subr.bf16.mxu0 0
  %4785 = vmatpush2.bf16.msra.mxu0 0
  %4786 = vmatprep.subr.bf16.mxu0 0
  %4787 = vmatpush2.bf16.msra.mxu0 0
  %4788 = vmatprep.subr.bf16.mxu0 0
  %4789 = vmatpush2.bf16.msra.mxu0 0
  %4790 = vmatprep.mubr.bf16.mxu0 0
  %4791 = vmatmul.mubr.bf16.gmra.mxu0 %v4524
  %v4792 = vpop.f32.mrf.mxu0
  %v4793 = vadd.f32 0.0, %v4792
  %v4794 = vpop.f32.mrf.mxu0
  %v4795 = vadd.f32 0.0, %v4794
  %v4796 = vpop.f32.mrf.mxu0
  %v4797 = vpop.f32.mrf.mxu0
  %4798 = vdwg.mxu0
  %v4799 = vadd.f32 %v4520, %v4752
  %v4800 = vadd.f32 %v4521, %v4754
  %v4801 = vadd.f32 %v4522, %v4793
  %v4802 = vadd.f32 %v4523, %v4795
  %v4803 = vxor.u32 %v4799, 2147483648
  %v4804 = vmul.f32 %v4803, 1.442695
  %v4805 = vpow.pop %v4804
  %v4806 = vadd.f32 %v4805, 1.0
  %v4807 = vrcp.pop %v4806
  %v4808 = vmul.f32 1.0, %v4807
  %v4809 = vxor.u32 %v4800, 2147483648
  %v4810 = vmul.f32 %v4809, 1.442695
  %v4811 = vpow.pop %v4810
  %v4812 = vadd.f32 %v4811, 1.0
  %v4813 = vrcp.pop %v4812
  %v4814 = vmul.f32 1.0, %v4813
  %v4815 = vtanh.pop %v4801
  %v4816 = vxor.u32 %v4802, 2147483648
  %v4817 = vmul.f32 %v4816, 1.442695
  %v4818 = vpow.pop %v4817
  %v4819 = vadd.f32 %v4818, 1.0
  %v4820 = vrcp.pop %v4819
  %v4821 = vmul.f32 1.0, %v4820
  %v4822 = vmul.f32 %v4814, %v4515
  %v4823 = vmul.f32 %v4808, %v4815
  %v4824 = vadd.f32 %v4822, %v4823
  %v4825 = vtanh.pop %v4824
  %v4826 = vmul.f32 %v4821, %v4825
  %s4827 = sadd.s32 %s25, 14
  %v4828 = vstv %s4827
  %vm4829 = vcmp.lt.s32.totalorder %v4828, %v24
  %v4830 = vsel %vm4829, 1, 0
  %4831 = vset.pattern.permute.xlu0 0
  %4832 = vperm.xlu0 %4831, %v4830
  %v4833 = vpop.permute.xlu0 %4832
  %vm4834 = vcmp.eq.s32.totalorder %v4833, 1
  %v4835 = vsel %vm4834, %v4826, %v4514
  %v4836 = vsel %vm4834, %v4824, %v4515
  %v4837 = vsel %vm4834, %v4826, 0.0
  %s4838 = scalar_lea.vmem %s3, 112
  %4839 = vst [vmem:[%s4838] sm:$0xff] %v4837
  %s4840 = scalar_lea.vmem %s1, 480
  %v4841 = vld [vmem:[%s4840] sm:$0xff]
  %v4842 = vld [vmem:[%s4840 + $0x8] sm:$0xff]
  %v4843 = vld [vmem:[%s4840 + $0x10] sm:$0xff]
  %v4844 = vld [vmem:[%s4840 + $0x18] sm:$0xff]
  %v4845 = vpack.c.bf16 %v4835, %v4835
  %v4846 = vld [vmem:[%s2] sm:$0xff]
  %v4847 = vld [vmem:[%s2 + $0x8] sm:$0xff]
  %v4848 = vld [vmem:[%s2 + $0x10] sm:$0xff]
  %v4849 = vld [vmem:[%s2 + $0x18] sm:$0xff]
  %v4850 = vld [vmem:[%s2 + $0x20] sm:$0xff]
  %v4851 = vld [vmem:[%s2 + $0x28] sm:$0xff]
  %v4852 = vld [vmem:[%s2 + $0x30] sm:$0xff]
  %v4853 = vld [vmem:[%s2 + $0x38] sm:$0xff]
  %v4854 = vld [vmem:[%s2 + $0x40] sm:$0xff]
  %v4855 = vld [vmem:[%s2 + $0x48] sm:$0xff]
  %v4856 = vld [vmem:[%s2 + $0x50] sm:$0xff]
  %v4857 = vld [vmem:[%s2 + $0x58] sm:$0xff]
  %v4858 = vld [vmem:[%s2 + $0x60] sm:$0xff]
  %v4859 = vld [vmem:[%s2 + $0x68] sm:$0xff]
  %v4860 = vld [vmem:[%s2 + $0x70] sm:$0xff]
  %v4861 = vld [vmem:[%s2 + $0x78] sm:$0xff]
  %v4862 = vld [vmem:[%s2 + $0x80] sm:$0xff]
  %v4863 = vld [vmem:[%s2 + $0x88] sm:$0xff]
  %v4864 = vld [vmem:[%s2 + $0x90] sm:$0xff]
  %v4865 = vld [vmem:[%s2 + $0x98] sm:$0xff]
  %v4866 = vld [vmem:[%s2 + $0xa0] sm:$0xff]
  %v4867 = vld [vmem:[%s2 + $0xa8] sm:$0xff]
  %v4868 = vld [vmem:[%s2 + $0xb0] sm:$0xff]
  %v4869 = vld [vmem:[%s2 + $0xb8] sm:$0xff]
  %v4870 = vld [vmem:[%s2 + $0xc0] sm:$0xff]
  %v4871 = vld [vmem:[%s2 + $0xc8] sm:$0xff]
  %v4872 = vld [vmem:[%s2 + $0xd0] sm:$0xff]
  %v4873 = vld [vmem:[%s2 + $0xd8] sm:$0xff]
  %v4874 = vld [vmem:[%s2 + $0xe0] sm:$0xff]
  %v4875 = vld [vmem:[%s2 + $0xe8] sm:$0xff]
  %v4876 = vld [vmem:[%s2 + $0xf0] sm:$0xff]
  %v4877 = vld [vmem:[%s2 + $0xf8] sm:$0xff]
  %v4910 = vunpack.c.l.b16 %v4846
  %v4911 = vunpack.c.h.b16 %v4846
  %v4912 = vunpack.c.l.b16 %v4847
  %v4913 = vunpack.c.h.b16 %v4847
  %v4914 = vunpack.c.l.b16 %v4848
  %v4915 = vunpack.c.h.b16 %v4848
  %v4916 = vunpack.c.l.b16 %v4849
  %v4917 = vunpack.c.h.b16 %v4849
  %v4918 = vunpack.c.l.b16 %v4850
  %v4919 = vunpack.c.h.b16 %v4850
  %v4920 = vunpack.c.l.b16 %v4851
  %v4921 = vunpack.c.h.b16 %v4851
  %v4922 = vunpack.c.l.b16 %v4852
  %v4923 = vunpack.c.h.b16 %v4852
  %v4924 = vunpack.c.l.b16 %v4853
  %v4925 = vunpack.c.h.b16 %v4853
  %v4926 = vunpack.c.l.b16 %v4854
  %v4927 = vunpack.c.h.b16 %v4854
  %v4928 = vunpack.c.l.b16 %v4855
  %v4929 = vunpack.c.h.b16 %v4855
  %v4930 = vunpack.c.l.b16 %v4856
  %v4931 = vunpack.c.h.b16 %v4856
  %v4932 = vunpack.c.l.b16 %v4857
  %v4933 = vunpack.c.h.b16 %v4857
  %v4934 = vunpack.c.l.b16 %v4858
  %v4935 = vunpack.c.h.b16 %v4858
  %v4936 = vunpack.c.l.b16 %v4859
  %v4937 = vunpack.c.h.b16 %v4859
  %v4938 = vunpack.c.l.b16 %v4860
  %v4939 = vunpack.c.h.b16 %v4860
  %v4940 = vunpack.c.l.b16 %v4861
  %v4941 = vunpack.c.h.b16 %v4861
  %v4942 = vunpack.c.l.b16 %v4862
  %v4943 = vunpack.c.h.b16 %v4862
  %v4944 = vunpack.c.l.b16 %v4863
  %v4945 = vunpack.c.h.b16 %v4863
  %v4946 = vunpack.c.l.b16 %v4864
  %v4947 = vunpack.c.h.b16 %v4864
  %v4948 = vunpack.c.l.b16 %v4865
  %v4949 = vunpack.c.h.b16 %v4865
  %v4950 = vunpack.c.l.b16 %v4866
  %v4951 = vunpack.c.h.b16 %v4866
  %v4952 = vunpack.c.l.b16 %v4867
  %v4953 = vunpack.c.h.b16 %v4867
  %v4954 = vunpack.c.l.b16 %v4868
  %v4955 = vunpack.c.h.b16 %v4868
  %v4956 = vunpack.c.l.b16 %v4869
  %v4957 = vunpack.c.h.b16 %v4869
  %v4958 = vunpack.c.l.b16 %v4870
  %v4959 = vunpack.c.h.b16 %v4870
  %v4960 = vunpack.c.l.b16 %v4871
  %v4961 = vunpack.c.h.b16 %v4871
  %v4962 = vunpack.c.l.b16 %v4872
  %v4963 = vunpack.c.h.b16 %v4872
  %v4964 = vunpack.c.l.b16 %v4873
  %v4965 = vunpack.c.h.b16 %v4873
  %v4966 = vunpack.c.l.b16 %v4874
  %v4967 = vunpack.c.h.b16 %v4874
  %v4968 = vunpack.c.l.b16 %v4875
  %v4969 = vunpack.c.h.b16 %v4875
  %v4970 = vunpack.c.l.b16 %v4876
  %v4971 = vunpack.c.h.b16 %v4876
  %v4972 = vunpack.c.l.b16 %v4877
  %v4973 = vunpack.c.h.b16 %v4877
  %v4974 = vpack.c.b16 %v4914, %v4910
  %v4975 = vpack.c.b16 %v4915, %v4911
  %v4976 = vpack.c.b16 %v4916, %v4912
  %v4977 = vpack.c.b16 %v4917, %v4913
  %v4978 = vpack.c.b16 %v4922, %v4918
  %v4979 = vpack.c.b16 %v4923, %v4919
  %v4980 = vpack.c.b16 %v4924, %v4920
  %v4981 = vpack.c.b16 %v4925, %v4921
  %v4982 = vpack.c.b16 %v4930, %v4926
  %v4983 = vpack.c.b16 %v4931, %v4927
  %v4984 = vpack.c.b16 %v4932, %v4928
  %v4985 = vpack.c.b16 %v4933, %v4929
  %v4986 = vpack.c.b16 %v4938, %v4934
  %v4987 = vpack.c.b16 %v4939, %v4935
  %v4988 = vpack.c.b16 %v4940, %v4936
  %v4989 = vpack.c.b16 %v4941, %v4937
  %v4990 = vpack.c.b16 %v4946, %v4942
  %v4991 = vpack.c.b16 %v4947, %v4943
  %v4992 = vpack.c.b16 %v4948, %v4944
  %v4993 = vpack.c.b16 %v4949, %v4945
  %v4994 = vpack.c.b16 %v4954, %v4950
  %v4995 = vpack.c.b16 %v4955, %v4951
  %v4996 = vpack.c.b16 %v4956, %v4952
  %v4997 = vpack.c.b16 %v4957, %v4953
  %v4998 = vpack.c.b16 %v4962, %v4958
  %v4999 = vpack.c.b16 %v4963, %v4959
  %v5000 = vpack.c.b16 %v4964, %v4960
  %v5001 = vpack.c.b16 %v4965, %v4961
  %v5002 = vpack.c.b16 %v4970, %v4966
  %v5003 = vpack.c.b16 %v4971, %v4967
  %v5004 = vpack.c.b16 %v4972, %v4968
  %v5005 = vpack.c.b16 %v4973, %v4969
  %5038 = vmatprep.subr.bf16.mxu0 %v5003
  %5039 = vmatpush1.bf16.msra.mxu0 %v5002
  %5040 = vmatprep.subr.bf16.mxu0 %v4999
  %5041 = vmatpush1.bf16.msra.mxu0 %v4998
  %5042 = vmatprep.subr.bf16.mxu0 %v4995
  %5043 = vmatpush1.bf16.msra.mxu0 %v4994
  %5044 = vmatprep.subr.bf16.mxu0 %v4991
  %5045 = vmatpush1.bf16.msra.mxu0 %v4990
  %5046 = vmatprep.subr.bf16.mxu0 %v4987
  %5047 = vmatpush1.bf16.msra.mxu0 %v4986
  %5048 = vmatprep.subr.bf16.mxu0 %v4983
  %5049 = vmatpush1.bf16.msra.mxu0 %v4982
  %5050 = vmatprep.subr.bf16.mxu0 %v4979
  %5051 = vmatpush1.bf16.msra.mxu0 %v4978
  %5052 = vmatprep.subr.bf16.mxu0 %v4975
  %5053 = vmatpush1.bf16.msra.mxu0 %v4974
  %5054 = vmatprep.subr.bf16.mxu0 0
  %5055 = vmatpush2.bf16.msra.mxu0 0
  %5056 = vmatprep.subr.bf16.mxu0 0
  %5057 = vmatpush2.bf16.msra.mxu0 0
  %5058 = vmatprep.subr.bf16.mxu0 0
  %5059 = vmatpush2.bf16.msra.mxu0 0
  %5060 = vmatprep.subr.bf16.mxu0 0
  %5061 = vmatpush2.bf16.msra.mxu0 0
  %5062 = vmatprep.subr.bf16.mxu0 0
  %5063 = vmatpush2.bf16.msra.mxu0 0
  %5064 = vmatprep.subr.bf16.mxu0 0
  %5065 = vmatpush2.bf16.msra.mxu0 0
  %5066 = vmatprep.subr.bf16.mxu0 0
  %5067 = vmatpush2.bf16.msra.mxu0 0
  %5068 = vmatprep.subr.bf16.mxu0 0
  %5069 = vmatpush2.bf16.msra.mxu0 0
  %5070 = vmatprep.mubr.bf16.mxu0 0
  %5071 = vmatmul.mubr.bf16.gmra.mxu0 %v4845
  %v5072 = vpop.f32.mrf.mxu0
  %v5073 = vadd.f32 0.0, %v5072
  %v5074 = vpop.f32.mrf.mxu0
  %v5075 = vadd.f32 0.0, %v5074
  %v5076 = vpop.f32.mrf.mxu0
  %v5077 = vpop.f32.mrf.mxu0
  %5078 = vdwg.mxu0
  %5079 = vmatprep.subr.bf16.mxu0 %v5005
  %5080 = vmatpush1.bf16.msra.mxu0 %v5004
  %5081 = vmatprep.subr.bf16.mxu0 %v5001
  %5082 = vmatpush1.bf16.msra.mxu0 %v5000
  %5083 = vmatprep.subr.bf16.mxu0 %v4997
  %5084 = vmatpush1.bf16.msra.mxu0 %v4996
  %5085 = vmatprep.subr.bf16.mxu0 %v4993
  %5086 = vmatpush1.bf16.msra.mxu0 %v4992
  %5087 = vmatprep.subr.bf16.mxu0 %v4989
  %5088 = vmatpush1.bf16.msra.mxu0 %v4988
  %5089 = vmatprep.subr.bf16.mxu0 %v4985
  %5090 = vmatpush1.bf16.msra.mxu0 %v4984
  %5091 = vmatprep.subr.bf16.mxu0 %v4981
  %5092 = vmatpush1.bf16.msra.mxu0 %v4980
  %5093 = vmatprep.subr.bf16.mxu0 %v4977
  %5094 = vmatpush1.bf16.msra.mxu0 %v4976
  %5095 = vmatprep.subr.bf16.mxu0 0
  %5096 = vmatpush2.bf16.msra.mxu0 0
  %5097 = vmatprep.subr.bf16.mxu0 0
  %5098 = vmatpush2.bf16.msra.mxu0 0
  %5099 = vmatprep.subr.bf16.mxu0 0
  %5100 = vmatpush2.bf16.msra.mxu0 0
  %5101 = vmatprep.subr.bf16.mxu0 0
  %5102 = vmatpush2.bf16.msra.mxu0 0
  %5103 = vmatprep.subr.bf16.mxu0 0
  %5104 = vmatpush2.bf16.msra.mxu0 0
  %5105 = vmatprep.subr.bf16.mxu0 0
  %5106 = vmatpush2.bf16.msra.mxu0 0
  %5107 = vmatprep.subr.bf16.mxu0 0
  %5108 = vmatpush2.bf16.msra.mxu0 0
  %5109 = vmatprep.subr.bf16.mxu0 0
  %5110 = vmatpush2.bf16.msra.mxu0 0
  %5111 = vmatprep.mubr.bf16.mxu0 0
  %5112 = vmatmul.mubr.bf16.gmra.mxu0 %v4845
  %v5113 = vpop.f32.mrf.mxu0
  %v5114 = vadd.f32 0.0, %v5113
  %v5115 = vpop.f32.mrf.mxu0
  %v5116 = vadd.f32 0.0, %v5115
  %v5117 = vpop.f32.mrf.mxu0
  %v5118 = vpop.f32.mrf.mxu0
  %5119 = vdwg.mxu0
  %v5120 = vadd.f32 %v4841, %v5073
  %v5121 = vadd.f32 %v4842, %v5075
  %v5122 = vadd.f32 %v4843, %v5114
  %v5123 = vadd.f32 %v4844, %v5116
  %v5124 = vxor.u32 %v5120, 2147483648
  %v5125 = vmul.f32 %v5124, 1.442695
  %v5126 = vpow.pop %v5125
  %v5127 = vadd.f32 %v5126, 1.0
  %v5128 = vrcp.pop %v5127
  %v5129 = vmul.f32 1.0, %v5128
  %v5130 = vxor.u32 %v5121, 2147483648
  %v5131 = vmul.f32 %v5130, 1.442695
  %v5132 = vpow.pop %v5131
  %v5133 = vadd.f32 %v5132, 1.0
  %v5134 = vrcp.pop %v5133
  %v5135 = vmul.f32 1.0, %v5134
  %v5136 = vtanh.pop %v5122
  %v5137 = vxor.u32 %v5123, 2147483648
  %v5138 = vmul.f32 %v5137, 1.442695
  %v5139 = vpow.pop %v5138
  %v5140 = vadd.f32 %v5139, 1.0
  %v5141 = vrcp.pop %v5140
  %v5142 = vmul.f32 1.0, %v5141
  %v5143 = vmul.f32 %v5135, %v4836
  %v5144 = vmul.f32 %v5129, %v5136
  %v5145 = vadd.f32 %v5143, %v5144
  %v5146 = vtanh.pop %v5145
  %v5147 = vmul.f32 %v5142, %v5146
  %s5148 = sadd.s32 %s25, 15
  %v5149 = vstv %s5148
  %vm5150 = vcmp.lt.s32.totalorder %v5149, %v24
  %v5151 = vsel %vm5150, 1, 0
  %5152 = vset.pattern.permute.xlu0 0
  %5153 = vperm.xlu0 %5152, %v5151
  %v5154 = vpop.permute.xlu0 %5153
  %vm5155 = vcmp.eq.s32.totalorder %v5154, 1
  %v5156 = vsel %vm5155, %v5147, %v4835
  %v5157 = vsel %vm5155, %v5145, %v4836
  %v5158 = vsel %vm5155, %v5147, 0.0
  %s5159 = scalar_lea.vmem %s3, 120
  %5160 = vst [vmem:[%s5159] sm:$0xff] %v5158
  %5161 = vst [vmem:[#allocation2] sm:$0xff] %v5156
  %5162 = vst [vmem:[#allocation3] sm:$0xff] %v5157
  // Predicated region
  $region18: #{rnn_forward.6} parent=0 // pred_check
    %p5163 = pneg %p18
  $region19: #{rnn_forward.6} parent=0 // pred_check_branch
    %5165 = sbr.rel (%p5163) target = $region21
  $region20: #{rnn_forward.6} parent=0 // pred_region
    %5166 = vst [vmem:[%s4] sm:$0xff] %v5156
    %5167 = vst [vmem:[%s5] sm:$0xff] %v5157
  $region21: #{rnn_forward.6} parent=0 // pred_fallthru
    _
  // Predicated region
  $region22: #{rnn_forward.6} parent=0 // pred_check
    _
  $region23: #{rnn_forward.6} parent=0 // pred_check_branch
    %5169 = sbr.rel (0) target = $region25
  $region24: #{rnn_forward.6} parent=0 // pred_region
    _
  $region25: #{rnn_forward.6} parent=0 // pred_fallthru
    _
  // Predicated region
  $region26: #{rnn_forward.6} parent=0 // pred_check
    _
  $region27: #{rnn_forward.6} parent=0 // pred_check_branch
    %5171 = sbr.rel (0) target = $region29
  $region28: #{rnn_forward.6} parent=0 // pred_region
    _
  $region29: #{rnn_forward.6} parent=0 // pred_fallthru
    _
  // Predicated region
  $region30: #{rnn_forward.6} parent=0 // pred_check
    _
  $region31: #{rnn_forward.6} parent=0 // pred_check_branch
    %5173 = sbr.rel (0) target = $region33
  $region32: #{rnn_forward.6} parent=0 // pred_region
    _
  $region33: #{rnn_forward.6} parent=0 // pred_fallthru
    _
  // Predicated region
  $region34: #{rnn_forward.6} parent=0 // pred_check
    _
  $region35: #{rnn_forward.6} parent=0 // pred_check_branch
    %5175 = sbr.rel (0) target = $region37
  $region36: #{rnn_forward.6} parent=0 // pred_region
    _
  $region37: #{rnn_forward.6} parent=0 // pred_fallthru
    _
  // Predicated region
  $region38: #{rnn_forward.6} parent=0 // pred_check
    _
  $region39: #{rnn_forward.6} parent=0 // pred_check_branch
    %5177 = sbr.rel (0) target = $region41
  $region40: #{rnn_forward.6} parent=0 // pred_region
    _
  $region41: #{rnn_forward.6} parent=0 // pred_fallthru
    _
  // Predicated region
  $region42: #{rnn_forward.6} parent=0 // pred_check
    _
  $region43: #{rnn_forward.6} parent=0 // pred_check_branch
    %5179 = sbr.rel (0) target = $region45
  $region44: #{rnn_forward.6} parent=0 // pred_region
    _
  $region45: #{rnn_forward.6} parent=0 // pred_fallthru
    _

</llo_original>
